<compile_context>
chip_gen: v7x
topology: tpu7x:2x2x1
jax: 0.10.0
libtpu: 0.0.40
codegen_flags: <defaults>
</compile_context>

<pallas_src>
import functools

import jax
import jax.numpy as jnp
from jax.experimental import pallas as pl
from jax.experimental.pallas import tpu as pltpu

_LRELU_SLOPE = 0.01
_HEAD_PAD = 128  # lane-dense padded width for the tiny (256 x 3) head


# --------------------------------------------------------------------------
# Kernel: the entire MLP in a single invocation (weights VMEM-resident).
# --------------------------------------------------------------------------
def _fused_mlp_kernel(x_ref,
                      w1_ref, b1_ref,
                      w2_ref, b2_ref,
                      w3_ref, b3_ref,
                      w4_ref, b4_ref,
                      w5_ref, b5_ref,
                      o_ref):
    """Fused fc1..fc5 with folded BatchNorm and LeakyReLU.

    x_ref : (B, D_in)        bf16 activations
    wK_ref: (K_in, K_out)    bf16 weights (BN folded in; head zero-padded to 128)
    bK_ref: (1, K_out)       f32 bias (BN shift folded in)
    o_ref : (B, 128)         f32 padded logits (valid columns = [:, :3])
    """
    def dense(h, w_ref, b_ref):
        return jnp.dot(h, w_ref[...], preferred_element_type=jnp.float32) + b_ref[...]

    def lrelu(y):
        return jnp.where(y >= 0, y, _LRELU_SLOPE * y)

    h = x_ref[...]                                             # (B, D_in) bf16
    h = lrelu(dense(h, w1_ref, b1_ref)).astype(jnp.bfloat16)   # (B, 2048)
    h = lrelu(dense(h, w2_ref, b2_ref)).astype(jnp.bfloat16)   # (B, 1024)
    h = lrelu(dense(h, w3_ref, b3_ref)).astype(jnp.bfloat16)   # (B, 512)
    h = lrelu(dense(h, w4_ref, b4_ref)).astype(jnp.bfloat16)   # (B, 256)
    o_ref[...] = dense(h, w5_ref, b5_ref)                      # (B, 128) padded head


# --------------------------------------------------------------------------
# Wrapper
# --------------------------------------------------------------------------
def cnn_model_forward(x, folded_params, *, output_dim):
    """Forward pass of CNNModel (inference). `folded_params` from fold_params()."""
    B, _ = x.shape
    b_pad = ((B + 7) // 8) * 8                  # sublane-align the batch
    x_p = jnp.pad(x, ((0, b_pad - B), (0, 0))) if b_pad != B else x
    x_bf16 = x_p.astype(jnp.bfloat16)

    flat = []
    for w, b in folded_params:
        flat.extend([w, b])

    vmem = pl.BlockSpec(memory_space=pltpu.MemorySpace.VMEM)
    out = pl.pallas_call(
        _fused_mlp_kernel,
        out_shape=jax.ShapeDtypeStruct((b_pad, _HEAD_PAD), jnp.float32),
        in_specs=[vmem] * (1 + len(flat)),
        out_specs=vmem,
        compiler_params=pltpu.CompilerParams(
            vmem_limit_bytes=48 * 1024 * 1024),   # headroom for v7x (64 MiB VMEM)
    )(x_bf16, *flat)
    return out[:B, :output_dim]


# --------------------------------------------------------------------------
# Parameter prep (deterministic synthetic params matching CNNModel's shapes)
# --------------------------------------------------------------------------
def init_params(key, input_dim, output_dim=3):
    dims = [input_dim, 2048, 1024, 512, 256, output_dim]
    raw = []
    for li in range(5):
        k_in, k_out = dims[li], dims[li + 1]
        key, kw, kb, kg, kbeta, km, kv = jax.random.split(key, 7)
        w = jax.random.normal(kw, (k_in, k_out), jnp.float32) * 0.02
        b = jax.random.normal(kb, (k_out,), jnp.float32) * 0.01
        if li < 4:  # layers 1..4 have BatchNorm1d
            gamma = 1.0 + 0.1 * jax.random.normal(kg, (k_out,), jnp.float32)
            beta = 0.1 * jax.random.normal(kbeta, (k_out,), jnp.float32)
            rmean = 0.1 * jax.random.normal(km, (k_out,), jnp.float32)
            rvar = jax.random.uniform(kv, (k_out,), jnp.float32, 0.5, 1.5)
            bn = (gamma, beta, rmean, rvar)
        else:
            bn = None
        raw.append(dict(w=w, b=b, bn=bn))
    return raw


def fold_params(raw, *, eps=1e-5):
    """Fold eval-mode BN into the Linear; cast weights bf16; pad the head to 128."""
    folded = []
    for li, p in enumerate(raw):
        w, b = p["w"], p["b"]
        if p["bn"] is not None:
            gamma, beta, rmean, rvar = p["bn"]
            scale = gamma / jnp.sqrt(rvar + eps)
            w = w * scale[None, :]
            b = b * scale + (beta - rmean * scale)
        if li == 4:  # zero-pad the 3-wide head to a lane-dense 128 columns
            n = w.shape[1]
            w = jnp.pad(w, ((0, 0), (0, _HEAD_PAD - n)))
            b = jnp.pad(b, (0, _HEAD_PAD - n))
        folded.append((w.astype(jnp.bfloat16),
                       b.reshape(1, -1).astype(jnp.float32)))
    return folded


# --------------------------------------------------------------------------
# References
# --------------------------------------------------------------------------
def reference_f32(x, raw, *, eps=1e-5):
    """Full-precision semantic reference: Linear -> BN(eval) -> LeakyReLU."""
    h = x
    for p in raw:
        y = h @ p["w"] + p["b"]
        if p["bn"] is not None:
            gamma, beta, rmean, rvar = p["bn"]
            y = (y - rmean) / jnp.sqrt(rvar + eps) * gamma + beta
            y = jnp.where(y >= 0, y, _LRELU_SLOPE * y)
        h = y
    return h


def reference_bf16(x, folded, *, output_dim):
    """Dtype-matched reference (same bf16 weights / f32 accumulation as kernel)."""
    h = x.astype(jnp.bfloat16)
    for li, (w, b) in enumerate(folded):
        y = jnp.dot(h, w, preferred_element_type=jnp.float32) + b
        if li < 4:
            y = jnp.where(y >= 0, y, _LRELU_SLOPE * y)
            h = y.astype(jnp.bfloat16)
        else:
            h = y
    return h[:, :output_dim]


if __name__ == "__main__":
    B = 8            # batch (sublane aligned; wrapper pads arbitrary B)
    INPUT_DIM = 512  # TF-IDF feature dim (lane aligned)
    OUTPUT_DIM = 3

    key = jax.random.PRNGKey(0)
    kx, kp = jax.random.split(key)
    x = jax.random.normal(kx, (B, INPUT_DIM), jnp.float32)
    raw = init_params(kp, INPUT_DIM, OUTPUT_DIM)
    folded = fold_params(raw)

    fwd = jax.jit(functools.partial(cnn_model_forward, output_dim=OUTPUT_DIM))
    out = jax.block_until_ready(fwd(x, folded))
    assert out.shape == (B, OUTPUT_DIM), out.shape

    # Strict check: identical bf16/f32 dtype path in pure JAX.
    ref_b = reference_bf16(x, folded, output_dim=OUTPUT_DIM)
    assert jnp.allclose(out, ref_b, atol=2e-3, rtol=2e-3), "mismatch vs bf16 reference"

    # Semantic check: full-precision unfolded Linear+BN+LeakyReLU (slack covers
    # bf16 weight/activation quantization).
    ref_f = reference_f32(x, raw)
    assert jnp.allclose(out, ref_f, atol=2e-2, rtol=2e-2), "mismatch vs f32 reference"

    print("KERNEL_OK")
</pallas_src>

<mosaic_0001>
module attributes {stable_mosaic.version = 11 : i64} {
  func.func @_fused_mlp_kernel(%arg0: memref<8x512xbf16, #tpu.memory_space<vmem>>, %arg1: memref<512x2048xbf16, #tpu.memory_space<vmem>>, %arg2: memref<1x2048xf32, #tpu.memory_space<vmem>>, %arg3: memref<2048x1024xbf16, #tpu.memory_space<vmem>>, %arg4: memref<1x1024xf32, #tpu.memory_space<vmem>>, %arg5: memref<1024x512xbf16, #tpu.memory_space<vmem>>, %arg6: memref<1x512xf32, #tpu.memory_space<vmem>>, %arg7: memref<512x256xbf16, #tpu.memory_space<vmem>>, %arg8: memref<1x256xf32, #tpu.memory_space<vmem>>, %arg9: memref<256x128xbf16, #tpu.memory_space<vmem>>, %arg10: memref<1x128xf32, #tpu.memory_space<vmem>>, %arg11: memref<8x128xf32, #tpu.memory_space<vmem>>) attributes {dimension_semantics = [], scalar_prefetch = 0 : i64, scratch_operands = 0 : i64, tpu.core_type = #tpu.core_type<tc>} {
    %c0 = arith.constant 0 : index
    %c0_0 = arith.constant 0 : index
    %0 = vector.load %arg0[%c0, %c0_0] : memref<8x512xbf16, #tpu.memory_space<vmem>>, vector<8x512xbf16>
    %c0_1 = arith.constant 0 : index
    %c0_2 = arith.constant 0 : index
    %1 = vector.load %arg1[%c0_1, %c0_2] : memref<512x2048xbf16, #tpu.memory_space<vmem>>, vector<512x2048xbf16>
    %cst = arith.constant dense<0.000000e+00> : vector<8x2048xf32>
    %2 = tpu.matmul %0, %1, %cst {dimension_numbers = #tpu.dot_dimension_numbers<[1], [0], [0], [1], [0, 0, 1, 1], [], []>} : vector<8x512xbf16>, vector<512x2048xbf16>, vector<8x2048xf32> -> vector<8x2048xf32>
    %c0_3 = arith.constant 0 : index
    %c0_4 = arith.constant 0 : index
    %3 = vector.load %arg2[%c0_3, %c0_4] : memref<1x2048xf32, #tpu.memory_space<vmem>>, vector<1x2048xf32>
    %4 = vector.broadcast %3 : vector<1x2048xf32> to vector<8x2048xf32>
    %5 = arith.addf %2, %4 : vector<8x2048xf32>
    %cst_5 = arith.constant 0.000000e+00 : f32
    %6 = vector.broadcast %cst_5 : f32 to vector<8x2048xf32>
    %7 = arith.cmpf oge, %5, %6 : vector<8x2048xf32>
    %cst_6 = arith.constant 0.00999999977 : f32
    %8 = vector.broadcast %cst_6 : f32 to vector<8x2048xf32>
    %9 = arith.mulf %8, %5 : vector<8x2048xf32>
    %10 = arith.select %7, %5, %9 : vector<8x2048xi1>, vector<8x2048xf32>
    %11 = arith.truncf %10 : vector<8x2048xf32> to vector<8x2048xbf16>
    %c0_7 = arith.constant 0 : index
    %c0_8 = arith.constant 0 : index
    %12 = vector.load %arg3[%c0_7, %c0_8] : memref<2048x1024xbf16, #tpu.memory_space<vmem>>, vector<2048x1024xbf16>
    %cst_9 = arith.constant dense<0.000000e+00> : vector<8x1024xf32>
    %13 = tpu.matmul %11, %12, %cst_9 {dimension_numbers = #tpu.dot_dimension_numbers<[1], [0], [0], [1], [0, 0, 1, 1], [], []>} : vector<8x2048xbf16>, vector<2048x1024xbf16>, vector<8x1024xf32> -> vector<8x1024xf32>
    %c0_10 = arith.constant 0 : index
    %c0_11 = arith.constant 0 : index
    %14 = vector.load %arg4[%c0_10, %c0_11] : memref<1x1024xf32, #tpu.memory_space<vmem>>, vector<1x1024xf32>
    %15 = vector.broadcast %14 : vector<1x1024xf32> to vector<8x1024xf32>
    %16 = arith.addf %13, %15 : vector<8x1024xf32>
    %cst_12 = arith.constant 0.000000e+00 : f32
    %17 = vector.broadcast %cst_12 : f32 to vector<8x1024xf32>
    %18 = arith.cmpf oge, %16, %17 : vector<8x1024xf32>
    %cst_13 = arith.constant 0.00999999977 : f32
    %19 = vector.broadcast %cst_13 : f32 to vector<8x1024xf32>
    %20 = arith.mulf %19, %16 : vector<8x1024xf32>
    %21 = arith.select %18, %16, %20 : vector<8x1024xi1>, vector<8x1024xf32>
    %22 = arith.truncf %21 : vector<8x1024xf32> to vector<8x1024xbf16>
    %c0_14 = arith.constant 0 : index
    %c0_15 = arith.constant 0 : index
    %23 = vector.load %arg5[%c0_14, %c0_15] : memref<1024x512xbf16, #tpu.memory_space<vmem>>, vector<1024x512xbf16>
    %cst_16 = arith.constant dense<0.000000e+00> : vector<8x512xf32>
    %24 = tpu.matmul %22, %23, %cst_16 {dimension_numbers = #tpu.dot_dimension_numbers<[1], [0], [0], [1], [0, 0, 1, 1], [], []>} : vector<8x1024xbf16>, vector<1024x512xbf16>, vector<8x512xf32> -> vector<8x512xf32>
    %c0_17 = arith.constant 0 : index
    %c0_18 = arith.constant 0 : index
    %25 = vector.load %arg6[%c0_17, %c0_18] : memref<1x512xf32, #tpu.memory_space<vmem>>, vector<1x512xf32>
    %26 = vector.broadcast %25 : vector<1x512xf32> to vector<8x512xf32>
    %27 = arith.addf %24, %26 : vector<8x512xf32>
    %cst_19 = arith.constant 0.000000e+00 : f32
    %28 = vector.broadcast %cst_19 : f32 to vector<8x512xf32>
    %29 = arith.cmpf oge, %27, %28 : vector<8x512xf32>
    %cst_20 = arith.constant 0.00999999977 : f32
    %30 = vector.broadcast %cst_20 : f32 to vector<8x512xf32>
    %31 = arith.mulf %30, %27 : vector<8x512xf32>
    %32 = arith.select %29, %27, %31 : vector<8x512xi1>, vector<8x512xf32>
    %33 = arith.truncf %32 : vector<8x512xf32> to vector<8x512xbf16>
    %c0_21 = arith.constant 0 : index
    %c0_22 = arith.constant 0 : index
    %34 = vector.load %arg7[%c0_21, %c0_22] : memref<512x256xbf16, #tpu.memory_space<vmem>>, vector<512x256xbf16>
    %cst_23 = arith.constant dense<0.000000e+00> : vector<8x256xf32>
    %35 = tpu.matmul %33, %34, %cst_23 {dimension_numbers = #tpu.dot_dimension_numbers<[1], [0], [0], [1], [0, 0, 1, 1], [], []>} : vector<8x512xbf16>, vector<512x256xbf16>, vector<8x256xf32> -> vector<8x256xf32>
    %c0_24 = arith.constant 0 : index
    %c0_25 = arith.constant 0 : index
    %36 = vector.load %arg8[%c0_24, %c0_25] : memref<1x256xf32, #tpu.memory_space<vmem>>, vector<1x256xf32>
    %37 = vector.broadcast %36 : vector<1x256xf32> to vector<8x256xf32>
    %38 = arith.addf %35, %37 : vector<8x256xf32>
    %cst_26 = arith.constant 0.000000e+00 : f32
    %39 = vector.broadcast %cst_26 : f32 to vector<8x256xf32>
    %40 = arith.cmpf oge, %38, %39 : vector<8x256xf32>
    %cst_27 = arith.constant 0.00999999977 : f32
    %41 = vector.broadcast %cst_27 : f32 to vector<8x256xf32>
    %42 = arith.mulf %41, %38 : vector<8x256xf32>
    %43 = arith.select %40, %38, %42 : vector<8x256xi1>, vector<8x256xf32>
    %44 = arith.truncf %43 : vector<8x256xf32> to vector<8x256xbf16>
    %c0_28 = arith.constant 0 : index
    %c0_29 = arith.constant 0 : index
    %45 = vector.load %arg9[%c0_28, %c0_29] : memref<256x128xbf16, #tpu.memory_space<vmem>>, vector<256x128xbf16>
    %cst_30 = arith.constant dense<0.000000e+00> : vector<8x128xf32>
    %46 = tpu.matmul %44, %45, %cst_30 {dimension_numbers = #tpu.dot_dimension_numbers<[1], [0], [0], [1], [0, 0, 1, 1], [], []>} : vector<8x256xbf16>, vector<256x128xbf16>, vector<8x128xf32> -> vector<8x128xf32>
    %c0_31 = arith.constant 0 : index
    %c0_32 = arith.constant 0 : index
    %47 = vector.load %arg10[%c0_31, %c0_32] : memref<1x128xf32, #tpu.memory_space<vmem>>, vector<1x128xf32>
    %48 = vector.broadcast %47 : vector<1x128xf32> to vector<8x128xf32>
    %49 = arith.addf %46, %48 : vector<8x128xf32>
    %c0_33 = arith.constant 0 : index
    %c0_34 = arith.constant 0 : index
    %50 = vector.load %arg11[%c0_33, %c0_34] : memref<8x128xf32, #tpu.memory_space<vmem>>, vector<8x128xf32>
    tpu.vector_store %arg11[%c0_33, %c0_34], %49 {strides = array<i32>} : memref<8x128xf32, #tpu.memory_space<vmem>>, vector<8x128xf32>,
    return
  }
}

</mosaic_0001>

<llo_original>
// kernel: cnn_model_forward.1
$region0: #{cnn_model_forward.1}
  #allocation0 [shape = 'u32[]', space=smem, size = 0x4, offset = 0x4, fixed_abs, tag = 'smem constant byte address 0x4 - core index']
  #allocation1 [shape = 'u32[144,128]{1,0:T(1,128)}', space=vmem, size = 0x12000, scoped, tag = 'internal scratch']
  %s0 = inlined_call_operand.vmem [shape: bf16[8,512], index: 0, kind: input, shape index: {}]
  %s1 = inlined_call_operand.hbm [shape: bf16[512,2048], index: 1, kind: input, shape index: {}]
  %s2 = inlined_call_operand.hbm [shape: f32[1,2048], index: 2, kind: input, shape index: {}]
  %s3 = inlined_call_operand.hbm [shape: bf16[2048,1024], index: 3, kind: input, shape index: {}]
  %s4 = inlined_call_operand.hbm [shape: f32[1,1024], index: 4, kind: input, shape index: {}]
  %s5 = inlined_call_operand.hbm [shape: bf16[1024,512], index: 5, kind: input, shape index: {}]
  %s6 = inlined_call_operand.hbm [shape: f32[1,512], index: 6, kind: input, shape index: {}]
  %s7 = inlined_call_operand.hbm [shape: bf16[512,256], index: 7, kind: input, shape index: {}]
  %s8 = inlined_call_operand.hbm [shape: f32[1,256], index: 8, kind: input, shape index: {}]
  %s9 = inlined_call_operand.hbm [shape: bf16[256,128], index: 9, kind: input, shape index: {}]
  %s10 = inlined_call_operand.hbm [shape: f32[1,128], index: 10, kind: input, shape index: {}]
  %s11 = inlined_call_operand.vmem [shape: f32[8,128], index: 11, kind: output, shape index: {}]
  %s12 = sld [smem:[#allocation0]]
  $region94: #{cnn_model_forward.1} parent=0
    _
  %s14 = ssub.s32 1, %s12
  %s15 = scalar_select 0, %s14, %s12
  $region1: #{cnn_model_forward.1} parent=0
    #allocation2 [shape = 'u8[2097152]{0}', space=vmem, size = 0x200000, scoped, tag = 'input window, operand 1, single buffered']
    #allocation3 [shape = 's32[1]{0}', space=sflag, size = 0x4, scoped, tag = 'scoped memory for cnn_model_forward.1']
    #allocation4 [shape = 'u8[8192]{0}', space=vmem, size = 0x2000, scoped, tag = 'input window, operand 2, single buffered']
    #allocation5 [shape = 's32[1]{0}', space=sflag, size = 0x4, scoped, tag = 'scoped memory for cnn_model_forward.1']
    #allocation6 [shape = 'u8[4194304]{0}', space=vmem, size = 0x400000, scoped, tag = 'input window, operand 3, single buffered']
    #allocation7 [shape = 'u8[4096]{0}', space=vmem, size = 0x1000, scoped, tag = 'input window, operand 4, single buffered']
    #allocation8 [shape = 's32[1]{0}', space=sflag, size = 0x4, scoped, tag = 'scoped memory for cnn_model_forward.1']
    #allocation9 [shape = 'u8[1048576]{0}', space=vmem, size = 0x100000, scoped, tag = 'input window, operand 5, single buffered']
    #allocation10 [shape = 'u8[2048]{0}', space=vmem, size = 0x800, scoped, tag = 'input window, operand 6, single buffered']
    #allocation11 [shape = 's32[1]{0}', space=sflag, size = 0x4, scoped, tag = 'scoped memory for cnn_model_forward.1']
    #allocation12 [shape = 'u8[262144]{0}', space=vmem, size = 0x40000, scoped, tag = 'input window, operand 7, single buffered']
    #allocation13 [shape = 'u8[1024]{0}', space=vmem, size = 0x400, scoped, tag = 'input window, operand 8, single buffered']
    #allocation14 [shape = 's32[1]{0}', space=sflag, size = 0x4, scoped, tag = 'scoped memory for cnn_model_forward.1']
    #allocation15 [shape = 'u8[65536]{0}', space=vmem, size = 0x10000, scoped, tag = 'input window, operand 9, single buffered']
    #allocation16 [shape = 'u8[512]{0}', space=vmem, size = 0x400, scoped, tag = 'input window, operand 10, single buffered']
    #allocation17 [shape = 's32[1]{0}', space=sflag, size = 0x4, scoped, tag = 'scoped memory for cnn_model_forward.1']
    %16 = vsyncpa [#allocation3], 0
    %17 = vsyncpa [#allocation5], 0
    %18 = vsyncpa [#allocation8], 0
    %19 = vsyncpa [#allocation11], 0
    %20 = vsyncpa [#allocation14], 0
    %21 = vsyncpa [#allocation17], 0
    // Predicated region
    $region2: #{cnn_model_forward.1} parent=1 // pred_check
      _
    $region3: #{cnn_model_forward.1} parent=1 // pred_check_branch
      %23 = sbr.rel (0) target = $region5
    $region4: #{cnn_model_forward.1} parent=1 // pred_region
      _
    $region5: #{cnn_model_forward.1} parent=1 // pred_fallthru
      _
    // Predicated region
    $region6: #{cnn_model_forward.1} parent=1 // pred_check
      _
    $region7: #{cnn_model_forward.1} parent=1 // pred_check_branch
      %25 = sbr.rel (0) target = $region9
    $region8: #{cnn_model_forward.1} parent=1 // pred_region
      %s27 = ssub.s32 65536, 65536
      %28 = vsyncadd [#allocation3], %s27
      %s29 = sshll.u32 [#allocation2], 4
      %s30 = int_to_ptr.vmem [resolvable:$true] %s29
      %35 = dma.hbm_to_vmem [thread:$0]  %s1, 65536, %s30, [#allocation3], 1024, 1024, 64
    $region9: #{cnn_model_forward.1} parent=1 // pred_fallthru
      _
    // Predicated region
    $region10: #{cnn_model_forward.1} parent=1 // pred_check
      _
    $region11: #{cnn_model_forward.1} parent=1 // pred_check_branch
      %37 = sbr.rel (0) target = $region13
    $region12: #{cnn_model_forward.1} parent=1 // pred_region
      %s39 = ssub.s32 256, 256
      %40 = vsyncadd [#allocation5], %s39
      %s42 = sshll.u32 [#allocation4], 4
      %s43 = int_to_ptr.vmem [resolvable:$true] %s42
      %45 = dma.hbm_to_vmem [thread:$0]  %s2, 256, %s43, [#allocation5]
    $region13: #{cnn_model_forward.1} parent=1 // pred_fallthru
      _
    // Predicated region
    $region14: #{cnn_model_forward.1} parent=1 // pred_check
      _
    $region15: #{cnn_model_forward.1} parent=1 // pred_check_branch
      %47 = sbr.rel (0) target = $region17
    $region16: #{cnn_model_forward.1} parent=1 // pred_region
      %s49 = ssub.s32 131072, 131072
      %50 = vsyncadd [#allocation5], %s49
      %s51 = sshll.u32 [#allocation6], 4
      %s52 = int_to_ptr.vmem [resolvable:$true] %s51
      %57 = dma.hbm_to_vmem [thread:$0]  %s3, 131072, %s52, [#allocation5], 512, 512, 32
    $region17: #{cnn_model_forward.1} parent=1 // pred_fallthru
      _
    // Predicated region
    $region18: #{cnn_model_forward.1} parent=1 // pred_check
      _
    $region19: #{cnn_model_forward.1} parent=1 // pred_check_branch
      %59 = sbr.rel (0) target = $region21
    $region20: #{cnn_model_forward.1} parent=1 // pred_region
      %s61 = ssub.s32 128, 128
      %62 = vsyncadd [#allocation8], %s61
      %s64 = sshll.u32 [#allocation7], 4
      %s65 = int_to_ptr.vmem [resolvable:$true] %s64
      %67 = dma.hbm_to_vmem [thread:$0]  %s4, 128, %s65, [#allocation8]
    $region21: #{cnn_model_forward.1} parent=1 // pred_fallthru
      _
    // Predicated region
    $region22: #{cnn_model_forward.1} parent=1 // pred_check
      _
    $region23: #{cnn_model_forward.1} parent=1 // pred_check_branch
      %69 = sbr.rel (0) target = $region25
    $region24: #{cnn_model_forward.1} parent=1 // pred_region
      %s71 = ssub.s32 32768, 32768
      %72 = vsyncadd [#allocation8], %s71
      %s73 = sshll.u32 [#allocation9], 4
      %s74 = int_to_ptr.vmem [resolvable:$true] %s73
      %79 = dma.hbm_to_vmem [thread:$0]  %s5, 32768, %s74, [#allocation8], 256, 256, 16
    $region25: #{cnn_model_forward.1} parent=1 // pred_fallthru
      _
    // Predicated region
    $region26: #{cnn_model_forward.1} parent=1 // pred_check
      _
    $region27: #{cnn_model_forward.1} parent=1 // pred_check_branch
      %81 = sbr.rel (0) target = $region29
    $region28: #{cnn_model_forward.1} parent=1 // pred_region
      %s83 = ssub.s32 64, 64
      %84 = vsyncadd [#allocation11], %s83
      %s86 = sshll.u32 [#allocation10], 4
      %s87 = int_to_ptr.vmem [resolvable:$true] %s86
      %89 = dma.hbm_to_vmem [thread:$0]  %s6, 64, %s87, [#allocation11]
    $region29: #{cnn_model_forward.1} parent=1 // pred_fallthru
      _
    // Predicated region
    $region30: #{cnn_model_forward.1} parent=1 // pred_check
      _
    $region31: #{cnn_model_forward.1} parent=1 // pred_check_branch
      %91 = sbr.rel (0) target = $region33
    $region32: #{cnn_model_forward.1} parent=1 // pred_region
      %s93 = ssub.s32 8192, 8192
      %94 = vsyncadd [#allocation11], %s93
      %s95 = sshll.u32 [#allocation12], 4
      %s96 = int_to_ptr.vmem [resolvable:$true] %s95
      %101 = dma.hbm_to_vmem [thread:$0]  %s7, 8192, %s96, [#allocation11], 128, 128, 8
    $region33: #{cnn_model_forward.1} parent=1 // pred_fallthru
      _
    // Predicated region
    $region34: #{cnn_model_forward.1} parent=1 // pred_check
      _
    $region35: #{cnn_model_forward.1} parent=1 // pred_check_branch
      %103 = sbr.rel (0) target = $region37
    $region36: #{cnn_model_forward.1} parent=1 // pred_region
      %s105 = ssub.s32 32, 32
      %106 = vsyncadd [#allocation14], %s105
      %s108 = sshll.u32 [#allocation13], 4
      %s109 = int_to_ptr.vmem [resolvable:$true] %s108
      %111 = dma.hbm_to_vmem [thread:$0]  %s8, 32, %s109, [#allocation14]
    $region37: #{cnn_model_forward.1} parent=1 // pred_fallthru
      _
    // Predicated region
    $region38: #{cnn_model_forward.1} parent=1 // pred_check
      _
    $region39: #{cnn_model_forward.1} parent=1 // pred_check_branch
      %113 = sbr.rel (0) target = $region41
    $region40: #{cnn_model_forward.1} parent=1 // pred_region
      %s115 = ssub.s32 2048, 2048
      %116 = vsyncadd [#allocation14], %s115
      %s117 = sshll.u32 [#allocation15], 4
      %s118 = int_to_ptr.vmem [resolvable:$true] %s117
      %123 = dma.hbm_to_vmem [thread:$0]  %s9, 2048, %s118, [#allocation14], 64, 64, 4
    $region41: #{cnn_model_forward.1} parent=1 // pred_fallthru
      _
    // Predicated region
    $region42: #{cnn_model_forward.1} parent=1 // pred_check
      _
    $region43: #{cnn_model_forward.1} parent=1 // pred_check_branch
      %125 = sbr.rel (0) target = $region45
    $region44: #{cnn_model_forward.1} parent=1 // pred_region
      %s127 = ssub.s32 16, 16
      %128 = vsyncadd [#allocation17], %s127
      %s130 = sshll.u32 [#allocation16], 4
      %s131 = int_to_ptr.vmem [resolvable:$true] %s130
      %133 = dma.hbm_to_vmem [thread:$0]  %s10, 16, %s131, [#allocation17]
    $region45: #{cnn_model_forward.1} parent=1 // pred_fallthru
      _
    // Predicated region
    $region46: #{cnn_model_forward.1} parent=1 // pred_check
      _
    $region47: #{cnn_model_forward.1} parent=1 // pred_check_branch
      %135 = sbr.rel (0) target = $region49
    $region48: #{cnn_model_forward.1} parent=1 // pred_region
      %136 = dma.done [#allocation3], 65536
    $region49: #{cnn_model_forward.1} parent=1 // pred_fallthru
      _
    // Predicated region
    $region50: #{cnn_model_forward.1} parent=1 // pred_check
      _
    $region51: #{cnn_model_forward.1} parent=1 // pred_check_branch
      %138 = sbr.rel (0) target = $region53
    $region52: #{cnn_model_forward.1} parent=1 // pred_region
      %139 = dma.done [#allocation5], 256
    $region53: #{cnn_model_forward.1} parent=1 // pred_fallthru
      _
    // Predicated region
    $region54: #{cnn_model_forward.1} parent=1 // pred_check
      _
    $region55: #{cnn_model_forward.1} parent=1 // pred_check_branch
      %141 = sbr.rel (0) target = $region57
    $region56: #{cnn_model_forward.1} parent=1 // pred_region
      %142 = dma.done [#allocation5], 131072
    $region57: #{cnn_model_forward.1} parent=1 // pred_fallthru
      _
    // Predicated region
    $region58: #{cnn_model_forward.1} parent=1 // pred_check
      _
    $region59: #{cnn_model_forward.1} parent=1 // pred_check_branch
      %144 = sbr.rel (0) target = $region61
    $region60: #{cnn_model_forward.1} parent=1 // pred_region
      %145 = dma.done [#allocation8], 128
    $region61: #{cnn_model_forward.1} parent=1 // pred_fallthru
      _
    // Predicated region
    $region62: #{cnn_model_forward.1} parent=1 // pred_check
      _
    $region63: #{cnn_model_forward.1} parent=1 // pred_check_branch
      %147 = sbr.rel (0) target = $region65
    $region64: #{cnn_model_forward.1} parent=1 // pred_region
      %148 = dma.done [#allocation8], 32768
    $region65: #{cnn_model_forward.1} parent=1 // pred_fallthru
      _
    // Predicated region
    $region66: #{cnn_model_forward.1} parent=1 // pred_check
      _
    $region67: #{cnn_model_forward.1} parent=1 // pred_check_branch
      %150 = sbr.rel (0) target = $region69
    $region68: #{cnn_model_forward.1} parent=1 // pred_region
      %151 = dma.done [#allocation11], 64
    $region69: #{cnn_model_forward.1} parent=1 // pred_fallthru
      _
    // Predicated region
    $region70: #{cnn_model_forward.1} parent=1 // pred_check
      _
    $region71: #{cnn_model_forward.1} parent=1 // pred_check_branch
      %153 = sbr.rel (0) target = $region73
    $region72: #{cnn_model_forward.1} parent=1 // pred_region
      %154 = dma.done [#allocation11], 8192
    $region73: #{cnn_model_forward.1} parent=1 // pred_fallthru
      _
    // Predicated region
    $region74: #{cnn_model_forward.1} parent=1 // pred_check
      _
    $region75: #{cnn_model_forward.1} parent=1 // pred_check_branch
      %156 = sbr.rel (0) target = $region77
    $region76: #{cnn_model_forward.1} parent=1 // pred_region
      %157 = dma.done [#allocation14], 32
    $region77: #{cnn_model_forward.1} parent=1 // pred_fallthru
      _
    // Predicated region
    $region78: #{cnn_model_forward.1} parent=1 // pred_check
      _
    $region79: #{cnn_model_forward.1} parent=1 // pred_check_branch
      %159 = sbr.rel (0) target = $region81
    $region80: #{cnn_model_forward.1} parent=1 // pred_region
      %160 = dma.done [#allocation14], 2048
    $region81: #{cnn_model_forward.1} parent=1 // pred_fallthru
      _
    // Predicated region
    $region82: #{cnn_model_forward.1} parent=1 // pred_check
      _
    $region83: #{cnn_model_forward.1} parent=1 // pred_check_branch
      %162 = sbr.rel (0) target = $region85
    $region84: #{cnn_model_forward.1} parent=1 // pred_region
      %163 = dma.done [#allocation17], 16
    $region85: #{cnn_model_forward.1} parent=1 // pred_fallthru
      _
    %v165 = vld [vmem:[%s0] sm:$0xff]
    %v166 = vld [vmem:[%s0 + $0x8] sm:$0xff]
    %v167 = vld [vmem:[#allocation2] sm:$0xff]
    %v168 = vld [vmem:[#allocation2 + $0x8] sm:$0xff]
    %v169 = vld [vmem:[#allocation2 + $0x10] sm:$0xff]
    %v170 = vld [vmem:[#allocation2 + $0x18] sm:$0xff]
    %v171 = vld [vmem:[#allocation2 + $0x20] sm:$0xff]
    %v172 = vld [vmem:[#allocation2 + $0x28] sm:$0xff]
    %v173 = vld [vmem:[#allocation2 + $0x30] sm:$0xff]
    %v174 = vld [vmem:[#allocation2 + $0x38] sm:$0xff]
    %v175 = vld [vmem:[#allocation2 + $0x40] sm:$0xff]
    %v176 = vld [vmem:[#allocation2 + $0x48] sm:$0xff]
    %v177 = vld [vmem:[#allocation2 + $0x50] sm:$0xff]
    %v178 = vld [vmem:[#allocation2 + $0x58] sm:$0xff]
    %v179 = vld [vmem:[#allocation2 + $0x60] sm:$0xff]
    %v180 = vld [vmem:[#allocation2 + $0x68] sm:$0xff]
    %v181 = vld [vmem:[#allocation2 + $0x70] sm:$0xff]
    %v182 = vld [vmem:[#allocation2 + $0x78] sm:$0xff]
    %v183 = vld [vmem:[#allocation2 + $0x80] sm:$0xff]
    %v184 = vld [vmem:[#allocation2 + $0x88] sm:$0xff]
    %v185 = vld [vmem:[#allocation2 + $0x90] sm:$0xff]
    %v186 = vld [vmem:[#allocation2 + $0x98] sm:$0xff]
    %v187 = vld [vmem:[#allocation2 + $0xa0] sm:$0xff]
    %v188 = vld [vmem:[#allocation2 + $0xa8] sm:$0xff]
    %v189 = vld [vmem:[#allocation2 + $0xb0] sm:$0xff]
    %v190 = vld [vmem:[#allocation2 + $0xb8] sm:$0xff]
    %v191 = vld [vmem:[#allocation2 + $0xc0] sm:$0xff]
    %v192 = vld [vmem:[#allocation2 + $0xc8] sm:$0xff]
    %v193 = vld [vmem:[#allocation2 + $0xd0] sm:$0xff]
    %v194 = vld [vmem:[#allocation2 + $0xd8] sm:$0xff]
    %v195 = vld [vmem:[#allocation2 + $0xe0] sm:$0xff]
    %v196 = vld [vmem:[#allocation2 + $0xe8] sm:$0xff]
    %v197 = vld [vmem:[#allocation2 + $0xf0] sm:$0xff]
    %v198 = vld [vmem:[#allocation2 + $0xf8] sm:$0xff]
    %v199 = vld [vmem:[#allocation2 + $0x100] sm:$0xff]
    %v200 = vld [vmem:[#allocation2 + $0x108] sm:$0xff]
    %v201 = vld [vmem:[#allocation2 + $0x110] sm:$0xff]
    %v202 = vld [vmem:[#allocation2 + $0x118] sm:$0xff]
    %v203 = vld [vmem:[#allocation2 + $0x120] sm:$0xff]
    %v204 = vld [vmem:[#allocation2 + $0x128] sm:$0xff]
    %v205 = vld [vmem:[#allocation2 + $0x130] sm:$0xff]
    %v206 = vld [vmem:[#allocation2 + $0x138] sm:$0xff]
    %v207 = vld [vmem:[#allocation2 + $0x140] sm:$0xff]
    %v208 = vld [vmem:[#allocation2 + $0x148] sm:$0xff]
    %v209 = vld [vmem:[#allocation2 + $0x150] sm:$0xff]
    %v210 = vld [vmem:[#allocation2 + $0x158] sm:$0xff]
    %v211 = vld [vmem:[#allocation2 + $0x160] sm:$0xff]
    %v212 = vld [vmem:[#allocation2 + $0x168] sm:$0xff]
    %v213 = vld [vmem:[#allocation2 + $0x170] sm:$0xff]
    %v214 = vld [vmem:[#allocation2 + $0x178] sm:$0xff]
    %v215 = vld [vmem:[#allocation2 + $0x180] sm:$0xff]
    %v216 = vld [vmem:[#allocation2 + $0x188] sm:$0xff]
    %v217 = vld [vmem:[#allocation2 + $0x190] sm:$0xff]
    %v218 = vld [vmem:[#allocation2 + $0x198] sm:$0xff]
    %v219 = vld [vmem:[#allocation2 + $0x1a0] sm:$0xff]
    %v220 = vld [vmem:[#allocation2 + $0x1a8] sm:$0xff]
    %v221 = vld [vmem:[#allocation2 + $0x1b0] sm:$0xff]
    %v222 = vld [vmem:[#allocation2 + $0x1b8] sm:$0xff]
    %v223 = vld [vmem:[#allocation2 + $0x1c0] sm:$0xff]
    %v224 = vld [vmem:[#allocation2 + $0x1c8] sm:$0xff]
    %v225 = vld [vmem:[#allocation2 + $0x1d0] sm:$0xff]
    %v226 = vld [vmem:[#allocation2 + $0x1d8] sm:$0xff]
    %v227 = vld [vmem:[#allocation2 + $0x1e0] sm:$0xff]
    %v228 = vld [vmem:[#allocation2 + $0x1e8] sm:$0xff]
    %v229 = vld [vmem:[#allocation2 + $0x1f0] sm:$0xff]
    %v230 = vld [vmem:[#allocation2 + $0x1f8] sm:$0xff]
    %v231 = vld [vmem:[#allocation2 + $0x200] sm:$0xff]
    %v232 = vld [vmem:[#allocation2 + $0x208] sm:$0xff]
    %v233 = vld [vmem:[#allocation2 + $0x210] sm:$0xff]
    %v234 = vld [vmem:[#allocation2 + $0x218] sm:$0xff]
    %v235 = vld [vmem:[#allocation2 + $0x220] sm:$0xff]
    %v236 = vld [vmem:[#allocation2 + $0x228] sm:$0xff]
    %v237 = vld [vmem:[#allocation2 + $0x230] sm:$0xff]
    %v238 = vld [vmem:[#allocation2 + $0x238] sm:$0xff]
    %v239 = vld [vmem:[#allocation2 + $0x240] sm:$0xff]
    %v240 = vld [vmem:[#allocation2 + $0x248] sm:$0xff]
    %v241 = vld [vmem:[#allocation2 + $0x250] sm:$0xff]
    %v242 = vld [vmem:[#allocation2 + $0x258] sm:$0xff]
    %v243 = vld [vmem:[#allocation2 + $0x260] sm:$0xff]
    %v244 = vld [vmem:[#allocation2 + $0x268] sm:$0xff]
    %v245 = vld [vmem:[#allocation2 + $0x270] sm:$0xff]
    %v246 = vld [vmem:[#allocation2 + $0x278] sm:$0xff]
    %v247 = vld [vmem:[#allocation2 + $0x280] sm:$0xff]
    %v248 = vld [vmem:[#allocation2 + $0x288] sm:$0xff]
    %v249 = vld [vmem:[#allocation2 + $0x290] sm:$0xff]
    %v250 = vld [vmem:[#allocation2 + $0x298] sm:$0xff]
    %v251 = vld [vmem:[#allocation2 + $0x2a0] sm:$0xff]
    %v252 = vld [vmem:[#allocation2 + $0x2a8] sm:$0xff]
    %v253 = vld [vmem:[#allocation2 + $0x2b0] sm:$0xff]
    %v254 = vld [vmem:[#allocation2 + $0x2b8] sm:$0xff]
    %v255 = vld [vmem:[#allocation2 + $0x2c0] sm:$0xff]
    %v256 = vld [vmem:[#allocation2 + $0x2c8] sm:$0xff]
    %v257 = vld [vmem:[#allocation2 + $0x2d0] sm:$0xff]
    %v258 = vld [vmem:[#allocation2 + $0x2d8] sm:$0xff]
    %v259 = vld [vmem:[#allocation2 + $0x2e0] sm:$0xff]
    %v260 = vld [vmem:[#allocation2 + $0x2e8] sm:$0xff]
    %v261 = vld [vmem:[#allocation2 + $0x2f0] sm:$0xff]
    %v262 = vld [vmem:[#allocation2 + $0x2f8] sm:$0xff]
    %v263 = vld [vmem:[#allocation2 + $0x300] sm:$0xff]
    %v264 = vld [vmem:[#allocation2 + $0x308] sm:$0xff]
    %v265 = vld [vmem:[#allocation2 + $0x310] sm:$0xff]
    %v266 = vld [vmem:[#allocation2 + $0x318] sm:$0xff]
    %v267 = vld [vmem:[#allocation2 + $0x320] sm:$0xff]
    %v268 = vld [vmem:[#allocation2 + $0x328] sm:$0xff]
    %v269 = vld [vmem:[#allocation2 + $0x330] sm:$0xff]
    %v270 = vld [vmem:[#allocation2 + $0x338] sm:$0xff]
    %v271 = vld [vmem:[#allocation2 + $0x340] sm:$0xff]
    %v272 = vld [vmem:[#allocation2 + $0x348] sm:$0xff]
    %v273 = vld [vmem:[#allocation2 + $0x350] sm:$0xff]
    %v274 = vld [vmem:[#allocation2 + $0x358] sm:$0xff]
    %v275 = vld [vmem:[#allocation2 + $0x360] sm:$0xff]
    %v276 = vld [vmem:[#allocation2 + $0x368] sm:$0xff]
    %v277 = vld [vmem:[#allocation2 + $0x370] sm:$0xff]
    %v278 = vld [vmem:[#allocation2 + $0x378] sm:$0xff]
    %v279 = vld [vmem:[#allocation2 + $0x380] sm:$0xff]
    %v280 = vld [vmem:[#allocation2 + $0x388] sm:$0xff]
    %v281 = vld [vmem:[#allocation2 + $0x390] sm:$0xff]
    %v282 = vld [vmem:[#allocation2 + $0x398] sm:$0xff]
    %v283 = vld [vmem:[#allocation2 + $0x3a0] sm:$0xff]
    %v284 = vld [vmem:[#allocation2 + $0x3a8] sm:$0xff]
    %v285 = vld [vmem:[#allocation2 + $0x3b0] sm:$0xff]
    %v286 = vld [vmem:[#allocation2 + $0x3b8] sm:$0xff]
    %v287 = vld [vmem:[#allocation2 + $0x3c0] sm:$0xff]
    %v288 = vld [vmem:[#allocation2 + $0x3c8] sm:$0xff]
    %v289 = vld [vmem:[#allocation2 + $0x3d0] sm:$0xff]
    %v290 = vld [vmem:[#allocation2 + $0x3d8] sm:$0xff]
    %v291 = vld [vmem:[#allocation2 + $0x3e0] sm:$0xff]
    %v292 = vld [vmem:[#allocation2 + $0x3e8] sm:$0xff]
    %v293 = vld [vmem:[#allocation2 + $0x3f0] sm:$0xff]
    %v294 = vld [vmem:[#allocation2 + $0x3f8] sm:$0xff]
    %v295 = vld [vmem:[#allocation2 + $0x400] sm:$0xff]
    %v296 = vld [vmem:[#allocation2 + $0x408] sm:$0xff]
    %v297 = vld [vmem:[#allocation2 + $0x410] sm:$0xff]
    %v298 = vld [vmem:[#allocation2 + $0x418] sm:$0xff]
    %v299 = vld [vmem:[#allocation2 + $0x420] sm:$0xff]
    %v300 = vld [vmem:[#allocation2 + $0x428] sm:$0xff]
    %v301 = vld [vmem:[#allocation2 + $0x430] sm:$0xff]
    %v302 = vld [vmem:[#allocation2 + $0x438] sm:$0xff]
    %v303 = vld [vmem:[#allocation2 + $0x440] sm:$0xff]
    %v304 = vld [vmem:[#allocation2 + $0x448] sm:$0xff]
    %v305 = vld [vmem:[#allocation2 + $0x450] sm:$0xff]
    %v306 = vld [vmem:[#allocation2 + $0x458] sm:$0xff]
    %v307 = vld [vmem:[#allocation2 + $0x460] sm:$0xff]
    %v308 = vld [vmem:[#allocation2 + $0x468] sm:$0xff]
    %v309 = vld [vmem:[#allocation2 + $0x470] sm:$0xff]
    %v310 = vld [vmem:[#allocation2 + $0x478] sm:$0xff]
    %v311 = vld [vmem:[#allocation2 + $0x480] sm:$0xff]
    %v312 = vld [vmem:[#allocation2 + $0x488] sm:$0xff]
    %v313 = vld [vmem:[#allocation2 + $0x490] sm:$0xff]
    %v314 = vld [vmem:[#allocation2 + $0x498] sm:$0xff]
    %v315 = vld [vmem:[#allocation2 + $0x4a0] sm:$0xff]
    %v316 = vld [vmem:[#allocation2 + $0x4a8] sm:$0xff]
    %v317 = vld [vmem:[#allocation2 + $0x4b0] sm:$0xff]
    %v318 = vld [vmem:[#allocation2 + $0x4b8] sm:$0xff]
    %v319 = vld [vmem:[#allocation2 + $0x4c0] sm:$0xff]
    %v320 = vld [vmem:[#allocation2 + $0x4c8] sm:$0xff]
    %v321 = vld [vmem:[#allocation2 + $0x4d0] sm:$0xff]
    %v322 = vld [vmem:[#allocation2 + $0x4d8] sm:$0xff]
    %v323 = vld [vmem:[#allocation2 + $0x4e0] sm:$0xff]
    %v324 = vld [vmem:[#allocation2 + $0x4e8] sm:$0xff]
    %v325 = vld [vmem:[#allocation2 + $0x4f0] sm:$0xff]
    %v326 = vld [vmem:[#allocation2 + $0x4f8] sm:$0xff]
    %v327 = vld [vmem:[#allocation2 + $0x500] sm:$0xff]
    %v328 = vld [vmem:[#allocation2 + $0x508] sm:$0xff]
    %v329 = vld [vmem:[#allocation2 + $0x510] sm:$0xff]
    %v330 = vld [vmem:[#allocation2 + $0x518] sm:$0xff]
    %v331 = vld [vmem:[#allocation2 + $0x520] sm:$0xff]
    %v332 = vld [vmem:[#allocation2 + $0x528] sm:$0xff]
    %v333 = vld [vmem:[#allocation2 + $0x530] sm:$0xff]
    %v334 = vld [vmem:[#allocation2 + $0x538] sm:$0xff]
    %v335 = vld [vmem:[#allocation2 + $0x540] sm:$0xff]
    %v336 = vld [vmem:[#allocation2 + $0x548] sm:$0xff]
    %v337 = vld [vmem:[#allocation2 + $0x550] sm:$0xff]
    %v338 = vld [vmem:[#allocation2 + $0x558] sm:$0xff]
    %v339 = vld [vmem:[#allocation2 + $0x560] sm:$0xff]
    %v340 = vld [vmem:[#allocation2 + $0x568] sm:$0xff]
    %v341 = vld [vmem:[#allocation2 + $0x570] sm:$0xff]
    %v342 = vld [vmem:[#allocation2 + $0x578] sm:$0xff]
    %v343 = vld [vmem:[#allocation2 + $0x580] sm:$0xff]
    %v344 = vld [vmem:[#allocation2 + $0x588] sm:$0xff]
    %v345 = vld [vmem:[#allocation2 + $0x590] sm:$0xff]
    %v346 = vld [vmem:[#allocation2 + $0x598] sm:$0xff]
    %v347 = vld [vmem:[#allocation2 + $0x5a0] sm:$0xff]
    %v348 = vld [vmem:[#allocation2 + $0x5a8] sm:$0xff]
    %v349 = vld [vmem:[#allocation2 + $0x5b0] sm:$0xff]
    %v350 = vld [vmem:[#allocation2 + $0x5b8] sm:$0xff]
    %v351 = vld [vmem:[#allocation2 + $0x5c0] sm:$0xff]
    %v352 = vld [vmem:[#allocation2 + $0x5c8] sm:$0xff]
    %v353 = vld [vmem:[#allocation2 + $0x5d0] sm:$0xff]
    %v354 = vld [vmem:[#allocation2 + $0x5d8] sm:$0xff]
    %v355 = vld [vmem:[#allocation2 + $0x5e0] sm:$0xff]
    %v356 = vld [vmem:[#allocation2 + $0x5e8] sm:$0xff]
    %v357 = vld [vmem:[#allocation2 + $0x5f0] sm:$0xff]
    %v358 = vld [vmem:[#allocation2 + $0x5f8] sm:$0xff]
    %v359 = vld [vmem:[#allocation2 + $0x600] sm:$0xff]
    %v360 = vld [vmem:[#allocation2 + $0x608] sm:$0xff]
    %v361 = vld [vmem:[#allocation2 + $0x610] sm:$0xff]
    %v362 = vld [vmem:[#allocation2 + $0x618] sm:$0xff]
    %v363 = vld [vmem:[#allocation2 + $0x620] sm:$0xff]
    %v364 = vld [vmem:[#allocation2 + $0x628] sm:$0xff]
    %v365 = vld [vmem:[#allocation2 + $0x630] sm:$0xff]
    %v366 = vld [vmem:[#allocation2 + $0x638] sm:$0xff]
    %v367 = vld [vmem:[#allocation2 + $0x640] sm:$0xff]
    %v368 = vld [vmem:[#allocation2 + $0x648] sm:$0xff]
    %v369 = vld [vmem:[#allocation2 + $0x650] sm:$0xff]
    %v370 = vld [vmem:[#allocation2 + $0x658] sm:$0xff]
    %v371 = vld [vmem:[#allocation2 + $0x660] sm:$0xff]
    %v372 = vld [vmem:[#allocation2 + $0x668] sm:$0xff]
    %v373 = vld [vmem:[#allocation2 + $0x670] sm:$0xff]
    %v374 = vld [vmem:[#allocation2 + $0x678] sm:$0xff]
    %v375 = vld [vmem:[#allocation2 + $0x680] sm:$0xff]
    %v376 = vld [vmem:[#allocation2 + $0x688] sm:$0xff]
    %v377 = vld [vmem:[#allocation2 + $0x690] sm:$0xff]
    %v378 = vld [vmem:[#allocation2 + $0x698] sm:$0xff]
    %v379 = vld [vmem:[#allocation2 + $0x6a0] sm:$0xff]
    %v380 = vld [vmem:[#allocation2 + $0x6a8] sm:$0xff]
    %v381 = vld [vmem:[#allocation2 + $0x6b0] sm:$0xff]
    %v382 = vld [vmem:[#allocation2 + $0x6b8] sm:$0xff]
    %v383 = vld [vmem:[#allocation2 + $0x6c0] sm:$0xff]
    %v384 = vld [vmem:[#allocation2 + $0x6c8] sm:$0xff]
    %v385 = vld [vmem:[#allocation2 + $0x6d0] sm:$0xff]
    %v386 = vld [vmem:[#allocation2 + $0x6d8] sm:$0xff]
    %v387 = vld [vmem:[#allocation2 + $0x6e0] sm:$0xff]
    %v388 = vld [vmem:[#allocation2 + $0x6e8] sm:$0xff]
    %v389 = vld [vmem:[#allocation2 + $0x6f0] sm:$0xff]
    %v390 = vld [vmem:[#allocation2 + $0x6f8] sm:$0xff]
    %v391 = vld [vmem:[#allocation2 + $0x700] sm:$0xff]
    %v392 = vld [vmem:[#allocation2 + $0x708] sm:$0xff]
    %v393 = vld [vmem:[#allocation2 + $0x710] sm:$0xff]
    %v394 = vld [vmem:[#allocation2 + $0x718] sm:$0xff]
    %v395 = vld [vmem:[#allocation2 + $0x720] sm:$0xff]
    %v396 = vld [vmem:[#allocation2 + $0x728] sm:$0xff]
    %v397 = vld [vmem:[#allocation2 + $0x730] sm:$0xff]
    %v398 = vld [vmem:[#allocation2 + $0x738] sm:$0xff]
    %v399 = vld [vmem:[#allocation2 + $0x740] sm:$0xff]
    %v400 = vld [vmem:[#allocation2 + $0x748] sm:$0xff]
    %v401 = vld [vmem:[#allocation2 + $0x750] sm:$0xff]
    %v402 = vld [vmem:[#allocation2 + $0x758] sm:$0xff]
    %v403 = vld [vmem:[#allocation2 + $0x760] sm:$0xff]
    %v404 = vld [vmem:[#allocation2 + $0x768] sm:$0xff]
    %v405 = vld [vmem:[#allocation2 + $0x770] sm:$0xff]
    %v406 = vld [vmem:[#allocation2 + $0x778] sm:$0xff]
    %v407 = vld [vmem:[#allocation2 + $0x780] sm:$0xff]
    %v408 = vld [vmem:[#allocation2 + $0x788] sm:$0xff]
    %v409 = vld [vmem:[#allocation2 + $0x790] sm:$0xff]
    %v410 = vld [vmem:[#allocation2 + $0x798] sm:$0xff]
    %v411 = vld [vmem:[#allocation2 + $0x7a0] sm:$0xff]
    %v412 = vld [vmem:[#allocation2 + $0x7a8] sm:$0xff]
    %v413 = vld [vmem:[#allocation2 + $0x7b0] sm:$0xff]
    %v414 = vld [vmem:[#allocation2 + $0x7b8] sm:$0xff]
    %v415 = vld [vmem:[#allocation2 + $0x7c0] sm:$0xff]
    %v416 = vld [vmem:[#allocation2 + $0x7c8] sm:$0xff]
    %v417 = vld [vmem:[#allocation2 + $0x7d0] sm:$0xff]
    %v418 = vld [vmem:[#allocation2 + $0x7d8] sm:$0xff]
    %v419 = vld [vmem:[#allocation2 + $0x7e0] sm:$0xff]
    %v420 = vld [vmem:[#allocation2 + $0x7e8] sm:$0xff]
    %v421 = vld [vmem:[#allocation2 + $0x7f0] sm:$0xff]
    %v422 = vld [vmem:[#allocation2 + $0x7f8] sm:$0xff]
    %v423 = vld [vmem:[#allocation2 + $0x800] sm:$0xff]
    %v424 = vld [vmem:[#allocation2 + $0x808] sm:$0xff]
    %v425 = vld [vmem:[#allocation2 + $0x810] sm:$0xff]
    %v426 = vld [vmem:[#allocation2 + $0x818] sm:$0xff]
    %v427 = vld [vmem:[#allocation2 + $0x820] sm:$0xff]
    %v428 = vld [vmem:[#allocation2 + $0x828] sm:$0xff]
    %v429 = vld [vmem:[#allocation2 + $0x830] sm:$0xff]
    %v430 = vld [vmem:[#allocation2 + $0x838] sm:$0xff]
    %v431 = vld [vmem:[#allocation2 + $0x840] sm:$0xff]
    %v432 = vld [vmem:[#allocation2 + $0x848] sm:$0xff]
    %v433 = vld [vmem:[#allocation2 + $0x850] sm:$0xff]
    %v434 = vld [vmem:[#allocation2 + $0x858] sm:$0xff]
    %v435 = vld [vmem:[#allocation2 + $0x860] sm:$0xff]
    %v436 = vld [vmem:[#allocation2 + $0x868] sm:$0xff]
    %v437 = vld [vmem:[#allocation2 + $0x870] sm:$0xff]
    %v438 = vld [vmem:[#allocation2 + $0x878] sm:$0xff]
    %v439 = vld [vmem:[#allocation2 + $0x880] sm:$0xff]
    %v440 = vld [vmem:[#allocation2 + $0x888] sm:$0xff]
    %v441 = vld [vmem:[#allocation2 + $0x890] sm:$0xff]
    %v442 = vld [vmem:[#allocation2 + $0x898] sm:$0xff]
    %v443 = vld [vmem:[#allocation2 + $0x8a0] sm:$0xff]
    %v444 = vld [vmem:[#allocation2 + $0x8a8] sm:$0xff]
    %v445 = vld [vmem:[#allocation2 + $0x8b0] sm:$0xff]
    %v446 = vld [vmem:[#allocation2 + $0x8b8] sm:$0xff]
    %v447 = vld [vmem:[#allocation2 + $0x8c0] sm:$0xff]
    %v448 = vld [vmem:[#allocation2 + $0x8c8] sm:$0xff]
    %v449 = vld [vmem:[#allocation2 + $0x8d0] sm:$0xff]
    %v450 = vld [vmem:[#allocation2 + $0x8d8] sm:$0xff]
    %v451 = vld [vmem:[#allocation2 + $0x8e0] sm:$0xff]
    %v452 = vld [vmem:[#allocation2 + $0x8e8] sm:$0xff]
    %v453 = vld [vmem:[#allocation2 + $0x8f0] sm:$0xff]
    %v454 = vld [vmem:[#allocation2 + $0x8f8] sm:$0xff]
    %v455 = vld [vmem:[#allocation2 + $0x900] sm:$0xff]
    %v456 = vld [vmem:[#allocation2 + $0x908] sm:$0xff]
    %v457 = vld [vmem:[#allocation2 + $0x910] sm:$0xff]
    %v458 = vld [vmem:[#allocation2 + $0x918] sm:$0xff]
    %v459 = vld [vmem:[#allocation2 + $0x920] sm:$0xff]
    %v460 = vld [vmem:[#allocation2 + $0x928] sm:$0xff]
    %v461 = vld [vmem:[#allocation2 + $0x930] sm:$0xff]
    %v462 = vld [vmem:[#allocation2 + $0x938] sm:$0xff]
    %v463 = vld [vmem:[#allocation2 + $0x940] sm:$0xff]
    %v464 = vld [vmem:[#allocation2 + $0x948] sm:$0xff]
    %v465 = vld [vmem:[#allocation2 + $0x950] sm:$0xff]
    %v466 = vld [vmem:[#allocation2 + $0x958] sm:$0xff]
    %v467 = vld [vmem:[#allocation2 + $0x960] sm:$0xff]
    %v468 = vld [vmem:[#allocation2 + $0x968] sm:$0xff]
    %v469 = vld [vmem:[#allocation2 + $0x970] sm:$0xff]
    %v470 = vld [vmem:[#allocation2 + $0x978] sm:$0xff]
    %v471 = vld [vmem:[#allocation2 + $0x980] sm:$0xff]
    %v472 = vld [vmem:[#allocation2 + $0x988] sm:$0xff]
    %v473 = vld [vmem:[#allocation2 + $0x990] sm:$0xff]
    %v474 = vld [vmem:[#allocation2 + $0x998] sm:$0xff]
    %v475 = vld [vmem:[#allocation2 + $0x9a0] sm:$0xff]
    %v476 = vld [vmem:[#allocation2 + $0x9a8] sm:$0xff]
    %v477 = vld [vmem:[#allocation2 + $0x9b0] sm:$0xff]
    %v478 = vld [vmem:[#allocation2 + $0x9b8] sm:$0xff]
    %v479 = vld [vmem:[#allocation2 + $0x9c0] sm:$0xff]
    %v480 = vld [vmem:[#allocation2 + $0x9c8] sm:$0xff]
    %v481 = vld [vmem:[#allocation2 + $0x9d0] sm:$0xff]
    %v482 = vld [vmem:[#allocation2 + $0x9d8] sm:$0xff]
    %v483 = vld [vmem:[#allocation2 + $0x9e0] sm:$0xff]
    %v484 = vld [vmem:[#allocation2 + $0x9e8] sm:$0xff]
    %v485 = vld [vmem:[#allocation2 + $0x9f0] sm:$0xff]
    %v486 = vld [vmem:[#allocation2 + $0x9f8] sm:$0xff]
    %v487 = vld [vmem:[#allocation2 + $0xa00] sm:$0xff]
    %v488 = vld [vmem:[#allocation2 + $0xa08] sm:$0xff]
    %v489 = vld [vmem:[#allocation2 + $0xa10] sm:$0xff]
    %v490 = vld [vmem:[#allocation2 + $0xa18] sm:$0xff]
    %v491 = vld [vmem:[#allocation2 + $0xa20] sm:$0xff]
    %v492 = vld [vmem:[#allocation2 + $0xa28] sm:$0xff]
    %v493 = vld [vmem:[#allocation2 + $0xa30] sm:$0xff]
    %v494 = vld [vmem:[#allocation2 + $0xa38] sm:$0xff]
    %v495 = vld [vmem:[#allocation2 + $0xa40] sm:$0xff]
    %v496 = vld [vmem:[#allocation2 + $0xa48] sm:$0xff]
    %v497 = vld [vmem:[#allocation2 + $0xa50] sm:$0xff]
    %v498 = vld [vmem:[#allocation2 + $0xa58] sm:$0xff]
    %v499 = vld [vmem:[#allocation2 + $0xa60] sm:$0xff]
    %v500 = vld [vmem:[#allocation2 + $0xa68] sm:$0xff]
    %v501 = vld [vmem:[#allocation2 + $0xa70] sm:$0xff]
    %v502 = vld [vmem:[#allocation2 + $0xa78] sm:$0xff]
    %v503 = vld [vmem:[#allocation2 + $0xa80] sm:$0xff]
    %v504 = vld [vmem:[#allocation2 + $0xa88] sm:$0xff]
    %v505 = vld [vmem:[#allocation2 + $0xa90] sm:$0xff]
    %v506 = vld [vmem:[#allocation2 + $0xa98] sm:$0xff]
    %v507 = vld [vmem:[#allocation2 + $0xaa0] sm:$0xff]
    %v508 = vld [vmem:[#allocation2 + $0xaa8] sm:$0xff]
    %v509 = vld [vmem:[#allocation2 + $0xab0] sm:$0xff]
    %v510 = vld [vmem:[#allocation2 + $0xab8] sm:$0xff]
    %v511 = vld [vmem:[#allocation2 + $0xac0] sm:$0xff]
    %v512 = vld [vmem:[#allocation2 + $0xac8] sm:$0xff]
    %v513 = vld [vmem:[#allocation2 + $0xad0] sm:$0xff]
    %v514 = vld [vmem:[#allocation2 + $0xad8] sm:$0xff]
    %v515 = vld [vmem:[#allocation2 + $0xae0] sm:$0xff]
    %v516 = vld [vmem:[#allocation2 + $0xae8] sm:$0xff]
    %v517 = vld [vmem:[#allocation2 + $0xaf0] sm:$0xff]
    %v518 = vld [vmem:[#allocation2 + $0xaf8] sm:$0xff]
    %v519 = vld [vmem:[#allocation2 + $0xb00] sm:$0xff]
    %v520 = vld [vmem:[#allocation2 + $0xb08] sm:$0xff]
    %v521 = vld [vmem:[#allocation2 + $0xb10] sm:$0xff]
    %v522 = vld [vmem:[#allocation2 + $0xb18] sm:$0xff]
    %v523 = vld [vmem:[#allocation2 + $0xb20] sm:$0xff]
    %v524 = vld [vmem:[#allocation2 + $0xb28] sm:$0xff]
    %v525 = vld [vmem:[#allocation2 + $0xb30] sm:$0xff]
    %v526 = vld [vmem:[#allocation2 + $0xb38] sm:$0xff]
    %v527 = vld [vmem:[#allocation2 + $0xb40] sm:$0xff]
    %v528 = vld [vmem:[#allocation2 + $0xb48] sm:$0xff]
    %v529 = vld [vmem:[#allocation2 + $0xb50] sm:$0xff]
    %v530 = vld [vmem:[#allocation2 + $0xb58] sm:$0xff]
    %v531 = vld [vmem:[#allocation2 + $0xb60] sm:$0xff]
    %v532 = vld [vmem:[#allocation2 + $0xb68] sm:$0xff]
    %v533 = vld [vmem:[#allocation2 + $0xb70] sm:$0xff]
    %v534 = vld [vmem:[#allocation2 + $0xb78] sm:$0xff]
    %v535 = vld [vmem:[#allocation2 + $0xb80] sm:$0xff]
    %v536 = vld [vmem:[#allocation2 + $0xb88] sm:$0xff]
    %v537 = vld [vmem:[#allocation2 + $0xb90] sm:$0xff]
    %v538 = vld [vmem:[#allocation2 + $0xb98] sm:$0xff]
    %v539 = vld [vmem:[#allocation2 + $0xba0] sm:$0xff]
    %v540 = vld [vmem:[#allocation2 + $0xba8] sm:$0xff]
    %v541 = vld [vmem:[#allocation2 + $0xbb0] sm:$0xff]
    %v542 = vld [vmem:[#allocation2 + $0xbb8] sm:$0xff]
    %v543 = vld [vmem:[#allocation2 + $0xbc0] sm:$0xff]
    %v544 = vld [vmem:[#allocation2 + $0xbc8] sm:$0xff]
    %v545 = vld [vmem:[#allocation2 + $0xbd0] sm:$0xff]
    %v546 = vld [vmem:[#allocation2 + $0xbd8] sm:$0xff]
    %v547 = vld [vmem:[#allocation2 + $0xbe0] sm:$0xff]
    %v548 = vld [vmem:[#allocation2 + $0xbe8] sm:$0xff]
    %v549 = vld [vmem:[#allocation2 + $0xbf0] sm:$0xff]
    %v550 = vld [vmem:[#allocation2 + $0xbf8] sm:$0xff]
    %v551 = vld [vmem:[#allocation2 + $0xc00] sm:$0xff]
    %v552 = vld [vmem:[#allocation2 + $0xc08] sm:$0xff]
    %v553 = vld [vmem:[#allocation2 + $0xc10] sm:$0xff]
    %v554 = vld [vmem:[#allocation2 + $0xc18] sm:$0xff]
    %v555 = vld [vmem:[#allocation2 + $0xc20] sm:$0xff]
    %v556 = vld [vmem:[#allocation2 + $0xc28] sm:$0xff]
    %v557 = vld [vmem:[#allocation2 + $0xc30] sm:$0xff]
    %v558 = vld [vmem:[#allocation2 + $0xc38] sm:$0xff]
    %v559 = vld [vmem:[#allocation2 + $0xc40] sm:$0xff]
    %v560 = vld [vmem:[#allocation2 + $0xc48] sm:$0xff]
    %v561 = vld [vmem:[#allocation2 + $0xc50] sm:$0xff]
    %v562 = vld [vmem:[#allocation2 + $0xc58] sm:$0xff]
    %v563 = vld [vmem:[#allocation2 + $0xc60] sm:$0xff]
    %v564 = vld [vmem:[#allocation2 + $0xc68] sm:$0xff]
    %v565 = vld [vmem:[#allocation2 + $0xc70] sm:$0xff]
    %v566 = vld [vmem:[#allocation2 + $0xc78] sm:$0xff]
    %v567 = vld [vmem:[#allocation2 + $0xc80] sm:$0xff]
    %v568 = vld [vmem:[#allocation2 + $0xc88] sm:$0xff]
    %v569 = vld [vmem:[#allocation2 + $0xc90] sm:$0xff]
    %v570 = vld [vmem:[#allocation2 + $0xc98] sm:$0xff]
    %v571 = vld [vmem:[#allocation2 + $0xca0] sm:$0xff]
    %v572 = vld [vmem:[#allocation2 + $0xca8] sm:$0xff]
    %v573 = vld [vmem:[#allocation2 + $0xcb0] sm:$0xff]
    %v574 = vld [vmem:[#allocation2 + $0xcb8] sm:$0xff]
    %v575 = vld [vmem:[#allocation2 + $0xcc0] sm:$0xff]
    %v576 = vld [vmem:[#allocation2 + $0xcc8] sm:$0xff]
    %v577 = vld [vmem:[#allocation2 + $0xcd0] sm:$0xff]
    %v578 = vld [vmem:[#allocation2 + $0xcd8] sm:$0xff]
    %v579 = vld [vmem:[#allocation2 + $0xce0] sm:$0xff]
    %v580 = vld [vmem:[#allocation2 + $0xce8] sm:$0xff]
    %v581 = vld [vmem:[#allocation2 + $0xcf0] sm:$0xff]
    %v582 = vld [vmem:[#allocation2 + $0xcf8] sm:$0xff]
    %v583 = vld [vmem:[#allocation2 + $0xd00] sm:$0xff]
    %v584 = vld [vmem:[#allocation2 + $0xd08] sm:$0xff]
    %v585 = vld [vmem:[#allocation2 + $0xd10] sm:$0xff]
    %v586 = vld [vmem:[#allocation2 + $0xd18] sm:$0xff]
    %v587 = vld [vmem:[#allocation2 + $0xd20] sm:$0xff]
    %v588 = vld [vmem:[#allocation2 + $0xd28] sm:$0xff]
    %v589 = vld [vmem:[#allocation2 + $0xd30] sm:$0xff]
    %v590 = vld [vmem:[#allocation2 + $0xd38] sm:$0xff]
    %v591 = vld [vmem:[#allocation2 + $0xd40] sm:$0xff]
    %v592 = vld [vmem:[#allocation2 + $0xd48] sm:$0xff]
    %v593 = vld [vmem:[#allocation2 + $0xd50] sm:$0xff]
    %v594 = vld [vmem:[#allocation2 + $0xd58] sm:$0xff]
    %v595 = vld [vmem:[#allocation2 + $0xd60] sm:$0xff]
    %v596 = vld [vmem:[#allocation2 + $0xd68] sm:$0xff]
    %v597 = vld [vmem:[#allocation2 + $0xd70] sm:$0xff]
    %v598 = vld [vmem:[#allocation2 + $0xd78] sm:$0xff]
    %v599 = vld [vmem:[#allocation2 + $0xd80] sm:$0xff]
    %v600 = vld [vmem:[#allocation2 + $0xd88] sm:$0xff]
    %v601 = vld [vmem:[#allocation2 + $0xd90] sm:$0xff]
    %v602 = vld [vmem:[#allocation2 + $0xd98] sm:$0xff]
    %v603 = vld [vmem:[#allocation2 + $0xda0] sm:$0xff]
    %v604 = vld [vmem:[#allocation2 + $0xda8] sm:$0xff]
    %v605 = vld [vmem:[#allocation2 + $0xdb0] sm:$0xff]
    %v606 = vld [vmem:[#allocation2 + $0xdb8] sm:$0xff]
    %v607 = vld [vmem:[#allocation2 + $0xdc0] sm:$0xff]
    %v608 = vld [vmem:[#allocation2 + $0xdc8] sm:$0xff]
    %v609 = vld [vmem:[#allocation2 + $0xdd0] sm:$0xff]
    %v610 = vld [vmem:[#allocation2 + $0xdd8] sm:$0xff]
    %v611 = vld [vmem:[#allocation2 + $0xde0] sm:$0xff]
    %v612 = vld [vmem:[#allocation2 + $0xde8] sm:$0xff]
    %v613 = vld [vmem:[#allocation2 + $0xdf0] sm:$0xff]
    %v614 = vld [vmem:[#allocation2 + $0xdf8] sm:$0xff]
    %v615 = vld [vmem:[#allocation2 + $0xe00] sm:$0xff]
    %v616 = vld [vmem:[#allocation2 + $0xe08] sm:$0xff]
    %v617 = vld [vmem:[#allocation2 + $0xe10] sm:$0xff]
    %v618 = vld [vmem:[#allocation2 + $0xe18] sm:$0xff]
    %v619 = vld [vmem:[#allocation2 + $0xe20] sm:$0xff]
    %v620 = vld [vmem:[#allocation2 + $0xe28] sm:$0xff]
    %v621 = vld [vmem:[#allocation2 + $0xe30] sm:$0xff]
    %v622 = vld [vmem:[#allocation2 + $0xe38] sm:$0xff]
    %v623 = vld [vmem:[#allocation2 + $0xe40] sm:$0xff]
    %v624 = vld [vmem:[#allocation2 + $0xe48] sm:$0xff]
    %v625 = vld [vmem:[#allocation2 + $0xe50] sm:$0xff]
    %v626 = vld [vmem:[#allocation2 + $0xe58] sm:$0xff]
    %v627 = vld [vmem:[#allocation2 + $0xe60] sm:$0xff]
    %v628 = vld [vmem:[#allocation2 + $0xe68] sm:$0xff]
    %v629 = vld [vmem:[#allocation2 + $0xe70] sm:$0xff]
    %v630 = vld [vmem:[#allocation2 + $0xe78] sm:$0xff]
    %v631 = vld [vmem:[#allocation2 + $0xe80] sm:$0xff]
    %v632 = vld [vmem:[#allocation2 + $0xe88] sm:$0xff]
    %v633 = vld [vmem:[#allocation2 + $0xe90] sm:$0xff]
    %v634 = vld [vmem:[#allocation2 + $0xe98] sm:$0xff]
    %v635 = vld [vmem:[#allocation2 + $0xea0] sm:$0xff]
    %v636 = vld [vmem:[#allocation2 + $0xea8] sm:$0xff]
    %v637 = vld [vmem:[#allocation2 + $0xeb0] sm:$0xff]
    %v638 = vld [vmem:[#allocation2 + $0xeb8] sm:$0xff]
    %v639 = vld [vmem:[#allocation2 + $0xec0] sm:$0xff]
    %v640 = vld [vmem:[#allocation2 + $0xec8] sm:$0xff]
    %v641 = vld [vmem:[#allocation2 + $0xed0] sm:$0xff]
    %v642 = vld [vmem:[#allocation2 + $0xed8] sm:$0xff]
    %v643 = vld [vmem:[#allocation2 + $0xee0] sm:$0xff]
    %v644 = vld [vmem:[#allocation2 + $0xee8] sm:$0xff]
    %v645 = vld [vmem:[#allocation2 + $0xef0] sm:$0xff]
    %v646 = vld [vmem:[#allocation2 + $0xef8] sm:$0xff]
    %v647 = vld [vmem:[#allocation2 + $0xf00] sm:$0xff]
    %v648 = vld [vmem:[#allocation2 + $0xf08] sm:$0xff]
    %v649 = vld [vmem:[#allocation2 + $0xf10] sm:$0xff]
    %v650 = vld [vmem:[#allocation2 + $0xf18] sm:$0xff]
    %v651 = vld [vmem:[#allocation2 + $0xf20] sm:$0xff]
    %v652 = vld [vmem:[#allocation2 + $0xf28] sm:$0xff]
    %v653 = vld [vmem:[#allocation2 + $0xf30] sm:$0xff]
    %v654 = vld [vmem:[#allocation2 + $0xf38] sm:$0xff]
    %v655 = vld [vmem:[#allocation2 + $0xf40] sm:$0xff]
    %v656 = vld [vmem:[#allocation2 + $0xf48] sm:$0xff]
    %v657 = vld [vmem:[#allocation2 + $0xf50] sm:$0xff]
    %v658 = vld [vmem:[#allocation2 + $0xf58] sm:$0xff]
    %v659 = vld [vmem:[#allocation2 + $0xf60] sm:$0xff]
    %v660 = vld [vmem:[#allocation2 + $0xf68] sm:$0xff]
    %v661 = vld [vmem:[#allocation2 + $0xf70] sm:$0xff]
    %v662 = vld [vmem:[#allocation2 + $0xf78] sm:$0xff]
    %v663 = vld [vmem:[#allocation2 + $0xf80] sm:$0xff]
    %v664 = vld [vmem:[#allocation2 + $0xf88] sm:$0xff]
    %v665 = vld [vmem:[#allocation2 + $0xf90] sm:$0xff]
    %v666 = vld [vmem:[#allocation2 + $0xf98] sm:$0xff]
    %v667 = vld [vmem:[#allocation2 + $0xfa0] sm:$0xff]
    %v668 = vld [vmem:[#allocation2 + $0xfa8] sm:$0xff]
    %v669 = vld [vmem:[#allocation2 + $0xfb0] sm:$0xff]
    %v670 = vld [vmem:[#allocation2 + $0xfb8] sm:$0xff]
    %v671 = vld [vmem:[#allocation2 + $0xfc0] sm:$0xff]
    %v672 = vld [vmem:[#allocation2 + $0xfc8] sm:$0xff]
    %v673 = vld [vmem:[#allocation2 + $0xfd0] sm:$0xff]
    %v674 = vld [vmem:[#allocation2 + $0xfd8] sm:$0xff]
    %v675 = vld [vmem:[#allocation2 + $0xfe0] sm:$0xff]
    %v676 = vld [vmem:[#allocation2 + $0xfe8] sm:$0xff]
    %v677 = vld [vmem:[#allocation2 + $0xff0] sm:$0xff]
    %v678 = vld [vmem:[#allocation2 + $0xff8] sm:$0xff]
    %v679 = vld [vmem:[#allocation4] sm:$0xff]
    %v680 = vld [vmem:[#allocation4 + $0x8] sm:$0xff]
    %v683 = vlaneseq
    %v684 = vshrl.u32 %v683, 7
    %v685 = vsub.s32 0, %v684
    %v686 = vrot.slane %v679, %v685
    %v687 = vlaneseq
    %v688 = vshrl.u32 %v687, 7
    %v689 = vsub.s32 1, %v688
    %v690 = vrot.slane %v679, %v689
    %v691 = vlaneseq
    %v692 = vshrl.u32 %v691, 7
    %v693 = vsub.s32 2, %v692
    %v694 = vrot.slane %v679, %v693
    %v695 = vlaneseq
    %v696 = vshrl.u32 %v695, 7
    %v697 = vsub.s32 3, %v696
    %v698 = vrot.slane %v679, %v697
    %v699 = vlaneseq
    %v700 = vshrl.u32 %v699, 7
    %v701 = vsub.s32 4, %v700
    %v702 = vrot.slane %v679, %v701
    %v703 = vlaneseq
    %v704 = vshrl.u32 %v703, 7
    %v705 = vsub.s32 5, %v704
    %v706 = vrot.slane %v679, %v705
    %v707 = vlaneseq
    %v708 = vshrl.u32 %v707, 7
    %v709 = vsub.s32 6, %v708
    %v710 = vrot.slane %v679, %v709
    %v711 = vlaneseq
    %v712 = vshrl.u32 %v711, 7
    %v713 = vsub.s32 7, %v712
    %v714 = vrot.slane %v679, %v713
    %v715 = vlaneseq
    %v716 = vshrl.u32 %v715, 7
    %v717 = vsub.s32 0, %v716
    %v718 = vrot.slane %v680, %v717
    %v719 = vlaneseq
    %v720 = vshrl.u32 %v719, 7
    %v721 = vsub.s32 1, %v720
    %v722 = vrot.slane %v680, %v721
    %v723 = vlaneseq
    %v724 = vshrl.u32 %v723, 7
    %v725 = vsub.s32 2, %v724
    %v726 = vrot.slane %v680, %v725
    %v727 = vlaneseq
    %v728 = vshrl.u32 %v727, 7
    %v729 = vsub.s32 3, %v728
    %v730 = vrot.slane %v680, %v729
    %v731 = vlaneseq
    %v732 = vshrl.u32 %v731, 7
    %v733 = vsub.s32 4, %v732
    %v734 = vrot.slane %v680, %v733
    %v735 = vlaneseq
    %v736 = vshrl.u32 %v735, 7
    %v737 = vsub.s32 5, %v736
    %v738 = vrot.slane %v680, %v737
    %v739 = vlaneseq
    %v740 = vshrl.u32 %v739, 7
    %v741 = vsub.s32 6, %v740
    %v742 = vrot.slane %v680, %v741
    %v743 = vlaneseq
    %v744 = vshrl.u32 %v743, 7
    %v745 = vsub.s32 7, %v744
    %v746 = vrot.slane %v680, %v745
    %v765 = vunpack.c.l.b16 %v165
    %v766 = vunpack.c.h.b16 %v165
    %v767 = vunpack.c.l.b16 %v166
    %v768 = vunpack.c.h.b16 %v166
    %v769 = vpack.c.b16 %v765, %v765
    %v770 = vpack.c.b16 %v766, %v766
    %v771 = vpack.c.b16 %v767, %v767
    %v772 = vpack.c.b16 %v768, %v768
    %v1289 = vunpack.c.l.b16 %v167
    %v1290 = vunpack.c.h.b16 %v167
    %v1291 = vunpack.c.l.b16 %v168
    %v1292 = vunpack.c.h.b16 %v168
    %v1293 = vunpack.c.l.b16 %v169
    %v1294 = vunpack.c.h.b16 %v169
    %v1295 = vunpack.c.l.b16 %v170
    %v1296 = vunpack.c.h.b16 %v170
    %v1297 = vunpack.c.l.b16 %v171
    %v1298 = vunpack.c.h.b16 %v171
    %v1299 = vunpack.c.l.b16 %v172
    %v1300 = vunpack.c.h.b16 %v172
    %v1301 = vunpack.c.l.b16 %v173
    %v1302 = vunpack.c.h.b16 %v173
    %v1303 = vunpack.c.l.b16 %v174
    %v1304 = vunpack.c.h.b16 %v174
    %v1305 = vunpack.c.l.b16 %v175
    %v1306 = vunpack.c.h.b16 %v175
    %v1307 = vunpack.c.l.b16 %v176
    %v1308 = vunpack.c.h.b16 %v176
    %v1309 = vunpack.c.l.b16 %v177
    %v1310 = vunpack.c.h.b16 %v177
    %v1311 = vunpack.c.l.b16 %v178
    %v1312 = vunpack.c.h.b16 %v178
    %v1313 = vunpack.c.l.b16 %v179
    %v1314 = vunpack.c.h.b16 %v179
    %v1315 = vunpack.c.l.b16 %v180
    %v1316 = vunpack.c.h.b16 %v180
    %v1317 = vunpack.c.l.b16 %v181
    %v1318 = vunpack.c.h.b16 %v181
    %v1319 = vunpack.c.l.b16 %v182
    %v1320 = vunpack.c.h.b16 %v182
    %v1321 = vunpack.c.l.b16 %v183
    %v1322 = vunpack.c.h.b16 %v183
    %v1323 = vunpack.c.l.b16 %v184
    %v1324 = vunpack.c.h.b16 %v184
    %v1325 = vunpack.c.l.b16 %v185
    %v1326 = vunpack.c.h.b16 %v185
    %v1327 = vunpack.c.l.b16 %v186
    %v1328 = vunpack.c.h.b16 %v186
    %v1329 = vunpack.c.l.b16 %v187
    %v1330 = vunpack.c.h.b16 %v187
    %v1331 = vunpack.c.l.b16 %v188
    %v1332 = vunpack.c.h.b16 %v188
    %v1333 = vunpack.c.l.b16 %v189
    %v1334 = vunpack.c.h.b16 %v189
    %v1335 = vunpack.c.l.b16 %v190
    %v1336 = vunpack.c.h.b16 %v190
    %v1337 = vunpack.c.l.b16 %v191
    %v1338 = vunpack.c.h.b16 %v191
    %v1339 = vunpack.c.l.b16 %v192
    %v1340 = vunpack.c.h.b16 %v192
    %v1341 = vunpack.c.l.b16 %v193
    %v1342 = vunpack.c.h.b16 %v193
    %v1343 = vunpack.c.l.b16 %v194
    %v1344 = vunpack.c.h.b16 %v194
    %v1345 = vunpack.c.l.b16 %v195
    %v1346 = vunpack.c.h.b16 %v195
    %v1347 = vunpack.c.l.b16 %v196
    %v1348 = vunpack.c.h.b16 %v196
    %v1349 = vunpack.c.l.b16 %v197
    %v1350 = vunpack.c.h.b16 %v197
    %v1351 = vunpack.c.l.b16 %v198
    %v1352 = vunpack.c.h.b16 %v198
    %v1353 = vunpack.c.l.b16 %v199
    %v1354 = vunpack.c.h.b16 %v199
    %v1355 = vunpack.c.l.b16 %v200
    %v1356 = vunpack.c.h.b16 %v200
    %v1357 = vunpack.c.l.b16 %v201
    %v1358 = vunpack.c.h.b16 %v201
    %v1359 = vunpack.c.l.b16 %v202
    %v1360 = vunpack.c.h.b16 %v202
    %v1361 = vunpack.c.l.b16 %v203
    %v1362 = vunpack.c.h.b16 %v203
    %v1363 = vunpack.c.l.b16 %v204
    %v1364 = vunpack.c.h.b16 %v204
    %v1365 = vunpack.c.l.b16 %v205
    %v1366 = vunpack.c.h.b16 %v205
    %v1367 = vunpack.c.l.b16 %v206
    %v1368 = vunpack.c.h.b16 %v206
    %v1369 = vunpack.c.l.b16 %v207
    %v1370 = vunpack.c.h.b16 %v207
    %v1371 = vunpack.c.l.b16 %v208
    %v1372 = vunpack.c.h.b16 %v208
    %v1373 = vunpack.c.l.b16 %v209
    %v1374 = vunpack.c.h.b16 %v209
    %v1375 = vunpack.c.l.b16 %v210
    %v1376 = vunpack.c.h.b16 %v210
    %v1377 = vunpack.c.l.b16 %v211
    %v1378 = vunpack.c.h.b16 %v211
    %v1379 = vunpack.c.l.b16 %v212
    %v1380 = vunpack.c.h.b16 %v212
    %v1381 = vunpack.c.l.b16 %v213
    %v1382 = vunpack.c.h.b16 %v213
    %v1383 = vunpack.c.l.b16 %v214
    %v1384 = vunpack.c.h.b16 %v214
    %v1385 = vunpack.c.l.b16 %v215
    %v1386 = vunpack.c.h.b16 %v215
    %v1387 = vunpack.c.l.b16 %v216
    %v1388 = vunpack.c.h.b16 %v216
    %v1389 = vunpack.c.l.b16 %v217
    %v1390 = vunpack.c.h.b16 %v217
    %v1391 = vunpack.c.l.b16 %v218
    %v1392 = vunpack.c.h.b16 %v218
    %v1393 = vunpack.c.l.b16 %v219
    %v1394 = vunpack.c.h.b16 %v219
    %v1395 = vunpack.c.l.b16 %v220
    %v1396 = vunpack.c.h.b16 %v220
    %v1397 = vunpack.c.l.b16 %v221
    %v1398 = vunpack.c.h.b16 %v221
    %v1399 = vunpack.c.l.b16 %v222
    %v1400 = vunpack.c.h.b16 %v222
    %v1401 = vunpack.c.l.b16 %v223
    %v1402 = vunpack.c.h.b16 %v223
    %v1403 = vunpack.c.l.b16 %v224
    %v1404 = vunpack.c.h.b16 %v224
    %v1405 = vunpack.c.l.b16 %v225
    %v1406 = vunpack.c.h.b16 %v225
    %v1407 = vunpack.c.l.b16 %v226
    %v1408 = vunpack.c.h.b16 %v226
    %v1409 = vunpack.c.l.b16 %v227
    %v1410 = vunpack.c.h.b16 %v227
    %v1411 = vunpack.c.l.b16 %v228
    %v1412 = vunpack.c.h.b16 %v228
    %v1413 = vunpack.c.l.b16 %v229
    %v1414 = vunpack.c.h.b16 %v229
    %v1415 = vunpack.c.l.b16 %v230
    %v1416 = vunpack.c.h.b16 %v230
    %v1417 = vunpack.c.l.b16 %v231
    %v1418 = vunpack.c.h.b16 %v231
    %v1419 = vunpack.c.l.b16 %v232
    %v1420 = vunpack.c.h.b16 %v232
    %v1421 = vunpack.c.l.b16 %v233
    %v1422 = vunpack.c.h.b16 %v233
    %v1423 = vunpack.c.l.b16 %v234
    %v1424 = vunpack.c.h.b16 %v234
    %v1425 = vunpack.c.l.b16 %v235
    %v1426 = vunpack.c.h.b16 %v235
    %v1427 = vunpack.c.l.b16 %v236
    %v1428 = vunpack.c.h.b16 %v236
    %v1429 = vunpack.c.l.b16 %v237
    %v1430 = vunpack.c.h.b16 %v237
    %v1431 = vunpack.c.l.b16 %v238
    %v1432 = vunpack.c.h.b16 %v238
    %v1433 = vunpack.c.l.b16 %v239
    %v1434 = vunpack.c.h.b16 %v239
    %v1435 = vunpack.c.l.b16 %v240
    %v1436 = vunpack.c.h.b16 %v240
    %v1437 = vunpack.c.l.b16 %v241
    %v1438 = vunpack.c.h.b16 %v241
    %v1439 = vunpack.c.l.b16 %v242
    %v1440 = vunpack.c.h.b16 %v242
    %v1441 = vunpack.c.l.b16 %v243
    %v1442 = vunpack.c.h.b16 %v243
    %v1443 = vunpack.c.l.b16 %v244
    %v1444 = vunpack.c.h.b16 %v244
    %v1445 = vunpack.c.l.b16 %v245
    %v1446 = vunpack.c.h.b16 %v245
    %v1447 = vunpack.c.l.b16 %v246
    %v1448 = vunpack.c.h.b16 %v246
    %v1449 = vunpack.c.l.b16 %v247
    %v1450 = vunpack.c.h.b16 %v247
    %v1451 = vunpack.c.l.b16 %v248
    %v1452 = vunpack.c.h.b16 %v248
    %v1453 = vunpack.c.l.b16 %v249
    %v1454 = vunpack.c.h.b16 %v249
    %v1455 = vunpack.c.l.b16 %v250
    %v1456 = vunpack.c.h.b16 %v250
    %v1457 = vunpack.c.l.b16 %v251
    %v1458 = vunpack.c.h.b16 %v251
    %v1459 = vunpack.c.l.b16 %v252
    %v1460 = vunpack.c.h.b16 %v252
    %v1461 = vunpack.c.l.b16 %v253
    %v1462 = vunpack.c.h.b16 %v253
    %v1463 = vunpack.c.l.b16 %v254
    %v1464 = vunpack.c.h.b16 %v254
    %v1465 = vunpack.c.l.b16 %v255
    %v1466 = vunpack.c.h.b16 %v255
    %v1467 = vunpack.c.l.b16 %v256
    %v1468 = vunpack.c.h.b16 %v256
    %v1469 = vunpack.c.l.b16 %v257
    %v1470 = vunpack.c.h.b16 %v257
    %v1471 = vunpack.c.l.b16 %v258
    %v1472 = vunpack.c.h.b16 %v258
    %v1473 = vunpack.c.l.b16 %v259
    %v1474 = vunpack.c.h.b16 %v259
    %v1475 = vunpack.c.l.b16 %v260
    %v1476 = vunpack.c.h.b16 %v260
    %v1477 = vunpack.c.l.b16 %v261
    %v1478 = vunpack.c.h.b16 %v261
    %v1479 = vunpack.c.l.b16 %v262
    %v1480 = vunpack.c.h.b16 %v262
    %v1481 = vunpack.c.l.b16 %v263
    %v1482 = vunpack.c.h.b16 %v263
    %v1483 = vunpack.c.l.b16 %v264
    %v1484 = vunpack.c.h.b16 %v264
    %v1485 = vunpack.c.l.b16 %v265
    %v1486 = vunpack.c.h.b16 %v265
    %v1487 = vunpack.c.l.b16 %v266
    %v1488 = vunpack.c.h.b16 %v266
    %v1489 = vunpack.c.l.b16 %v267
    %v1490 = vunpack.c.h.b16 %v267
    %v1491 = vunpack.c.l.b16 %v268
    %v1492 = vunpack.c.h.b16 %v268
    %v1493 = vunpack.c.l.b16 %v269
    %v1494 = vunpack.c.h.b16 %v269
    %v1495 = vunpack.c.l.b16 %v270
    %v1496 = vunpack.c.h.b16 %v270
    %v1497 = vunpack.c.l.b16 %v271
    %v1498 = vunpack.c.h.b16 %v271
    %v1499 = vunpack.c.l.b16 %v272
    %v1500 = vunpack.c.h.b16 %v272
    %v1501 = vunpack.c.l.b16 %v273
    %v1502 = vunpack.c.h.b16 %v273
    %v1503 = vunpack.c.l.b16 %v274
    %v1504 = vunpack.c.h.b16 %v274
    %v1505 = vunpack.c.l.b16 %v275
    %v1506 = vunpack.c.h.b16 %v275
    %v1507 = vunpack.c.l.b16 %v276
    %v1508 = vunpack.c.h.b16 %v276
    %v1509 = vunpack.c.l.b16 %v277
    %v1510 = vunpack.c.h.b16 %v277
    %v1511 = vunpack.c.l.b16 %v278
    %v1512 = vunpack.c.h.b16 %v278
    %v1513 = vunpack.c.l.b16 %v279
    %v1514 = vunpack.c.h.b16 %v279
    %v1515 = vunpack.c.l.b16 %v280
    %v1516 = vunpack.c.h.b16 %v280
    %v1517 = vunpack.c.l.b16 %v281
    %v1518 = vunpack.c.h.b16 %v281
    %v1519 = vunpack.c.l.b16 %v282
    %v1520 = vunpack.c.h.b16 %v282
    %v1521 = vunpack.c.l.b16 %v283
    %v1522 = vunpack.c.h.b16 %v283
    %v1523 = vunpack.c.l.b16 %v284
    %v1524 = vunpack.c.h.b16 %v284
    %v1525 = vunpack.c.l.b16 %v285
    %v1526 = vunpack.c.h.b16 %v285
    %v1527 = vunpack.c.l.b16 %v286
    %v1528 = vunpack.c.h.b16 %v286
    %v1529 = vunpack.c.l.b16 %v287
    %v1530 = vunpack.c.h.b16 %v287
    %v1531 = vunpack.c.l.b16 %v288
    %v1532 = vunpack.c.h.b16 %v288
    %v1533 = vunpack.c.l.b16 %v289
    %v1534 = vunpack.c.h.b16 %v289
    %v1535 = vunpack.c.l.b16 %v290
    %v1536 = vunpack.c.h.b16 %v290
    %v1537 = vunpack.c.l.b16 %v291
    %v1538 = vunpack.c.h.b16 %v291
    %v1539 = vunpack.c.l.b16 %v292
    %v1540 = vunpack.c.h.b16 %v292
    %v1541 = vunpack.c.l.b16 %v293
    %v1542 = vunpack.c.h.b16 %v293
    %v1543 = vunpack.c.l.b16 %v294
    %v1544 = vunpack.c.h.b16 %v294
    %v1545 = vunpack.c.l.b16 %v295
    %v1546 = vunpack.c.h.b16 %v295
    %v1547 = vunpack.c.l.b16 %v296
    %v1548 = vunpack.c.h.b16 %v296
    %v1549 = vunpack.c.l.b16 %v297
    %v1550 = vunpack.c.h.b16 %v297
    %v1551 = vunpack.c.l.b16 %v298
    %v1552 = vunpack.c.h.b16 %v298
    %v1553 = vunpack.c.l.b16 %v299
    %v1554 = vunpack.c.h.b16 %v299
    %v1555 = vunpack.c.l.b16 %v300
    %v1556 = vunpack.c.h.b16 %v300
    %v1557 = vunpack.c.l.b16 %v301
    %v1558 = vunpack.c.h.b16 %v301
    %v1559 = vunpack.c.l.b16 %v302
    %v1560 = vunpack.c.h.b16 %v302
    %v1561 = vunpack.c.l.b16 %v303
    %v1562 = vunpack.c.h.b16 %v303
    %v1563 = vunpack.c.l.b16 %v304
    %v1564 = vunpack.c.h.b16 %v304
    %v1565 = vunpack.c.l.b16 %v305
    %v1566 = vunpack.c.h.b16 %v305
    %v1567 = vunpack.c.l.b16 %v306
    %v1568 = vunpack.c.h.b16 %v306
    %v1569 = vunpack.c.l.b16 %v307
    %v1570 = vunpack.c.h.b16 %v307
    %v1571 = vunpack.c.l.b16 %v308
    %v1572 = vunpack.c.h.b16 %v308
    %v1573 = vunpack.c.l.b16 %v309
    %v1574 = vunpack.c.h.b16 %v309
    %v1575 = vunpack.c.l.b16 %v310
    %v1576 = vunpack.c.h.b16 %v310
    %v1577 = vunpack.c.l.b16 %v311
    %v1578 = vunpack.c.h.b16 %v311
    %v1579 = vunpack.c.l.b16 %v312
    %v1580 = vunpack.c.h.b16 %v312
    %v1581 = vunpack.c.l.b16 %v313
    %v1582 = vunpack.c.h.b16 %v313
    %v1583 = vunpack.c.l.b16 %v314
    %v1584 = vunpack.c.h.b16 %v314
    %v1585 = vunpack.c.l.b16 %v315
    %v1586 = vunpack.c.h.b16 %v315
    %v1587 = vunpack.c.l.b16 %v316
    %v1588 = vunpack.c.h.b16 %v316
    %v1589 = vunpack.c.l.b16 %v317
    %v1590 = vunpack.c.h.b16 %v317
    %v1591 = vunpack.c.l.b16 %v318
    %v1592 = vunpack.c.h.b16 %v318
    %v1593 = vunpack.c.l.b16 %v319
    %v1594 = vunpack.c.h.b16 %v319
    %v1595 = vunpack.c.l.b16 %v320
    %v1596 = vunpack.c.h.b16 %v320
    %v1597 = vunpack.c.l.b16 %v321
    %v1598 = vunpack.c.h.b16 %v321
    %v1599 = vunpack.c.l.b16 %v322
    %v1600 = vunpack.c.h.b16 %v322
    %v1601 = vunpack.c.l.b16 %v323
    %v1602 = vunpack.c.h.b16 %v323
    %v1603 = vunpack.c.l.b16 %v324
    %v1604 = vunpack.c.h.b16 %v324
    %v1605 = vunpack.c.l.b16 %v325
    %v1606 = vunpack.c.h.b16 %v325
    %v1607 = vunpack.c.l.b16 %v326
    %v1608 = vunpack.c.h.b16 %v326
    %v1609 = vunpack.c.l.b16 %v327
    %v1610 = vunpack.c.h.b16 %v327
    %v1611 = vunpack.c.l.b16 %v328
    %v1612 = vunpack.c.h.b16 %v328
    %v1613 = vunpack.c.l.b16 %v329
    %v1614 = vunpack.c.h.b16 %v329
    %v1615 = vunpack.c.l.b16 %v330
    %v1616 = vunpack.c.h.b16 %v330
    %v1617 = vunpack.c.l.b16 %v331
    %v1618 = vunpack.c.h.b16 %v331
    %v1619 = vunpack.c.l.b16 %v332
    %v1620 = vunpack.c.h.b16 %v332
    %v1621 = vunpack.c.l.b16 %v333
    %v1622 = vunpack.c.h.b16 %v333
    %v1623 = vunpack.c.l.b16 %v334
    %v1624 = vunpack.c.h.b16 %v334
    %v1625 = vunpack.c.l.b16 %v335
    %v1626 = vunpack.c.h.b16 %v335
    %v1627 = vunpack.c.l.b16 %v336
    %v1628 = vunpack.c.h.b16 %v336
    %v1629 = vunpack.c.l.b16 %v337
    %v1630 = vunpack.c.h.b16 %v337
    %v1631 = vunpack.c.l.b16 %v338
    %v1632 = vunpack.c.h.b16 %v338
    %v1633 = vunpack.c.l.b16 %v339
    %v1634 = vunpack.c.h.b16 %v339
    %v1635 = vunpack.c.l.b16 %v340
    %v1636 = vunpack.c.h.b16 %v340
    %v1637 = vunpack.c.l.b16 %v341
    %v1638 = vunpack.c.h.b16 %v341
    %v1639 = vunpack.c.l.b16 %v342
    %v1640 = vunpack.c.h.b16 %v342
    %v1641 = vunpack.c.l.b16 %v343
    %v1642 = vunpack.c.h.b16 %v343
    %v1643 = vunpack.c.l.b16 %v344
    %v1644 = vunpack.c.h.b16 %v344
    %v1645 = vunpack.c.l.b16 %v345
    %v1646 = vunpack.c.h.b16 %v345
    %v1647 = vunpack.c.l.b16 %v346
    %v1648 = vunpack.c.h.b16 %v346
    %v1649 = vunpack.c.l.b16 %v347
    %v1650 = vunpack.c.h.b16 %v347
    %v1651 = vunpack.c.l.b16 %v348
    %v1652 = vunpack.c.h.b16 %v348
    %v1653 = vunpack.c.l.b16 %v349
    %v1654 = vunpack.c.h.b16 %v349
    %v1655 = vunpack.c.l.b16 %v350
    %v1656 = vunpack.c.h.b16 %v350
    %v1657 = vunpack.c.l.b16 %v351
    %v1658 = vunpack.c.h.b16 %v351
    %v1659 = vunpack.c.l.b16 %v352
    %v1660 = vunpack.c.h.b16 %v352
    %v1661 = vunpack.c.l.b16 %v353
    %v1662 = vunpack.c.h.b16 %v353
    %v1663 = vunpack.c.l.b16 %v354
    %v1664 = vunpack.c.h.b16 %v354
    %v1665 = vunpack.c.l.b16 %v355
    %v1666 = vunpack.c.h.b16 %v355
    %v1667 = vunpack.c.l.b16 %v356
    %v1668 = vunpack.c.h.b16 %v356
    %v1669 = vunpack.c.l.b16 %v357
    %v1670 = vunpack.c.h.b16 %v357
    %v1671 = vunpack.c.l.b16 %v358
    %v1672 = vunpack.c.h.b16 %v358
    %v1673 = vunpack.c.l.b16 %v359
    %v1674 = vunpack.c.h.b16 %v359
    %v1675 = vunpack.c.l.b16 %v360
    %v1676 = vunpack.c.h.b16 %v360
    %v1677 = vunpack.c.l.b16 %v361
    %v1678 = vunpack.c.h.b16 %v361
    %v1679 = vunpack.c.l.b16 %v362
    %v1680 = vunpack.c.h.b16 %v362
    %v1681 = vunpack.c.l.b16 %v363
    %v1682 = vunpack.c.h.b16 %v363
    %v1683 = vunpack.c.l.b16 %v364
    %v1684 = vunpack.c.h.b16 %v364
    %v1685 = vunpack.c.l.b16 %v365
    %v1686 = vunpack.c.h.b16 %v365
    %v1687 = vunpack.c.l.b16 %v366
    %v1688 = vunpack.c.h.b16 %v366
    %v1689 = vunpack.c.l.b16 %v367
    %v1690 = vunpack.c.h.b16 %v367
    %v1691 = vunpack.c.l.b16 %v368
    %v1692 = vunpack.c.h.b16 %v368
    %v1693 = vunpack.c.l.b16 %v369
    %v1694 = vunpack.c.h.b16 %v369
    %v1695 = vunpack.c.l.b16 %v370
    %v1696 = vunpack.c.h.b16 %v370
    %v1697 = vunpack.c.l.b16 %v371
    %v1698 = vunpack.c.h.b16 %v371
    %v1699 = vunpack.c.l.b16 %v372
    %v1700 = vunpack.c.h.b16 %v372
    %v1701 = vunpack.c.l.b16 %v373
    %v1702 = vunpack.c.h.b16 %v373
    %v1703 = vunpack.c.l.b16 %v374
    %v1704 = vunpack.c.h.b16 %v374
    %v1705 = vunpack.c.l.b16 %v375
    %v1706 = vunpack.c.h.b16 %v375
    %v1707 = vunpack.c.l.b16 %v376
    %v1708 = vunpack.c.h.b16 %v376
    %v1709 = vunpack.c.l.b16 %v377
    %v1710 = vunpack.c.h.b16 %v377
    %v1711 = vunpack.c.l.b16 %v378
    %v1712 = vunpack.c.h.b16 %v378
    %v1713 = vunpack.c.l.b16 %v379
    %v1714 = vunpack.c.h.b16 %v379
    %v1715 = vunpack.c.l.b16 %v380
    %v1716 = vunpack.c.h.b16 %v380
    %v1717 = vunpack.c.l.b16 %v381
    %v1718 = vunpack.c.h.b16 %v381
    %v1719 = vunpack.c.l.b16 %v382
    %v1720 = vunpack.c.h.b16 %v382
    %v1721 = vunpack.c.l.b16 %v383
    %v1722 = vunpack.c.h.b16 %v383
    %v1723 = vunpack.c.l.b16 %v384
    %v1724 = vunpack.c.h.b16 %v384
    %v1725 = vunpack.c.l.b16 %v385
    %v1726 = vunpack.c.h.b16 %v385
    %v1727 = vunpack.c.l.b16 %v386
    %v1728 = vunpack.c.h.b16 %v386
    %v1729 = vunpack.c.l.b16 %v387
    %v1730 = vunpack.c.h.b16 %v387
    %v1731 = vunpack.c.l.b16 %v388
    %v1732 = vunpack.c.h.b16 %v388
    %v1733 = vunpack.c.l.b16 %v389
    %v1734 = vunpack.c.h.b16 %v389
    %v1735 = vunpack.c.l.b16 %v390
    %v1736 = vunpack.c.h.b16 %v390
    %v1737 = vunpack.c.l.b16 %v391
    %v1738 = vunpack.c.h.b16 %v391
    %v1739 = vunpack.c.l.b16 %v392
    %v1740 = vunpack.c.h.b16 %v392
    %v1741 = vunpack.c.l.b16 %v393
    %v1742 = vunpack.c.h.b16 %v393
    %v1743 = vunpack.c.l.b16 %v394
    %v1744 = vunpack.c.h.b16 %v394
    %v1745 = vunpack.c.l.b16 %v395
    %v1746 = vunpack.c.h.b16 %v395
    %v1747 = vunpack.c.l.b16 %v396
    %v1748 = vunpack.c.h.b16 %v396
    %v1749 = vunpack.c.l.b16 %v397
    %v1750 = vunpack.c.h.b16 %v397
    %v1751 = vunpack.c.l.b16 %v398
    %v1752 = vunpack.c.h.b16 %v398
    %v1753 = vunpack.c.l.b16 %v399
    %v1754 = vunpack.c.h.b16 %v399
    %v1755 = vunpack.c.l.b16 %v400
    %v1756 = vunpack.c.h.b16 %v400
    %v1757 = vunpack.c.l.b16 %v401
    %v1758 = vunpack.c.h.b16 %v401
    %v1759 = vunpack.c.l.b16 %v402
    %v1760 = vunpack.c.h.b16 %v402
    %v1761 = vunpack.c.l.b16 %v403
    %v1762 = vunpack.c.h.b16 %v403
    %v1763 = vunpack.c.l.b16 %v404
    %v1764 = vunpack.c.h.b16 %v404
    %v1765 = vunpack.c.l.b16 %v405
    %v1766 = vunpack.c.h.b16 %v405
    %v1767 = vunpack.c.l.b16 %v406
    %v1768 = vunpack.c.h.b16 %v406
    %v1769 = vunpack.c.l.b16 %v407
    %v1770 = vunpack.c.h.b16 %v407
    %v1771 = vunpack.c.l.b16 %v408
    %v1772 = vunpack.c.h.b16 %v408
    %v1773 = vunpack.c.l.b16 %v409
    %v1774 = vunpack.c.h.b16 %v409
    %v1775 = vunpack.c.l.b16 %v410
    %v1776 = vunpack.c.h.b16 %v410
    %v1777 = vunpack.c.l.b16 %v411
    %v1778 = vunpack.c.h.b16 %v411
    %v1779 = vunpack.c.l.b16 %v412
    %v1780 = vunpack.c.h.b16 %v412
    %v1781 = vunpack.c.l.b16 %v413
    %v1782 = vunpack.c.h.b16 %v413
    %v1783 = vunpack.c.l.b16 %v414
    %v1784 = vunpack.c.h.b16 %v414
    %v1785 = vunpack.c.l.b16 %v415
    %v1786 = vunpack.c.h.b16 %v415
    %v1787 = vunpack.c.l.b16 %v416
    %v1788 = vunpack.c.h.b16 %v416
    %v1789 = vunpack.c.l.b16 %v417
    %v1790 = vunpack.c.h.b16 %v417
    %v1791 = vunpack.c.l.b16 %v418
    %v1792 = vunpack.c.h.b16 %v418
    %v1793 = vunpack.c.l.b16 %v419
    %v1794 = vunpack.c.h.b16 %v419
    %v1795 = vunpack.c.l.b16 %v420
    %v1796 = vunpack.c.h.b16 %v420
    %v1797 = vunpack.c.l.b16 %v421
    %v1798 = vunpack.c.h.b16 %v421
    %v1799 = vunpack.c.l.b16 %v422
    %v1800 = vunpack.c.h.b16 %v422
    %v1801 = vunpack.c.l.b16 %v423
    %v1802 = vunpack.c.h.b16 %v423
    %v1803 = vunpack.c.l.b16 %v424
    %v1804 = vunpack.c.h.b16 %v424
    %v1805 = vunpack.c.l.b16 %v425
    %v1806 = vunpack.c.h.b16 %v425
    %v1807 = vunpack.c.l.b16 %v426
    %v1808 = vunpack.c.h.b16 %v426
    %v1809 = vunpack.c.l.b16 %v427
    %v1810 = vunpack.c.h.b16 %v427
    %v1811 = vunpack.c.l.b16 %v428
    %v1812 = vunpack.c.h.b16 %v428
    %v1813 = vunpack.c.l.b16 %v429
    %v1814 = vunpack.c.h.b16 %v429
    %v1815 = vunpack.c.l.b16 %v430
    %v1816 = vunpack.c.h.b16 %v430
    %v1817 = vunpack.c.l.b16 %v431
    %v1818 = vunpack.c.h.b16 %v431
    %v1819 = vunpack.c.l.b16 %v432
    %v1820 = vunpack.c.h.b16 %v432
    %v1821 = vunpack.c.l.b16 %v433
    %v1822 = vunpack.c.h.b16 %v433
    %v1823 = vunpack.c.l.b16 %v434
    %v1824 = vunpack.c.h.b16 %v434
    %v1825 = vunpack.c.l.b16 %v435
    %v1826 = vunpack.c.h.b16 %v435
    %v1827 = vunpack.c.l.b16 %v436
    %v1828 = vunpack.c.h.b16 %v436
    %v1829 = vunpack.c.l.b16 %v437
    %v1830 = vunpack.c.h.b16 %v437
    %v1831 = vunpack.c.l.b16 %v438
    %v1832 = vunpack.c.h.b16 %v438
    %v1833 = vunpack.c.l.b16 %v439
    %v1834 = vunpack.c.h.b16 %v439
    %v1835 = vunpack.c.l.b16 %v440
    %v1836 = vunpack.c.h.b16 %v440
    %v1837 = vunpack.c.l.b16 %v441
    %v1838 = vunpack.c.h.b16 %v441
    %v1839 = vunpack.c.l.b16 %v442
    %v1840 = vunpack.c.h.b16 %v442
    %v1841 = vunpack.c.l.b16 %v443
    %v1842 = vunpack.c.h.b16 %v443
    %v1843 = vunpack.c.l.b16 %v444
    %v1844 = vunpack.c.h.b16 %v444
    %v1845 = vunpack.c.l.b16 %v445
    %v1846 = vunpack.c.h.b16 %v445
    %v1847 = vunpack.c.l.b16 %v446
    %v1848 = vunpack.c.h.b16 %v446
    %v1849 = vunpack.c.l.b16 %v447
    %v1850 = vunpack.c.h.b16 %v447
    %v1851 = vunpack.c.l.b16 %v448
    %v1852 = vunpack.c.h.b16 %v448
    %v1853 = vunpack.c.l.b16 %v449
    %v1854 = vunpack.c.h.b16 %v449
    %v1855 = vunpack.c.l.b16 %v450
    %v1856 = vunpack.c.h.b16 %v450
    %v1857 = vunpack.c.l.b16 %v451
    %v1858 = vunpack.c.h.b16 %v451
    %v1859 = vunpack.c.l.b16 %v452
    %v1860 = vunpack.c.h.b16 %v452
    %v1861 = vunpack.c.l.b16 %v453
    %v1862 = vunpack.c.h.b16 %v453
    %v1863 = vunpack.c.l.b16 %v454
    %v1864 = vunpack.c.h.b16 %v454
    %v1865 = vunpack.c.l.b16 %v455
    %v1866 = vunpack.c.h.b16 %v455
    %v1867 = vunpack.c.l.b16 %v456
    %v1868 = vunpack.c.h.b16 %v456
    %v1869 = vunpack.c.l.b16 %v457
    %v1870 = vunpack.c.h.b16 %v457
    %v1871 = vunpack.c.l.b16 %v458
    %v1872 = vunpack.c.h.b16 %v458
    %v1873 = vunpack.c.l.b16 %v459
    %v1874 = vunpack.c.h.b16 %v459
    %v1875 = vunpack.c.l.b16 %v460
    %v1876 = vunpack.c.h.b16 %v460
    %v1877 = vunpack.c.l.b16 %v461
    %v1878 = vunpack.c.h.b16 %v461
    %v1879 = vunpack.c.l.b16 %v462
    %v1880 = vunpack.c.h.b16 %v462
    %v1881 = vunpack.c.l.b16 %v463
    %v1882 = vunpack.c.h.b16 %v463
    %v1883 = vunpack.c.l.b16 %v464
    %v1884 = vunpack.c.h.b16 %v464
    %v1885 = vunpack.c.l.b16 %v465
    %v1886 = vunpack.c.h.b16 %v465
    %v1887 = vunpack.c.l.b16 %v466
    %v1888 = vunpack.c.h.b16 %v466
    %v1889 = vunpack.c.l.b16 %v467
    %v1890 = vunpack.c.h.b16 %v467
    %v1891 = vunpack.c.l.b16 %v468
    %v1892 = vunpack.c.h.b16 %v468
    %v1893 = vunpack.c.l.b16 %v469
    %v1894 = vunpack.c.h.b16 %v469
    %v1895 = vunpack.c.l.b16 %v470
    %v1896 = vunpack.c.h.b16 %v470
    %v1897 = vunpack.c.l.b16 %v471
    %v1898 = vunpack.c.h.b16 %v471
    %v1899 = vunpack.c.l.b16 %v472
    %v1900 = vunpack.c.h.b16 %v472
    %v1901 = vunpack.c.l.b16 %v473
    %v1902 = vunpack.c.h.b16 %v473
    %v1903 = vunpack.c.l.b16 %v474
    %v1904 = vunpack.c.h.b16 %v474
    %v1905 = vunpack.c.l.b16 %v475
    %v1906 = vunpack.c.h.b16 %v475
    %v1907 = vunpack.c.l.b16 %v476
    %v1908 = vunpack.c.h.b16 %v476
    %v1909 = vunpack.c.l.b16 %v477
    %v1910 = vunpack.c.h.b16 %v477
    %v1911 = vunpack.c.l.b16 %v478
    %v1912 = vunpack.c.h.b16 %v478
    %v1913 = vunpack.c.l.b16 %v479
    %v1914 = vunpack.c.h.b16 %v479
    %v1915 = vunpack.c.l.b16 %v480
    %v1916 = vunpack.c.h.b16 %v480
    %v1917 = vunpack.c.l.b16 %v481
    %v1918 = vunpack.c.h.b16 %v481
    %v1919 = vunpack.c.l.b16 %v482
    %v1920 = vunpack.c.h.b16 %v482
    %v1921 = vunpack.c.l.b16 %v483
    %v1922 = vunpack.c.h.b16 %v483
    %v1923 = vunpack.c.l.b16 %v484
    %v1924 = vunpack.c.h.b16 %v484
    %v1925 = vunpack.c.l.b16 %v485
    %v1926 = vunpack.c.h.b16 %v485
    %v1927 = vunpack.c.l.b16 %v486
    %v1928 = vunpack.c.h.b16 %v486
    %v1929 = vunpack.c.l.b16 %v487
    %v1930 = vunpack.c.h.b16 %v487
    %v1931 = vunpack.c.l.b16 %v488
    %v1932 = vunpack.c.h.b16 %v488
    %v1933 = vunpack.c.l.b16 %v489
    %v1934 = vunpack.c.h.b16 %v489
    %v1935 = vunpack.c.l.b16 %v490
    %v1936 = vunpack.c.h.b16 %v490
    %v1937 = vunpack.c.l.b16 %v491
    %v1938 = vunpack.c.h.b16 %v491
    %v1939 = vunpack.c.l.b16 %v492
    %v1940 = vunpack.c.h.b16 %v492
    %v1941 = vunpack.c.l.b16 %v493
    %v1942 = vunpack.c.h.b16 %v493
    %v1943 = vunpack.c.l.b16 %v494
    %v1944 = vunpack.c.h.b16 %v494
    %v1945 = vunpack.c.l.b16 %v495
    %v1946 = vunpack.c.h.b16 %v495
    %v1947 = vunpack.c.l.b16 %v496
    %v1948 = vunpack.c.h.b16 %v496
    %v1949 = vunpack.c.l.b16 %v497
    %v1950 = vunpack.c.h.b16 %v497
    %v1951 = vunpack.c.l.b16 %v498
    %v1952 = vunpack.c.h.b16 %v498
    %v1953 = vunpack.c.l.b16 %v499
    %v1954 = vunpack.c.h.b16 %v499
    %v1955 = vunpack.c.l.b16 %v500
    %v1956 = vunpack.c.h.b16 %v500
    %v1957 = vunpack.c.l.b16 %v501
    %v1958 = vunpack.c.h.b16 %v501
    %v1959 = vunpack.c.l.b16 %v502
    %v1960 = vunpack.c.h.b16 %v502
    %v1961 = vunpack.c.l.b16 %v503
    %v1962 = vunpack.c.h.b16 %v503
    %v1963 = vunpack.c.l.b16 %v504
    %v1964 = vunpack.c.h.b16 %v504
    %v1965 = vunpack.c.l.b16 %v505
    %v1966 = vunpack.c.h.b16 %v505
    %v1967 = vunpack.c.l.b16 %v506
    %v1968 = vunpack.c.h.b16 %v506
    %v1969 = vunpack.c.l.b16 %v507
    %v1970 = vunpack.c.h.b16 %v507
    %v1971 = vunpack.c.l.b16 %v508
    %v1972 = vunpack.c.h.b16 %v508
    %v1973 = vunpack.c.l.b16 %v509
    %v1974 = vunpack.c.h.b16 %v509
    %v1975 = vunpack.c.l.b16 %v510
    %v1976 = vunpack.c.h.b16 %v510
    %v1977 = vunpack.c.l.b16 %v511
    %v1978 = vunpack.c.h.b16 %v511
    %v1979 = vunpack.c.l.b16 %v512
    %v1980 = vunpack.c.h.b16 %v512
    %v1981 = vunpack.c.l.b16 %v513
    %v1982 = vunpack.c.h.b16 %v513
    %v1983 = vunpack.c.l.b16 %v514
    %v1984 = vunpack.c.h.b16 %v514
    %v1985 = vunpack.c.l.b16 %v515
    %v1986 = vunpack.c.h.b16 %v515
    %v1987 = vunpack.c.l.b16 %v516
    %v1988 = vunpack.c.h.b16 %v516
    %v1989 = vunpack.c.l.b16 %v517
    %v1990 = vunpack.c.h.b16 %v517
    %v1991 = vunpack.c.l.b16 %v518
    %v1992 = vunpack.c.h.b16 %v518
    %v1993 = vunpack.c.l.b16 %v519
    %v1994 = vunpack.c.h.b16 %v519
    %v1995 = vunpack.c.l.b16 %v520
    %v1996 = vunpack.c.h.b16 %v520
    %v1997 = vunpack.c.l.b16 %v521
    %v1998 = vunpack.c.h.b16 %v521
    %v1999 = vunpack.c.l.b16 %v522
    %v2000 = vunpack.c.h.b16 %v522
    %v2001 = vunpack.c.l.b16 %v523
    %v2002 = vunpack.c.h.b16 %v523
    %v2003 = vunpack.c.l.b16 %v524
    %v2004 = vunpack.c.h.b16 %v524
    %v2005 = vunpack.c.l.b16 %v525
    %v2006 = vunpack.c.h.b16 %v525
    %v2007 = vunpack.c.l.b16 %v526
    %v2008 = vunpack.c.h.b16 %v526
    %v2009 = vunpack.c.l.b16 %v527
    %v2010 = vunpack.c.h.b16 %v527
    %v2011 = vunpack.c.l.b16 %v528
    %v2012 = vunpack.c.h.b16 %v528
    %v2013 = vunpack.c.l.b16 %v529
    %v2014 = vunpack.c.h.b16 %v529
    %v2015 = vunpack.c.l.b16 %v530
    %v2016 = vunpack.c.h.b16 %v530
    %v2017 = vunpack.c.l.b16 %v531
    %v2018 = vunpack.c.h.b16 %v531
    %v2019 = vunpack.c.l.b16 %v532
    %v2020 = vunpack.c.h.b16 %v532
    %v2021 = vunpack.c.l.b16 %v533
    %v2022 = vunpack.c.h.b16 %v533
    %v2023 = vunpack.c.l.b16 %v534
    %v2024 = vunpack.c.h.b16 %v534
    %v2025 = vunpack.c.l.b16 %v535
    %v2026 = vunpack.c.h.b16 %v535
    %v2027 = vunpack.c.l.b16 %v536
    %v2028 = vunpack.c.h.b16 %v536
    %v2029 = vunpack.c.l.b16 %v537
    %v2030 = vunpack.c.h.b16 %v537
    %v2031 = vunpack.c.l.b16 %v538
    %v2032 = vunpack.c.h.b16 %v538
    %v2033 = vunpack.c.l.b16 %v539
    %v2034 = vunpack.c.h.b16 %v539
    %v2035 = vunpack.c.l.b16 %v540
    %v2036 = vunpack.c.h.b16 %v540
    %v2037 = vunpack.c.l.b16 %v541
    %v2038 = vunpack.c.h.b16 %v541
    %v2039 = vunpack.c.l.b16 %v542
    %v2040 = vunpack.c.h.b16 %v542
    %v2041 = vunpack.c.l.b16 %v543
    %v2042 = vunpack.c.h.b16 %v543
    %v2043 = vunpack.c.l.b16 %v544
    %v2044 = vunpack.c.h.b16 %v544
    %v2045 = vunpack.c.l.b16 %v545
    %v2046 = vunpack.c.h.b16 %v545
    %v2047 = vunpack.c.l.b16 %v546
    %v2048 = vunpack.c.h.b16 %v546
    %v2049 = vunpack.c.l.b16 %v547
    %v2050 = vunpack.c.h.b16 %v547
    %v2051 = vunpack.c.l.b16 %v548
    %v2052 = vunpack.c.h.b16 %v548
    %v2053 = vunpack.c.l.b16 %v549
    %v2054 = vunpack.c.h.b16 %v549
    %v2055 = vunpack.c.l.b16 %v550
    %v2056 = vunpack.c.h.b16 %v550
    %v2057 = vunpack.c.l.b16 %v551
    %v2058 = vunpack.c.h.b16 %v551
    %v2059 = vunpack.c.l.b16 %v552
    %v2060 = vunpack.c.h.b16 %v552
    %v2061 = vunpack.c.l.b16 %v553
    %v2062 = vunpack.c.h.b16 %v553
    %v2063 = vunpack.c.l.b16 %v554
    %v2064 = vunpack.c.h.b16 %v554
    %v2065 = vunpack.c.l.b16 %v555
    %v2066 = vunpack.c.h.b16 %v555
    %v2067 = vunpack.c.l.b16 %v556
    %v2068 = vunpack.c.h.b16 %v556
    %v2069 = vunpack.c.l.b16 %v557
    %v2070 = vunpack.c.h.b16 %v557
    %v2071 = vunpack.c.l.b16 %v558
    %v2072 = vunpack.c.h.b16 %v558
    %v2073 = vunpack.c.l.b16 %v559
    %v2074 = vunpack.c.h.b16 %v559
    %v2075 = vunpack.c.l.b16 %v560
    %v2076 = vunpack.c.h.b16 %v560
    %v2077 = vunpack.c.l.b16 %v561
    %v2078 = vunpack.c.h.b16 %v561
    %v2079 = vunpack.c.l.b16 %v562
    %v2080 = vunpack.c.h.b16 %v562
    %v2081 = vunpack.c.l.b16 %v563
    %v2082 = vunpack.c.h.b16 %v563
    %v2083 = vunpack.c.l.b16 %v564
    %v2084 = vunpack.c.h.b16 %v564
    %v2085 = vunpack.c.l.b16 %v565
    %v2086 = vunpack.c.h.b16 %v565
    %v2087 = vunpack.c.l.b16 %v566
    %v2088 = vunpack.c.h.b16 %v566
    %v2089 = vunpack.c.l.b16 %v567
    %v2090 = vunpack.c.h.b16 %v567
    %v2091 = vunpack.c.l.b16 %v568
    %v2092 = vunpack.c.h.b16 %v568
    %v2093 = vunpack.c.l.b16 %v569
    %v2094 = vunpack.c.h.b16 %v569
    %v2095 = vunpack.c.l.b16 %v570
    %v2096 = vunpack.c.h.b16 %v570
    %v2097 = vunpack.c.l.b16 %v571
    %v2098 = vunpack.c.h.b16 %v571
    %v2099 = vunpack.c.l.b16 %v572
    %v2100 = vunpack.c.h.b16 %v572
    %v2101 = vunpack.c.l.b16 %v573
    %v2102 = vunpack.c.h.b16 %v573
    %v2103 = vunpack.c.l.b16 %v574
    %v2104 = vunpack.c.h.b16 %v574
    %v2105 = vunpack.c.l.b16 %v575
    %v2106 = vunpack.c.h.b16 %v575
    %v2107 = vunpack.c.l.b16 %v576
    %v2108 = vunpack.c.h.b16 %v576
    %v2109 = vunpack.c.l.b16 %v577
    %v2110 = vunpack.c.h.b16 %v577
    %v2111 = vunpack.c.l.b16 %v578
    %v2112 = vunpack.c.h.b16 %v578
    %v2113 = vunpack.c.l.b16 %v579
    %v2114 = vunpack.c.h.b16 %v579
    %v2115 = vunpack.c.l.b16 %v580
    %v2116 = vunpack.c.h.b16 %v580
    %v2117 = vunpack.c.l.b16 %v581
    %v2118 = vunpack.c.h.b16 %v581
    %v2119 = vunpack.c.l.b16 %v582
    %v2120 = vunpack.c.h.b16 %v582
    %v2121 = vunpack.c.l.b16 %v583
    %v2122 = vunpack.c.h.b16 %v583
    %v2123 = vunpack.c.l.b16 %v584
    %v2124 = vunpack.c.h.b16 %v584
    %v2125 = vunpack.c.l.b16 %v585
    %v2126 = vunpack.c.h.b16 %v585
    %v2127 = vunpack.c.l.b16 %v586
    %v2128 = vunpack.c.h.b16 %v586
    %v2129 = vunpack.c.l.b16 %v587
    %v2130 = vunpack.c.h.b16 %v587
    %v2131 = vunpack.c.l.b16 %v588
    %v2132 = vunpack.c.h.b16 %v588
    %v2133 = vunpack.c.l.b16 %v589
    %v2134 = vunpack.c.h.b16 %v589
    %v2135 = vunpack.c.l.b16 %v590
    %v2136 = vunpack.c.h.b16 %v590
    %v2137 = vunpack.c.l.b16 %v591
    %v2138 = vunpack.c.h.b16 %v591
    %v2139 = vunpack.c.l.b16 %v592
    %v2140 = vunpack.c.h.b16 %v592
    %v2141 = vunpack.c.l.b16 %v593
    %v2142 = vunpack.c.h.b16 %v593
    %v2143 = vunpack.c.l.b16 %v594
    %v2144 = vunpack.c.h.b16 %v594
    %v2145 = vunpack.c.l.b16 %v595
    %v2146 = vunpack.c.h.b16 %v595
    %v2147 = vunpack.c.l.b16 %v596
    %v2148 = vunpack.c.h.b16 %v596
    %v2149 = vunpack.c.l.b16 %v597
    %v2150 = vunpack.c.h.b16 %v597
    %v2151 = vunpack.c.l.b16 %v598
    %v2152 = vunpack.c.h.b16 %v598
    %v2153 = vunpack.c.l.b16 %v599
    %v2154 = vunpack.c.h.b16 %v599
    %v2155 = vunpack.c.l.b16 %v600
    %v2156 = vunpack.c.h.b16 %v600
    %v2157 = vunpack.c.l.b16 %v601
    %v2158 = vunpack.c.h.b16 %v601
    %v2159 = vunpack.c.l.b16 %v602
    %v2160 = vunpack.c.h.b16 %v602
    %v2161 = vunpack.c.l.b16 %v603
    %v2162 = vunpack.c.h.b16 %v603
    %v2163 = vunpack.c.l.b16 %v604
    %v2164 = vunpack.c.h.b16 %v604
    %v2165 = vunpack.c.l.b16 %v605
    %v2166 = vunpack.c.h.b16 %v605
    %v2167 = vunpack.c.l.b16 %v606
    %v2168 = vunpack.c.h.b16 %v606
    %v2169 = vunpack.c.l.b16 %v607
    %v2170 = vunpack.c.h.b16 %v607
    %v2171 = vunpack.c.l.b16 %v608
    %v2172 = vunpack.c.h.b16 %v608
    %v2173 = vunpack.c.l.b16 %v609
    %v2174 = vunpack.c.h.b16 %v609
    %v2175 = vunpack.c.l.b16 %v610
    %v2176 = vunpack.c.h.b16 %v610
    %v2177 = vunpack.c.l.b16 %v611
    %v2178 = vunpack.c.h.b16 %v611
    %v2179 = vunpack.c.l.b16 %v612
    %v2180 = vunpack.c.h.b16 %v612
    %v2181 = vunpack.c.l.b16 %v613
    %v2182 = vunpack.c.h.b16 %v613
    %v2183 = vunpack.c.l.b16 %v614
    %v2184 = vunpack.c.h.b16 %v614
    %v2185 = vunpack.c.l.b16 %v615
    %v2186 = vunpack.c.h.b16 %v615
    %v2187 = vunpack.c.l.b16 %v616
    %v2188 = vunpack.c.h.b16 %v616
    %v2189 = vunpack.c.l.b16 %v617
    %v2190 = vunpack.c.h.b16 %v617
    %v2191 = vunpack.c.l.b16 %v618
    %v2192 = vunpack.c.h.b16 %v618
    %v2193 = vunpack.c.l.b16 %v619
    %v2194 = vunpack.c.h.b16 %v619
    %v2195 = vunpack.c.l.b16 %v620
    %v2196 = vunpack.c.h.b16 %v620
    %v2197 = vunpack.c.l.b16 %v621
    %v2198 = vunpack.c.h.b16 %v621
    %v2199 = vunpack.c.l.b16 %v622
    %v2200 = vunpack.c.h.b16 %v622
    %v2201 = vunpack.c.l.b16 %v623
    %v2202 = vunpack.c.h.b16 %v623
    %v2203 = vunpack.c.l.b16 %v624
    %v2204 = vunpack.c.h.b16 %v624
    %v2205 = vunpack.c.l.b16 %v625
    %v2206 = vunpack.c.h.b16 %v625
    %v2207 = vunpack.c.l.b16 %v626
    %v2208 = vunpack.c.h.b16 %v626
    %v2209 = vunpack.c.l.b16 %v627
    %v2210 = vunpack.c.h.b16 %v627
    %v2211 = vunpack.c.l.b16 %v628
    %v2212 = vunpack.c.h.b16 %v628
    %v2213 = vunpack.c.l.b16 %v629
    %v2214 = vunpack.c.h.b16 %v629
    %v2215 = vunpack.c.l.b16 %v630
    %v2216 = vunpack.c.h.b16 %v630
    %v2217 = vunpack.c.l.b16 %v631
    %v2218 = vunpack.c.h.b16 %v631
    %v2219 = vunpack.c.l.b16 %v632
    %v2220 = vunpack.c.h.b16 %v632
    %v2221 = vunpack.c.l.b16 %v633
    %v2222 = vunpack.c.h.b16 %v633
    %v2223 = vunpack.c.l.b16 %v634
    %v2224 = vunpack.c.h.b16 %v634
    %v2225 = vunpack.c.l.b16 %v635
    %v2226 = vunpack.c.h.b16 %v635
    %v2227 = vunpack.c.l.b16 %v636
    %v2228 = vunpack.c.h.b16 %v636
    %v2229 = vunpack.c.l.b16 %v637
    %v2230 = vunpack.c.h.b16 %v637
    %v2231 = vunpack.c.l.b16 %v638
    %v2232 = vunpack.c.h.b16 %v638
    %v2233 = vunpack.c.l.b16 %v639
    %v2234 = vunpack.c.h.b16 %v639
    %v2235 = vunpack.c.l.b16 %v640
    %v2236 = vunpack.c.h.b16 %v640
    %v2237 = vunpack.c.l.b16 %v641
    %v2238 = vunpack.c.h.b16 %v641
    %v2239 = vunpack.c.l.b16 %v642
    %v2240 = vunpack.c.h.b16 %v642
    %v2241 = vunpack.c.l.b16 %v643
    %v2242 = vunpack.c.h.b16 %v643
    %v2243 = vunpack.c.l.b16 %v644
    %v2244 = vunpack.c.h.b16 %v644
    %v2245 = vunpack.c.l.b16 %v645
    %v2246 = vunpack.c.h.b16 %v645
    %v2247 = vunpack.c.l.b16 %v646
    %v2248 = vunpack.c.h.b16 %v646
    %v2249 = vunpack.c.l.b16 %v647
    %v2250 = vunpack.c.h.b16 %v647
    %v2251 = vunpack.c.l.b16 %v648
    %v2252 = vunpack.c.h.b16 %v648
    %v2253 = vunpack.c.l.b16 %v649
    %v2254 = vunpack.c.h.b16 %v649
    %v2255 = vunpack.c.l.b16 %v650
    %v2256 = vunpack.c.h.b16 %v650
    %v2257 = vunpack.c.l.b16 %v651
    %v2258 = vunpack.c.h.b16 %v651
    %v2259 = vunpack.c.l.b16 %v652
    %v2260 = vunpack.c.h.b16 %v652
    %v2261 = vunpack.c.l.b16 %v653
    %v2262 = vunpack.c.h.b16 %v653
    %v2263 = vunpack.c.l.b16 %v654
    %v2264 = vunpack.c.h.b16 %v654
    %v2265 = vunpack.c.l.b16 %v655
    %v2266 = vunpack.c.h.b16 %v655
    %v2267 = vunpack.c.l.b16 %v656
    %v2268 = vunpack.c.h.b16 %v656
    %v2269 = vunpack.c.l.b16 %v657
    %v2270 = vunpack.c.h.b16 %v657
    %v2271 = vunpack.c.l.b16 %v658
    %v2272 = vunpack.c.h.b16 %v658
    %v2273 = vunpack.c.l.b16 %v659
    %v2274 = vunpack.c.h.b16 %v659
    %v2275 = vunpack.c.l.b16 %v660
    %v2276 = vunpack.c.h.b16 %v660
    %v2277 = vunpack.c.l.b16 %v661
    %v2278 = vunpack.c.h.b16 %v661
    %v2279 = vunpack.c.l.b16 %v662
    %v2280 = vunpack.c.h.b16 %v662
    %v2281 = vunpack.c.l.b16 %v663
    %v2282 = vunpack.c.h.b16 %v663
    %v2283 = vunpack.c.l.b16 %v664
    %v2284 = vunpack.c.h.b16 %v664
    %v2285 = vunpack.c.l.b16 %v665
    %v2286 = vunpack.c.h.b16 %v665
    %v2287 = vunpack.c.l.b16 %v666
    %v2288 = vunpack.c.h.b16 %v666
    %v2289 = vunpack.c.l.b16 %v667
    %v2290 = vunpack.c.h.b16 %v667
    %v2291 = vunpack.c.l.b16 %v668
    %v2292 = vunpack.c.h.b16 %v668
    %v2293 = vunpack.c.l.b16 %v669
    %v2294 = vunpack.c.h.b16 %v669
    %v2295 = vunpack.c.l.b16 %v670
    %v2296 = vunpack.c.h.b16 %v670
    %v2297 = vunpack.c.l.b16 %v671
    %v2298 = vunpack.c.h.b16 %v671
    %v2299 = vunpack.c.l.b16 %v672
    %v2300 = vunpack.c.h.b16 %v672
    %v2301 = vunpack.c.l.b16 %v673
    %v2302 = vunpack.c.h.b16 %v673
    %v2303 = vunpack.c.l.b16 %v674
    %v2304 = vunpack.c.h.b16 %v674
    %v2305 = vunpack.c.l.b16 %v675
    %v2306 = vunpack.c.h.b16 %v675
    %v2307 = vunpack.c.l.b16 %v676
    %v2308 = vunpack.c.h.b16 %v676
    %v2309 = vunpack.c.l.b16 %v677
    %v2310 = vunpack.c.h.b16 %v677
    %v2311 = vunpack.c.l.b16 %v678
    %v2312 = vunpack.c.h.b16 %v678
    %v2313 = vpack.c.b16 %v1305, %v1289
    %v2314 = vpack.c.b16 %v1306, %v1290
    %v2315 = vpack.c.b16 %v1307, %v1291
    %v2316 = vpack.c.b16 %v1308, %v1292
    %v2317 = vpack.c.b16 %v1309, %v1293
    %v2318 = vpack.c.b16 %v1310, %v1294
    %v2319 = vpack.c.b16 %v1311, %v1295
    %v2320 = vpack.c.b16 %v1312, %v1296
    %v2321 = vpack.c.b16 %v1313, %v1297
    %v2322 = vpack.c.b16 %v1314, %v1298
    %v2323 = vpack.c.b16 %v1315, %v1299
    %v2324 = vpack.c.b16 %v1316, %v1300
    %v2325 = vpack.c.b16 %v1317, %v1301
    %v2326 = vpack.c.b16 %v1318, %v1302
    %v2327 = vpack.c.b16 %v1319, %v1303
    %v2328 = vpack.c.b16 %v1320, %v1304
    %v2329 = vpack.c.b16 %v1337, %v1321
    %v2330 = vpack.c.b16 %v1338, %v1322
    %v2331 = vpack.c.b16 %v1339, %v1323
    %v2332 = vpack.c.b16 %v1340, %v1324
    %v2333 = vpack.c.b16 %v1341, %v1325
    %v2334 = vpack.c.b16 %v1342, %v1326
    %v2335 = vpack.c.b16 %v1343, %v1327
    %v2336 = vpack.c.b16 %v1344, %v1328
    %v2337 = vpack.c.b16 %v1345, %v1329
    %v2338 = vpack.c.b16 %v1346, %v1330
    %v2339 = vpack.c.b16 %v1347, %v1331
    %v2340 = vpack.c.b16 %v1348, %v1332
    %v2341 = vpack.c.b16 %v1349, %v1333
    %v2342 = vpack.c.b16 %v1350, %v1334
    %v2343 = vpack.c.b16 %v1351, %v1335
    %v2344 = vpack.c.b16 %v1352, %v1336
    %v2345 = vpack.c.b16 %v1369, %v1353
    %v2346 = vpack.c.b16 %v1370, %v1354
    %v2347 = vpack.c.b16 %v1371, %v1355
    %v2348 = vpack.c.b16 %v1372, %v1356
    %v2349 = vpack.c.b16 %v1373, %v1357
    %v2350 = vpack.c.b16 %v1374, %v1358
    %v2351 = vpack.c.b16 %v1375, %v1359
    %v2352 = vpack.c.b16 %v1376, %v1360
    %v2353 = vpack.c.b16 %v1377, %v1361
    %v2354 = vpack.c.b16 %v1378, %v1362
    %v2355 = vpack.c.b16 %v1379, %v1363
    %v2356 = vpack.c.b16 %v1380, %v1364
    %v2357 = vpack.c.b16 %v1381, %v1365
    %v2358 = vpack.c.b16 %v1382, %v1366
    %v2359 = vpack.c.b16 %v1383, %v1367
    %v2360 = vpack.c.b16 %v1384, %v1368
    %v2361 = vpack.c.b16 %v1401, %v1385
    %v2362 = vpack.c.b16 %v1402, %v1386
    %v2363 = vpack.c.b16 %v1403, %v1387
    %v2364 = vpack.c.b16 %v1404, %v1388
    %v2365 = vpack.c.b16 %v1405, %v1389
    %v2366 = vpack.c.b16 %v1406, %v1390
    %v2367 = vpack.c.b16 %v1407, %v1391
    %v2368 = vpack.c.b16 %v1408, %v1392
    %v2369 = vpack.c.b16 %v1409, %v1393
    %v2370 = vpack.c.b16 %v1410, %v1394
    %v2371 = vpack.c.b16 %v1411, %v1395
    %v2372 = vpack.c.b16 %v1412, %v1396
    %v2373 = vpack.c.b16 %v1413, %v1397
    %v2374 = vpack.c.b16 %v1414, %v1398
    %v2375 = vpack.c.b16 %v1415, %v1399
    %v2376 = vpack.c.b16 %v1416, %v1400
    %v2377 = vpack.c.b16 %v1433, %v1417
    %v2378 = vpack.c.b16 %v1434, %v1418
    %v2379 = vpack.c.b16 %v1435, %v1419
    %v2380 = vpack.c.b16 %v1436, %v1420
    %v2381 = vpack.c.b16 %v1437, %v1421
    %v2382 = vpack.c.b16 %v1438, %v1422
    %v2383 = vpack.c.b16 %v1439, %v1423
    %v2384 = vpack.c.b16 %v1440, %v1424
    %v2385 = vpack.c.b16 %v1441, %v1425
    %v2386 = vpack.c.b16 %v1442, %v1426
    %v2387 = vpack.c.b16 %v1443, %v1427
    %v2388 = vpack.c.b16 %v1444, %v1428
    %v2389 = vpack.c.b16 %v1445, %v1429
    %v2390 = vpack.c.b16 %v1446, %v1430
    %v2391 = vpack.c.b16 %v1447, %v1431
    %v2392 = vpack.c.b16 %v1448, %v1432
    %v2393 = vpack.c.b16 %v1465, %v1449
    %v2394 = vpack.c.b16 %v1466, %v1450
    %v2395 = vpack.c.b16 %v1467, %v1451
    %v2396 = vpack.c.b16 %v1468, %v1452
    %v2397 = vpack.c.b16 %v1469, %v1453
    %v2398 = vpack.c.b16 %v1470, %v1454
    %v2399 = vpack.c.b16 %v1471, %v1455
    %v2400 = vpack.c.b16 %v1472, %v1456
    %v2401 = vpack.c.b16 %v1473, %v1457
    %v2402 = vpack.c.b16 %v1474, %v1458
    %v2403 = vpack.c.b16 %v1475, %v1459
    %v2404 = vpack.c.b16 %v1476, %v1460
    %v2405 = vpack.c.b16 %v1477, %v1461
    %v2406 = vpack.c.b16 %v1478, %v1462
    %v2407 = vpack.c.b16 %v1479, %v1463
    %v2408 = vpack.c.b16 %v1480, %v1464
    %v2409 = vpack.c.b16 %v1497, %v1481
    %v2410 = vpack.c.b16 %v1498, %v1482
    %v2411 = vpack.c.b16 %v1499, %v1483
    %v2412 = vpack.c.b16 %v1500, %v1484
    %v2413 = vpack.c.b16 %v1501, %v1485
    %v2414 = vpack.c.b16 %v1502, %v1486
    %v2415 = vpack.c.b16 %v1503, %v1487
    %v2416 = vpack.c.b16 %v1504, %v1488
    %v2417 = vpack.c.b16 %v1505, %v1489
    %v2418 = vpack.c.b16 %v1506, %v1490
    %v2419 = vpack.c.b16 %v1507, %v1491
    %v2420 = vpack.c.b16 %v1508, %v1492
    %v2421 = vpack.c.b16 %v1509, %v1493
    %v2422 = vpack.c.b16 %v1510, %v1494
    %v2423 = vpack.c.b16 %v1511, %v1495
    %v2424 = vpack.c.b16 %v1512, %v1496
    %v2425 = vpack.c.b16 %v1529, %v1513
    %v2426 = vpack.c.b16 %v1530, %v1514
    %v2427 = vpack.c.b16 %v1531, %v1515
    %v2428 = vpack.c.b16 %v1532, %v1516
    %v2429 = vpack.c.b16 %v1533, %v1517
    %v2430 = vpack.c.b16 %v1534, %v1518
    %v2431 = vpack.c.b16 %v1535, %v1519
    %v2432 = vpack.c.b16 %v1536, %v1520
    %v2433 = vpack.c.b16 %v1537, %v1521
    %v2434 = vpack.c.b16 %v1538, %v1522
    %v2435 = vpack.c.b16 %v1539, %v1523
    %v2436 = vpack.c.b16 %v1540, %v1524
    %v2437 = vpack.c.b16 %v1541, %v1525
    %v2438 = vpack.c.b16 %v1542, %v1526
    %v2439 = vpack.c.b16 %v1543, %v1527
    %v2440 = vpack.c.b16 %v1544, %v1528
    %v2441 = vpack.c.b16 %v1561, %v1545
    %v2442 = vpack.c.b16 %v1562, %v1546
    %v2443 = vpack.c.b16 %v1563, %v1547
    %v2444 = vpack.c.b16 %v1564, %v1548
    %v2445 = vpack.c.b16 %v1565, %v1549
    %v2446 = vpack.c.b16 %v1566, %v1550
    %v2447 = vpack.c.b16 %v1567, %v1551
    %v2448 = vpack.c.b16 %v1568, %v1552
    %v2449 = vpack.c.b16 %v1569, %v1553
    %v2450 = vpack.c.b16 %v1570, %v1554
    %v2451 = vpack.c.b16 %v1571, %v1555
    %v2452 = vpack.c.b16 %v1572, %v1556
    %v2453 = vpack.c.b16 %v1573, %v1557
    %v2454 = vpack.c.b16 %v1574, %v1558
    %v2455 = vpack.c.b16 %v1575, %v1559
    %v2456 = vpack.c.b16 %v1576, %v1560
    %v2457 = vpack.c.b16 %v1593, %v1577
    %v2458 = vpack.c.b16 %v1594, %v1578
    %v2459 = vpack.c.b16 %v1595, %v1579
    %v2460 = vpack.c.b16 %v1596, %v1580
    %v2461 = vpack.c.b16 %v1597, %v1581
    %v2462 = vpack.c.b16 %v1598, %v1582
    %v2463 = vpack.c.b16 %v1599, %v1583
    %v2464 = vpack.c.b16 %v1600, %v1584
    %v2465 = vpack.c.b16 %v1601, %v1585
    %v2466 = vpack.c.b16 %v1602, %v1586
    %v2467 = vpack.c.b16 %v1603, %v1587
    %v2468 = vpack.c.b16 %v1604, %v1588
    %v2469 = vpack.c.b16 %v1605, %v1589
    %v2470 = vpack.c.b16 %v1606, %v1590
    %v2471 = vpack.c.b16 %v1607, %v1591
    %v2472 = vpack.c.b16 %v1608, %v1592
    %v2473 = vpack.c.b16 %v1625, %v1609
    %v2474 = vpack.c.b16 %v1626, %v1610
    %v2475 = vpack.c.b16 %v1627, %v1611
    %v2476 = vpack.c.b16 %v1628, %v1612
    %v2477 = vpack.c.b16 %v1629, %v1613
    %v2478 = vpack.c.b16 %v1630, %v1614
    %v2479 = vpack.c.b16 %v1631, %v1615
    %v2480 = vpack.c.b16 %v1632, %v1616
    %v2481 = vpack.c.b16 %v1633, %v1617
    %v2482 = vpack.c.b16 %v1634, %v1618
    %v2483 = vpack.c.b16 %v1635, %v1619
    %v2484 = vpack.c.b16 %v1636, %v1620
    %v2485 = vpack.c.b16 %v1637, %v1621
    %v2486 = vpack.c.b16 %v1638, %v1622
    %v2487 = vpack.c.b16 %v1639, %v1623
    %v2488 = vpack.c.b16 %v1640, %v1624
    %v2489 = vpack.c.b16 %v1657, %v1641
    %v2490 = vpack.c.b16 %v1658, %v1642
    %v2491 = vpack.c.b16 %v1659, %v1643
    %v2492 = vpack.c.b16 %v1660, %v1644
    %v2493 = vpack.c.b16 %v1661, %v1645
    %v2494 = vpack.c.b16 %v1662, %v1646
    %v2495 = vpack.c.b16 %v1663, %v1647
    %v2496 = vpack.c.b16 %v1664, %v1648
    %v2497 = vpack.c.b16 %v1665, %v1649
    %v2498 = vpack.c.b16 %v1666, %v1650
    %v2499 = vpack.c.b16 %v1667, %v1651
    %v2500 = vpack.c.b16 %v1668, %v1652
    %v2501 = vpack.c.b16 %v1669, %v1653
    %v2502 = vpack.c.b16 %v1670, %v1654
    %v2503 = vpack.c.b16 %v1671, %v1655
    %v2504 = vpack.c.b16 %v1672, %v1656
    %v2505 = vpack.c.b16 %v1689, %v1673
    %v2506 = vpack.c.b16 %v1690, %v1674
    %v2507 = vpack.c.b16 %v1691, %v1675
    %v2508 = vpack.c.b16 %v1692, %v1676
    %v2509 = vpack.c.b16 %v1693, %v1677
    %v2510 = vpack.c.b16 %v1694, %v1678
    %v2511 = vpack.c.b16 %v1695, %v1679
    %v2512 = vpack.c.b16 %v1696, %v1680
    %v2513 = vpack.c.b16 %v1697, %v1681
    %v2514 = vpack.c.b16 %v1698, %v1682
    %v2515 = vpack.c.b16 %v1699, %v1683
    %v2516 = vpack.c.b16 %v1700, %v1684
    %v2517 = vpack.c.b16 %v1701, %v1685
    %v2518 = vpack.c.b16 %v1702, %v1686
    %v2519 = vpack.c.b16 %v1703, %v1687
    %v2520 = vpack.c.b16 %v1704, %v1688
    %v2521 = vpack.c.b16 %v1721, %v1705
    %v2522 = vpack.c.b16 %v1722, %v1706
    %v2523 = vpack.c.b16 %v1723, %v1707
    %v2524 = vpack.c.b16 %v1724, %v1708
    %v2525 = vpack.c.b16 %v1725, %v1709
    %v2526 = vpack.c.b16 %v1726, %v1710
    %v2527 = vpack.c.b16 %v1727, %v1711
    %v2528 = vpack.c.b16 %v1728, %v1712
    %v2529 = vpack.c.b16 %v1729, %v1713
    %v2530 = vpack.c.b16 %v1730, %v1714
    %v2531 = vpack.c.b16 %v1731, %v1715
    %v2532 = vpack.c.b16 %v1732, %v1716
    %v2533 = vpack.c.b16 %v1733, %v1717
    %v2534 = vpack.c.b16 %v1734, %v1718
    %v2535 = vpack.c.b16 %v1735, %v1719
    %v2536 = vpack.c.b16 %v1736, %v1720
    %v2537 = vpack.c.b16 %v1753, %v1737
    %v2538 = vpack.c.b16 %v1754, %v1738
    %v2539 = vpack.c.b16 %v1755, %v1739
    %v2540 = vpack.c.b16 %v1756, %v1740
    %v2541 = vpack.c.b16 %v1757, %v1741
    %v2542 = vpack.c.b16 %v1758, %v1742
    %v2543 = vpack.c.b16 %v1759, %v1743
    %v2544 = vpack.c.b16 %v1760, %v1744
    %v2545 = vpack.c.b16 %v1761, %v1745
    %v2546 = vpack.c.b16 %v1762, %v1746
    %v2547 = vpack.c.b16 %v1763, %v1747
    %v2548 = vpack.c.b16 %v1764, %v1748
    %v2549 = vpack.c.b16 %v1765, %v1749
    %v2550 = vpack.c.b16 %v1766, %v1750
    %v2551 = vpack.c.b16 %v1767, %v1751
    %v2552 = vpack.c.b16 %v1768, %v1752
    %v2553 = vpack.c.b16 %v1785, %v1769
    %v2554 = vpack.c.b16 %v1786, %v1770
    %v2555 = vpack.c.b16 %v1787, %v1771
    %v2556 = vpack.c.b16 %v1788, %v1772
    %v2557 = vpack.c.b16 %v1789, %v1773
    %v2558 = vpack.c.b16 %v1790, %v1774
    %v2559 = vpack.c.b16 %v1791, %v1775
    %v2560 = vpack.c.b16 %v1792, %v1776
    %v2561 = vpack.c.b16 %v1793, %v1777
    %v2562 = vpack.c.b16 %v1794, %v1778
    %v2563 = vpack.c.b16 %v1795, %v1779
    %v2564 = vpack.c.b16 %v1796, %v1780
    %v2565 = vpack.c.b16 %v1797, %v1781
    %v2566 = vpack.c.b16 %v1798, %v1782
    %v2567 = vpack.c.b16 %v1799, %v1783
    %v2568 = vpack.c.b16 %v1800, %v1784
    %v2569 = vpack.c.b16 %v1817, %v1801
    %v2570 = vpack.c.b16 %v1818, %v1802
    %v2571 = vpack.c.b16 %v1819, %v1803
    %v2572 = vpack.c.b16 %v1820, %v1804
    %v2573 = vpack.c.b16 %v1821, %v1805
    %v2574 = vpack.c.b16 %v1822, %v1806
    %v2575 = vpack.c.b16 %v1823, %v1807
    %v2576 = vpack.c.b16 %v1824, %v1808
    %v2577 = vpack.c.b16 %v1825, %v1809
    %v2578 = vpack.c.b16 %v1826, %v1810
    %v2579 = vpack.c.b16 %v1827, %v1811
    %v2580 = vpack.c.b16 %v1828, %v1812
    %v2581 = vpack.c.b16 %v1829, %v1813
    %v2582 = vpack.c.b16 %v1830, %v1814
    %v2583 = vpack.c.b16 %v1831, %v1815
    %v2584 = vpack.c.b16 %v1832, %v1816
    %v2585 = vpack.c.b16 %v1849, %v1833
    %v2586 = vpack.c.b16 %v1850, %v1834
    %v2587 = vpack.c.b16 %v1851, %v1835
    %v2588 = vpack.c.b16 %v1852, %v1836
    %v2589 = vpack.c.b16 %v1853, %v1837
    %v2590 = vpack.c.b16 %v1854, %v1838
    %v2591 = vpack.c.b16 %v1855, %v1839
    %v2592 = vpack.c.b16 %v1856, %v1840
    %v2593 = vpack.c.b16 %v1857, %v1841
    %v2594 = vpack.c.b16 %v1858, %v1842
    %v2595 = vpack.c.b16 %v1859, %v1843
    %v2596 = vpack.c.b16 %v1860, %v1844
    %v2597 = vpack.c.b16 %v1861, %v1845
    %v2598 = vpack.c.b16 %v1862, %v1846
    %v2599 = vpack.c.b16 %v1863, %v1847
    %v2600 = vpack.c.b16 %v1864, %v1848
    %v2601 = vpack.c.b16 %v1881, %v1865
    %v2602 = vpack.c.b16 %v1882, %v1866
    %v2603 = vpack.c.b16 %v1883, %v1867
    %v2604 = vpack.c.b16 %v1884, %v1868
    %v2605 = vpack.c.b16 %v1885, %v1869
    %v2606 = vpack.c.b16 %v1886, %v1870
    %v2607 = vpack.c.b16 %v1887, %v1871
    %v2608 = vpack.c.b16 %v1888, %v1872
    %v2609 = vpack.c.b16 %v1889, %v1873
    %v2610 = vpack.c.b16 %v1890, %v1874
    %v2611 = vpack.c.b16 %v1891, %v1875
    %v2612 = vpack.c.b16 %v1892, %v1876
    %v2613 = vpack.c.b16 %v1893, %v1877
    %v2614 = vpack.c.b16 %v1894, %v1878
    %v2615 = vpack.c.b16 %v1895, %v1879
    %v2616 = vpack.c.b16 %v1896, %v1880
    %v2617 = vpack.c.b16 %v1913, %v1897
    %v2618 = vpack.c.b16 %v1914, %v1898
    %v2619 = vpack.c.b16 %v1915, %v1899
    %v2620 = vpack.c.b16 %v1916, %v1900
    %v2621 = vpack.c.b16 %v1917, %v1901
    %v2622 = vpack.c.b16 %v1918, %v1902
    %v2623 = vpack.c.b16 %v1919, %v1903
    %v2624 = vpack.c.b16 %v1920, %v1904
    %v2625 = vpack.c.b16 %v1921, %v1905
    %v2626 = vpack.c.b16 %v1922, %v1906
    %v2627 = vpack.c.b16 %v1923, %v1907
    %v2628 = vpack.c.b16 %v1924, %v1908
    %v2629 = vpack.c.b16 %v1925, %v1909
    %v2630 = vpack.c.b16 %v1926, %v1910
    %v2631 = vpack.c.b16 %v1927, %v1911
    %v2632 = vpack.c.b16 %v1928, %v1912
    %v2633 = vpack.c.b16 %v1945, %v1929
    %v2634 = vpack.c.b16 %v1946, %v1930
    %v2635 = vpack.c.b16 %v1947, %v1931
    %v2636 = vpack.c.b16 %v1948, %v1932
    %v2637 = vpack.c.b16 %v1949, %v1933
    %v2638 = vpack.c.b16 %v1950, %v1934
    %v2639 = vpack.c.b16 %v1951, %v1935
    %v2640 = vpack.c.b16 %v1952, %v1936
    %v2641 = vpack.c.b16 %v1953, %v1937
    %v2642 = vpack.c.b16 %v1954, %v1938
    %v2643 = vpack.c.b16 %v1955, %v1939
    %v2644 = vpack.c.b16 %v1956, %v1940
    %v2645 = vpack.c.b16 %v1957, %v1941
    %v2646 = vpack.c.b16 %v1958, %v1942
    %v2647 = vpack.c.b16 %v1959, %v1943
    %v2648 = vpack.c.b16 %v1960, %v1944
    %v2649 = vpack.c.b16 %v1977, %v1961
    %v2650 = vpack.c.b16 %v1978, %v1962
    %v2651 = vpack.c.b16 %v1979, %v1963
    %v2652 = vpack.c.b16 %v1980, %v1964
    %v2653 = vpack.c.b16 %v1981, %v1965
    %v2654 = vpack.c.b16 %v1982, %v1966
    %v2655 = vpack.c.b16 %v1983, %v1967
    %v2656 = vpack.c.b16 %v1984, %v1968
    %v2657 = vpack.c.b16 %v1985, %v1969
    %v2658 = vpack.c.b16 %v1986, %v1970
    %v2659 = vpack.c.b16 %v1987, %v1971
    %v2660 = vpack.c.b16 %v1988, %v1972
    %v2661 = vpack.c.b16 %v1989, %v1973
    %v2662 = vpack.c.b16 %v1990, %v1974
    %v2663 = vpack.c.b16 %v1991, %v1975
    %v2664 = vpack.c.b16 %v1992, %v1976
    %v2665 = vpack.c.b16 %v2009, %v1993
    %v2666 = vpack.c.b16 %v2010, %v1994
    %v2667 = vpack.c.b16 %v2011, %v1995
    %v2668 = vpack.c.b16 %v2012, %v1996
    %v2669 = vpack.c.b16 %v2013, %v1997
    %v2670 = vpack.c.b16 %v2014, %v1998
    %v2671 = vpack.c.b16 %v2015, %v1999
    %v2672 = vpack.c.b16 %v2016, %v2000
    %v2673 = vpack.c.b16 %v2017, %v2001
    %v2674 = vpack.c.b16 %v2018, %v2002
    %v2675 = vpack.c.b16 %v2019, %v2003
    %v2676 = vpack.c.b16 %v2020, %v2004
    %v2677 = vpack.c.b16 %v2021, %v2005
    %v2678 = vpack.c.b16 %v2022, %v2006
    %v2679 = vpack.c.b16 %v2023, %v2007
    %v2680 = vpack.c.b16 %v2024, %v2008
    %v2681 = vpack.c.b16 %v2041, %v2025
    %v2682 = vpack.c.b16 %v2042, %v2026
    %v2683 = vpack.c.b16 %v2043, %v2027
    %v2684 = vpack.c.b16 %v2044, %v2028
    %v2685 = vpack.c.b16 %v2045, %v2029
    %v2686 = vpack.c.b16 %v2046, %v2030
    %v2687 = vpack.c.b16 %v2047, %v2031
    %v2688 = vpack.c.b16 %v2048, %v2032
    %v2689 = vpack.c.b16 %v2049, %v2033
    %v2690 = vpack.c.b16 %v2050, %v2034
    %v2691 = vpack.c.b16 %v2051, %v2035
    %v2692 = vpack.c.b16 %v2052, %v2036
    %v2693 = vpack.c.b16 %v2053, %v2037
    %v2694 = vpack.c.b16 %v2054, %v2038
    %v2695 = vpack.c.b16 %v2055, %v2039
    %v2696 = vpack.c.b16 %v2056, %v2040
    %v2697 = vpack.c.b16 %v2073, %v2057
    %v2698 = vpack.c.b16 %v2074, %v2058
    %v2699 = vpack.c.b16 %v2075, %v2059
    %v2700 = vpack.c.b16 %v2076, %v2060
    %v2701 = vpack.c.b16 %v2077, %v2061
    %v2702 = vpack.c.b16 %v2078, %v2062
    %v2703 = vpack.c.b16 %v2079, %v2063
    %v2704 = vpack.c.b16 %v2080, %v2064
    %v2705 = vpack.c.b16 %v2081, %v2065
    %v2706 = vpack.c.b16 %v2082, %v2066
    %v2707 = vpack.c.b16 %v2083, %v2067
    %v2708 = vpack.c.b16 %v2084, %v2068
    %v2709 = vpack.c.b16 %v2085, %v2069
    %v2710 = vpack.c.b16 %v2086, %v2070
    %v2711 = vpack.c.b16 %v2087, %v2071
    %v2712 = vpack.c.b16 %v2088, %v2072
    %v2713 = vpack.c.b16 %v2105, %v2089
    %v2714 = vpack.c.b16 %v2106, %v2090
    %v2715 = vpack.c.b16 %v2107, %v2091
    %v2716 = vpack.c.b16 %v2108, %v2092
    %v2717 = vpack.c.b16 %v2109, %v2093
    %v2718 = vpack.c.b16 %v2110, %v2094
    %v2719 = vpack.c.b16 %v2111, %v2095
    %v2720 = vpack.c.b16 %v2112, %v2096
    %v2721 = vpack.c.b16 %v2113, %v2097
    %v2722 = vpack.c.b16 %v2114, %v2098
    %v2723 = vpack.c.b16 %v2115, %v2099
    %v2724 = vpack.c.b16 %v2116, %v2100
    %v2725 = vpack.c.b16 %v2117, %v2101
    %v2726 = vpack.c.b16 %v2118, %v2102
    %v2727 = vpack.c.b16 %v2119, %v2103
    %v2728 = vpack.c.b16 %v2120, %v2104
    %v2729 = vpack.c.b16 %v2137, %v2121
    %v2730 = vpack.c.b16 %v2138, %v2122
    %v2731 = vpack.c.b16 %v2139, %v2123
    %v2732 = vpack.c.b16 %v2140, %v2124
    %v2733 = vpack.c.b16 %v2141, %v2125
    %v2734 = vpack.c.b16 %v2142, %v2126
    %v2735 = vpack.c.b16 %v2143, %v2127
    %v2736 = vpack.c.b16 %v2144, %v2128
    %v2737 = vpack.c.b16 %v2145, %v2129
    %v2738 = vpack.c.b16 %v2146, %v2130
    %v2739 = vpack.c.b16 %v2147, %v2131
    %v2740 = vpack.c.b16 %v2148, %v2132
    %v2741 = vpack.c.b16 %v2149, %v2133
    %v2742 = vpack.c.b16 %v2150, %v2134
    %v2743 = vpack.c.b16 %v2151, %v2135
    %v2744 = vpack.c.b16 %v2152, %v2136
    %v2745 = vpack.c.b16 %v2169, %v2153
    %v2746 = vpack.c.b16 %v2170, %v2154
    %v2747 = vpack.c.b16 %v2171, %v2155
    %v2748 = vpack.c.b16 %v2172, %v2156
    %v2749 = vpack.c.b16 %v2173, %v2157
    %v2750 = vpack.c.b16 %v2174, %v2158
    %v2751 = vpack.c.b16 %v2175, %v2159
    %v2752 = vpack.c.b16 %v2176, %v2160
    %v2753 = vpack.c.b16 %v2177, %v2161
    %v2754 = vpack.c.b16 %v2178, %v2162
    %v2755 = vpack.c.b16 %v2179, %v2163
    %v2756 = vpack.c.b16 %v2180, %v2164
    %v2757 = vpack.c.b16 %v2181, %v2165
    %v2758 = vpack.c.b16 %v2182, %v2166
    %v2759 = vpack.c.b16 %v2183, %v2167
    %v2760 = vpack.c.b16 %v2184, %v2168
    %v2761 = vpack.c.b16 %v2201, %v2185
    %v2762 = vpack.c.b16 %v2202, %v2186
    %v2763 = vpack.c.b16 %v2203, %v2187
    %v2764 = vpack.c.b16 %v2204, %v2188
    %v2765 = vpack.c.b16 %v2205, %v2189
    %v2766 = vpack.c.b16 %v2206, %v2190
    %v2767 = vpack.c.b16 %v2207, %v2191
    %v2768 = vpack.c.b16 %v2208, %v2192
    %v2769 = vpack.c.b16 %v2209, %v2193
    %v2770 = vpack.c.b16 %v2210, %v2194
    %v2771 = vpack.c.b16 %v2211, %v2195
    %v2772 = vpack.c.b16 %v2212, %v2196
    %v2773 = vpack.c.b16 %v2213, %v2197
    %v2774 = vpack.c.b16 %v2214, %v2198
    %v2775 = vpack.c.b16 %v2215, %v2199
    %v2776 = vpack.c.b16 %v2216, %v2200
    %v2777 = vpack.c.b16 %v2233, %v2217
    %v2778 = vpack.c.b16 %v2234, %v2218
    %v2779 = vpack.c.b16 %v2235, %v2219
    %v2780 = vpack.c.b16 %v2236, %v2220
    %v2781 = vpack.c.b16 %v2237, %v2221
    %v2782 = vpack.c.b16 %v2238, %v2222
    %v2783 = vpack.c.b16 %v2239, %v2223
    %v2784 = vpack.c.b16 %v2240, %v2224
    %v2785 = vpack.c.b16 %v2241, %v2225
    %v2786 = vpack.c.b16 %v2242, %v2226
    %v2787 = vpack.c.b16 %v2243, %v2227
    %v2788 = vpack.c.b16 %v2244, %v2228
    %v2789 = vpack.c.b16 %v2245, %v2229
    %v2790 = vpack.c.b16 %v2246, %v2230
    %v2791 = vpack.c.b16 %v2247, %v2231
    %v2792 = vpack.c.b16 %v2248, %v2232
    %v2793 = vpack.c.b16 %v2265, %v2249
    %v2794 = vpack.c.b16 %v2266, %v2250
    %v2795 = vpack.c.b16 %v2267, %v2251
    %v2796 = vpack.c.b16 %v2268, %v2252
    %v2797 = vpack.c.b16 %v2269, %v2253
    %v2798 = vpack.c.b16 %v2270, %v2254
    %v2799 = vpack.c.b16 %v2271, %v2255
    %v2800 = vpack.c.b16 %v2272, %v2256
    %v2801 = vpack.c.b16 %v2273, %v2257
    %v2802 = vpack.c.b16 %v2274, %v2258
    %v2803 = vpack.c.b16 %v2275, %v2259
    %v2804 = vpack.c.b16 %v2276, %v2260
    %v2805 = vpack.c.b16 %v2277, %v2261
    %v2806 = vpack.c.b16 %v2278, %v2262
    %v2807 = vpack.c.b16 %v2279, %v2263
    %v2808 = vpack.c.b16 %v2280, %v2264
    %v2809 = vpack.c.b16 %v2297, %v2281
    %v2810 = vpack.c.b16 %v2298, %v2282
    %v2811 = vpack.c.b16 %v2299, %v2283
    %v2812 = vpack.c.b16 %v2300, %v2284
    %v2813 = vpack.c.b16 %v2301, %v2285
    %v2814 = vpack.c.b16 %v2302, %v2286
    %v2815 = vpack.c.b16 %v2303, %v2287
    %v2816 = vpack.c.b16 %v2304, %v2288
    %v2817 = vpack.c.b16 %v2305, %v2289
    %v2818 = vpack.c.b16 %v2306, %v2290
    %v2819 = vpack.c.b16 %v2307, %v2291
    %v2820 = vpack.c.b16 %v2308, %v2292
    %v2821 = vpack.c.b16 %v2309, %v2293
    %v2822 = vpack.c.b16 %v2310, %v2294
    %v2823 = vpack.c.b16 %v2311, %v2295
    %v2824 = vpack.c.b16 %v2312, %v2296
    %3337 = vmatprep.subr.bf16.mxu0 %v2314
    %3338 = vmatpush1.bf16.msra.mxu0 %v2313
    %3339 = vmatprep.subr.bf16.mxu0 %v2330
    %3340 = vmatpush1.bf16.msra.mxu0 %v2329
    %3341 = vmatprep.subr.bf16.mxu0 %v2346
    %3342 = vmatpush1.bf16.msra.mxu0 %v2345
    %3343 = vmatprep.subr.bf16.mxu0 %v2362
    %3344 = vmatpush1.bf16.msra.mxu0 %v2361
    %3345 = vmatprep.subr.bf16.mxu0 %v2378
    %3346 = vmatpush1.bf16.msra.mxu0 %v2377
    %3347 = vmatprep.subr.bf16.mxu0 %v2394
    %3348 = vmatpush1.bf16.msra.mxu0 %v2393
    %3349 = vmatprep.subr.bf16.mxu0 %v2410
    %3350 = vmatpush1.bf16.msra.mxu0 %v2409
    %3351 = vmatprep.subr.bf16.mxu0 %v2426
    %3352 = vmatpush1.bf16.msra.mxu0 %v2425
    %3353 = vmatprep.subr.bf16.mxu0 %v2442
    %3354 = vmatpush1.bf16.msra.mxu0 %v2441
    %3355 = vmatprep.subr.bf16.mxu0 %v2458
    %3356 = vmatpush1.bf16.msra.mxu0 %v2457
    %3357 = vmatprep.subr.bf16.mxu0 %v2474
    %3358 = vmatpush1.bf16.msra.mxu0 %v2473
    %3359 = vmatprep.subr.bf16.mxu0 %v2490
    %3360 = vmatpush1.bf16.msra.mxu0 %v2489
    %3361 = vmatprep.subr.bf16.mxu0 %v2506
    %3362 = vmatpush1.bf16.msra.mxu0 %v2505
    %3363 = vmatprep.subr.bf16.mxu0 %v2522
    %3364 = vmatpush1.bf16.msra.mxu0 %v2521
    %3365 = vmatprep.subr.bf16.mxu0 %v2538
    %3366 = vmatpush1.bf16.msra.mxu0 %v2537
    %3367 = vmatprep.subr.bf16.mxu0 %v2554
    %3368 = vmatpush1.bf16.msra.mxu0 %v2553
    %3369 = vmatprep.mubr.bf16.mxu0 %v770
    %3370 = vmatmul.mubr.bf16.gmra.mrb[0].mxu0 %v769
    %v3371 = vpop.f32.mrb[0].mxu0
    %v3372 = vadd.f32 %v686, %v3371
    %v3373 = vpop.f32.mrb[0].mxu0
    %v3374 = vadd.f32 %v690, %v3373
    %v3375 = vpop.f32.mrb[0].mxu0
    %v3376 = vpop.f32.mrb[0].mxu0
    %3377 = vdwg.mxu0
    %3378 = vmatprep.subr.bf16.mxu0 %v2570
    %3379 = vmatpush1.bf16.msra.mxu0 %v2569
    %3380 = vmatprep.subr.bf16.mxu0 %v2586
    %3381 = vmatpush1.bf16.msra.mxu0 %v2585
    %3382 = vmatprep.subr.bf16.mxu0 %v2602
    %3383 = vmatpush1.bf16.msra.mxu0 %v2601
    %3384 = vmatprep.subr.bf16.mxu0 %v2618
    %3385 = vmatpush1.bf16.msra.mxu0 %v2617
    %3386 = vmatprep.subr.bf16.mxu0 %v2634
    %3387 = vmatpush1.bf16.msra.mxu0 %v2633
    %3388 = vmatprep.subr.bf16.mxu0 %v2650
    %3389 = vmatpush1.bf16.msra.mxu0 %v2649
    %3390 = vmatprep.subr.bf16.mxu0 %v2666
    %3391 = vmatpush1.bf16.msra.mxu0 %v2665
    %3392 = vmatprep.subr.bf16.mxu0 %v2682
    %3393 = vmatpush1.bf16.msra.mxu0 %v2681
    %3394 = vmatprep.subr.bf16.mxu0 %v2698
    %3395 = vmatpush1.bf16.msra.mxu0 %v2697
    %3396 = vmatprep.subr.bf16.mxu0 %v2714
    %3397 = vmatpush1.bf16.msra.mxu0 %v2713
    %3398 = vmatprep.subr.bf16.mxu0 %v2730
    %3399 = vmatpush1.bf16.msra.mxu0 %v2729
    %3400 = vmatprep.subr.bf16.mxu0 %v2746
    %3401 = vmatpush1.bf16.msra.mxu0 %v2745
    %3402 = vmatprep.subr.bf16.mxu0 %v2762
    %3403 = vmatpush1.bf16.msra.mxu0 %v2761
    %3404 = vmatprep.subr.bf16.mxu0 %v2778
    %3405 = vmatpush1.bf16.msra.mxu0 %v2777
    %3406 = vmatprep.subr.bf16.mxu0 %v2794
    %3407 = vmatpush1.bf16.msra.mxu0 %v2793
    %3408 = vmatprep.subr.bf16.mxu0 %v2810
    %3409 = vmatpush1.bf16.msra.mxu0 %v2809
    %3410 = vmatprep.mubr.bf16.mxu0 %v772
    %3411 = vmatmul.mubr.bf16.gmra.mrb[0].mxu0 %v771
    %v3412 = vpop.f32.mrb[0].mxu0
    %v3413 = vadd.f32 %v3372, %v3412
    %v3414 = vpop.f32.mrb[0].mxu0
    %v3415 = vadd.f32 %v3374, %v3414
    %v3416 = vpop.f32.mrb[0].mxu0
    %v3417 = vpop.f32.mrb[0].mxu0
    %3418 = vdwg.mxu0
    %3419 = vmatprep.subr.bf16.mxu0 %v2316
    %3420 = vmatpush1.bf16.msra.mxu0 %v2315
    %3421 = vmatprep.subr.bf16.mxu0 %v2332
    %3422 = vmatpush1.bf16.msra.mxu0 %v2331
    %3423 = vmatprep.subr.bf16.mxu0 %v2348
    %3424 = vmatpush1.bf16.msra.mxu0 %v2347
    %3425 = vmatprep.subr.bf16.mxu0 %v2364
    %3426 = vmatpush1.bf16.msra.mxu0 %v2363
    %3427 = vmatprep.subr.bf16.mxu0 %v2380
    %3428 = vmatpush1.bf16.msra.mxu0 %v2379
    %3429 = vmatprep.subr.bf16.mxu0 %v2396
    %3430 = vmatpush1.bf16.msra.mxu0 %v2395
    %3431 = vmatprep.subr.bf16.mxu0 %v2412
    %3432 = vmatpush1.bf16.msra.mxu0 %v2411
    %3433 = vmatprep.subr.bf16.mxu0 %v2428
    %3434 = vmatpush1.bf16.msra.mxu0 %v2427
    %3435 = vmatprep.subr.bf16.mxu0 %v2444
    %3436 = vmatpush1.bf16.msra.mxu0 %v2443
    %3437 = vmatprep.subr.bf16.mxu0 %v2460
    %3438 = vmatpush1.bf16.msra.mxu0 %v2459
    %3439 = vmatprep.subr.bf16.mxu0 %v2476
    %3440 = vmatpush1.bf16.msra.mxu0 %v2475
    %3441 = vmatprep.subr.bf16.mxu0 %v2492
    %3442 = vmatpush1.bf16.msra.mxu0 %v2491
    %3443 = vmatprep.subr.bf16.mxu0 %v2508
    %3444 = vmatpush1.bf16.msra.mxu0 %v2507
    %3445 = vmatprep.subr.bf16.mxu0 %v2524
    %3446 = vmatpush1.bf16.msra.mxu0 %v2523
    %3447 = vmatprep.subr.bf16.mxu0 %v2540
    %3448 = vmatpush1.bf16.msra.mxu0 %v2539
    %3449 = vmatprep.subr.bf16.mxu0 %v2556
    %3450 = vmatpush1.bf16.msra.mxu0 %v2555
    %3451 = vmatprep.mubr.bf16.mxu0 %v770
    %3452 = vmatmul.mubr.bf16.gmra.mrb[0].mxu0 %v769
    %v3453 = vpop.f32.mrb[0].mxu0
    %v3454 = vadd.f32 %v694, %v3453
    %v3455 = vpop.f32.mrb[0].mxu0
    %v3456 = vadd.f32 %v698, %v3455
    %v3457 = vpop.f32.mrb[0].mxu0
    %v3458 = vpop.f32.mrb[0].mxu0
    %3459 = vdwg.mxu0
    %3460 = vmatprep.subr.bf16.mxu0 %v2572
    %3461 = vmatpush1.bf16.msra.mxu0 %v2571
    %3462 = vmatprep.subr.bf16.mxu0 %v2588
    %3463 = vmatpush1.bf16.msra.mxu0 %v2587
    %3464 = vmatprep.subr.bf16.mxu0 %v2604
    %3465 = vmatpush1.bf16.msra.mxu0 %v2603
    %3466 = vmatprep.subr.bf16.mxu0 %v2620
    %3467 = vmatpush1.bf16.msra.mxu0 %v2619
    %3468 = vmatprep.subr.bf16.mxu0 %v2636
    %3469 = vmatpush1.bf16.msra.mxu0 %v2635
    %3470 = vmatprep.subr.bf16.mxu0 %v2652
    %3471 = vmatpush1.bf16.msra.mxu0 %v2651
    %3472 = vmatprep.subr.bf16.mxu0 %v2668
    %3473 = vmatpush1.bf16.msra.mxu0 %v2667
    %3474 = vmatprep.subr.bf16.mxu0 %v2684
    %3475 = vmatpush1.bf16.msra.mxu0 %v2683
    %3476 = vmatprep.subr.bf16.mxu0 %v2700
    %3477 = vmatpush1.bf16.msra.mxu0 %v2699
    %3478 = vmatprep.subr.bf16.mxu0 %v2716
    %3479 = vmatpush1.bf16.msra.mxu0 %v2715
    %3480 = vmatprep.subr.bf16.mxu0 %v2732
    %3481 = vmatpush1.bf16.msra.mxu0 %v2731
    %3482 = vmatprep.subr.bf16.mxu0 %v2748
    %3483 = vmatpush1.bf16.msra.mxu0 %v2747
    %3484 = vmatprep.subr.bf16.mxu0 %v2764
    %3485 = vmatpush1.bf16.msra.mxu0 %v2763
    %3486 = vmatprep.subr.bf16.mxu0 %v2780
    %3487 = vmatpush1.bf16.msra.mxu0 %v2779
    %3488 = vmatprep.subr.bf16.mxu0 %v2796
    %3489 = vmatpush1.bf16.msra.mxu0 %v2795
    %3490 = vmatprep.subr.bf16.mxu0 %v2812
    %3491 = vmatpush1.bf16.msra.mxu0 %v2811
    %3492 = vmatprep.mubr.bf16.mxu0 %v772
    %3493 = vmatmul.mubr.bf16.gmra.mrb[0].mxu0 %v771
    %v3494 = vpop.f32.mrb[0].mxu0
    %v3495 = vadd.f32 %v3454, %v3494
    %v3496 = vpop.f32.mrb[0].mxu0
    %v3497 = vadd.f32 %v3456, %v3496
    %v3498 = vpop.f32.mrb[0].mxu0
    %v3499 = vpop.f32.mrb[0].mxu0
    %3500 = vdwg.mxu0
    %3501 = vmatprep.subr.bf16.mxu0 %v2318
    %3502 = vmatpush1.bf16.msra.mxu0 %v2317
    %3503 = vmatprep.subr.bf16.mxu0 %v2334
    %3504 = vmatpush1.bf16.msra.mxu0 %v2333
    %3505 = vmatprep.subr.bf16.mxu0 %v2350
    %3506 = vmatpush1.bf16.msra.mxu0 %v2349
    %3507 = vmatprep.subr.bf16.mxu0 %v2366
    %3508 = vmatpush1.bf16.msra.mxu0 %v2365
    %3509 = vmatprep.subr.bf16.mxu0 %v2382
    %3510 = vmatpush1.bf16.msra.mxu0 %v2381
    %3511 = vmatprep.subr.bf16.mxu0 %v2398
    %3512 = vmatpush1.bf16.msra.mxu0 %v2397
    %3513 = vmatprep.subr.bf16.mxu0 %v2414
    %3514 = vmatpush1.bf16.msra.mxu0 %v2413
    %3515 = vmatprep.subr.bf16.mxu0 %v2430
    %3516 = vmatpush1.bf16.msra.mxu0 %v2429
    %3517 = vmatprep.subr.bf16.mxu0 %v2446
    %3518 = vmatpush1.bf16.msra.mxu0 %v2445
    %3519 = vmatprep.subr.bf16.mxu0 %v2462
    %3520 = vmatpush1.bf16.msra.mxu0 %v2461
    %3521 = vmatprep.subr.bf16.mxu0 %v2478
    %3522 = vmatpush1.bf16.msra.mxu0 %v2477
    %3523 = vmatprep.subr.bf16.mxu0 %v2494
    %3524 = vmatpush1.bf16.msra.mxu0 %v2493
    %3525 = vmatprep.subr.bf16.mxu0 %v2510
    %3526 = vmatpush1.bf16.msra.mxu0 %v2509
    %3527 = vmatprep.subr.bf16.mxu0 %v2526
    %3528 = vmatpush1.bf16.msra.mxu0 %v2525
    %3529 = vmatprep.subr.bf16.mxu0 %v2542
    %3530 = vmatpush1.bf16.msra.mxu0 %v2541
    %3531 = vmatprep.subr.bf16.mxu0 %v2558
    %3532 = vmatpush1.bf16.msra.mxu0 %v2557
    %3533 = vmatprep.mubr.bf16.mxu0 %v770
    %3534 = vmatmul.mubr.bf16.gmra.mrb[0].mxu0 %v769
    %v3535 = vpop.f32.mrb[0].mxu0
    %v3536 = vadd.f32 %v702, %v3535
    %v3537 = vpop.f32.mrb[0].mxu0
    %v3538 = vadd.f32 %v706, %v3537
    %v3539 = vpop.f32.mrb[0].mxu0
    %v3540 = vpop.f32.mrb[0].mxu0
    %3541 = vdwg.mxu0
    %3542 = vmatprep.subr.bf16.mxu0 %v2574
    %3543 = vmatpush1.bf16.msra.mxu0 %v2573
    %3544 = vmatprep.subr.bf16.mxu0 %v2590
    %3545 = vmatpush1.bf16.msra.mxu0 %v2589
    %3546 = vmatprep.subr.bf16.mxu0 %v2606
    %3547 = vmatpush1.bf16.msra.mxu0 %v2605
    %3548 = vmatprep.subr.bf16.mxu0 %v2622
    %3549 = vmatpush1.bf16.msra.mxu0 %v2621
    %3550 = vmatprep.subr.bf16.mxu0 %v2638
    %3551 = vmatpush1.bf16.msra.mxu0 %v2637
    %3552 = vmatprep.subr.bf16.mxu0 %v2654
    %3553 = vmatpush1.bf16.msra.mxu0 %v2653
    %3554 = vmatprep.subr.bf16.mxu0 %v2670
    %3555 = vmatpush1.bf16.msra.mxu0 %v2669
    %3556 = vmatprep.subr.bf16.mxu0 %v2686
    %3557 = vmatpush1.bf16.msra.mxu0 %v2685
    %3558 = vmatprep.subr.bf16.mxu0 %v2702
    %3559 = vmatpush1.bf16.msra.mxu0 %v2701
    %3560 = vmatprep.subr.bf16.mxu0 %v2718
    %3561 = vmatpush1.bf16.msra.mxu0 %v2717
    %3562 = vmatprep.subr.bf16.mxu0 %v2734
    %3563 = vmatpush1.bf16.msra.mxu0 %v2733
    %3564 = vmatprep.subr.bf16.mxu0 %v2750
    %3565 = vmatpush1.bf16.msra.mxu0 %v2749
    %3566 = vmatprep.subr.bf16.mxu0 %v2766
    %3567 = vmatpush1.bf16.msra.mxu0 %v2765
    %3568 = vmatprep.subr.bf16.mxu0 %v2782
    %3569 = vmatpush1.bf16.msra.mxu0 %v2781
    %3570 = vmatprep.subr.bf16.mxu0 %v2798
    %3571 = vmatpush1.bf16.msra.mxu0 %v2797
    %3572 = vmatprep.subr.bf16.mxu0 %v2814
    %3573 = vmatpush1.bf16.msra.mxu0 %v2813
    %3574 = vmatprep.mubr.bf16.mxu0 %v772
    %3575 = vmatmul.mubr.bf16.gmra.mrb[0].mxu0 %v771
    %v3576 = vpop.f32.mrb[0].mxu0
    %v3577 = vadd.f32 %v3536, %v3576
    %v3578 = vpop.f32.mrb[0].mxu0
    %v3579 = vadd.f32 %v3538, %v3578
    %v3580 = vpop.f32.mrb[0].mxu0
    %v3581 = vpop.f32.mrb[0].mxu0
    %3582 = vdwg.mxu0
    %3583 = vmatprep.subr.bf16.mxu0 %v2320
    %3584 = vmatpush1.bf16.msra.mxu0 %v2319
    %3585 = vmatprep.subr.bf16.mxu0 %v2336
    %3586 = vmatpush1.bf16.msra.mxu0 %v2335
    %3587 = vmatprep.subr.bf16.mxu0 %v2352
    %3588 = vmatpush1.bf16.msra.mxu0 %v2351
    %3589 = vmatprep.subr.bf16.mxu0 %v2368
    %3590 = vmatpush1.bf16.msra.mxu0 %v2367
    %3591 = vmatprep.subr.bf16.mxu0 %v2384
    %3592 = vmatpush1.bf16.msra.mxu0 %v2383
    %3593 = vmatprep.subr.bf16.mxu0 %v2400
    %3594 = vmatpush1.bf16.msra.mxu0 %v2399
    %3595 = vmatprep.subr.bf16.mxu0 %v2416
    %3596 = vmatpush1.bf16.msra.mxu0 %v2415
    %3597 = vmatprep.subr.bf16.mxu0 %v2432
    %3598 = vmatpush1.bf16.msra.mxu0 %v2431
    %3599 = vmatprep.subr.bf16.mxu0 %v2448
    %3600 = vmatpush1.bf16.msra.mxu0 %v2447
    %3601 = vmatprep.subr.bf16.mxu0 %v2464
    %3602 = vmatpush1.bf16.msra.mxu0 %v2463
    %3603 = vmatprep.subr.bf16.mxu0 %v2480
    %3604 = vmatpush1.bf16.msra.mxu0 %v2479
    %3605 = vmatprep.subr.bf16.mxu0 %v2496
    %3606 = vmatpush1.bf16.msra.mxu0 %v2495
    %3607 = vmatprep.subr.bf16.mxu0 %v2512
    %3608 = vmatpush1.bf16.msra.mxu0 %v2511
    %3609 = vmatprep.subr.bf16.mxu0 %v2528
    %3610 = vmatpush1.bf16.msra.mxu0 %v2527
    %3611 = vmatprep.subr.bf16.mxu0 %v2544
    %3612 = vmatpush1.bf16.msra.mxu0 %v2543
    %3613 = vmatprep.subr.bf16.mxu0 %v2560
    %3614 = vmatpush1.bf16.msra.mxu0 %v2559
    %3615 = vmatprep.mubr.bf16.mxu0 %v770
    %3616 = vmatmul.mubr.bf16.gmra.mrb[0].mxu0 %v769
    %v3617 = vpop.f32.mrb[0].mxu0
    %v3618 = vadd.f32 %v710, %v3617
    %v3619 = vpop.f32.mrb[0].mxu0
    %v3620 = vadd.f32 %v714, %v3619
    %v3621 = vpop.f32.mrb[0].mxu0
    %v3622 = vpop.f32.mrb[0].mxu0
    %3623 = vdwg.mxu0
    %3624 = vmatprep.subr.bf16.mxu0 %v2576
    %3625 = vmatpush1.bf16.msra.mxu0 %v2575
    %3626 = vmatprep.subr.bf16.mxu0 %v2592
    %3627 = vmatpush1.bf16.msra.mxu0 %v2591
    %3628 = vmatprep.subr.bf16.mxu0 %v2608
    %3629 = vmatpush1.bf16.msra.mxu0 %v2607
    %3630 = vmatprep.subr.bf16.mxu0 %v2624
    %3631 = vmatpush1.bf16.msra.mxu0 %v2623
    %3632 = vmatprep.subr.bf16.mxu0 %v2640
    %3633 = vmatpush1.bf16.msra.mxu0 %v2639
    %3634 = vmatprep.subr.bf16.mxu0 %v2656
    %3635 = vmatpush1.bf16.msra.mxu0 %v2655
    %3636 = vmatprep.subr.bf16.mxu0 %v2672
    %3637 = vmatpush1.bf16.msra.mxu0 %v2671
    %3638 = vmatprep.subr.bf16.mxu0 %v2688
    %3639 = vmatpush1.bf16.msra.mxu0 %v2687
    %3640 = vmatprep.subr.bf16.mxu0 %v2704
    %3641 = vmatpush1.bf16.msra.mxu0 %v2703
    %3642 = vmatprep.subr.bf16.mxu0 %v2720
    %3643 = vmatpush1.bf16.msra.mxu0 %v2719
    %3644 = vmatprep.subr.bf16.mxu0 %v2736
    %3645 = vmatpush1.bf16.msra.mxu0 %v2735
    %3646 = vmatprep.subr.bf16.mxu0 %v2752
    %3647 = vmatpush1.bf16.msra.mxu0 %v2751
    %3648 = vmatprep.subr.bf16.mxu0 %v2768
    %3649 = vmatpush1.bf16.msra.mxu0 %v2767
    %3650 = vmatprep.subr.bf16.mxu0 %v2784
    %3651 = vmatpush1.bf16.msra.mxu0 %v2783
    %3652 = vmatprep.subr.bf16.mxu0 %v2800
    %3653 = vmatpush1.bf16.msra.mxu0 %v2799
    %3654 = vmatprep.subr.bf16.mxu0 %v2816
    %3655 = vmatpush1.bf16.msra.mxu0 %v2815
    %3656 = vmatprep.mubr.bf16.mxu0 %v772
    %3657 = vmatmul.mubr.bf16.gmra.mrb[0].mxu0 %v771
    %v3658 = vpop.f32.mrb[0].mxu0
    %v3659 = vadd.f32 %v3618, %v3658
    %v3660 = vpop.f32.mrb[0].mxu0
    %v3661 = vadd.f32 %v3620, %v3660
    %v3662 = vpop.f32.mrb[0].mxu0
    %v3663 = vpop.f32.mrb[0].mxu0
    %3664 = vdwg.mxu0
    %3665 = vmatprep.subr.bf16.mxu0 %v2322
    %3666 = vmatpush1.bf16.msra.mxu0 %v2321
    %3667 = vmatprep.subr.bf16.mxu0 %v2338
    %3668 = vmatpush1.bf16.msra.mxu0 %v2337
    %3669 = vmatprep.subr.bf16.mxu0 %v2354
    %3670 = vmatpush1.bf16.msra.mxu0 %v2353
    %3671 = vmatprep.subr.bf16.mxu0 %v2370
    %3672 = vmatpush1.bf16.msra.mxu0 %v2369
    %3673 = vmatprep.subr.bf16.mxu0 %v2386
    %3674 = vmatpush1.bf16.msra.mxu0 %v2385
    %3675 = vmatprep.subr.bf16.mxu0 %v2402
    %3676 = vmatpush1.bf16.msra.mxu0 %v2401
    %3677 = vmatprep.subr.bf16.mxu0 %v2418
    %3678 = vmatpush1.bf16.msra.mxu0 %v2417
    %3679 = vmatprep.subr.bf16.mxu0 %v2434
    %3680 = vmatpush1.bf16.msra.mxu0 %v2433
    %3681 = vmatprep.subr.bf16.mxu0 %v2450
    %3682 = vmatpush1.bf16.msra.mxu0 %v2449
    %3683 = vmatprep.subr.bf16.mxu0 %v2466
    %3684 = vmatpush1.bf16.msra.mxu0 %v2465
    %3685 = vmatprep.subr.bf16.mxu0 %v2482
    %3686 = vmatpush1.bf16.msra.mxu0 %v2481
    %3687 = vmatprep.subr.bf16.mxu0 %v2498
    %3688 = vmatpush1.bf16.msra.mxu0 %v2497
    %3689 = vmatprep.subr.bf16.mxu0 %v2514
    %3690 = vmatpush1.bf16.msra.mxu0 %v2513
    %3691 = vmatprep.subr.bf16.mxu0 %v2530
    %3692 = vmatpush1.bf16.msra.mxu0 %v2529
    %3693 = vmatprep.subr.bf16.mxu0 %v2546
    %3694 = vmatpush1.bf16.msra.mxu0 %v2545
    %3695 = vmatprep.subr.bf16.mxu0 %v2562
    %3696 = vmatpush1.bf16.msra.mxu0 %v2561
    %3697 = vmatprep.mubr.bf16.mxu0 %v770
    %3698 = vmatmul.mubr.bf16.gmra.mrb[0].mxu0 %v769
    %v3699 = vpop.f32.mrb[0].mxu0
    %v3700 = vadd.f32 %v718, %v3699
    %v3701 = vpop.f32.mrb[0].mxu0
    %v3702 = vadd.f32 %v722, %v3701
    %v3703 = vpop.f32.mrb[0].mxu0
    %v3704 = vpop.f32.mrb[0].mxu0
    %3705 = vdwg.mxu0
    %3706 = vmatprep.subr.bf16.mxu0 %v2578
    %3707 = vmatpush1.bf16.msra.mxu0 %v2577
    %3708 = vmatprep.subr.bf16.mxu0 %v2594
    %3709 = vmatpush1.bf16.msra.mxu0 %v2593
    %3710 = vmatprep.subr.bf16.mxu0 %v2610
    %3711 = vmatpush1.bf16.msra.mxu0 %v2609
    %3712 = vmatprep.subr.bf16.mxu0 %v2626
    %3713 = vmatpush1.bf16.msra.mxu0 %v2625
    %3714 = vmatprep.subr.bf16.mxu0 %v2642
    %3715 = vmatpush1.bf16.msra.mxu0 %v2641
    %3716 = vmatprep.subr.bf16.mxu0 %v2658
    %3717 = vmatpush1.bf16.msra.mxu0 %v2657
    %3718 = vmatprep.subr.bf16.mxu0 %v2674
    %3719 = vmatpush1.bf16.msra.mxu0 %v2673
    %3720 = vmatprep.subr.bf16.mxu0 %v2690
    %3721 = vmatpush1.bf16.msra.mxu0 %v2689
    %3722 = vmatprep.subr.bf16.mxu0 %v2706
    %3723 = vmatpush1.bf16.msra.mxu0 %v2705
    %3724 = vmatprep.subr.bf16.mxu0 %v2722
    %3725 = vmatpush1.bf16.msra.mxu0 %v2721
    %3726 = vmatprep.subr.bf16.mxu0 %v2738
    %3727 = vmatpush1.bf16.msra.mxu0 %v2737
    %3728 = vmatprep.subr.bf16.mxu0 %v2754
    %3729 = vmatpush1.bf16.msra.mxu0 %v2753
    %3730 = vmatprep.subr.bf16.mxu0 %v2770
    %3731 = vmatpush1.bf16.msra.mxu0 %v2769
    %3732 = vmatprep.subr.bf16.mxu0 %v2786
    %3733 = vmatpush1.bf16.msra.mxu0 %v2785
    %3734 = vmatprep.subr.bf16.mxu0 %v2802
    %3735 = vmatpush1.bf16.msra.mxu0 %v2801
    %3736 = vmatprep.subr.bf16.mxu0 %v2818
    %3737 = vmatpush1.bf16.msra.mxu0 %v2817
    %3738 = vmatprep.mubr.bf16.mxu0 %v772
    %3739 = vmatmul.mubr.bf16.gmra.mrb[0].mxu0 %v771
    %v3740 = vpop.f32.mrb[0].mxu0
    %v3741 = vadd.f32 %v3700, %v3740
    %v3742 = vpop.f32.mrb[0].mxu0
    %v3743 = vadd.f32 %v3702, %v3742
    %v3744 = vpop.f32.mrb[0].mxu0
    %v3745 = vpop.f32.mrb[0].mxu0
    %3746 = vdwg.mxu0
    %3747 = vmatprep.subr.bf16.mxu0 %v2324
    %3748 = vmatpush1.bf16.msra.mxu0 %v2323
    %3749 = vmatprep.subr.bf16.mxu0 %v2340
    %3750 = vmatpush1.bf16.msra.mxu0 %v2339
    %3751 = vmatprep.subr.bf16.mxu0 %v2356
    %3752 = vmatpush1.bf16.msra.mxu0 %v2355
    %3753 = vmatprep.subr.bf16.mxu0 %v2372
    %3754 = vmatpush1.bf16.msra.mxu0 %v2371
    %3755 = vmatprep.subr.bf16.mxu0 %v2388
    %3756 = vmatpush1.bf16.msra.mxu0 %v2387
    %3757 = vmatprep.subr.bf16.mxu0 %v2404
    %3758 = vmatpush1.bf16.msra.mxu0 %v2403
    %3759 = vmatprep.subr.bf16.mxu0 %v2420
    %3760 = vmatpush1.bf16.msra.mxu0 %v2419
    %3761 = vmatprep.subr.bf16.mxu0 %v2436
    %3762 = vmatpush1.bf16.msra.mxu0 %v2435
    %3763 = vmatprep.subr.bf16.mxu0 %v2452
    %3764 = vmatpush1.bf16.msra.mxu0 %v2451
    %3765 = vmatprep.subr.bf16.mxu0 %v2468
    %3766 = vmatpush1.bf16.msra.mxu0 %v2467
    %3767 = vmatprep.subr.bf16.mxu0 %v2484
    %3768 = vmatpush1.bf16.msra.mxu0 %v2483
    %3769 = vmatprep.subr.bf16.mxu0 %v2500
    %3770 = vmatpush1.bf16.msra.mxu0 %v2499
    %3771 = vmatprep.subr.bf16.mxu0 %v2516
    %3772 = vmatpush1.bf16.msra.mxu0 %v2515
    %3773 = vmatprep.subr.bf16.mxu0 %v2532
    %3774 = vmatpush1.bf16.msra.mxu0 %v2531
    %3775 = vmatprep.subr.bf16.mxu0 %v2548
    %3776 = vmatpush1.bf16.msra.mxu0 %v2547
    %3777 = vmatprep.subr.bf16.mxu0 %v2564
    %3778 = vmatpush1.bf16.msra.mxu0 %v2563
    %3779 = vmatprep.mubr.bf16.mxu0 %v770
    %3780 = vmatmul.mubr.bf16.gmra.mrb[0].mxu0 %v769
    %v3781 = vpop.f32.mrb[0].mxu0
    %v3782 = vadd.f32 %v726, %v3781
    %v3783 = vpop.f32.mrb[0].mxu0
    %v3784 = vadd.f32 %v730, %v3783
    %v3785 = vpop.f32.mrb[0].mxu0
    %v3786 = vpop.f32.mrb[0].mxu0
    %3787 = vdwg.mxu0
    %3788 = vmatprep.subr.bf16.mxu0 %v2580
    %3789 = vmatpush1.bf16.msra.mxu0 %v2579
    %3790 = vmatprep.subr.bf16.mxu0 %v2596
    %3791 = vmatpush1.bf16.msra.mxu0 %v2595
    %3792 = vmatprep.subr.bf16.mxu0 %v2612
    %3793 = vmatpush1.bf16.msra.mxu0 %v2611
    %3794 = vmatprep.subr.bf16.mxu0 %v2628
    %3795 = vmatpush1.bf16.msra.mxu0 %v2627
    %3796 = vmatprep.subr.bf16.mxu0 %v2644
    %3797 = vmatpush1.bf16.msra.mxu0 %v2643
    %3798 = vmatprep.subr.bf16.mxu0 %v2660
    %3799 = vmatpush1.bf16.msra.mxu0 %v2659
    %3800 = vmatprep.subr.bf16.mxu0 %v2676
    %3801 = vmatpush1.bf16.msra.mxu0 %v2675
    %3802 = vmatprep.subr.bf16.mxu0 %v2692
    %3803 = vmatpush1.bf16.msra.mxu0 %v2691
    %3804 = vmatprep.subr.bf16.mxu0 %v2708
    %3805 = vmatpush1.bf16.msra.mxu0 %v2707
    %3806 = vmatprep.subr.bf16.mxu0 %v2724
    %3807 = vmatpush1.bf16.msra.mxu0 %v2723
    %3808 = vmatprep.subr.bf16.mxu0 %v2740
    %3809 = vmatpush1.bf16.msra.mxu0 %v2739
    %3810 = vmatprep.subr.bf16.mxu0 %v2756
    %3811 = vmatpush1.bf16.msra.mxu0 %v2755
    %3812 = vmatprep.subr.bf16.mxu0 %v2772
    %3813 = vmatpush1.bf16.msra.mxu0 %v2771
    %3814 = vmatprep.subr.bf16.mxu0 %v2788
    %3815 = vmatpush1.bf16.msra.mxu0 %v2787
    %3816 = vmatprep.subr.bf16.mxu0 %v2804
    %3817 = vmatpush1.bf16.msra.mxu0 %v2803
    %3818 = vmatprep.subr.bf16.mxu0 %v2820
    %3819 = vmatpush1.bf16.msra.mxu0 %v2819
    %3820 = vmatprep.mubr.bf16.mxu0 %v772
    %3821 = vmatmul.mubr.bf16.gmra.mrb[0].mxu0 %v771
    %v3822 = vpop.f32.mrb[0].mxu0
    %v3823 = vadd.f32 %v3782, %v3822
    %v3824 = vpop.f32.mrb[0].mxu0
    %v3825 = vadd.f32 %v3784, %v3824
    %v3826 = vpop.f32.mrb[0].mxu0
    %v3827 = vpop.f32.mrb[0].mxu0
    %3828 = vdwg.mxu0
    %3829 = vmatprep.subr.bf16.mxu0 %v2326
    %3830 = vmatpush1.bf16.msra.mxu0 %v2325
    %3831 = vmatprep.subr.bf16.mxu0 %v2342
    %3832 = vmatpush1.bf16.msra.mxu0 %v2341
    %3833 = vmatprep.subr.bf16.mxu0 %v2358
    %3834 = vmatpush1.bf16.msra.mxu0 %v2357
    %3835 = vmatprep.subr.bf16.mxu0 %v2374
    %3836 = vmatpush1.bf16.msra.mxu0 %v2373
    %3837 = vmatprep.subr.bf16.mxu0 %v2390
    %3838 = vmatpush1.bf16.msra.mxu0 %v2389
    %3839 = vmatprep.subr.bf16.mxu0 %v2406
    %3840 = vmatpush1.bf16.msra.mxu0 %v2405
    %3841 = vmatprep.subr.bf16.mxu0 %v2422
    %3842 = vmatpush1.bf16.msra.mxu0 %v2421
    %3843 = vmatprep.subr.bf16.mxu0 %v2438
    %3844 = vmatpush1.bf16.msra.mxu0 %v2437
    %3845 = vmatprep.subr.bf16.mxu0 %v2454
    %3846 = vmatpush1.bf16.msra.mxu0 %v2453
    %3847 = vmatprep.subr.bf16.mxu0 %v2470
    %3848 = vmatpush1.bf16.msra.mxu0 %v2469
    %3849 = vmatprep.subr.bf16.mxu0 %v2486
    %3850 = vmatpush1.bf16.msra.mxu0 %v2485
    %3851 = vmatprep.subr.bf16.mxu0 %v2502
    %3852 = vmatpush1.bf16.msra.mxu0 %v2501
    %3853 = vmatprep.subr.bf16.mxu0 %v2518
    %3854 = vmatpush1.bf16.msra.mxu0 %v2517
    %3855 = vmatprep.subr.bf16.mxu0 %v2534
    %3856 = vmatpush1.bf16.msra.mxu0 %v2533
    %3857 = vmatprep.subr.bf16.mxu0 %v2550
    %3858 = vmatpush1.bf16.msra.mxu0 %v2549
    %3859 = vmatprep.subr.bf16.mxu0 %v2566
    %3860 = vmatpush1.bf16.msra.mxu0 %v2565
    %3861 = vmatprep.mubr.bf16.mxu0 %v770
    %3862 = vmatmul.mubr.bf16.gmra.mrb[0].mxu0 %v769
    %v3863 = vpop.f32.mrb[0].mxu0
    %v3864 = vadd.f32 %v734, %v3863
    %v3865 = vpop.f32.mrb[0].mxu0
    %v3866 = vadd.f32 %v738, %v3865
    %v3867 = vpop.f32.mrb[0].mxu0
    %v3868 = vpop.f32.mrb[0].mxu0
    %3869 = vdwg.mxu0
    %3870 = vmatprep.subr.bf16.mxu0 %v2582
    %3871 = vmatpush1.bf16.msra.mxu0 %v2581
    %3872 = vmatprep.subr.bf16.mxu0 %v2598
    %3873 = vmatpush1.bf16.msra.mxu0 %v2597
    %3874 = vmatprep.subr.bf16.mxu0 %v2614
    %3875 = vmatpush1.bf16.msra.mxu0 %v2613
    %3876 = vmatprep.subr.bf16.mxu0 %v2630
    %3877 = vmatpush1.bf16.msra.mxu0 %v2629
    %3878 = vmatprep.subr.bf16.mxu0 %v2646
    %3879 = vmatpush1.bf16.msra.mxu0 %v2645
    %3880 = vmatprep.subr.bf16.mxu0 %v2662
    %3881 = vmatpush1.bf16.msra.mxu0 %v2661
    %3882 = vmatprep.subr.bf16.mxu0 %v2678
    %3883 = vmatpush1.bf16.msra.mxu0 %v2677
    %3884 = vmatprep.subr.bf16.mxu0 %v2694
    %3885 = vmatpush1.bf16.msra.mxu0 %v2693
    %3886 = vmatprep.subr.bf16.mxu0 %v2710
    %3887 = vmatpush1.bf16.msra.mxu0 %v2709
    %3888 = vmatprep.subr.bf16.mxu0 %v2726
    %3889 = vmatpush1.bf16.msra.mxu0 %v2725
    %3890 = vmatprep.subr.bf16.mxu0 %v2742
    %3891 = vmatpush1.bf16.msra.mxu0 %v2741
    %3892 = vmatprep.subr.bf16.mxu0 %v2758
    %3893 = vmatpush1.bf16.msra.mxu0 %v2757
    %3894 = vmatprep.subr.bf16.mxu0 %v2774
    %3895 = vmatpush1.bf16.msra.mxu0 %v2773
    %3896 = vmatprep.subr.bf16.mxu0 %v2790
    %3897 = vmatpush1.bf16.msra.mxu0 %v2789
    %3898 = vmatprep.subr.bf16.mxu0 %v2806
    %3899 = vmatpush1.bf16.msra.mxu0 %v2805
    %3900 = vmatprep.subr.bf16.mxu0 %v2822
    %3901 = vmatpush1.bf16.msra.mxu0 %v2821
    %3902 = vmatprep.mubr.bf16.mxu0 %v772
    %3903 = vmatmul.mubr.bf16.gmra.mrb[0].mxu0 %v771
    %v3904 = vpop.f32.mrb[0].mxu0
    %v3905 = vadd.f32 %v3864, %v3904
    %v3906 = vpop.f32.mrb[0].mxu0
    %v3907 = vadd.f32 %v3866, %v3906
    %v3908 = vpop.f32.mrb[0].mxu0
    %v3909 = vpop.f32.mrb[0].mxu0
    %3910 = vdwg.mxu0
    %3911 = vmatprep.subr.bf16.mxu0 %v2328
    %3912 = vmatpush1.bf16.msra.mxu0 %v2327
    %3913 = vmatprep.subr.bf16.mxu0 %v2344
    %3914 = vmatpush1.bf16.msra.mxu0 %v2343
    %3915 = vmatprep.subr.bf16.mxu0 %v2360
    %3916 = vmatpush1.bf16.msra.mxu0 %v2359
    %3917 = vmatprep.subr.bf16.mxu0 %v2376
    %3918 = vmatpush1.bf16.msra.mxu0 %v2375
    %3919 = vmatprep.subr.bf16.mxu0 %v2392
    %3920 = vmatpush1.bf16.msra.mxu0 %v2391
    %3921 = vmatprep.subr.bf16.mxu0 %v2408
    %3922 = vmatpush1.bf16.msra.mxu0 %v2407
    %3923 = vmatprep.subr.bf16.mxu0 %v2424
    %3924 = vmatpush1.bf16.msra.mxu0 %v2423
    %3925 = vmatprep.subr.bf16.mxu0 %v2440
    %3926 = vmatpush1.bf16.msra.mxu0 %v2439
    %3927 = vmatprep.subr.bf16.mxu0 %v2456
    %3928 = vmatpush1.bf16.msra.mxu0 %v2455
    %3929 = vmatprep.subr.bf16.mxu0 %v2472
    %3930 = vmatpush1.bf16.msra.mxu0 %v2471
    %3931 = vmatprep.subr.bf16.mxu0 %v2488
    %3932 = vmatpush1.bf16.msra.mxu0 %v2487
    %3933 = vmatprep.subr.bf16.mxu0 %v2504
    %3934 = vmatpush1.bf16.msra.mxu0 %v2503
    %3935 = vmatprep.subr.bf16.mxu0 %v2520
    %3936 = vmatpush1.bf16.msra.mxu0 %v2519
    %3937 = vmatprep.subr.bf16.mxu0 %v2536
    %3938 = vmatpush1.bf16.msra.mxu0 %v2535
    %3939 = vmatprep.subr.bf16.mxu0 %v2552
    %3940 = vmatpush1.bf16.msra.mxu0 %v2551
    %3941 = vmatprep.subr.bf16.mxu0 %v2568
    %3942 = vmatpush1.bf16.msra.mxu0 %v2567
    %3943 = vmatprep.mubr.bf16.mxu0 %v770
    %3944 = vmatmul.mubr.bf16.gmra.mrb[0].mxu0 %v769
    %v3945 = vpop.f32.mrb[0].mxu0
    %v3946 = vadd.f32 %v742, %v3945
    %v3947 = vpop.f32.mrb[0].mxu0
    %v3948 = vadd.f32 %v746, %v3947
    %v3949 = vpop.f32.mrb[0].mxu0
    %v3950 = vpop.f32.mrb[0].mxu0
    %3951 = vdwg.mxu0
    %3952 = vmatprep.subr.bf16.mxu0 %v2584
    %3953 = vmatpush1.bf16.msra.mxu0 %v2583
    %3954 = vmatprep.subr.bf16.mxu0 %v2600
    %3955 = vmatpush1.bf16.msra.mxu0 %v2599
    %3956 = vmatprep.subr.bf16.mxu0 %v2616
    %3957 = vmatpush1.bf16.msra.mxu0 %v2615
    %3958 = vmatprep.subr.bf16.mxu0 %v2632
    %3959 = vmatpush1.bf16.msra.mxu0 %v2631
    %3960 = vmatprep.subr.bf16.mxu0 %v2648
    %3961 = vmatpush1.bf16.msra.mxu0 %v2647
    %3962 = vmatprep.subr.bf16.mxu0 %v2664
    %3963 = vmatpush1.bf16.msra.mxu0 %v2663
    %3964 = vmatprep.subr.bf16.mxu0 %v2680
    %3965 = vmatpush1.bf16.msra.mxu0 %v2679
    %3966 = vmatprep.subr.bf16.mxu0 %v2696
    %3967 = vmatpush1.bf16.msra.mxu0 %v2695
    %3968 = vmatprep.subr.bf16.mxu0 %v2712
    %3969 = vmatpush1.bf16.msra.mxu0 %v2711
    %3970 = vmatprep.subr.bf16.mxu0 %v2728
    %3971 = vmatpush1.bf16.msra.mxu0 %v2727
    %3972 = vmatprep.subr.bf16.mxu0 %v2744
    %3973 = vmatpush1.bf16.msra.mxu0 %v2743
    %3974 = vmatprep.subr.bf16.mxu0 %v2760
    %3975 = vmatpush1.bf16.msra.mxu0 %v2759
    %3976 = vmatprep.subr.bf16.mxu0 %v2776
    %3977 = vmatpush1.bf16.msra.mxu0 %v2775
    %3978 = vmatprep.subr.bf16.mxu0 %v2792
    %3979 = vmatpush1.bf16.msra.mxu0 %v2791
    %3980 = vmatprep.subr.bf16.mxu0 %v2808
    %3981 = vmatpush1.bf16.msra.mxu0 %v2807
    %3982 = vmatprep.subr.bf16.mxu0 %v2824
    %3983 = vmatpush1.bf16.msra.mxu0 %v2823
    %3984 = vmatprep.mubr.bf16.mxu0 %v772
    %3985 = vmatmul.mubr.bf16.gmra.mrb[0].mxu0 %v771
    %v3986 = vpop.f32.mrb[0].mxu0
    %v3987 = vadd.f32 %v3946, %v3986
    %v3988 = vpop.f32.mrb[0].mxu0
    %v3989 = vadd.f32 %v3948, %v3988
    %v3990 = vpop.f32.mrb[0].mxu0
    %v3991 = vpop.f32.mrb[0].mxu0
    %3992 = vdwg.mxu0
    %vm3993 = vcmp.ge.f32.partialorder %v3413, 0.0
    %vm3994 = vcmp.ge.f32.partialorder %v3415, 0.0
    %vm3995 = vcmp.ge.f32.partialorder %v3495, 0.0
    %vm3996 = vcmp.ge.f32.partialorder %v3497, 0.0
    %vm3997 = vcmp.ge.f32.partialorder %v3577, 0.0
    %vm3998 = vcmp.ge.f32.partialorder %v3579, 0.0
    %vm3999 = vcmp.ge.f32.partialorder %v3659, 0.0
    %vm4000 = vcmp.ge.f32.partialorder %v3661, 0.0
    %vm4001 = vcmp.ge.f32.partialorder %v3741, 0.0
    %vm4002 = vcmp.ge.f32.partialorder %v3743, 0.0
    %vm4003 = vcmp.ge.f32.partialorder %v3823, 0.0
    %vm4004 = vcmp.ge.f32.partialorder %v3825, 0.0
    %vm4005 = vcmp.ge.f32.partialorder %v3905, 0.0
    %vm4006 = vcmp.ge.f32.partialorder %v3907, 0.0
    %vm4007 = vcmp.ge.f32.partialorder %v3987, 0.0
    %vm4008 = vcmp.ge.f32.partialorder %v3989, 0.0
    %v4009 = vmul.f32 %v3413, 0.01
    %v4010 = vmul.f32 %v3415, 0.01
    %v4011 = vmul.f32 %v3495, 0.01
    %v4012 = vmul.f32 %v3497, 0.01
    %v4013 = vmul.f32 %v3577, 0.01
    %v4014 = vmul.f32 %v3579, 0.01
    %v4015 = vmul.f32 %v3659, 0.01
    %v4016 = vmul.f32 %v3661, 0.01
    %v4017 = vmul.f32 %v3741, 0.01
    %v4018 = vmul.f32 %v3743, 0.01
    %v4019 = vmul.f32 %v3823, 0.01
    %v4020 = vmul.f32 %v3825, 0.01
    %v4021 = vmul.f32 %v3905, 0.01
    %v4022 = vmul.f32 %v3907, 0.01
    %v4023 = vmul.f32 %v3987, 0.01
    %v4024 = vmul.f32 %v3989, 0.01
    %v4025 = vsel %vm3993, %v3413, %v4009
    %v4026 = vsel %vm3994, %v3415, %v4010
    %v4027 = vsel %vm3995, %v3495, %v4011
    %v4028 = vsel %vm3996, %v3497, %v4012
    %v4029 = vsel %vm3997, %v3577, %v4013
    %v4030 = vsel %vm3998, %v3579, %v4014
    %v4031 = vsel %vm3999, %v3659, %v4015
    %v4032 = vsel %vm4000, %v3661, %v4016
    %v4033 = vsel %vm4001, %v3741, %v4017
    %v4034 = vsel %vm4002, %v3743, %v4018
    %v4035 = vsel %vm4003, %v3823, %v4019
    %v4036 = vsel %vm4004, %v3825, %v4020
    %v4037 = vsel %vm4005, %v3905, %v4021
    %v4038 = vsel %vm4006, %v3907, %v4022
    %v4039 = vsel %vm4007, %v3987, %v4023
    %v4040 = vsel %vm4008, %v3989, %v4024
    %v4041 = vpack.c.bf16 %v4025, %v4025
    %v4042 = vpack.c.bf16 %v4026, %v4026
    %v4043 = vpack.c.bf16 %v4027, %v4027
    %v4044 = vpack.c.bf16 %v4028, %v4028
    %v4045 = vpack.c.bf16 %v4029, %v4029
    %v4046 = vpack.c.bf16 %v4030, %v4030
    %v4047 = vpack.c.bf16 %v4031, %v4031
    %v4048 = vpack.c.bf16 %v4032, %v4032
    %v4049 = vpack.c.bf16 %v4033, %v4033
    %v4050 = vpack.c.bf16 %v4034, %v4034
    %v4051 = vpack.c.bf16 %v4035, %v4035
    %v4052 = vpack.c.bf16 %v4036, %v4036
    %v4053 = vpack.c.bf16 %v4037, %v4037
    %v4054 = vpack.c.bf16 %v4038, %v4038
    %v4055 = vpack.c.bf16 %v4039, %v4039
    %v4056 = vpack.c.bf16 %v4040, %v4040
    %v4057 = vld [vmem:[#allocation6] sm:$0xff]
    %v4058 = vld [vmem:[#allocation6 + $0x8] sm:$0xff]
    %v4059 = vld [vmem:[#allocation6 + $0x10] sm:$0xff]
    %v4060 = vld [vmem:[#allocation6 + $0x18] sm:$0xff]
    %v4061 = vld [vmem:[#allocation6 + $0x20] sm:$0xff]
    %v4062 = vld [vmem:[#allocation6 + $0x28] sm:$0xff]
    %v4063 = vld [vmem:[#allocation6 + $0x30] sm:$0xff]
    %v4064 = vld [vmem:[#allocation6 + $0x38] sm:$0xff]
    %v4065 = vld [vmem:[#allocation6 + $0x40] sm:$0xff]
    %v4066 = vld [vmem:[#allocation6 + $0x48] sm:$0xff]
    %v4067 = vld [vmem:[#allocation6 + $0x50] sm:$0xff]
    %v4068 = vld [vmem:[#allocation6 + $0x58] sm:$0xff]
    %v4069 = vld [vmem:[#allocation6 + $0x60] sm:$0xff]
    %v4070 = vld [vmem:[#allocation6 + $0x68] sm:$0xff]
    %v4071 = vld [vmem:[#allocation6 + $0x70] sm:$0xff]
    %v4072 = vld [vmem:[#allocation6 + $0x78] sm:$0xff]
    %v4073 = vld [vmem:[#allocation6 + $0x80] sm:$0xff]
    %v4074 = vld [vmem:[#allocation6 + $0x88] sm:$0xff]
    %v4075 = vld [vmem:[#allocation6 + $0x90] sm:$0xff]
    %v4076 = vld [vmem:[#allocation6 + $0x98] sm:$0xff]
    %v4077 = vld [vmem:[#allocation6 + $0xa0] sm:$0xff]
    %v4078 = vld [vmem:[#allocation6 + $0xa8] sm:$0xff]
    %v4079 = vld [vmem:[#allocation6 + $0xb0] sm:$0xff]
    %v4080 = vld [vmem:[#allocation6 + $0xb8] sm:$0xff]
    %v4081 = vld [vmem:[#allocation6 + $0xc0] sm:$0xff]
    %v4082 = vld [vmem:[#allocation6 + $0xc8] sm:$0xff]
    %v4083 = vld [vmem:[#allocation6 + $0xd0] sm:$0xff]
    %v4084 = vld [vmem:[#allocation6 + $0xd8] sm:$0xff]
    %v4085 = vld [vmem:[#allocation6 + $0xe0] sm:$0xff]
    %v4086 = vld [vmem:[#allocation6 + $0xe8] sm:$0xff]
    %v4087 = vld [vmem:[#allocation6 + $0xf0] sm:$0xff]
    %v4088 = vld [vmem:[#allocation6 + $0xf8] sm:$0xff]
    %v4089 = vld [vmem:[#allocation6 + $0x100] sm:$0xff]
    %v4090 = vld [vmem:[#allocation6 + $0x108] sm:$0xff]
    %v4091 = vld [vmem:[#allocation6 + $0x110] sm:$0xff]
    %v4092 = vld [vmem:[#allocation6 + $0x118] sm:$0xff]
    %v4093 = vld [vmem:[#allocation6 + $0x120] sm:$0xff]
    %v4094 = vld [vmem:[#allocation6 + $0x128] sm:$0xff]
    %v4095 = vld [vmem:[#allocation6 + $0x130] sm:$0xff]
    %v4096 = vld [vmem:[#allocation6 + $0x138] sm:$0xff]
    %v4097 = vld [vmem:[#allocation6 + $0x140] sm:$0xff]
    %v4098 = vld [vmem:[#allocation6 + $0x148] sm:$0xff]
    %v4099 = vld [vmem:[#allocation6 + $0x150] sm:$0xff]
    %v4100 = vld [vmem:[#allocation6 + $0x158] sm:$0xff]
    %v4101 = vld [vmem:[#allocation6 + $0x160] sm:$0xff]
    %v4102 = vld [vmem:[#allocation6 + $0x168] sm:$0xff]
    %v4103 = vld [vmem:[#allocation6 + $0x170] sm:$0xff]
    %v4104 = vld [vmem:[#allocation6 + $0x178] sm:$0xff]
    %v4105 = vld [vmem:[#allocation6 + $0x180] sm:$0xff]
    %v4106 = vld [vmem:[#allocation6 + $0x188] sm:$0xff]
    %v4107 = vld [vmem:[#allocation6 + $0x190] sm:$0xff]
    %v4108 = vld [vmem:[#allocation6 + $0x198] sm:$0xff]
    %v4109 = vld [vmem:[#allocation6 + $0x1a0] sm:$0xff]
    %v4110 = vld [vmem:[#allocation6 + $0x1a8] sm:$0xff]
    %v4111 = vld [vmem:[#allocation6 + $0x1b0] sm:$0xff]
    %v4112 = vld [vmem:[#allocation6 + $0x1b8] sm:$0xff]
    %v4113 = vld [vmem:[#allocation6 + $0x1c0] sm:$0xff]
    %v4114 = vld [vmem:[#allocation6 + $0x1c8] sm:$0xff]
    %v4115 = vld [vmem:[#allocation6 + $0x1d0] sm:$0xff]
    %v4116 = vld [vmem:[#allocation6 + $0x1d8] sm:$0xff]
    %v4117 = vld [vmem:[#allocation6 + $0x1e0] sm:$0xff]
    %v4118 = vld [vmem:[#allocation6 + $0x1e8] sm:$0xff]
    %v4119 = vld [vmem:[#allocation6 + $0x1f0] sm:$0xff]
    %v4120 = vld [vmem:[#allocation6 + $0x1f8] sm:$0xff]
    %v4121 = vld [vmem:[#allocation6 + $0x200] sm:$0xff]
    %v4122 = vld [vmem:[#allocation6 + $0x208] sm:$0xff]
    %v4123 = vld [vmem:[#allocation6 + $0x210] sm:$0xff]
    %v4124 = vld [vmem:[#allocation6 + $0x218] sm:$0xff]
    %v4125 = vld [vmem:[#allocation6 + $0x220] sm:$0xff]
    %v4126 = vld [vmem:[#allocation6 + $0x228] sm:$0xff]
    %v4127 = vld [vmem:[#allocation6 + $0x230] sm:$0xff]
    %v4128 = vld [vmem:[#allocation6 + $0x238] sm:$0xff]
    %v4129 = vld [vmem:[#allocation6 + $0x240] sm:$0xff]
    %v4130 = vld [vmem:[#allocation6 + $0x248] sm:$0xff]
    %v4131 = vld [vmem:[#allocation6 + $0x250] sm:$0xff]
    %v4132 = vld [vmem:[#allocation6 + $0x258] sm:$0xff]
    %v4133 = vld [vmem:[#allocation6 + $0x260] sm:$0xff]
    %v4134 = vld [vmem:[#allocation6 + $0x268] sm:$0xff]
    %v4135 = vld [vmem:[#allocation6 + $0x270] sm:$0xff]
    %v4136 = vld [vmem:[#allocation6 + $0x278] sm:$0xff]
    %v4137 = vld [vmem:[#allocation6 + $0x280] sm:$0xff]
    %v4138 = vld [vmem:[#allocation6 + $0x288] sm:$0xff]
    %v4139 = vld [vmem:[#allocation6 + $0x290] sm:$0xff]
    %v4140 = vld [vmem:[#allocation6 + $0x298] sm:$0xff]
    %v4141 = vld [vmem:[#allocation6 + $0x2a0] sm:$0xff]
    %v4142 = vld [vmem:[#allocation6 + $0x2a8] sm:$0xff]
    %v4143 = vld [vmem:[#allocation6 + $0x2b0] sm:$0xff]
    %v4144 = vld [vmem:[#allocation6 + $0x2b8] sm:$0xff]
    %v4145 = vld [vmem:[#allocation6 + $0x2c0] sm:$0xff]
    %v4146 = vld [vmem:[#allocation6 + $0x2c8] sm:$0xff]
    %v4147 = vld [vmem:[#allocation6 + $0x2d0] sm:$0xff]
    %v4148 = vld [vmem:[#allocation6 + $0x2d8] sm:$0xff]
    %v4149 = vld [vmem:[#allocation6 + $0x2e0] sm:$0xff]
    %v4150 = vld [vmem:[#allocation6 + $0x2e8] sm:$0xff]
    %v4151 = vld [vmem:[#allocation6 + $0x2f0] sm:$0xff]
    %v4152 = vld [vmem:[#allocation6 + $0x2f8] sm:$0xff]
    %v4153 = vld [vmem:[#allocation6 + $0x300] sm:$0xff]
    %v4154 = vld [vmem:[#allocation6 + $0x308] sm:$0xff]
    %v4155 = vld [vmem:[#allocation6 + $0x310] sm:$0xff]
    %v4156 = vld [vmem:[#allocation6 + $0x318] sm:$0xff]
    %v4157 = vld [vmem:[#allocation6 + $0x320] sm:$0xff]
    %v4158 = vld [vmem:[#allocation6 + $0x328] sm:$0xff]
    %v4159 = vld [vmem:[#allocation6 + $0x330] sm:$0xff]
    %v4160 = vld [vmem:[#allocation6 + $0x338] sm:$0xff]
    %v4161 = vld [vmem:[#allocation6 + $0x340] sm:$0xff]
    %v4162 = vld [vmem:[#allocation6 + $0x348] sm:$0xff]
    %v4163 = vld [vmem:[#allocation6 + $0x350] sm:$0xff]
    %v4164 = vld [vmem:[#allocation6 + $0x358] sm:$0xff]
    %v4165 = vld [vmem:[#allocation6 + $0x360] sm:$0xff]
    %v4166 = vld [vmem:[#allocation6 + $0x368] sm:$0xff]
    %v4167 = vld [vmem:[#allocation6 + $0x370] sm:$0xff]
    %v4168 = vld [vmem:[#allocation6 + $0x378] sm:$0xff]
    %v4169 = vld [vmem:[#allocation6 + $0x380] sm:$0xff]
    %v4170 = vld [vmem:[#allocation6 + $0x388] sm:$0xff]
    %v4171 = vld [vmem:[#allocation6 + $0x390] sm:$0xff]
    %v4172 = vld [vmem:[#allocation6 + $0x398] sm:$0xff]
    %v4173 = vld [vmem:[#allocation6 + $0x3a0] sm:$0xff]
    %v4174 = vld [vmem:[#allocation6 + $0x3a8] sm:$0xff]
    %v4175 = vld [vmem:[#allocation6 + $0x3b0] sm:$0xff]
    %v4176 = vld [vmem:[#allocation6 + $0x3b8] sm:$0xff]
    %v4177 = vld [vmem:[#allocation6 + $0x3c0] sm:$0xff]
    %v4178 = vld [vmem:[#allocation6 + $0x3c8] sm:$0xff]
    %v4179 = vld [vmem:[#allocation6 + $0x3d0] sm:$0xff]
    %v4180 = vld [vmem:[#allocation6 + $0x3d8] sm:$0xff]
    %v4181 = vld [vmem:[#allocation6 + $0x3e0] sm:$0xff]
    %v4182 = vld [vmem:[#allocation6 + $0x3e8] sm:$0xff]
    %v4183 = vld [vmem:[#allocation6 + $0x3f0] sm:$0xff]
    %v4184 = vld [vmem:[#allocation6 + $0x3f8] sm:$0xff]
    %v4185 = vld [vmem:[#allocation6 + $0x400] sm:$0xff]
    %v4186 = vld [vmem:[#allocation6 + $0x408] sm:$0xff]
    %v4187 = vld [vmem:[#allocation6 + $0x410] sm:$0xff]
    %v4188 = vld [vmem:[#allocation6 + $0x418] sm:$0xff]
    %v4189 = vld [vmem:[#allocation6 + $0x420] sm:$0xff]
    %v4190 = vld [vmem:[#allocation6 + $0x428] sm:$0xff]
    %v4191 = vld [vmem:[#allocation6 + $0x430] sm:$0xff]
    %v4192 = vld [vmem:[#allocation6 + $0x438] sm:$0xff]
    %v4193 = vld [vmem:[#allocation6 + $0x440] sm:$0xff]
    %v4194 = vld [vmem:[#allocation6 + $0x448] sm:$0xff]
    %v4195 = vld [vmem:[#allocation6 + $0x450] sm:$0xff]
    %v4196 = vld [vmem:[#allocation6 + $0x458] sm:$0xff]
    %v4197 = vld [vmem:[#allocation6 + $0x460] sm:$0xff]
    %v4198 = vld [vmem:[#allocation6 + $0x468] sm:$0xff]
    %v4199 = vld [vmem:[#allocation6 + $0x470] sm:$0xff]
    %v4200 = vld [vmem:[#allocation6 + $0x478] sm:$0xff]
    %v4201 = vld [vmem:[#allocation6 + $0x480] sm:$0xff]
    %v4202 = vld [vmem:[#allocation6 + $0x488] sm:$0xff]
    %v4203 = vld [vmem:[#allocation6 + $0x490] sm:$0xff]
    %v4204 = vld [vmem:[#allocation6 + $0x498] sm:$0xff]
    %v4205 = vld [vmem:[#allocation6 + $0x4a0] sm:$0xff]
    %v4206 = vld [vmem:[#allocation6 + $0x4a8] sm:$0xff]
    %v4207 = vld [vmem:[#allocation6 + $0x4b0] sm:$0xff]
    %v4208 = vld [vmem:[#allocation6 + $0x4b8] sm:$0xff]
    %v4209 = vld [vmem:[#allocation6 + $0x4c0] sm:$0xff]
    %v4210 = vld [vmem:[#allocation6 + $0x4c8] sm:$0xff]
    %v4211 = vld [vmem:[#allocation6 + $0x4d0] sm:$0xff]
    %v4212 = vld [vmem:[#allocation6 + $0x4d8] sm:$0xff]
    %v4213 = vld [vmem:[#allocation6 + $0x4e0] sm:$0xff]
    %v4214 = vld [vmem:[#allocation6 + $0x4e8] sm:$0xff]
    %v4215 = vld [vmem:[#allocation6 + $0x4f0] sm:$0xff]
    %v4216 = vld [vmem:[#allocation6 + $0x4f8] sm:$0xff]
    %v4217 = vld [vmem:[#allocation6 + $0x500] sm:$0xff]
    %v4218 = vld [vmem:[#allocation6 + $0x508] sm:$0xff]
    %v4219 = vld [vmem:[#allocation6 + $0x510] sm:$0xff]
    %v4220 = vld [vmem:[#allocation6 + $0x518] sm:$0xff]
    %v4221 = vld [vmem:[#allocation6 + $0x520] sm:$0xff]
    %v4222 = vld [vmem:[#allocation6 + $0x528] sm:$0xff]
    %v4223 = vld [vmem:[#allocation6 + $0x530] sm:$0xff]
    %v4224 = vld [vmem:[#allocation6 + $0x538] sm:$0xff]
    %v4225 = vld [vmem:[#allocation6 + $0x540] sm:$0xff]
    %v4226 = vld [vmem:[#allocation6 + $0x548] sm:$0xff]
    %v4227 = vld [vmem:[#allocation6 + $0x550] sm:$0xff]
    %v4228 = vld [vmem:[#allocation6 + $0x558] sm:$0xff]
    %v4229 = vld [vmem:[#allocation6 + $0x560] sm:$0xff]
    %v4230 = vld [vmem:[#allocation6 + $0x568] sm:$0xff]
    %v4231 = vld [vmem:[#allocation6 + $0x570] sm:$0xff]
    %v4232 = vld [vmem:[#allocation6 + $0x578] sm:$0xff]
    %v4233 = vld [vmem:[#allocation6 + $0x580] sm:$0xff]
    %v4234 = vld [vmem:[#allocation6 + $0x588] sm:$0xff]
    %v4235 = vld [vmem:[#allocation6 + $0x590] sm:$0xff]
    %v4236 = vld [vmem:[#allocation6 + $0x598] sm:$0xff]
    %v4237 = vld [vmem:[#allocation6 + $0x5a0] sm:$0xff]
    %v4238 = vld [vmem:[#allocation6 + $0x5a8] sm:$0xff]
    %v4239 = vld [vmem:[#allocation6 + $0x5b0] sm:$0xff]
    %v4240 = vld [vmem:[#allocation6 + $0x5b8] sm:$0xff]
    %v4241 = vld [vmem:[#allocation6 + $0x5c0] sm:$0xff]
    %v4242 = vld [vmem:[#allocation6 + $0x5c8] sm:$0xff]
    %v4243 = vld [vmem:[#allocation6 + $0x5d0] sm:$0xff]
    %v4244 = vld [vmem:[#allocation6 + $0x5d8] sm:$0xff]
    %v4245 = vld [vmem:[#allocation6 + $0x5e0] sm:$0xff]
    %v4246 = vld [vmem:[#allocation6 + $0x5e8] sm:$0xff]
    %v4247 = vld [vmem:[#allocation6 + $0x5f0] sm:$0xff]
    %v4248 = vld [vmem:[#allocation6 + $0x5f8] sm:$0xff]
    %v4249 = vld [vmem:[#allocation6 + $0x600] sm:$0xff]
    %v4250 = vld [vmem:[#allocation6 + $0x608] sm:$0xff]
    %v4251 = vld [vmem:[#allocation6 + $0x610] sm:$0xff]
    %v4252 = vld [vmem:[#allocation6 + $0x618] sm:$0xff]
    %v4253 = vld [vmem:[#allocation6 + $0x620] sm:$0xff]
    %v4254 = vld [vmem:[#allocation6 + $0x628] sm:$0xff]
    %v4255 = vld [vmem:[#allocation6 + $0x630] sm:$0xff]
    %v4256 = vld [vmem:[#allocation6 + $0x638] sm:$0xff]
    %v4257 = vld [vmem:[#allocation6 + $0x640] sm:$0xff]
    %v4258 = vld [vmem:[#allocation6 + $0x648] sm:$0xff]
    %v4259 = vld [vmem:[#allocation6 + $0x650] sm:$0xff]
    %v4260 = vld [vmem:[#allocation6 + $0x658] sm:$0xff]
    %v4261 = vld [vmem:[#allocation6 + $0x660] sm:$0xff]
    %v4262 = vld [vmem:[#allocation6 + $0x668] sm:$0xff]
    %v4263 = vld [vmem:[#allocation6 + $0x670] sm:$0xff]
    %v4264 = vld [vmem:[#allocation6 + $0x678] sm:$0xff]
    %v4265 = vld [vmem:[#allocation6 + $0x680] sm:$0xff]
    %v4266 = vld [vmem:[#allocation6 + $0x688] sm:$0xff]
    %v4267 = vld [vmem:[#allocation6 + $0x690] sm:$0xff]
    %v4268 = vld [vmem:[#allocation6 + $0x698] sm:$0xff]
    %v4269 = vld [vmem:[#allocation6 + $0x6a0] sm:$0xff]
    %v4270 = vld [vmem:[#allocation6 + $0x6a8] sm:$0xff]
    %v4271 = vld [vmem:[#allocation6 + $0x6b0] sm:$0xff]
    %v4272 = vld [vmem:[#allocation6 + $0x6b8] sm:$0xff]
    %v4273 = vld [vmem:[#allocation6 + $0x6c0] sm:$0xff]
    %v4274 = vld [vmem:[#allocation6 + $0x6c8] sm:$0xff]
    %v4275 = vld [vmem:[#allocation6 + $0x6d0] sm:$0xff]
    %v4276 = vld [vmem:[#allocation6 + $0x6d8] sm:$0xff]
    %v4277 = vld [vmem:[#allocation6 + $0x6e0] sm:$0xff]
    %v4278 = vld [vmem:[#allocation6 + $0x6e8] sm:$0xff]
    %v4279 = vld [vmem:[#allocation6 + $0x6f0] sm:$0xff]
    %v4280 = vld [vmem:[#allocation6 + $0x6f8] sm:$0xff]
    %v4281 = vld [vmem:[#allocation6 + $0x700] sm:$0xff]
    %v4282 = vld [vmem:[#allocation6 + $0x708] sm:$0xff]
    %v4283 = vld [vmem:[#allocation6 + $0x710] sm:$0xff]
    %v4284 = vld [vmem:[#allocation6 + $0x718] sm:$0xff]
    %v4285 = vld [vmem:[#allocation6 + $0x720] sm:$0xff]
    %v4286 = vld [vmem:[#allocation6 + $0x728] sm:$0xff]
    %v4287 = vld [vmem:[#allocation6 + $0x730] sm:$0xff]
    %v4288 = vld [vmem:[#allocation6 + $0x738] sm:$0xff]
    %v4289 = vld [vmem:[#allocation6 + $0x740] sm:$0xff]
    %v4290 = vld [vmem:[#allocation6 + $0x748] sm:$0xff]
    %v4291 = vld [vmem:[#allocation6 + $0x750] sm:$0xff]
    %v4292 = vld [vmem:[#allocation6 + $0x758] sm:$0xff]
    %v4293 = vld [vmem:[#allocation6 + $0x760] sm:$0xff]
    %v4294 = vld [vmem:[#allocation6 + $0x768] sm:$0xff]
    %v4295 = vld [vmem:[#allocation6 + $0x770] sm:$0xff]
    %v4296 = vld [vmem:[#allocation6 + $0x778] sm:$0xff]
    %v4297 = vld [vmem:[#allocation6 + $0x780] sm:$0xff]
    %v4298 = vld [vmem:[#allocation6 + $0x788] sm:$0xff]
    %v4299 = vld [vmem:[#allocation6 + $0x790] sm:$0xff]
    %v4300 = vld [vmem:[#allocation6 + $0x798] sm:$0xff]
    %v4301 = vld [vmem:[#allocation6 + $0x7a0] sm:$0xff]
    %v4302 = vld [vmem:[#allocation6 + $0x7a8] sm:$0xff]
    %v4303 = vld [vmem:[#allocation6 + $0x7b0] sm:$0xff]
    %v4304 = vld [vmem:[#allocation6 + $0x7b8] sm:$0xff]
    %v4305 = vld [vmem:[#allocation6 + $0x7c0] sm:$0xff]
    %v4306 = vld [vmem:[#allocation6 + $0x7c8] sm:$0xff]
    %v4307 = vld [vmem:[#allocation6 + $0x7d0] sm:$0xff]
    %v4308 = vld [vmem:[#allocation6 + $0x7d8] sm:$0xff]
    %v4309 = vld [vmem:[#allocation6 + $0x7e0] sm:$0xff]
    %v4310 = vld [vmem:[#allocation6 + $0x7e8] sm:$0xff]
    %v4311 = vld [vmem:[#allocation6 + $0x7f0] sm:$0xff]
    %v4312 = vld [vmem:[#allocation6 + $0x7f8] sm:$0xff]
    %v4313 = vld [vmem:[#allocation6 + $0x800] sm:$0xff]
    %v4314 = vld [vmem:[#allocation6 + $0x808] sm:$0xff]
    %v4315 = vld [vmem:[#allocation6 + $0x810] sm:$0xff]
    %v4316 = vld [vmem:[#allocation6 + $0x818] sm:$0xff]
    %v4317 = vld [vmem:[#allocation6 + $0x820] sm:$0xff]
    %v4318 = vld [vmem:[#allocation6 + $0x828] sm:$0xff]
    %v4319 = vld [vmem:[#allocation6 + $0x830] sm:$0xff]
    %v4320 = vld [vmem:[#allocation6 + $0x838] sm:$0xff]
    %v4321 = vld [vmem:[#allocation6 + $0x840] sm:$0xff]
    %v4322 = vld [vmem:[#allocation6 + $0x848] sm:$0xff]
    %v4323 = vld [vmem:[#allocation6 + $0x850] sm:$0xff]
    %v4324 = vld [vmem:[#allocation6 + $0x858] sm:$0xff]
    %v4325 = vld [vmem:[#allocation6 + $0x860] sm:$0xff]
    %v4326 = vld [vmem:[#allocation6 + $0x868] sm:$0xff]
    %v4327 = vld [vmem:[#allocation6 + $0x870] sm:$0xff]
    %v4328 = vld [vmem:[#allocation6 + $0x878] sm:$0xff]
    %v4329 = vld [vmem:[#allocation6 + $0x880] sm:$0xff]
    %v4330 = vld [vmem:[#allocation6 + $0x888] sm:$0xff]
    %v4331 = vld [vmem:[#allocation6 + $0x890] sm:$0xff]
    %v4332 = vld [vmem:[#allocation6 + $0x898] sm:$0xff]
    %v4333 = vld [vmem:[#allocation6 + $0x8a0] sm:$0xff]
    %v4334 = vld [vmem:[#allocation6 + $0x8a8] sm:$0xff]
    %v4335 = vld [vmem:[#allocation6 + $0x8b0] sm:$0xff]
    %v4336 = vld [vmem:[#allocation6 + $0x8b8] sm:$0xff]
    %v4337 = vld [vmem:[#allocation6 + $0x8c0] sm:$0xff]
    %v4338 = vld [vmem:[#allocation6 + $0x8c8] sm:$0xff]
    %v4339 = vld [vmem:[#allocation6 + $0x8d0] sm:$0xff]
    %v4340 = vld [vmem:[#allocation6 + $0x8d8] sm:$0xff]
    %v4341 = vld [vmem:[#allocation6 + $0x8e0] sm:$0xff]
    %v4342 = vld [vmem:[#allocation6 + $0x8e8] sm:$0xff]
    %v4343 = vld [vmem:[#allocation6 + $0x8f0] sm:$0xff]
    %v4344 = vld [vmem:[#allocation6 + $0x8f8] sm:$0xff]
    %v4345 = vld [vmem:[#allocation6 + $0x900] sm:$0xff]
    %v4346 = vld [vmem:[#allocation6 + $0x908] sm:$0xff]
    %v4347 = vld [vmem:[#allocation6 + $0x910] sm:$0xff]
    %v4348 = vld [vmem:[#allocation6 + $0x918] sm:$0xff]
    %v4349 = vld [vmem:[#allocation6 + $0x920] sm:$0xff]
    %v4350 = vld [vmem:[#allocation6 + $0x928] sm:$0xff]
    %v4351 = vld [vmem:[#allocation6 + $0x930] sm:$0xff]
    %v4352 = vld [vmem:[#allocation6 + $0x938] sm:$0xff]
    %v4353 = vld [vmem:[#allocation6 + $0x940] sm:$0xff]
    %v4354 = vld [vmem:[#allocation6 + $0x948] sm:$0xff]
    %v4355 = vld [vmem:[#allocation6 + $0x950] sm:$0xff]
    %v4356 = vld [vmem:[#allocation6 + $0x958] sm:$0xff]
    %v4357 = vld [vmem:[#allocation6 + $0x960] sm:$0xff]
    %v4358 = vld [vmem:[#allocation6 + $0x968] sm:$0xff]
    %v4359 = vld [vmem:[#allocation6 + $0x970] sm:$0xff]
    %v4360 = vld [vmem:[#allocation6 + $0x978] sm:$0xff]
    %v4361 = vld [vmem:[#allocation6 + $0x980] sm:$0xff]
    %v4362 = vld [vmem:[#allocation6 + $0x988] sm:$0xff]
    %v4363 = vld [vmem:[#allocation6 + $0x990] sm:$0xff]
    %v4364 = vld [vmem:[#allocation6 + $0x998] sm:$0xff]
    %v4365 = vld [vmem:[#allocation6 + $0x9a0] sm:$0xff]
    %v4366 = vld [vmem:[#allocation6 + $0x9a8] sm:$0xff]
    %v4367 = vld [vmem:[#allocation6 + $0x9b0] sm:$0xff]
    %v4368 = vld [vmem:[#allocation6 + $0x9b8] sm:$0xff]
    %v4369 = vld [vmem:[#allocation6 + $0x9c0] sm:$0xff]
    %v4370 = vld [vmem:[#allocation6 + $0x9c8] sm:$0xff]
    %v4371 = vld [vmem:[#allocation6 + $0x9d0] sm:$0xff]
    %v4372 = vld [vmem:[#allocation6 + $0x9d8] sm:$0xff]
    %v4373 = vld [vmem:[#allocation6 + $0x9e0] sm:$0xff]
    %v4374 = vld [vmem:[#allocation6 + $0x9e8] sm:$0xff]
    %v4375 = vld [vmem:[#allocation6 + $0x9f0] sm:$0xff]
    %v4376 = vld [vmem:[#allocation6 + $0x9f8] sm:$0xff]
    %v4377 = vld [vmem:[#allocation6 + $0xa00] sm:$0xff]
    %v4378 = vld [vmem:[#allocation6 + $0xa08] sm:$0xff]
    %v4379 = vld [vmem:[#allocation6 + $0xa10] sm:$0xff]
    %v4380 = vld [vmem:[#allocation6 + $0xa18] sm:$0xff]
    %v4381 = vld [vmem:[#allocation6 + $0xa20] sm:$0xff]
    %v4382 = vld [vmem:[#allocation6 + $0xa28] sm:$0xff]
    %v4383 = vld [vmem:[#allocation6 + $0xa30] sm:$0xff]
    %v4384 = vld [vmem:[#allocation6 + $0xa38] sm:$0xff]
    %v4385 = vld [vmem:[#allocation6 + $0xa40] sm:$0xff]
    %v4386 = vld [vmem:[#allocation6 + $0xa48] sm:$0xff]
    %v4387 = vld [vmem:[#allocation6 + $0xa50] sm:$0xff]
    %v4388 = vld [vmem:[#allocation6 + $0xa58] sm:$0xff]
    %v4389 = vld [vmem:[#allocation6 + $0xa60] sm:$0xff]
    %v4390 = vld [vmem:[#allocation6 + $0xa68] sm:$0xff]
    %v4391 = vld [vmem:[#allocation6 + $0xa70] sm:$0xff]
    %v4392 = vld [vmem:[#allocation6 + $0xa78] sm:$0xff]
    %v4393 = vld [vmem:[#allocation6 + $0xa80] sm:$0xff]
    %v4394 = vld [vmem:[#allocation6 + $0xa88] sm:$0xff]
    %v4395 = vld [vmem:[#allocation6 + $0xa90] sm:$0xff]
    %v4396 = vld [vmem:[#allocation6 + $0xa98] sm:$0xff]
    %v4397 = vld [vmem:[#allocation6 + $0xaa0] sm:$0xff]
    %v4398 = vld [vmem:[#allocation6 + $0xaa8] sm:$0xff]
    %v4399 = vld [vmem:[#allocation6 + $0xab0] sm:$0xff]
    %v4400 = vld [vmem:[#allocation6 + $0xab8] sm:$0xff]
    %v4401 = vld [vmem:[#allocation6 + $0xac0] sm:$0xff]
    %v4402 = vld [vmem:[#allocation6 + $0xac8] sm:$0xff]
    %v4403 = vld [vmem:[#allocation6 + $0xad0] sm:$0xff]
    %v4404 = vld [vmem:[#allocation6 + $0xad8] sm:$0xff]
    %v4405 = vld [vmem:[#allocation6 + $0xae0] sm:$0xff]
    %v4406 = vld [vmem:[#allocation6 + $0xae8] sm:$0xff]
    %v4407 = vld [vmem:[#allocation6 + $0xaf0] sm:$0xff]
    %v4408 = vld [vmem:[#allocation6 + $0xaf8] sm:$0xff]
    %v4409 = vld [vmem:[#allocation6 + $0xb00] sm:$0xff]
    %v4410 = vld [vmem:[#allocation6 + $0xb08] sm:$0xff]
    %v4411 = vld [vmem:[#allocation6 + $0xb10] sm:$0xff]
    %v4412 = vld [vmem:[#allocation6 + $0xb18] sm:$0xff]
    %v4413 = vld [vmem:[#allocation6 + $0xb20] sm:$0xff]
    %v4414 = vld [vmem:[#allocation6 + $0xb28] sm:$0xff]
    %v4415 = vld [vmem:[#allocation6 + $0xb30] sm:$0xff]
    %v4416 = vld [vmem:[#allocation6 + $0xb38] sm:$0xff]
    %v4417 = vld [vmem:[#allocation6 + $0xb40] sm:$0xff]
    %v4418 = vld [vmem:[#allocation6 + $0xb48] sm:$0xff]
    %v4419 = vld [vmem:[#allocation6 + $0xb50] sm:$0xff]
    %v4420 = vld [vmem:[#allocation6 + $0xb58] sm:$0xff]
    %v4421 = vld [vmem:[#allocation6 + $0xb60] sm:$0xff]
    %v4422 = vld [vmem:[#allocation6 + $0xb68] sm:$0xff]
    %v4423 = vld [vmem:[#allocation6 + $0xb70] sm:$0xff]
    %v4424 = vld [vmem:[#allocation6 + $0xb78] sm:$0xff]
    %v4425 = vld [vmem:[#allocation6 + $0xb80] sm:$0xff]
    %v4426 = vld [vmem:[#allocation6 + $0xb88] sm:$0xff]
    %v4427 = vld [vmem:[#allocation6 + $0xb90] sm:$0xff]
    %v4428 = vld [vmem:[#allocation6 + $0xb98] sm:$0xff]
    %v4429 = vld [vmem:[#allocation6 + $0xba0] sm:$0xff]
    %v4430 = vld [vmem:[#allocation6 + $0xba8] sm:$0xff]
    %v4431 = vld [vmem:[#allocation6 + $0xbb0] sm:$0xff]
    %v4432 = vld [vmem:[#allocation6 + $0xbb8] sm:$0xff]
    %v4433 = vld [vmem:[#allocation6 + $0xbc0] sm:$0xff]
    %v4434 = vld [vmem:[#allocation6 + $0xbc8] sm:$0xff]
    %v4435 = vld [vmem:[#allocation6 + $0xbd0] sm:$0xff]
    %v4436 = vld [vmem:[#allocation6 + $0xbd8] sm:$0xff]
    %v4437 = vld [vmem:[#allocation6 + $0xbe0] sm:$0xff]
    %v4438 = vld [vmem:[#allocation6 + $0xbe8] sm:$0xff]
    %v4439 = vld [vmem:[#allocation6 + $0xbf0] sm:$0xff]
    %v4440 = vld [vmem:[#allocation6 + $0xbf8] sm:$0xff]
    %v4441 = vld [vmem:[#allocation6 + $0xc00] sm:$0xff]
    %v4442 = vld [vmem:[#allocation6 + $0xc08] sm:$0xff]
    %v4443 = vld [vmem:[#allocation6 + $0xc10] sm:$0xff]
    %v4444 = vld [vmem:[#allocation6 + $0xc18] sm:$0xff]
    %v4445 = vld [vmem:[#allocation6 + $0xc20] sm:$0xff]
    %v4446 = vld [vmem:[#allocation6 + $0xc28] sm:$0xff]
    %v4447 = vld [vmem:[#allocation6 + $0xc30] sm:$0xff]
    %v4448 = vld [vmem:[#allocation6 + $0xc38] sm:$0xff]
    %v4449 = vld [vmem:[#allocation6 + $0xc40] sm:$0xff]
    %v4450 = vld [vmem:[#allocation6 + $0xc48] sm:$0xff]
    %v4451 = vld [vmem:[#allocation6 + $0xc50] sm:$0xff]
    %v4452 = vld [vmem:[#allocation6 + $0xc58] sm:$0xff]
    %v4453 = vld [vmem:[#allocation6 + $0xc60] sm:$0xff]
    %v4454 = vld [vmem:[#allocation6 + $0xc68] sm:$0xff]
    %v4455 = vld [vmem:[#allocation6 + $0xc70] sm:$0xff]
    %v4456 = vld [vmem:[#allocation6 + $0xc78] sm:$0xff]
    %v4457 = vld [vmem:[#allocation6 + $0xc80] sm:$0xff]
    %v4458 = vld [vmem:[#allocation6 + $0xc88] sm:$0xff]
    %v4459 = vld [vmem:[#allocation6 + $0xc90] sm:$0xff]
    %v4460 = vld [vmem:[#allocation6 + $0xc98] sm:$0xff]
    %v4461 = vld [vmem:[#allocation6 + $0xca0] sm:$0xff]
    %v4462 = vld [vmem:[#allocation6 + $0xca8] sm:$0xff]
    %v4463 = vld [vmem:[#allocation6 + $0xcb0] sm:$0xff]
    %v4464 = vld [vmem:[#allocation6 + $0xcb8] sm:$0xff]
    %v4465 = vld [vmem:[#allocation6 + $0xcc0] sm:$0xff]
    %v4466 = vld [vmem:[#allocation6 + $0xcc8] sm:$0xff]
    %v4467 = vld [vmem:[#allocation6 + $0xcd0] sm:$0xff]
    %v4468 = vld [vmem:[#allocation6 + $0xcd8] sm:$0xff]
    %v4469 = vld [vmem:[#allocation6 + $0xce0] sm:$0xff]
    %v4470 = vld [vmem:[#allocation6 + $0xce8] sm:$0xff]
    %v4471 = vld [vmem:[#allocation6 + $0xcf0] sm:$0xff]
    %v4472 = vld [vmem:[#allocation6 + $0xcf8] sm:$0xff]
    %v4473 = vld [vmem:[#allocation6 + $0xd00] sm:$0xff]
    %v4474 = vld [vmem:[#allocation6 + $0xd08] sm:$0xff]
    %v4475 = vld [vmem:[#allocation6 + $0xd10] sm:$0xff]
    %v4476 = vld [vmem:[#allocation6 + $0xd18] sm:$0xff]
    %v4477 = vld [vmem:[#allocation6 + $0xd20] sm:$0xff]
    %v4478 = vld [vmem:[#allocation6 + $0xd28] sm:$0xff]
    %v4479 = vld [vmem:[#allocation6 + $0xd30] sm:$0xff]
    %v4480 = vld [vmem:[#allocation6 + $0xd38] sm:$0xff]
    %v4481 = vld [vmem:[#allocation6 + $0xd40] sm:$0xff]
    %v4482 = vld [vmem:[#allocation6 + $0xd48] sm:$0xff]
    %v4483 = vld [vmem:[#allocation6 + $0xd50] sm:$0xff]
    %v4484 = vld [vmem:[#allocation6 + $0xd58] sm:$0xff]
    %v4485 = vld [vmem:[#allocation6 + $0xd60] sm:$0xff]
    %v4486 = vld [vmem:[#allocation6 + $0xd68] sm:$0xff]
    %v4487 = vld [vmem:[#allocation6 + $0xd70] sm:$0xff]
    %v4488 = vld [vmem:[#allocation6 + $0xd78] sm:$0xff]
    %v4489 = vld [vmem:[#allocation6 + $0xd80] sm:$0xff]
    %v4490 = vld [vmem:[#allocation6 + $0xd88] sm:$0xff]
    %v4491 = vld [vmem:[#allocation6 + $0xd90] sm:$0xff]
    %v4492 = vld [vmem:[#allocation6 + $0xd98] sm:$0xff]
    %v4493 = vld [vmem:[#allocation6 + $0xda0] sm:$0xff]
    %v4494 = vld [vmem:[#allocation6 + $0xda8] sm:$0xff]
    %v4495 = vld [vmem:[#allocation6 + $0xdb0] sm:$0xff]
    %v4496 = vld [vmem:[#allocation6 + $0xdb8] sm:$0xff]
    %v4497 = vld [vmem:[#allocation6 + $0xdc0] sm:$0xff]
    %v4498 = vld [vmem:[#allocation6 + $0xdc8] sm:$0xff]
    %v4499 = vld [vmem:[#allocation6 + $0xdd0] sm:$0xff]
    %v4500 = vld [vmem:[#allocation6 + $0xdd8] sm:$0xff]
    %v4501 = vld [vmem:[#allocation6 + $0xde0] sm:$0xff]
    %v4502 = vld [vmem:[#allocation6 + $0xde8] sm:$0xff]
    %v4503 = vld [vmem:[#allocation6 + $0xdf0] sm:$0xff]
    %v4504 = vld [vmem:[#allocation6 + $0xdf8] sm:$0xff]
    %v4505 = vld [vmem:[#allocation6 + $0xe00] sm:$0xff]
    %v4506 = vld [vmem:[#allocation6 + $0xe08] sm:$0xff]
    %v4507 = vld [vmem:[#allocation6 + $0xe10] sm:$0xff]
    %v4508 = vld [vmem:[#allocation6 + $0xe18] sm:$0xff]
    %v4509 = vld [vmem:[#allocation6 + $0xe20] sm:$0xff]
    %v4510 = vld [vmem:[#allocation6 + $0xe28] sm:$0xff]
    %v4511 = vld [vmem:[#allocation6 + $0xe30] sm:$0xff]
    %v4512 = vld [vmem:[#allocation6 + $0xe38] sm:$0xff]
    %v4513 = vld [vmem:[#allocation6 + $0xe40] sm:$0xff]
    %v4514 = vld [vmem:[#allocation6 + $0xe48] sm:$0xff]
    %v4515 = vld [vmem:[#allocation6 + $0xe50] sm:$0xff]
    %v4516 = vld [vmem:[#allocation6 + $0xe58] sm:$0xff]
    %v4517 = vld [vmem:[#allocation6 + $0xe60] sm:$0xff]
    %v4518 = vld [vmem:[#allocation6 + $0xe68] sm:$0xff]
    %v4519 = vld [vmem:[#allocation6 + $0xe70] sm:$0xff]
    %v4520 = vld [vmem:[#allocation6 + $0xe78] sm:$0xff]
    %v4521 = vld [vmem:[#allocation6 + $0xe80] sm:$0xff]
    %v4522 = vld [vmem:[#allocation6 + $0xe88] sm:$0xff]
    %v4523 = vld [vmem:[#allocation6 + $0xe90] sm:$0xff]
    %v4524 = vld [vmem:[#allocation6 + $0xe98] sm:$0xff]
    %v4525 = vld [vmem:[#allocation6 + $0xea0] sm:$0xff]
    %v4526 = vld [vmem:[#allocation6 + $0xea8] sm:$0xff]
    %v4527 = vld [vmem:[#allocation6 + $0xeb0] sm:$0xff]
    %v4528 = vld [vmem:[#allocation6 + $0xeb8] sm:$0xff]
    %v4529 = vld [vmem:[#allocation6 + $0xec0] sm:$0xff]
    %v4530 = vld [vmem:[#allocation6 + $0xec8] sm:$0xff]
    %v4531 = vld [vmem:[#allocation6 + $0xed0] sm:$0xff]
    %v4532 = vld [vmem:[#allocation6 + $0xed8] sm:$0xff]
    %v4533 = vld [vmem:[#allocation6 + $0xee0] sm:$0xff]
    %v4534 = vld [vmem:[#allocation6 + $0xee8] sm:$0xff]
    %v4535 = vld [vmem:[#allocation6 + $0xef0] sm:$0xff]
    %v4536 = vld [vmem:[#allocation6 + $0xef8] sm:$0xff]
    %v4537 = vld [vmem:[#allocation6 + $0xf00] sm:$0xff]
    %v4538 = vld [vmem:[#allocation6 + $0xf08] sm:$0xff]
    %v4539 = vld [vmem:[#allocation6 + $0xf10] sm:$0xff]
    %v4540 = vld [vmem:[#allocation6 + $0xf18] sm:$0xff]
    %v4541 = vld [vmem:[#allocation6 + $0xf20] sm:$0xff]
    %v4542 = vld [vmem:[#allocation6 + $0xf28] sm:$0xff]
    %v4543 = vld [vmem:[#allocation6 + $0xf30] sm:$0xff]
    %v4544 = vld [vmem:[#allocation6 + $0xf38] sm:$0xff]
    %v4545 = vld [vmem:[#allocation6 + $0xf40] sm:$0xff]
    %v4546 = vld [vmem:[#allocation6 + $0xf48] sm:$0xff]
    %v4547 = vld [vmem:[#allocation6 + $0xf50] sm:$0xff]
    %v4548 = vld [vmem:[#allocation6 + $0xf58] sm:$0xff]
    %v4549 = vld [vmem:[#allocation6 + $0xf60] sm:$0xff]
    %v4550 = vld [vmem:[#allocation6 + $0xf68] sm:$0xff]
    %v4551 = vld [vmem:[#allocation6 + $0xf70] sm:$0xff]
    %v4552 = vld [vmem:[#allocation6 + $0xf78] sm:$0xff]
    %v4553 = vld [vmem:[#allocation6 + $0xf80] sm:$0xff]
    %v4554 = vld [vmem:[#allocation6 + $0xf88] sm:$0xff]
    %v4555 = vld [vmem:[#allocation6 + $0xf90] sm:$0xff]
    %v4556 = vld [vmem:[#allocation6 + $0xf98] sm:$0xff]
    %v4557 = vld [vmem:[#allocation6 + $0xfa0] sm:$0xff]
    %v4558 = vld [vmem:[#allocation6 + $0xfa8] sm:$0xff]
    %v4559 = vld [vmem:[#allocation6 + $0xfb0] sm:$0xff]
    %v4560 = vld [vmem:[#allocation6 + $0xfb8] sm:$0xff]
    %v4561 = vld [vmem:[#allocation6 + $0xfc0] sm:$0xff]
    %v4562 = vld [vmem:[#allocation6 + $0xfc8] sm:$0xff]
    %v4563 = vld [vmem:[#allocation6 + $0xfd0] sm:$0xff]
    %v4564 = vld [vmem:[#allocation6 + $0xfd8] sm:$0xff]
    %v4565 = vld [vmem:[#allocation6 + $0xfe0] sm:$0xff]
    %v4566 = vld [vmem:[#allocation6 + $0xfe8] sm:$0xff]
    %v4567 = vld [vmem:[#allocation6 + $0xff0] sm:$0xff]
    %v4568 = vld [vmem:[#allocation6 + $0xff8] sm:$0xff]
    %v4569 = vld [vmem:[#allocation6 + $0x1000] sm:$0xff]
    %v4570 = vld [vmem:[#allocation6 + $0x1008] sm:$0xff]
    %v4571 = vld [vmem:[#allocation6 + $0x1010] sm:$0xff]
    %v4572 = vld [vmem:[#allocation6 + $0x1018] sm:$0xff]
    %v4573 = vld [vmem:[#allocation6 + $0x1020] sm:$0xff]
    %v4574 = vld [vmem:[#allocation6 + $0x1028] sm:$0xff]
    %v4575 = vld [vmem:[#allocation6 + $0x1030] sm:$0xff]
    %v4576 = vld [vmem:[#allocation6 + $0x1038] sm:$0xff]
    %v4577 = vld [vmem:[#allocation6 + $0x1040] sm:$0xff]
    %v4578 = vld [vmem:[#allocation6 + $0x1048] sm:$0xff]
    %v4579 = vld [vmem:[#allocation6 + $0x1050] sm:$0xff]
    %v4580 = vld [vmem:[#allocation6 + $0x1058] sm:$0xff]
    %v4581 = vld [vmem:[#allocation6 + $0x1060] sm:$0xff]
    %v4582 = vld [vmem:[#allocation6 + $0x1068] sm:$0xff]
    %v4583 = vld [vmem:[#allocation6 + $0x1070] sm:$0xff]
    %v4584 = vld [vmem:[#allocation6 + $0x1078] sm:$0xff]
    %v4585 = vld [vmem:[#allocation6 + $0x1080] sm:$0xff]
    %v4586 = vld [vmem:[#allocation6 + $0x1088] sm:$0xff]
    %v4587 = vld [vmem:[#allocation6 + $0x1090] sm:$0xff]
    %v4588 = vld [vmem:[#allocation6 + $0x1098] sm:$0xff]
    %v4589 = vld [vmem:[#allocation6 + $0x10a0] sm:$0xff]
    %v4590 = vld [vmem:[#allocation6 + $0x10a8] sm:$0xff]
    %v4591 = vld [vmem:[#allocation6 + $0x10b0] sm:$0xff]
    %v4592 = vld [vmem:[#allocation6 + $0x10b8] sm:$0xff]
    %v4593 = vld [vmem:[#allocation6 + $0x10c0] sm:$0xff]
    %v4594 = vld [vmem:[#allocation6 + $0x10c8] sm:$0xff]
    %v4595 = vld [vmem:[#allocation6 + $0x10d0] sm:$0xff]
    %v4596 = vld [vmem:[#allocation6 + $0x10d8] sm:$0xff]
    %v4597 = vld [vmem:[#allocation6 + $0x10e0] sm:$0xff]
    %v4598 = vld [vmem:[#allocation6 + $0x10e8] sm:$0xff]
    %v4599 = vld [vmem:[#allocation6 + $0x10f0] sm:$0xff]
    %v4600 = vld [vmem:[#allocation6 + $0x10f8] sm:$0xff]
    %v4601 = vld [vmem:[#allocation6 + $0x1100] sm:$0xff]
    %v4602 = vld [vmem:[#allocation6 + $0x1108] sm:$0xff]
    %v4603 = vld [vmem:[#allocation6 + $0x1110] sm:$0xff]
    %v4604 = vld [vmem:[#allocation6 + $0x1118] sm:$0xff]
    %v4605 = vld [vmem:[#allocation6 + $0x1120] sm:$0xff]
    %v4606 = vld [vmem:[#allocation6 + $0x1128] sm:$0xff]
    %v4607 = vld [vmem:[#allocation6 + $0x1130] sm:$0xff]
    %v4608 = vld [vmem:[#allocation6 + $0x1138] sm:$0xff]
    %v4609 = vld [vmem:[#allocation6 + $0x1140] sm:$0xff]
    %v4610 = vld [vmem:[#allocation6 + $0x1148] sm:$0xff]
    %v4611 = vld [vmem:[#allocation6 + $0x1150] sm:$0xff]
    %v4612 = vld [vmem:[#allocation6 + $0x1158] sm:$0xff]
    %v4613 = vld [vmem:[#allocation6 + $0x1160] sm:$0xff]
    %v4614 = vld [vmem:[#allocation6 + $0x1168] sm:$0xff]
    %v4615 = vld [vmem:[#allocation6 + $0x1170] sm:$0xff]
    %v4616 = vld [vmem:[#allocation6 + $0x1178] sm:$0xff]
    %v4617 = vld [vmem:[#allocation6 + $0x1180] sm:$0xff]
    %v4618 = vld [vmem:[#allocation6 + $0x1188] sm:$0xff]
    %v4619 = vld [vmem:[#allocation6 + $0x1190] sm:$0xff]
    %v4620 = vld [vmem:[#allocation6 + $0x1198] sm:$0xff]
    %v4621 = vld [vmem:[#allocation6 + $0x11a0] sm:$0xff]
    %v4622 = vld [vmem:[#allocation6 + $0x11a8] sm:$0xff]
    %v4623 = vld [vmem:[#allocation6 + $0x11b0] sm:$0xff]
    %v4624 = vld [vmem:[#allocation6 + $0x11b8] sm:$0xff]
    %v4625 = vld [vmem:[#allocation6 + $0x11c0] sm:$0xff]
    %v4626 = vld [vmem:[#allocation6 + $0x11c8] sm:$0xff]
    %v4627 = vld [vmem:[#allocation6 + $0x11d0] sm:$0xff]
    %v4628 = vld [vmem:[#allocation6 + $0x11d8] sm:$0xff]
    %v4629 = vld [vmem:[#allocation6 + $0x11e0] sm:$0xff]
    %v4630 = vld [vmem:[#allocation6 + $0x11e8] sm:$0xff]
    %v4631 = vld [vmem:[#allocation6 + $0x11f0] sm:$0xff]
    %v4632 = vld [vmem:[#allocation6 + $0x11f8] sm:$0xff]
    %v4633 = vld [vmem:[#allocation6 + $0x1200] sm:$0xff]
    %v4634 = vld [vmem:[#allocation6 + $0x1208] sm:$0xff]
    %v4635 = vld [vmem:[#allocation6 + $0x1210] sm:$0xff]
    %v4636 = vld [vmem:[#allocation6 + $0x1218] sm:$0xff]
    %v4637 = vld [vmem:[#allocation6 + $0x1220] sm:$0xff]
    %v4638 = vld [vmem:[#allocation6 + $0x1228] sm:$0xff]
    %v4639 = vld [vmem:[#allocation6 + $0x1230] sm:$0xff]
    %v4640 = vld [vmem:[#allocation6 + $0x1238] sm:$0xff]
    %v4641 = vld [vmem:[#allocation6 + $0x1240] sm:$0xff]
    %v4642 = vld [vmem:[#allocation6 + $0x1248] sm:$0xff]
    %v4643 = vld [vmem:[#allocation6 + $0x1250] sm:$0xff]
    %v4644 = vld [vmem:[#allocation6 + $0x1258] sm:$0xff]
    %v4645 = vld [vmem:[#allocation6 + $0x1260] sm:$0xff]
    %v4646 = vld [vmem:[#allocation6 + $0x1268] sm:$0xff]
    %v4647 = vld [vmem:[#allocation6 + $0x1270] sm:$0xff]
    %v4648 = vld [vmem:[#allocation6 + $0x1278] sm:$0xff]
    %v4649 = vld [vmem:[#allocation6 + $0x1280] sm:$0xff]
    %v4650 = vld [vmem:[#allocation6 + $0x1288] sm:$0xff]
    %v4651 = vld [vmem:[#allocation6 + $0x1290] sm:$0xff]
    %v4652 = vld [vmem:[#allocation6 + $0x1298] sm:$0xff]
    %v4653 = vld [vmem:[#allocation6 + $0x12a0] sm:$0xff]
    %v4654 = vld [vmem:[#allocation6 + $0x12a8] sm:$0xff]
    %v4655 = vld [vmem:[#allocation6 + $0x12b0] sm:$0xff]
    %v4656 = vld [vmem:[#allocation6 + $0x12b8] sm:$0xff]
    %v4657 = vld [vmem:[#allocation6 + $0x12c0] sm:$0xff]
    %v4658 = vld [vmem:[#allocation6 + $0x12c8] sm:$0xff]
    %v4659 = vld [vmem:[#allocation6 + $0x12d0] sm:$0xff]
    %v4660 = vld [vmem:[#allocation6 + $0x12d8] sm:$0xff]
    %v4661 = vld [vmem:[#allocation6 + $0x12e0] sm:$0xff]
    %v4662 = vld [vmem:[#allocation6 + $0x12e8] sm:$0xff]
    %v4663 = vld [vmem:[#allocation6 + $0x12f0] sm:$0xff]
    %v4664 = vld [vmem:[#allocation6 + $0x12f8] sm:$0xff]
    %v4665 = vld [vmem:[#allocation6 + $0x1300] sm:$0xff]
    %v4666 = vld [vmem:[#allocation6 + $0x1308] sm:$0xff]
    %v4667 = vld [vmem:[#allocation6 + $0x1310] sm:$0xff]
    %v4668 = vld [vmem:[#allocation6 + $0x1318] sm:$0xff]
    %v4669 = vld [vmem:[#allocation6 + $0x1320] sm:$0xff]
    %v4670 = vld [vmem:[#allocation6 + $0x1328] sm:$0xff]
    %v4671 = vld [vmem:[#allocation6 + $0x1330] sm:$0xff]
    %v4672 = vld [vmem:[#allocation6 + $0x1338] sm:$0xff]
    %v4673 = vld [vmem:[#allocation6 + $0x1340] sm:$0xff]
    %v4674 = vld [vmem:[#allocation6 + $0x1348] sm:$0xff]
    %v4675 = vld [vmem:[#allocation6 + $0x1350] sm:$0xff]
    %v4676 = vld [vmem:[#allocation6 + $0x1358] sm:$0xff]
    %v4677 = vld [vmem:[#allocation6 + $0x1360] sm:$0xff]
    %v4678 = vld [vmem:[#allocation6 + $0x1368] sm:$0xff]
    %v4679 = vld [vmem:[#allocation6 + $0x1370] sm:$0xff]
    %v4680 = vld [vmem:[#allocation6 + $0x1378] sm:$0xff]
    %v4681 = vld [vmem:[#allocation6 + $0x1380] sm:$0xff]
    %v4682 = vld [vmem:[#allocation6 + $0x1388] sm:$0xff]
    %v4683 = vld [vmem:[#allocation6 + $0x1390] sm:$0xff]
    %v4684 = vld [vmem:[#allocation6 + $0x1398] sm:$0xff]
    %v4685 = vld [vmem:[#allocation6 + $0x13a0] sm:$0xff]
    %v4686 = vld [vmem:[#allocation6 + $0x13a8] sm:$0xff]
    %v4687 = vld [vmem:[#allocation6 + $0x13b0] sm:$0xff]
    %v4688 = vld [vmem:[#allocation6 + $0x13b8] sm:$0xff]
    %v4689 = vld [vmem:[#allocation6 + $0x13c0] sm:$0xff]
    %v4690 = vld [vmem:[#allocation6 + $0x13c8] sm:$0xff]
    %v4691 = vld [vmem:[#allocation6 + $0x13d0] sm:$0xff]
    %v4692 = vld [vmem:[#allocation6 + $0x13d8] sm:$0xff]
    %v4693 = vld [vmem:[#allocation6 + $0x13e0] sm:$0xff]
    %v4694 = vld [vmem:[#allocation6 + $0x13e8] sm:$0xff]
    %v4695 = vld [vmem:[#allocation6 + $0x13f0] sm:$0xff]
    %v4696 = vld [vmem:[#allocation6 + $0x13f8] sm:$0xff]
    %v4697 = vld [vmem:[#allocation6 + $0x1400] sm:$0xff]
    %v4698 = vld [vmem:[#allocation6 + $0x1408] sm:$0xff]
    %v4699 = vld [vmem:[#allocation6 + $0x1410] sm:$0xff]
    %v4700 = vld [vmem:[#allocation6 + $0x1418] sm:$0xff]
    %v4701 = vld [vmem:[#allocation6 + $0x1420] sm:$0xff]
    %v4702 = vld [vmem:[#allocation6 + $0x1428] sm:$0xff]
    %v4703 = vld [vmem:[#allocation6 + $0x1430] sm:$0xff]
    %v4704 = vld [vmem:[#allocation6 + $0x1438] sm:$0xff]
    %v4705 = vld [vmem:[#allocation6 + $0x1440] sm:$0xff]
    %v4706 = vld [vmem:[#allocation6 + $0x1448] sm:$0xff]
    %v4707 = vld [vmem:[#allocation6 + $0x1450] sm:$0xff]
    %v4708 = vld [vmem:[#allocation6 + $0x1458] sm:$0xff]
    %v4709 = vld [vmem:[#allocation6 + $0x1460] sm:$0xff]
    %v4710 = vld [vmem:[#allocation6 + $0x1468] sm:$0xff]
    %v4711 = vld [vmem:[#allocation6 + $0x1470] sm:$0xff]
    %v4712 = vld [vmem:[#allocation6 + $0x1478] sm:$0xff]
    %v4713 = vld [vmem:[#allocation6 + $0x1480] sm:$0xff]
    %v4714 = vld [vmem:[#allocation6 + $0x1488] sm:$0xff]
    %v4715 = vld [vmem:[#allocation6 + $0x1490] sm:$0xff]
    %v4716 = vld [vmem:[#allocation6 + $0x1498] sm:$0xff]
    %v4717 = vld [vmem:[#allocation6 + $0x14a0] sm:$0xff]
    %v4718 = vld [vmem:[#allocation6 + $0x14a8] sm:$0xff]
    %v4719 = vld [vmem:[#allocation6 + $0x14b0] sm:$0xff]
    %v4720 = vld [vmem:[#allocation6 + $0x14b8] sm:$0xff]
    %v4721 = vld [vmem:[#allocation6 + $0x14c0] sm:$0xff]
    %v4722 = vld [vmem:[#allocation6 + $0x14c8] sm:$0xff]
    %v4723 = vld [vmem:[#allocation6 + $0x14d0] sm:$0xff]
    %v4724 = vld [vmem:[#allocation6 + $0x14d8] sm:$0xff]
    %v4725 = vld [vmem:[#allocation6 + $0x14e0] sm:$0xff]
    %v4726 = vld [vmem:[#allocation6 + $0x14e8] sm:$0xff]
    %v4727 = vld [vmem:[#allocation6 + $0x14f0] sm:$0xff]
    %v4728 = vld [vmem:[#allocation6 + $0x14f8] sm:$0xff]
    %v4729 = vld [vmem:[#allocation6 + $0x1500] sm:$0xff]
    %v4730 = vld [vmem:[#allocation6 + $0x1508] sm:$0xff]
    %v4731 = vld [vmem:[#allocation6 + $0x1510] sm:$0xff]
    %v4732 = vld [vmem:[#allocation6 + $0x1518] sm:$0xff]
    %v4733 = vld [vmem:[#allocation6 + $0x1520] sm:$0xff]
    %v4734 = vld [vmem:[#allocation6 + $0x1528] sm:$0xff]
    %v4735 = vld [vmem:[#allocation6 + $0x1530] sm:$0xff]
    %v4736 = vld [vmem:[#allocation6 + $0x1538] sm:$0xff]
    %v4737 = vld [vmem:[#allocation6 + $0x1540] sm:$0xff]
    %v4738 = vld [vmem:[#allocation6 + $0x1548] sm:$0xff]
    %v4739 = vld [vmem:[#allocation6 + $0x1550] sm:$0xff]
    %v4740 = vld [vmem:[#allocation6 + $0x1558] sm:$0xff]
    %v4741 = vld [vmem:[#allocation6 + $0x1560] sm:$0xff]
    %v4742 = vld [vmem:[#allocation6 + $0x1568] sm:$0xff]
    %v4743 = vld [vmem:[#allocation6 + $0x1570] sm:$0xff]
    %v4744 = vld [vmem:[#allocation6 + $0x1578] sm:$0xff]
    %v4745 = vld [vmem:[#allocation6 + $0x1580] sm:$0xff]
    %v4746 = vld [vmem:[#allocation6 + $0x1588] sm:$0xff]
    %v4747 = vld [vmem:[#allocation6 + $0x1590] sm:$0xff]
    %v4748 = vld [vmem:[#allocation6 + $0x1598] sm:$0xff]
    %v4749 = vld [vmem:[#allocation6 + $0x15a0] sm:$0xff]
    %v4750 = vld [vmem:[#allocation6 + $0x15a8] sm:$0xff]
    %v4751 = vld [vmem:[#allocation6 + $0x15b0] sm:$0xff]
    %v4752 = vld [vmem:[#allocation6 + $0x15b8] sm:$0xff]
    %v4753 = vld [vmem:[#allocation6 + $0x15c0] sm:$0xff]
    %v4754 = vld [vmem:[#allocation6 + $0x15c8] sm:$0xff]
    %v4755 = vld [vmem:[#allocation6 + $0x15d0] sm:$0xff]
    %v4756 = vld [vmem:[#allocation6 + $0x15d8] sm:$0xff]
    %v4757 = vld [vmem:[#allocation6 + $0x15e0] sm:$0xff]
    %v4758 = vld [vmem:[#allocation6 + $0x15e8] sm:$0xff]
    %v4759 = vld [vmem:[#allocation6 + $0x15f0] sm:$0xff]
    %v4760 = vld [vmem:[#allocation6 + $0x15f8] sm:$0xff]
    %v4761 = vld [vmem:[#allocation6 + $0x1600] sm:$0xff]
    %v4762 = vld [vmem:[#allocation6 + $0x1608] sm:$0xff]
    %v4763 = vld [vmem:[#allocation6 + $0x1610] sm:$0xff]
    %v4764 = vld [vmem:[#allocation6 + $0x1618] sm:$0xff]
    %v4765 = vld [vmem:[#allocation6 + $0x1620] sm:$0xff]
    %v4766 = vld [vmem:[#allocation6 + $0x1628] sm:$0xff]
    %v4767 = vld [vmem:[#allocation6 + $0x1630] sm:$0xff]
    %v4768 = vld [vmem:[#allocation6 + $0x1638] sm:$0xff]
    %v4769 = vld [vmem:[#allocation6 + $0x1640] sm:$0xff]
    %v4770 = vld [vmem:[#allocation6 + $0x1648] sm:$0xff]
    %v4771 = vld [vmem:[#allocation6 + $0x1650] sm:$0xff]
    %v4772 = vld [vmem:[#allocation6 + $0x1658] sm:$0xff]
    %v4773 = vld [vmem:[#allocation6 + $0x1660] sm:$0xff]
    %v4774 = vld [vmem:[#allocation6 + $0x1668] sm:$0xff]
    %v4775 = vld [vmem:[#allocation6 + $0x1670] sm:$0xff]
    %v4776 = vld [vmem:[#allocation6 + $0x1678] sm:$0xff]
    %v4777 = vld [vmem:[#allocation6 + $0x1680] sm:$0xff]
    %v4778 = vld [vmem:[#allocation6 + $0x1688] sm:$0xff]
    %v4779 = vld [vmem:[#allocation6 + $0x1690] sm:$0xff]
    %v4780 = vld [vmem:[#allocation6 + $0x1698] sm:$0xff]
    %v4781 = vld [vmem:[#allocation6 + $0x16a0] sm:$0xff]
    %v4782 = vld [vmem:[#allocation6 + $0x16a8] sm:$0xff]
    %v4783 = vld [vmem:[#allocation6 + $0x16b0] sm:$0xff]
    %v4784 = vld [vmem:[#allocation6 + $0x16b8] sm:$0xff]
    %v4785 = vld [vmem:[#allocation6 + $0x16c0] sm:$0xff]
    %v4786 = vld [vmem:[#allocation6 + $0x16c8] sm:$0xff]
    %v4787 = vld [vmem:[#allocation6 + $0x16d0] sm:$0xff]
    %v4788 = vld [vmem:[#allocation6 + $0x16d8] sm:$0xff]
    %v4789 = vld [vmem:[#allocation6 + $0x16e0] sm:$0xff]
    %v4790 = vld [vmem:[#allocation6 + $0x16e8] sm:$0xff]
    %v4791 = vld [vmem:[#allocation6 + $0x16f0] sm:$0xff]
    %v4792 = vld [vmem:[#allocation6 + $0x16f8] sm:$0xff]
    %v4793 = vld [vmem:[#allocation6 + $0x1700] sm:$0xff]
    %v4794 = vld [vmem:[#allocation6 + $0x1708] sm:$0xff]
    %v4795 = vld [vmem:[#allocation6 + $0x1710] sm:$0xff]
    %v4796 = vld [vmem:[#allocation6 + $0x1718] sm:$0xff]
    %v4797 = vld [vmem:[#allocation6 + $0x1720] sm:$0xff]
    %v4798 = vld [vmem:[#allocation6 + $0x1728] sm:$0xff]
    %v4799 = vld [vmem:[#allocation6 + $0x1730] sm:$0xff]
    %v4800 = vld [vmem:[#allocation6 + $0x1738] sm:$0xff]
    %v4801 = vld [vmem:[#allocation6 + $0x1740] sm:$0xff]
    %v4802 = vld [vmem:[#allocation6 + $0x1748] sm:$0xff]
    %v4803 = vld [vmem:[#allocation6 + $0x1750] sm:$0xff]
    %v4804 = vld [vmem:[#allocation6 + $0x1758] sm:$0xff]
    %v4805 = vld [vmem:[#allocation6 + $0x1760] sm:$0xff]
    %v4806 = vld [vmem:[#allocation6 + $0x1768] sm:$0xff]
    %v4807 = vld [vmem:[#allocation6 + $0x1770] sm:$0xff]
    %v4808 = vld [vmem:[#allocation6 + $0x1778] sm:$0xff]
    %v4809 = vld [vmem:[#allocation6 + $0x1780] sm:$0xff]
    %v4810 = vld [vmem:[#allocation6 + $0x1788] sm:$0xff]
    %v4811 = vld [vmem:[#allocation6 + $0x1790] sm:$0xff]
    %v4812 = vld [vmem:[#allocation6 + $0x1798] sm:$0xff]
    %v4813 = vld [vmem:[#allocation6 + $0x17a0] sm:$0xff]
    %v4814 = vld [vmem:[#allocation6 + $0x17a8] sm:$0xff]
    %v4815 = vld [vmem:[#allocation6 + $0x17b0] sm:$0xff]
    %v4816 = vld [vmem:[#allocation6 + $0x17b8] sm:$0xff]
    %v4817 = vld [vmem:[#allocation6 + $0x17c0] sm:$0xff]
    %v4818 = vld [vmem:[#allocation6 + $0x17c8] sm:$0xff]
    %v4819 = vld [vmem:[#allocation6 + $0x17d0] sm:$0xff]
    %v4820 = vld [vmem:[#allocation6 + $0x17d8] sm:$0xff]
    %v4821 = vld [vmem:[#allocation6 + $0x17e0] sm:$0xff]
    %v4822 = vld [vmem:[#allocation6 + $0x17e8] sm:$0xff]
    %v4823 = vld [vmem:[#allocation6 + $0x17f0] sm:$0xff]
    %v4824 = vld [vmem:[#allocation6 + $0x17f8] sm:$0xff]
    %v4825 = vld [vmem:[#allocation6 + $0x1800] sm:$0xff]
    %v4826 = vld [vmem:[#allocation6 + $0x1808] sm:$0xff]
    %v4827 = vld [vmem:[#allocation6 + $0x1810] sm:$0xff]
    %v4828 = vld [vmem:[#allocation6 + $0x1818] sm:$0xff]
    %v4829 = vld [vmem:[#allocation6 + $0x1820] sm:$0xff]
    %v4830 = vld [vmem:[#allocation6 + $0x1828] sm:$0xff]
    %v4831 = vld [vmem:[#allocation6 + $0x1830] sm:$0xff]
    %v4832 = vld [vmem:[#allocation6 + $0x1838] sm:$0xff]
    %v4833 = vld [vmem:[#allocation6 + $0x1840] sm:$0xff]
    %v4834 = vld [vmem:[#allocation6 + $0x1848] sm:$0xff]
    %v4835 = vld [vmem:[#allocation6 + $0x1850] sm:$0xff]
    %v4836 = vld [vmem:[#allocation6 + $0x1858] sm:$0xff]
    %v4837 = vld [vmem:[#allocation6 + $0x1860] sm:$0xff]
    %v4838 = vld [vmem:[#allocation6 + $0x1868] sm:$0xff]
    %v4839 = vld [vmem:[#allocation6 + $0x1870] sm:$0xff]
    %v4840 = vld [vmem:[#allocation6 + $0x1878] sm:$0xff]
    %v4841 = vld [vmem:[#allocation6 + $0x1880] sm:$0xff]
    %v4842 = vld [vmem:[#allocation6 + $0x1888] sm:$0xff]
    %v4843 = vld [vmem:[#allocation6 + $0x1890] sm:$0xff]
    %v4844 = vld [vmem:[#allocation6 + $0x1898] sm:$0xff]
    %v4845 = vld [vmem:[#allocation6 + $0x18a0] sm:$0xff]
    %v4846 = vld [vmem:[#allocation6 + $0x18a8] sm:$0xff]
    %v4847 = vld [vmem:[#allocation6 + $0x18b0] sm:$0xff]
    %v4848 = vld [vmem:[#allocation6 + $0x18b8] sm:$0xff]
    %v4849 = vld [vmem:[#allocation6 + $0x18c0] sm:$0xff]
    %v4850 = vld [vmem:[#allocation6 + $0x18c8] sm:$0xff]
    %v4851 = vld [vmem:[#allocation6 + $0x18d0] sm:$0xff]
    %v4852 = vld [vmem:[#allocation6 + $0x18d8] sm:$0xff]
    %v4853 = vld [vmem:[#allocation6 + $0x18e0] sm:$0xff]
    %v4854 = vld [vmem:[#allocation6 + $0x18e8] sm:$0xff]
    %v4855 = vld [vmem:[#allocation6 + $0x18f0] sm:$0xff]
    %v4856 = vld [vmem:[#allocation6 + $0x18f8] sm:$0xff]
    %v4857 = vld [vmem:[#allocation6 + $0x1900] sm:$0xff]
    %v4858 = vld [vmem:[#allocation6 + $0x1908] sm:$0xff]
    %v4859 = vld [vmem:[#allocation6 + $0x1910] sm:$0xff]
    %v4860 = vld [vmem:[#allocation6 + $0x1918] sm:$0xff]
    %v4861 = vld [vmem:[#allocation6 + $0x1920] sm:$0xff]
    %v4862 = vld [vmem:[#allocation6 + $0x1928] sm:$0xff]
    %v4863 = vld [vmem:[#allocation6 + $0x1930] sm:$0xff]
    %v4864 = vld [vmem:[#allocation6 + $0x1938] sm:$0xff]
    %v4865 = vld [vmem:[#allocation6 + $0x1940] sm:$0xff]
    %v4866 = vld [vmem:[#allocation6 + $0x1948] sm:$0xff]
    %v4867 = vld [vmem:[#allocation6 + $0x1950] sm:$0xff]
    %v4868 = vld [vmem:[#allocation6 + $0x1958] sm:$0xff]
    %v4869 = vld [vmem:[#allocation6 + $0x1960] sm:$0xff]
    %v4870 = vld [vmem:[#allocation6 + $0x1968] sm:$0xff]
    %v4871 = vld [vmem:[#allocation6 + $0x1970] sm:$0xff]
    %v4872 = vld [vmem:[#allocation6 + $0x1978] sm:$0xff]
    %v4873 = vld [vmem:[#allocation6 + $0x1980] sm:$0xff]
    %v4874 = vld [vmem:[#allocation6 + $0x1988] sm:$0xff]
    %v4875 = vld [vmem:[#allocation6 + $0x1990] sm:$0xff]
    %v4876 = vld [vmem:[#allocation6 + $0x1998] sm:$0xff]
    %v4877 = vld [vmem:[#allocation6 + $0x19a0] sm:$0xff]
    %v4878 = vld [vmem:[#allocation6 + $0x19a8] sm:$0xff]
    %v4879 = vld [vmem:[#allocation6 + $0x19b0] sm:$0xff]
    %v4880 = vld [vmem:[#allocation6 + $0x19b8] sm:$0xff]
    %v4881 = vld [vmem:[#allocation6 + $0x19c0] sm:$0xff]
    %v4882 = vld [vmem:[#allocation6 + $0x19c8] sm:$0xff]
    %v4883 = vld [vmem:[#allocation6 + $0x19d0] sm:$0xff]
    %v4884 = vld [vmem:[#allocation6 + $0x19d8] sm:$0xff]
    %v4885 = vld [vmem:[#allocation6 + $0x19e0] sm:$0xff]
    %v4886 = vld [vmem:[#allocation6 + $0x19e8] sm:$0xff]
    %v4887 = vld [vmem:[#allocation6 + $0x19f0] sm:$0xff]
    %v4888 = vld [vmem:[#allocation6 + $0x19f8] sm:$0xff]
    %v4889 = vld [vmem:[#allocation6 + $0x1a00] sm:$0xff]
    %v4890 = vld [vmem:[#allocation6 + $0x1a08] sm:$0xff]
    %v4891 = vld [vmem:[#allocation6 + $0x1a10] sm:$0xff]
    %v4892 = vld [vmem:[#allocation6 + $0x1a18] sm:$0xff]
    %v4893 = vld [vmem:[#allocation6 + $0x1a20] sm:$0xff]
    %v4894 = vld [vmem:[#allocation6 + $0x1a28] sm:$0xff]
    %v4895 = vld [vmem:[#allocation6 + $0x1a30] sm:$0xff]
    %v4896 = vld [vmem:[#allocation6 + $0x1a38] sm:$0xff]
    %v4897 = vld [vmem:[#allocation6 + $0x1a40] sm:$0xff]
    %v4898 = vld [vmem:[#allocation6 + $0x1a48] sm:$0xff]
    %v4899 = vld [vmem:[#allocation6 + $0x1a50] sm:$0xff]
    %v4900 = vld [vmem:[#allocation6 + $0x1a58] sm:$0xff]
    %v4901 = vld [vmem:[#allocation6 + $0x1a60] sm:$0xff]
    %v4902 = vld [vmem:[#allocation6 + $0x1a68] sm:$0xff]
    %v4903 = vld [vmem:[#allocation6 + $0x1a70] sm:$0xff]
    %v4904 = vld [vmem:[#allocation6 + $0x1a78] sm:$0xff]
    %v4905 = vld [vmem:[#allocation6 + $0x1a80] sm:$0xff]
    %v4906 = vld [vmem:[#allocation6 + $0x1a88] sm:$0xff]
    %v4907 = vld [vmem:[#allocation6 + $0x1a90] sm:$0xff]
    %v4908 = vld [vmem:[#allocation6 + $0x1a98] sm:$0xff]
    %v4909 = vld [vmem:[#allocation6 + $0x1aa0] sm:$0xff]
    %v4910 = vld [vmem:[#allocation6 + $0x1aa8] sm:$0xff]
    %v4911 = vld [vmem:[#allocation6 + $0x1ab0] sm:$0xff]
    %v4912 = vld [vmem:[#allocation6 + $0x1ab8] sm:$0xff]
    %v4913 = vld [vmem:[#allocation6 + $0x1ac0] sm:$0xff]
    %v4914 = vld [vmem:[#allocation6 + $0x1ac8] sm:$0xff]
    %v4915 = vld [vmem:[#allocation6 + $0x1ad0] sm:$0xff]
    %v4916 = vld [vmem:[#allocation6 + $0x1ad8] sm:$0xff]
    %v4917 = vld [vmem:[#allocation6 + $0x1ae0] sm:$0xff]
    %v4918 = vld [vmem:[#allocation6 + $0x1ae8] sm:$0xff]
    %v4919 = vld [vmem:[#allocation6 + $0x1af0] sm:$0xff]
    %v4920 = vld [vmem:[#allocation6 + $0x1af8] sm:$0xff]
    %v4921 = vld [vmem:[#allocation6 + $0x1b00] sm:$0xff]
    %v4922 = vld [vmem:[#allocation6 + $0x1b08] sm:$0xff]
    %v4923 = vld [vmem:[#allocation6 + $0x1b10] sm:$0xff]
    %v4924 = vld [vmem:[#allocation6 + $0x1b18] sm:$0xff]
    %v4925 = vld [vmem:[#allocation6 + $0x1b20] sm:$0xff]
    %v4926 = vld [vmem:[#allocation6 + $0x1b28] sm:$0xff]
    %v4927 = vld [vmem:[#allocation6 + $0x1b30] sm:$0xff]
    %v4928 = vld [vmem:[#allocation6 + $0x1b38] sm:$0xff]
    %v4929 = vld [vmem:[#allocation6 + $0x1b40] sm:$0xff]
    %v4930 = vld [vmem:[#allocation6 + $0x1b48] sm:$0xff]
    %v4931 = vld [vmem:[#allocation6 + $0x1b50] sm:$0xff]
    %v4932 = vld [vmem:[#allocation6 + $0x1b58] sm:$0xff]
    %v4933 = vld [vmem:[#allocation6 + $0x1b60] sm:$0xff]
    %v4934 = vld [vmem:[#allocation6 + $0x1b68] sm:$0xff]
    %v4935 = vld [vmem:[#allocation6 + $0x1b70] sm:$0xff]
    %v4936 = vld [vmem:[#allocation6 + $0x1b78] sm:$0xff]
    %v4937 = vld [vmem:[#allocation6 + $0x1b80] sm:$0xff]
    %v4938 = vld [vmem:[#allocation6 + $0x1b88] sm:$0xff]
    %v4939 = vld [vmem:[#allocation6 + $0x1b90] sm:$0xff]
    %v4940 = vld [vmem:[#allocation6 + $0x1b98] sm:$0xff]
    %v4941 = vld [vmem:[#allocation6 + $0x1ba0] sm:$0xff]
    %v4942 = vld [vmem:[#allocation6 + $0x1ba8] sm:$0xff]
    %v4943 = vld [vmem:[#allocation6 + $0x1bb0] sm:$0xff]
    %v4944 = vld [vmem:[#allocation6 + $0x1bb8] sm:$0xff]
    %v4945 = vld [vmem:[#allocation6 + $0x1bc0] sm:$0xff]
    %v4946 = vld [vmem:[#allocation6 + $0x1bc8] sm:$0xff]
    %v4947 = vld [vmem:[#allocation6 + $0x1bd0] sm:$0xff]
    %v4948 = vld [vmem:[#allocation6 + $0x1bd8] sm:$0xff]
    %v4949 = vld [vmem:[#allocation6 + $0x1be0] sm:$0xff]
    %v4950 = vld [vmem:[#allocation6 + $0x1be8] sm:$0xff]
    %v4951 = vld [vmem:[#allocation6 + $0x1bf0] sm:$0xff]
    %v4952 = vld [vmem:[#allocation6 + $0x1bf8] sm:$0xff]
    %v4953 = vld [vmem:[#allocation6 + $0x1c00] sm:$0xff]
    %v4954 = vld [vmem:[#allocation6 + $0x1c08] sm:$0xff]
    %v4955 = vld [vmem:[#allocation6 + $0x1c10] sm:$0xff]
    %v4956 = vld [vmem:[#allocation6 + $0x1c18] sm:$0xff]
    %v4957 = vld [vmem:[#allocation6 + $0x1c20] sm:$0xff]
    %v4958 = vld [vmem:[#allocation6 + $0x1c28] sm:$0xff]
    %v4959 = vld [vmem:[#allocation6 + $0x1c30] sm:$0xff]
    %v4960 = vld [vmem:[#allocation6 + $0x1c38] sm:$0xff]
    %v4961 = vld [vmem:[#allocation6 + $0x1c40] sm:$0xff]
    %v4962 = vld [vmem:[#allocation6 + $0x1c48] sm:$0xff]
    %v4963 = vld [vmem:[#allocation6 + $0x1c50] sm:$0xff]
    %v4964 = vld [vmem:[#allocation6 + $0x1c58] sm:$0xff]
    %v4965 = vld [vmem:[#allocation6 + $0x1c60] sm:$0xff]
    %v4966 = vld [vmem:[#allocation6 + $0x1c68] sm:$0xff]
    %v4967 = vld [vmem:[#allocation6 + $0x1c70] sm:$0xff]
    %v4968 = vld [vmem:[#allocation6 + $0x1c78] sm:$0xff]
    %v4969 = vld [vmem:[#allocation6 + $0x1c80] sm:$0xff]
    %v4970 = vld [vmem:[#allocation6 + $0x1c88] sm:$0xff]
    %v4971 = vld [vmem:[#allocation6 + $0x1c90] sm:$0xff]
    %v4972 = vld [vmem:[#allocation6 + $0x1c98] sm:$0xff]
    %v4973 = vld [vmem:[#allocation6 + $0x1ca0] sm:$0xff]
    %v4974 = vld [vmem:[#allocation6 + $0x1ca8] sm:$0xff]
    %v4975 = vld [vmem:[#allocation6 + $0x1cb0] sm:$0xff]
    %v4976 = vld [vmem:[#allocation6 + $0x1cb8] sm:$0xff]
    %v4977 = vld [vmem:[#allocation6 + $0x1cc0] sm:$0xff]
    %v4978 = vld [vmem:[#allocation6 + $0x1cc8] sm:$0xff]
    %v4979 = vld [vmem:[#allocation6 + $0x1cd0] sm:$0xff]
    %v4980 = vld [vmem:[#allocation6 + $0x1cd8] sm:$0xff]
    %v4981 = vld [vmem:[#allocation6 + $0x1ce0] sm:$0xff]
    %v4982 = vld [vmem:[#allocation6 + $0x1ce8] sm:$0xff]
    %v4983 = vld [vmem:[#allocation6 + $0x1cf0] sm:$0xff]
    %v4984 = vld [vmem:[#allocation6 + $0x1cf8] sm:$0xff]
    %v4985 = vld [vmem:[#allocation6 + $0x1d00] sm:$0xff]
    %v4986 = vld [vmem:[#allocation6 + $0x1d08] sm:$0xff]
    %v4987 = vld [vmem:[#allocation6 + $0x1d10] sm:$0xff]
    %v4988 = vld [vmem:[#allocation6 + $0x1d18] sm:$0xff]
    %v4989 = vld [vmem:[#allocation6 + $0x1d20] sm:$0xff]
    %v4990 = vld [vmem:[#allocation6 + $0x1d28] sm:$0xff]
    %v4991 = vld [vmem:[#allocation6 + $0x1d30] sm:$0xff]
    %v4992 = vld [vmem:[#allocation6 + $0x1d38] sm:$0xff]
    %v4993 = vld [vmem:[#allocation6 + $0x1d40] sm:$0xff]
    %v4994 = vld [vmem:[#allocation6 + $0x1d48] sm:$0xff]
    %v4995 = vld [vmem:[#allocation6 + $0x1d50] sm:$0xff]
    %v4996 = vld [vmem:[#allocation6 + $0x1d58] sm:$0xff]
    %v4997 = vld [vmem:[#allocation6 + $0x1d60] sm:$0xff]
    %v4998 = vld [vmem:[#allocation6 + $0x1d68] sm:$0xff]
    %v4999 = vld [vmem:[#allocation6 + $0x1d70] sm:$0xff]
    %v5000 = vld [vmem:[#allocation6 + $0x1d78] sm:$0xff]
    %v5001 = vld [vmem:[#allocation6 + $0x1d80] sm:$0xff]
    %v5002 = vld [vmem:[#allocation6 + $0x1d88] sm:$0xff]
    %v5003 = vld [vmem:[#allocation6 + $0x1d90] sm:$0xff]
    %v5004 = vld [vmem:[#allocation6 + $0x1d98] sm:$0xff]
    %v5005 = vld [vmem:[#allocation6 + $0x1da0] sm:$0xff]
    %v5006 = vld [vmem:[#allocation6 + $0x1da8] sm:$0xff]
    %v5007 = vld [vmem:[#allocation6 + $0x1db0] sm:$0xff]
    %v5008 = vld [vmem:[#allocation6 + $0x1db8] sm:$0xff]
    %v5009 = vld [vmem:[#allocation6 + $0x1dc0] sm:$0xff]
    %v5010 = vld [vmem:[#allocation6 + $0x1dc8] sm:$0xff]
    %v5011 = vld [vmem:[#allocation6 + $0x1dd0] sm:$0xff]
    %v5012 = vld [vmem:[#allocation6 + $0x1dd8] sm:$0xff]
    %v5013 = vld [vmem:[#allocation6 + $0x1de0] sm:$0xff]
    %v5014 = vld [vmem:[#allocation6 + $0x1de8] sm:$0xff]
    %v5015 = vld [vmem:[#allocation6 + $0x1df0] sm:$0xff]
    %v5016 = vld [vmem:[#allocation6 + $0x1df8] sm:$0xff]
    %v5017 = vld [vmem:[#allocation6 + $0x1e00] sm:$0xff]
    %v5018 = vld [vmem:[#allocation6 + $0x1e08] sm:$0xff]
    %v5019 = vld [vmem:[#allocation6 + $0x1e10] sm:$0xff]
    %v5020 = vld [vmem:[#allocation6 + $0x1e18] sm:$0xff]
    %v5021 = vld [vmem:[#allocation6 + $0x1e20] sm:$0xff]
    %v5022 = vld [vmem:[#allocation6 + $0x1e28] sm:$0xff]
    %v5023 = vld [vmem:[#allocation6 + $0x1e30] sm:$0xff]
    %v5024 = vld [vmem:[#allocation6 + $0x1e38] sm:$0xff]
    %v5025 = vld [vmem:[#allocation6 + $0x1e40] sm:$0xff]
    %v5026 = vld [vmem:[#allocation6 + $0x1e48] sm:$0xff]
    %v5027 = vld [vmem:[#allocation6 + $0x1e50] sm:$0xff]
    %v5028 = vld [vmem:[#allocation6 + $0x1e58] sm:$0xff]
    %v5029 = vld [vmem:[#allocation6 + $0x1e60] sm:$0xff]
    %v5030 = vld [vmem:[#allocation6 + $0x1e68] sm:$0xff]
    %v5031 = vld [vmem:[#allocation6 + $0x1e70] sm:$0xff]
    %v5032 = vld [vmem:[#allocation6 + $0x1e78] sm:$0xff]
    %v5033 = vld [vmem:[#allocation6 + $0x1e80] sm:$0xff]
    %v5034 = vld [vmem:[#allocation6 + $0x1e88] sm:$0xff]
    %v5035 = vld [vmem:[#allocation6 + $0x1e90] sm:$0xff]
    %v5036 = vld [vmem:[#allocation6 + $0x1e98] sm:$0xff]
    %v5037 = vld [vmem:[#allocation6 + $0x1ea0] sm:$0xff]
    %v5038 = vld [vmem:[#allocation6 + $0x1ea8] sm:$0xff]
    %v5039 = vld [vmem:[#allocation6 + $0x1eb0] sm:$0xff]
    %v5040 = vld [vmem:[#allocation6 + $0x1eb8] sm:$0xff]
    %v5041 = vld [vmem:[#allocation6 + $0x1ec0] sm:$0xff]
    %v5042 = vld [vmem:[#allocation6 + $0x1ec8] sm:$0xff]
    %v5043 = vld [vmem:[#allocation6 + $0x1ed0] sm:$0xff]
    %v5044 = vld [vmem:[#allocation6 + $0x1ed8] sm:$0xff]
    %v5045 = vld [vmem:[#allocation6 + $0x1ee0] sm:$0xff]
    %v5046 = vld [vmem:[#allocation6 + $0x1ee8] sm:$0xff]
    %v5047 = vld [vmem:[#allocation6 + $0x1ef0] sm:$0xff]
    %v5048 = vld [vmem:[#allocation6 + $0x1ef8] sm:$0xff]
    %v5049 = vld [vmem:[#allocation6 + $0x1f00] sm:$0xff]
    %v5050 = vld [vmem:[#allocation6 + $0x1f08] sm:$0xff]
    %v5051 = vld [vmem:[#allocation6 + $0x1f10] sm:$0xff]
    %v5052 = vld [vmem:[#allocation6 + $0x1f18] sm:$0xff]
    %v5053 = vld [vmem:[#allocation6 + $0x1f20] sm:$0xff]
    %v5054 = vld [vmem:[#allocation6 + $0x1f28] sm:$0xff]
    %v5055 = vld [vmem:[#allocation6 + $0x1f30] sm:$0xff]
    %v5056 = vld [vmem:[#allocation6 + $0x1f38] sm:$0xff]
    %v5057 = vld [vmem:[#allocation6 + $0x1f40] sm:$0xff]
    %v5058 = vld [vmem:[#allocation6 + $0x1f48] sm:$0xff]
    %v5059 = vld [vmem:[#allocation6 + $0x1f50] sm:$0xff]
    %v5060 = vld [vmem:[#allocation6 + $0x1f58] sm:$0xff]
    %v5061 = vld [vmem:[#allocation6 + $0x1f60] sm:$0xff]
    %v5062 = vld [vmem:[#allocation6 + $0x1f68] sm:$0xff]
    %v5063 = vld [vmem:[#allocation6 + $0x1f70] sm:$0xff]
    %v5064 = vld [vmem:[#allocation6 + $0x1f78] sm:$0xff]
    %v5065 = vld [vmem:[#allocation6 + $0x1f80] sm:$0xff]
    %v5066 = vld [vmem:[#allocation6 + $0x1f88] sm:$0xff]
    %v5067 = vld [vmem:[#allocation6 + $0x1f90] sm:$0xff]
    %v5068 = vld [vmem:[#allocation6 + $0x1f98] sm:$0xff]
    %v5069 = vld [vmem:[#allocation6 + $0x1fa0] sm:$0xff]
    %v5070 = vld [vmem:[#allocation6 + $0x1fa8] sm:$0xff]
    %v5071 = vld [vmem:[#allocation6 + $0x1fb0] sm:$0xff]
    %v5072 = vld [vmem:[#allocation6 + $0x1fb8] sm:$0xff]
    %v5073 = vld [vmem:[#allocation6 + $0x1fc0] sm:$0xff]
    %v5074 = vld [vmem:[#allocation6 + $0x1fc8] sm:$0xff]
    %v5075 = vld [vmem:[#allocation6 + $0x1fd0] sm:$0xff]
    %v5076 = vld [vmem:[#allocation6 + $0x1fd8] sm:$0xff]
    %v5077 = vld [vmem:[#allocation6 + $0x1fe0] sm:$0xff]
    %v5078 = vld [vmem:[#allocation6 + $0x1fe8] sm:$0xff]
    %v5079 = vld [vmem:[#allocation6 + $0x1ff0] sm:$0xff]
    %v5080 = vld [vmem:[#allocation6 + $0x1ff8] sm:$0xff]
    %v5081 = vld [vmem:[#allocation7] sm:$0xff]
    %v5083 = vlaneseq
    %v5084 = vshrl.u32 %v5083, 7
    %v5085 = vsub.s32 0, %v5084
    %v5086 = vrot.slane %v5081, %v5085
    %v5087 = vlaneseq
    %v5088 = vshrl.u32 %v5087, 7
    %v5089 = vsub.s32 1, %v5088
    %v5090 = vrot.slane %v5081, %v5089
    %v5091 = vlaneseq
    %v5092 = vshrl.u32 %v5091, 7
    %v5093 = vsub.s32 2, %v5092
    %v5094 = vrot.slane %v5081, %v5093
    %v5095 = vlaneseq
    %v5096 = vshrl.u32 %v5095, 7
    %v5097 = vsub.s32 3, %v5096
    %v5098 = vrot.slane %v5081, %v5097
    %v5099 = vlaneseq
    %v5100 = vshrl.u32 %v5099, 7
    %v5101 = vsub.s32 4, %v5100
    %v5102 = vrot.slane %v5081, %v5101
    %v5103 = vlaneseq
    %v5104 = vshrl.u32 %v5103, 7
    %v5105 = vsub.s32 5, %v5104
    %v5106 = vrot.slane %v5081, %v5105
    %v5107 = vlaneseq
    %v5108 = vshrl.u32 %v5107, 7
    %v5109 = vsub.s32 6, %v5108
    %v5110 = vrot.slane %v5081, %v5109
    %v5111 = vlaneseq
    %v5112 = vshrl.u32 %v5111, 7
    %v5113 = vsub.s32 7, %v5112
    %v5114 = vrot.slane %v5081, %v5113
    %v6147 = vunpack.c.l.b16 %v4057
    %v6148 = vunpack.c.h.b16 %v4057
    %v6149 = vunpack.c.l.b16 %v4058
    %v6150 = vunpack.c.h.b16 %v4058
    %v6151 = vunpack.c.l.b16 %v4059
    %v6152 = vunpack.c.h.b16 %v4059
    %v6153 = vunpack.c.l.b16 %v4060
    %v6154 = vunpack.c.h.b16 %v4060
    %v6155 = vunpack.c.l.b16 %v4061
    %v6156 = vunpack.c.h.b16 %v4061
    %v6157 = vunpack.c.l.b16 %v4062
    %v6158 = vunpack.c.h.b16 %v4062
    %v6159 = vunpack.c.l.b16 %v4063
    %v6160 = vunpack.c.h.b16 %v4063
    %v6161 = vunpack.c.l.b16 %v4064
    %v6162 = vunpack.c.h.b16 %v4064
    %v6163 = vunpack.c.l.b16 %v4065
    %v6164 = vunpack.c.h.b16 %v4065
    %v6165 = vunpack.c.l.b16 %v4066
    %v6166 = vunpack.c.h.b16 %v4066
    %v6167 = vunpack.c.l.b16 %v4067
    %v6168 = vunpack.c.h.b16 %v4067
    %v6169 = vunpack.c.l.b16 %v4068
    %v6170 = vunpack.c.h.b16 %v4068
    %v6171 = vunpack.c.l.b16 %v4069
    %v6172 = vunpack.c.h.b16 %v4069
    %v6173 = vunpack.c.l.b16 %v4070
    %v6174 = vunpack.c.h.b16 %v4070
    %v6175 = vunpack.c.l.b16 %v4071
    %v6176 = vunpack.c.h.b16 %v4071
    %v6177 = vunpack.c.l.b16 %v4072
    %v6178 = vunpack.c.h.b16 %v4072
    %v6179 = vunpack.c.l.b16 %v4073
    %v6180 = vunpack.c.h.b16 %v4073
    %v6181 = vunpack.c.l.b16 %v4074
    %v6182 = vunpack.c.h.b16 %v4074
    %v6183 = vunpack.c.l.b16 %v4075
    %v6184 = vunpack.c.h.b16 %v4075
    %v6185 = vunpack.c.l.b16 %v4076
    %v6186 = vunpack.c.h.b16 %v4076
    %v6187 = vunpack.c.l.b16 %v4077
    %v6188 = vunpack.c.h.b16 %v4077
    %v6189 = vunpack.c.l.b16 %v4078
    %v6190 = vunpack.c.h.b16 %v4078
    %v6191 = vunpack.c.l.b16 %v4079
    %v6192 = vunpack.c.h.b16 %v4079
    %v6193 = vunpack.c.l.b16 %v4080
    %v6194 = vunpack.c.h.b16 %v4080
    %v6195 = vunpack.c.l.b16 %v4081
    %v6196 = vunpack.c.h.b16 %v4081
    %v6197 = vunpack.c.l.b16 %v4082
    %v6198 = vunpack.c.h.b16 %v4082
    %v6199 = vunpack.c.l.b16 %v4083
    %v6200 = vunpack.c.h.b16 %v4083
    %v6201 = vunpack.c.l.b16 %v4084
    %v6202 = vunpack.c.h.b16 %v4084
    %v6203 = vunpack.c.l.b16 %v4085
    %v6204 = vunpack.c.h.b16 %v4085
    %v6205 = vunpack.c.l.b16 %v4086
    %v6206 = vunpack.c.h.b16 %v4086
    %v6207 = vunpack.c.l.b16 %v4087
    %v6208 = vunpack.c.h.b16 %v4087
    %v6209 = vunpack.c.l.b16 %v4088
    %v6210 = vunpack.c.h.b16 %v4088
    %v6211 = vunpack.c.l.b16 %v4089
    %v6212 = vunpack.c.h.b16 %v4089
    %v6213 = vunpack.c.l.b16 %v4090
    %v6214 = vunpack.c.h.b16 %v4090
    %v6215 = vunpack.c.l.b16 %v4091
    %v6216 = vunpack.c.h.b16 %v4091
    %v6217 = vunpack.c.l.b16 %v4092
    %v6218 = vunpack.c.h.b16 %v4092
    %v6219 = vunpack.c.l.b16 %v4093
    %v6220 = vunpack.c.h.b16 %v4093
    %v6221 = vunpack.c.l.b16 %v4094
    %v6222 = vunpack.c.h.b16 %v4094
    %v6223 = vunpack.c.l.b16 %v4095
    %v6224 = vunpack.c.h.b16 %v4095
    %v6225 = vunpack.c.l.b16 %v4096
    %v6226 = vunpack.c.h.b16 %v4096
    %v6227 = vunpack.c.l.b16 %v4097
    %v6228 = vunpack.c.h.b16 %v4097
    %v6229 = vunpack.c.l.b16 %v4098
    %v6230 = vunpack.c.h.b16 %v4098
    %v6231 = vunpack.c.l.b16 %v4099
    %v6232 = vunpack.c.h.b16 %v4099
    %v6233 = vunpack.c.l.b16 %v4100
    %v6234 = vunpack.c.h.b16 %v4100
    %v6235 = vunpack.c.l.b16 %v4101
    %v6236 = vunpack.c.h.b16 %v4101
    %v6237 = vunpack.c.l.b16 %v4102
    %v6238 = vunpack.c.h.b16 %v4102
    %v6239 = vunpack.c.l.b16 %v4103
    %v6240 = vunpack.c.h.b16 %v4103
    %v6241 = vunpack.c.l.b16 %v4104
    %v6242 = vunpack.c.h.b16 %v4104
    %v6243 = vunpack.c.l.b16 %v4105
    %v6244 = vunpack.c.h.b16 %v4105
    %v6245 = vunpack.c.l.b16 %v4106
    %v6246 = vunpack.c.h.b16 %v4106
    %v6247 = vunpack.c.l.b16 %v4107
    %v6248 = vunpack.c.h.b16 %v4107
    %v6249 = vunpack.c.l.b16 %v4108
    %v6250 = vunpack.c.h.b16 %v4108
    %v6251 = vunpack.c.l.b16 %v4109
    %v6252 = vunpack.c.h.b16 %v4109
    %v6253 = vunpack.c.l.b16 %v4110
    %v6254 = vunpack.c.h.b16 %v4110
    %v6255 = vunpack.c.l.b16 %v4111
    %v6256 = vunpack.c.h.b16 %v4111
    %v6257 = vunpack.c.l.b16 %v4112
    %v6258 = vunpack.c.h.b16 %v4112
    %v6259 = vunpack.c.l.b16 %v4113
    %v6260 = vunpack.c.h.b16 %v4113
    %v6261 = vunpack.c.l.b16 %v4114
    %v6262 = vunpack.c.h.b16 %v4114
    %v6263 = vunpack.c.l.b16 %v4115
    %v6264 = vunpack.c.h.b16 %v4115
    %v6265 = vunpack.c.l.b16 %v4116
    %v6266 = vunpack.c.h.b16 %v4116
    %v6267 = vunpack.c.l.b16 %v4117
    %v6268 = vunpack.c.h.b16 %v4117
    %v6269 = vunpack.c.l.b16 %v4118
    %v6270 = vunpack.c.h.b16 %v4118
    %v6271 = vunpack.c.l.b16 %v4119
    %v6272 = vunpack.c.h.b16 %v4119
    %v6273 = vunpack.c.l.b16 %v4120
    %v6274 = vunpack.c.h.b16 %v4120
    %v6275 = vunpack.c.l.b16 %v4121
    %v6276 = vunpack.c.h.b16 %v4121
    %v6277 = vunpack.c.l.b16 %v4122
    %v6278 = vunpack.c.h.b16 %v4122
    %v6279 = vunpack.c.l.b16 %v4123
    %v6280 = vunpack.c.h.b16 %v4123
    %v6281 = vunpack.c.l.b16 %v4124
    %v6282 = vunpack.c.h.b16 %v4124
    %v6283 = vunpack.c.l.b16 %v4125
    %v6284 = vunpack.c.h.b16 %v4125
    %v6285 = vunpack.c.l.b16 %v4126
    %v6286 = vunpack.c.h.b16 %v4126
    %v6287 = vunpack.c.l.b16 %v4127
    %v6288 = vunpack.c.h.b16 %v4127
    %v6289 = vunpack.c.l.b16 %v4128
    %v6290 = vunpack.c.h.b16 %v4128
    %v6291 = vunpack.c.l.b16 %v4129
    %v6292 = vunpack.c.h.b16 %v4129
    %v6293 = vunpack.c.l.b16 %v4130
    %v6294 = vunpack.c.h.b16 %v4130
    %v6295 = vunpack.c.l.b16 %v4131
    %v6296 = vunpack.c.h.b16 %v4131
    %v6297 = vunpack.c.l.b16 %v4132
    %v6298 = vunpack.c.h.b16 %v4132
    %v6299 = vunpack.c.l.b16 %v4133
    %v6300 = vunpack.c.h.b16 %v4133
    %v6301 = vunpack.c.l.b16 %v4134
    %v6302 = vunpack.c.h.b16 %v4134
    %v6303 = vunpack.c.l.b16 %v4135
    %v6304 = vunpack.c.h.b16 %v4135
    %v6305 = vunpack.c.l.b16 %v4136
    %v6306 = vunpack.c.h.b16 %v4136
    %v6307 = vunpack.c.l.b16 %v4137
    %v6308 = vunpack.c.h.b16 %v4137
    %v6309 = vunpack.c.l.b16 %v4138
    %v6310 = vunpack.c.h.b16 %v4138
    %v6311 = vunpack.c.l.b16 %v4139
    %v6312 = vunpack.c.h.b16 %v4139
    %v6313 = vunpack.c.l.b16 %v4140
    %v6314 = vunpack.c.h.b16 %v4140
    %v6315 = vunpack.c.l.b16 %v4141
    %v6316 = vunpack.c.h.b16 %v4141
    %v6317 = vunpack.c.l.b16 %v4142
    %v6318 = vunpack.c.h.b16 %v4142
    %v6319 = vunpack.c.l.b16 %v4143
    %v6320 = vunpack.c.h.b16 %v4143
    %v6321 = vunpack.c.l.b16 %v4144
    %v6322 = vunpack.c.h.b16 %v4144
    %v6323 = vunpack.c.l.b16 %v4145
    %v6324 = vunpack.c.h.b16 %v4145
    %v6325 = vunpack.c.l.b16 %v4146
    %v6326 = vunpack.c.h.b16 %v4146
    %v6327 = vunpack.c.l.b16 %v4147
    %v6328 = vunpack.c.h.b16 %v4147
    %v6329 = vunpack.c.l.b16 %v4148
    %v6330 = vunpack.c.h.b16 %v4148
    %v6331 = vunpack.c.l.b16 %v4149
    %v6332 = vunpack.c.h.b16 %v4149
    %v6333 = vunpack.c.l.b16 %v4150
    %v6334 = vunpack.c.h.b16 %v4150
    %v6335 = vunpack.c.l.b16 %v4151
    %v6336 = vunpack.c.h.b16 %v4151
    %v6337 = vunpack.c.l.b16 %v4152
    %v6338 = vunpack.c.h.b16 %v4152
    %v6339 = vunpack.c.l.b16 %v4153
    %v6340 = vunpack.c.h.b16 %v4153
    %v6341 = vunpack.c.l.b16 %v4154
    %v6342 = vunpack.c.h.b16 %v4154
    %v6343 = vunpack.c.l.b16 %v4155
    %v6344 = vunpack.c.h.b16 %v4155
    %v6345 = vunpack.c.l.b16 %v4156
    %v6346 = vunpack.c.h.b16 %v4156
    %v6347 = vunpack.c.l.b16 %v4157
    %v6348 = vunpack.c.h.b16 %v4157
    %v6349 = vunpack.c.l.b16 %v4158
    %v6350 = vunpack.c.h.b16 %v4158
    %v6351 = vunpack.c.l.b16 %v4159
    %v6352 = vunpack.c.h.b16 %v4159
    %v6353 = vunpack.c.l.b16 %v4160
    %v6354 = vunpack.c.h.b16 %v4160
    %v6355 = vunpack.c.l.b16 %v4161
    %v6356 = vunpack.c.h.b16 %v4161
    %v6357 = vunpack.c.l.b16 %v4162
    %v6358 = vunpack.c.h.b16 %v4162
    %v6359 = vunpack.c.l.b16 %v4163
    %v6360 = vunpack.c.h.b16 %v4163
    %v6361 = vunpack.c.l.b16 %v4164
    %v6362 = vunpack.c.h.b16 %v4164
    %v6363 = vunpack.c.l.b16 %v4165
    %v6364 = vunpack.c.h.b16 %v4165
    %v6365 = vunpack.c.l.b16 %v4166
    %v6366 = vunpack.c.h.b16 %v4166
    %v6367 = vunpack.c.l.b16 %v4167
    %v6368 = vunpack.c.h.b16 %v4167
    %v6369 = vunpack.c.l.b16 %v4168
    %v6370 = vunpack.c.h.b16 %v4168
    %v6371 = vunpack.c.l.b16 %v4169
    %v6372 = vunpack.c.h.b16 %v4169
    %v6373 = vunpack.c.l.b16 %v4170
    %v6374 = vunpack.c.h.b16 %v4170
    %v6375 = vunpack.c.l.b16 %v4171
    %v6376 = vunpack.c.h.b16 %v4171
    %v6377 = vunpack.c.l.b16 %v4172
    %v6378 = vunpack.c.h.b16 %v4172
    %v6379 = vunpack.c.l.b16 %v4173
    %v6380 = vunpack.c.h.b16 %v4173
    %v6381 = vunpack.c.l.b16 %v4174
    %v6382 = vunpack.c.h.b16 %v4174
    %v6383 = vunpack.c.l.b16 %v4175
    %v6384 = vunpack.c.h.b16 %v4175
    %v6385 = vunpack.c.l.b16 %v4176
    %v6386 = vunpack.c.h.b16 %v4176
    %v6387 = vunpack.c.l.b16 %v4177
    %v6388 = vunpack.c.h.b16 %v4177
    %v6389 = vunpack.c.l.b16 %v4178
    %v6390 = vunpack.c.h.b16 %v4178
    %v6391 = vunpack.c.l.b16 %v4179
    %v6392 = vunpack.c.h.b16 %v4179
    %v6393 = vunpack.c.l.b16 %v4180
    %v6394 = vunpack.c.h.b16 %v4180
    %v6395 = vunpack.c.l.b16 %v4181
    %v6396 = vunpack.c.h.b16 %v4181
    %v6397 = vunpack.c.l.b16 %v4182
    %v6398 = vunpack.c.h.b16 %v4182
    %v6399 = vunpack.c.l.b16 %v4183
    %v6400 = vunpack.c.h.b16 %v4183
    %v6401 = vunpack.c.l.b16 %v4184
    %v6402 = vunpack.c.h.b16 %v4184
    %v6403 = vunpack.c.l.b16 %v4185
    %v6404 = vunpack.c.h.b16 %v4185
    %v6405 = vunpack.c.l.b16 %v4186
    %v6406 = vunpack.c.h.b16 %v4186
    %v6407 = vunpack.c.l.b16 %v4187
    %v6408 = vunpack.c.h.b16 %v4187
    %v6409 = vunpack.c.l.b16 %v4188
    %v6410 = vunpack.c.h.b16 %v4188
    %v6411 = vunpack.c.l.b16 %v4189
    %v6412 = vunpack.c.h.b16 %v4189
    %v6413 = vunpack.c.l.b16 %v4190
    %v6414 = vunpack.c.h.b16 %v4190
    %v6415 = vunpack.c.l.b16 %v4191
    %v6416 = vunpack.c.h.b16 %v4191
    %v6417 = vunpack.c.l.b16 %v4192
    %v6418 = vunpack.c.h.b16 %v4192
    %v6419 = vunpack.c.l.b16 %v4193
    %v6420 = vunpack.c.h.b16 %v4193
    %v6421 = vunpack.c.l.b16 %v4194
    %v6422 = vunpack.c.h.b16 %v4194
    %v6423 = vunpack.c.l.b16 %v4195
    %v6424 = vunpack.c.h.b16 %v4195
    %v6425 = vunpack.c.l.b16 %v4196
    %v6426 = vunpack.c.h.b16 %v4196
    %v6427 = vunpack.c.l.b16 %v4197
    %v6428 = vunpack.c.h.b16 %v4197
    %v6429 = vunpack.c.l.b16 %v4198
    %v6430 = vunpack.c.h.b16 %v4198
    %v6431 = vunpack.c.l.b16 %v4199
    %v6432 = vunpack.c.h.b16 %v4199
    %v6433 = vunpack.c.l.b16 %v4200
    %v6434 = vunpack.c.h.b16 %v4200
    %v6435 = vunpack.c.l.b16 %v4201
    %v6436 = vunpack.c.h.b16 %v4201
    %v6437 = vunpack.c.l.b16 %v4202
    %v6438 = vunpack.c.h.b16 %v4202
    %v6439 = vunpack.c.l.b16 %v4203
    %v6440 = vunpack.c.h.b16 %v4203
    %v6441 = vunpack.c.l.b16 %v4204
    %v6442 = vunpack.c.h.b16 %v4204
    %v6443 = vunpack.c.l.b16 %v4205
    %v6444 = vunpack.c.h.b16 %v4205
    %v6445 = vunpack.c.l.b16 %v4206
    %v6446 = vunpack.c.h.b16 %v4206
    %v6447 = vunpack.c.l.b16 %v4207
    %v6448 = vunpack.c.h.b16 %v4207
    %v6449 = vunpack.c.l.b16 %v4208
    %v6450 = vunpack.c.h.b16 %v4208
    %v6451 = vunpack.c.l.b16 %v4209
    %v6452 = vunpack.c.h.b16 %v4209
    %v6453 = vunpack.c.l.b16 %v4210
    %v6454 = vunpack.c.h.b16 %v4210
    %v6455 = vunpack.c.l.b16 %v4211
    %v6456 = vunpack.c.h.b16 %v4211
    %v6457 = vunpack.c.l.b16 %v4212
    %v6458 = vunpack.c.h.b16 %v4212
    %v6459 = vunpack.c.l.b16 %v4213
    %v6460 = vunpack.c.h.b16 %v4213
    %v6461 = vunpack.c.l.b16 %v4214
    %v6462 = vunpack.c.h.b16 %v4214
    %v6463 = vunpack.c.l.b16 %v4215
    %v6464 = vunpack.c.h.b16 %v4215
    %v6465 = vunpack.c.l.b16 %v4216
    %v6466 = vunpack.c.h.b16 %v4216
    %v6467 = vunpack.c.l.b16 %v4217
    %v6468 = vunpack.c.h.b16 %v4217
    %v6469 = vunpack.c.l.b16 %v4218
    %v6470 = vunpack.c.h.b16 %v4218
    %v6471 = vunpack.c.l.b16 %v4219
    %v6472 = vunpack.c.h.b16 %v4219
    %v6473 = vunpack.c.l.b16 %v4220
    %v6474 = vunpack.c.h.b16 %v4220
    %v6475 = vunpack.c.l.b16 %v4221
    %v6476 = vunpack.c.h.b16 %v4221
    %v6477 = vunpack.c.l.b16 %v4222
    %v6478 = vunpack.c.h.b16 %v4222
    %v6479 = vunpack.c.l.b16 %v4223
    %v6480 = vunpack.c.h.b16 %v4223
    %v6481 = vunpack.c.l.b16 %v4224
    %v6482 = vunpack.c.h.b16 %v4224
    %v6483 = vunpack.c.l.b16 %v4225
    %v6484 = vunpack.c.h.b16 %v4225
    %v6485 = vunpack.c.l.b16 %v4226
    %v6486 = vunpack.c.h.b16 %v4226
    %v6487 = vunpack.c.l.b16 %v4227
    %v6488 = vunpack.c.h.b16 %v4227
    %v6489 = vunpack.c.l.b16 %v4228
    %v6490 = vunpack.c.h.b16 %v4228
    %v6491 = vunpack.c.l.b16 %v4229
    %v6492 = vunpack.c.h.b16 %v4229
    %v6493 = vunpack.c.l.b16 %v4230
    %v6494 = vunpack.c.h.b16 %v4230
    %v6495 = vunpack.c.l.b16 %v4231
    %v6496 = vunpack.c.h.b16 %v4231
    %v6497 = vunpack.c.l.b16 %v4232
    %v6498 = vunpack.c.h.b16 %v4232
    %v6499 = vunpack.c.l.b16 %v4233
    %v6500 = vunpack.c.h.b16 %v4233
    %v6501 = vunpack.c.l.b16 %v4234
    %v6502 = vunpack.c.h.b16 %v4234
    %v6503 = vunpack.c.l.b16 %v4235
    %v6504 = vunpack.c.h.b16 %v4235
    %v6505 = vunpack.c.l.b16 %v4236
    %v6506 = vunpack.c.h.b16 %v4236
    %v6507 = vunpack.c.l.b16 %v4237
    %v6508 = vunpack.c.h.b16 %v4237
    %v6509 = vunpack.c.l.b16 %v4238
    %v6510 = vunpack.c.h.b16 %v4238
    %v6511 = vunpack.c.l.b16 %v4239
    %v6512 = vunpack.c.h.b16 %v4239
    %v6513 = vunpack.c.l.b16 %v4240
    %v6514 = vunpack.c.h.b16 %v4240
    %v6515 = vunpack.c.l.b16 %v4241
    %v6516 = vunpack.c.h.b16 %v4241
    %v6517 = vunpack.c.l.b16 %v4242
    %v6518 = vunpack.c.h.b16 %v4242
    %v6519 = vunpack.c.l.b16 %v4243
    %v6520 = vunpack.c.h.b16 %v4243
    %v6521 = vunpack.c.l.b16 %v4244
    %v6522 = vunpack.c.h.b16 %v4244
    %v6523 = vunpack.c.l.b16 %v4245
    %v6524 = vunpack.c.h.b16 %v4245
    %v6525 = vunpack.c.l.b16 %v4246
    %v6526 = vunpack.c.h.b16 %v4246
    %v6527 = vunpack.c.l.b16 %v4247
    %v6528 = vunpack.c.h.b16 %v4247
    %v6529 = vunpack.c.l.b16 %v4248
    %v6530 = vunpack.c.h.b16 %v4248
    %v6531 = vunpack.c.l.b16 %v4249
    %v6532 = vunpack.c.h.b16 %v4249
    %v6533 = vunpack.c.l.b16 %v4250
    %v6534 = vunpack.c.h.b16 %v4250
    %v6535 = vunpack.c.l.b16 %v4251
    %v6536 = vunpack.c.h.b16 %v4251
    %v6537 = vunpack.c.l.b16 %v4252
    %v6538 = vunpack.c.h.b16 %v4252
    %v6539 = vunpack.c.l.b16 %v4253
    %v6540 = vunpack.c.h.b16 %v4253
    %v6541 = vunpack.c.l.b16 %v4254
    %v6542 = vunpack.c.h.b16 %v4254
    %v6543 = vunpack.c.l.b16 %v4255
    %v6544 = vunpack.c.h.b16 %v4255
    %v6545 = vunpack.c.l.b16 %v4256
    %v6546 = vunpack.c.h.b16 %v4256
    %v6547 = vunpack.c.l.b16 %v4257
    %v6548 = vunpack.c.h.b16 %v4257
    %v6549 = vunpack.c.l.b16 %v4258
    %v6550 = vunpack.c.h.b16 %v4258
    %v6551 = vunpack.c.l.b16 %v4259
    %v6552 = vunpack.c.h.b16 %v4259
    %v6553 = vunpack.c.l.b16 %v4260
    %v6554 = vunpack.c.h.b16 %v4260
    %v6555 = vunpack.c.l.b16 %v4261
    %v6556 = vunpack.c.h.b16 %v4261
    %v6557 = vunpack.c.l.b16 %v4262
    %v6558 = vunpack.c.h.b16 %v4262
    %v6559 = vunpack.c.l.b16 %v4263
    %v6560 = vunpack.c.h.b16 %v4263
    %v6561 = vunpack.c.l.b16 %v4264
    %v6562 = vunpack.c.h.b16 %v4264
    %v6563 = vunpack.c.l.b16 %v4265
    %v6564 = vunpack.c.h.b16 %v4265
    %v6565 = vunpack.c.l.b16 %v4266
    %v6566 = vunpack.c.h.b16 %v4266
    %v6567 = vunpack.c.l.b16 %v4267
    %v6568 = vunpack.c.h.b16 %v4267
    %v6569 = vunpack.c.l.b16 %v4268
    %v6570 = vunpack.c.h.b16 %v4268
    %v6571 = vunpack.c.l.b16 %v4269
    %v6572 = vunpack.c.h.b16 %v4269
    %v6573 = vunpack.c.l.b16 %v4270
    %v6574 = vunpack.c.h.b16 %v4270
    %v6575 = vunpack.c.l.b16 %v4271
    %v6576 = vunpack.c.h.b16 %v4271
    %v6577 = vunpack.c.l.b16 %v4272
    %v6578 = vunpack.c.h.b16 %v4272
    %v6579 = vunpack.c.l.b16 %v4273
    %v6580 = vunpack.c.h.b16 %v4273
    %v6581 = vunpack.c.l.b16 %v4274
    %v6582 = vunpack.c.h.b16 %v4274
    %v6583 = vunpack.c.l.b16 %v4275
    %v6584 = vunpack.c.h.b16 %v4275
    %v6585 = vunpack.c.l.b16 %v4276
    %v6586 = vunpack.c.h.b16 %v4276
    %v6587 = vunpack.c.l.b16 %v4277
    %v6588 = vunpack.c.h.b16 %v4277
    %v6589 = vunpack.c.l.b16 %v4278
    %v6590 = vunpack.c.h.b16 %v4278
    %v6591 = vunpack.c.l.b16 %v4279
    %v6592 = vunpack.c.h.b16 %v4279
    %v6593 = vunpack.c.l.b16 %v4280
    %v6594 = vunpack.c.h.b16 %v4280
    %v6595 = vunpack.c.l.b16 %v4281
    %v6596 = vunpack.c.h.b16 %v4281
    %v6597 = vunpack.c.l.b16 %v4282
    %v6598 = vunpack.c.h.b16 %v4282
    %v6599 = vunpack.c.l.b16 %v4283
    %v6600 = vunpack.c.h.b16 %v4283
    %v6601 = vunpack.c.l.b16 %v4284
    %v6602 = vunpack.c.h.b16 %v4284
    %v6603 = vunpack.c.l.b16 %v4285
    %v6604 = vunpack.c.h.b16 %v4285
    %v6605 = vunpack.c.l.b16 %v4286
    %v6606 = vunpack.c.h.b16 %v4286
    %v6607 = vunpack.c.l.b16 %v4287
    %v6608 = vunpack.c.h.b16 %v4287
    %v6609 = vunpack.c.l.b16 %v4288
    %v6610 = vunpack.c.h.b16 %v4288
    %v6611 = vunpack.c.l.b16 %v4289
    %v6612 = vunpack.c.h.b16 %v4289
    %v6613 = vunpack.c.l.b16 %v4290
    %v6614 = vunpack.c.h.b16 %v4290
    %v6615 = vunpack.c.l.b16 %v4291
    %v6616 = vunpack.c.h.b16 %v4291
    %v6617 = vunpack.c.l.b16 %v4292
    %v6618 = vunpack.c.h.b16 %v4292
    %v6619 = vunpack.c.l.b16 %v4293
    %v6620 = vunpack.c.h.b16 %v4293
    %v6621 = vunpack.c.l.b16 %v4294
    %v6622 = vunpack.c.h.b16 %v4294
    %v6623 = vunpack.c.l.b16 %v4295
    %v6624 = vunpack.c.h.b16 %v4295
    %v6625 = vunpack.c.l.b16 %v4296
    %v6626 = vunpack.c.h.b16 %v4296
    %v6627 = vunpack.c.l.b16 %v4297
    %v6628 = vunpack.c.h.b16 %v4297
    %v6629 = vunpack.c.l.b16 %v4298
    %v6630 = vunpack.c.h.b16 %v4298
    %v6631 = vunpack.c.l.b16 %v4299
    %v6632 = vunpack.c.h.b16 %v4299
    %v6633 = vunpack.c.l.b16 %v4300
    %v6634 = vunpack.c.h.b16 %v4300
    %v6635 = vunpack.c.l.b16 %v4301
    %v6636 = vunpack.c.h.b16 %v4301
    %v6637 = vunpack.c.l.b16 %v4302
    %v6638 = vunpack.c.h.b16 %v4302
    %v6639 = vunpack.c.l.b16 %v4303
    %v6640 = vunpack.c.h.b16 %v4303
    %v6641 = vunpack.c.l.b16 %v4304
    %v6642 = vunpack.c.h.b16 %v4304
    %v6643 = vunpack.c.l.b16 %v4305
    %v6644 = vunpack.c.h.b16 %v4305
    %v6645 = vunpack.c.l.b16 %v4306
    %v6646 = vunpack.c.h.b16 %v4306
    %v6647 = vunpack.c.l.b16 %v4307
    %v6648 = vunpack.c.h.b16 %v4307
    %v6649 = vunpack.c.l.b16 %v4308
    %v6650 = vunpack.c.h.b16 %v4308
    %v6651 = vunpack.c.l.b16 %v4309
    %v6652 = vunpack.c.h.b16 %v4309
    %v6653 = vunpack.c.l.b16 %v4310
    %v6654 = vunpack.c.h.b16 %v4310
    %v6655 = vunpack.c.l.b16 %v4311
    %v6656 = vunpack.c.h.b16 %v4311
    %v6657 = vunpack.c.l.b16 %v4312
    %v6658 = vunpack.c.h.b16 %v4312
    %v6659 = vunpack.c.l.b16 %v4313
    %v6660 = vunpack.c.h.b16 %v4313
    %v6661 = vunpack.c.l.b16 %v4314
    %v6662 = vunpack.c.h.b16 %v4314
    %v6663 = vunpack.c.l.b16 %v4315
    %v6664 = vunpack.c.h.b16 %v4315
    %v6665 = vunpack.c.l.b16 %v4316
    %v6666 = vunpack.c.h.b16 %v4316
    %v6667 = vunpack.c.l.b16 %v4317
    %v6668 = vunpack.c.h.b16 %v4317
    %v6669 = vunpack.c.l.b16 %v4318
    %v6670 = vunpack.c.h.b16 %v4318
    %v6671 = vunpack.c.l.b16 %v4319
    %v6672 = vunpack.c.h.b16 %v4319
    %v6673 = vunpack.c.l.b16 %v4320
    %v6674 = vunpack.c.h.b16 %v4320
    %v6675 = vunpack.c.l.b16 %v4321
    %v6676 = vunpack.c.h.b16 %v4321
    %v6677 = vunpack.c.l.b16 %v4322
    %v6678 = vunpack.c.h.b16 %v4322
    %v6679 = vunpack.c.l.b16 %v4323
    %v6680 = vunpack.c.h.b16 %v4323
    %v6681 = vunpack.c.l.b16 %v4324
    %v6682 = vunpack.c.h.b16 %v4324
    %v6683 = vunpack.c.l.b16 %v4325
    %v6684 = vunpack.c.h.b16 %v4325
    %v6685 = vunpack.c.l.b16 %v4326
    %v6686 = vunpack.c.h.b16 %v4326
    %v6687 = vunpack.c.l.b16 %v4327
    %v6688 = vunpack.c.h.b16 %v4327
    %v6689 = vunpack.c.l.b16 %v4328
    %v6690 = vunpack.c.h.b16 %v4328
    %v6691 = vunpack.c.l.b16 %v4329
    %v6692 = vunpack.c.h.b16 %v4329
    %v6693 = vunpack.c.l.b16 %v4330
    %v6694 = vunpack.c.h.b16 %v4330
    %v6695 = vunpack.c.l.b16 %v4331
    %v6696 = vunpack.c.h.b16 %v4331
    %v6697 = vunpack.c.l.b16 %v4332
    %v6698 = vunpack.c.h.b16 %v4332
    %v6699 = vunpack.c.l.b16 %v4333
    %v6700 = vunpack.c.h.b16 %v4333
    %v6701 = vunpack.c.l.b16 %v4334
    %v6702 = vunpack.c.h.b16 %v4334
    %v6703 = vunpack.c.l.b16 %v4335
    %v6704 = vunpack.c.h.b16 %v4335
    %v6705 = vunpack.c.l.b16 %v4336
    %v6706 = vunpack.c.h.b16 %v4336
    %v6707 = vunpack.c.l.b16 %v4337
    %v6708 = vunpack.c.h.b16 %v4337
    %v6709 = vunpack.c.l.b16 %v4338
    %v6710 = vunpack.c.h.b16 %v4338
    %v6711 = vunpack.c.l.b16 %v4339
    %v6712 = vunpack.c.h.b16 %v4339
    %v6713 = vunpack.c.l.b16 %v4340
    %v6714 = vunpack.c.h.b16 %v4340
    %v6715 = vunpack.c.l.b16 %v4341
    %v6716 = vunpack.c.h.b16 %v4341
    %v6717 = vunpack.c.l.b16 %v4342
    %v6718 = vunpack.c.h.b16 %v4342
    %v6719 = vunpack.c.l.b16 %v4343
    %v6720 = vunpack.c.h.b16 %v4343
    %v6721 = vunpack.c.l.b16 %v4344
    %v6722 = vunpack.c.h.b16 %v4344
    %v6723 = vunpack.c.l.b16 %v4345
    %v6724 = vunpack.c.h.b16 %v4345
    %v6725 = vunpack.c.l.b16 %v4346
    %v6726 = vunpack.c.h.b16 %v4346
    %v6727 = vunpack.c.l.b16 %v4347
    %v6728 = vunpack.c.h.b16 %v4347
    %v6729 = vunpack.c.l.b16 %v4348
    %v6730 = vunpack.c.h.b16 %v4348
    %v6731 = vunpack.c.l.b16 %v4349
    %v6732 = vunpack.c.h.b16 %v4349
    %v6733 = vunpack.c.l.b16 %v4350
    %v6734 = vunpack.c.h.b16 %v4350
    %v6735 = vunpack.c.l.b16 %v4351
    %v6736 = vunpack.c.h.b16 %v4351
    %v6737 = vunpack.c.l.b16 %v4352
    %v6738 = vunpack.c.h.b16 %v4352
    %v6739 = vunpack.c.l.b16 %v4353
    %v6740 = vunpack.c.h.b16 %v4353
    %v6741 = vunpack.c.l.b16 %v4354
    %v6742 = vunpack.c.h.b16 %v4354
    %v6743 = vunpack.c.l.b16 %v4355
    %v6744 = vunpack.c.h.b16 %v4355
    %v6745 = vunpack.c.l.b16 %v4356
    %v6746 = vunpack.c.h.b16 %v4356
    %v6747 = vunpack.c.l.b16 %v4357
    %v6748 = vunpack.c.h.b16 %v4357
    %v6749 = vunpack.c.l.b16 %v4358
    %v6750 = vunpack.c.h.b16 %v4358
    %v6751 = vunpack.c.l.b16 %v4359
    %v6752 = vunpack.c.h.b16 %v4359
    %v6753 = vunpack.c.l.b16 %v4360
    %v6754 = vunpack.c.h.b16 %v4360
    %v6755 = vunpack.c.l.b16 %v4361
    %v6756 = vunpack.c.h.b16 %v4361
    %v6757 = vunpack.c.l.b16 %v4362
    %v6758 = vunpack.c.h.b16 %v4362
    %v6759 = vunpack.c.l.b16 %v4363
    %v6760 = vunpack.c.h.b16 %v4363
    %v6761 = vunpack.c.l.b16 %v4364
    %v6762 = vunpack.c.h.b16 %v4364
    %v6763 = vunpack.c.l.b16 %v4365
    %v6764 = vunpack.c.h.b16 %v4365
    %v6765 = vunpack.c.l.b16 %v4366
    %v6766 = vunpack.c.h.b16 %v4366
    %v6767 = vunpack.c.l.b16 %v4367
    %v6768 = vunpack.c.h.b16 %v4367
    %v6769 = vunpack.c.l.b16 %v4368
    %v6770 = vunpack.c.h.b16 %v4368
    %v6771 = vunpack.c.l.b16 %v4369
    %v6772 = vunpack.c.h.b16 %v4369
    %v6773 = vunpack.c.l.b16 %v4370
    %v6774 = vunpack.c.h.b16 %v4370
    %v6775 = vunpack.c.l.b16 %v4371
    %v6776 = vunpack.c.h.b16 %v4371
    %v6777 = vunpack.c.l.b16 %v4372
    %v6778 = vunpack.c.h.b16 %v4372
    %v6779 = vunpack.c.l.b16 %v4373
    %v6780 = vunpack.c.h.b16 %v4373
    %v6781 = vunpack.c.l.b16 %v4374
    %v6782 = vunpack.c.h.b16 %v4374
    %v6783 = vunpack.c.l.b16 %v4375
    %v6784 = vunpack.c.h.b16 %v4375
    %v6785 = vunpack.c.l.b16 %v4376
    %v6786 = vunpack.c.h.b16 %v4376
    %v6787 = vunpack.c.l.b16 %v4377
    %v6788 = vunpack.c.h.b16 %v4377
    %v6789 = vunpack.c.l.b16 %v4378
    %v6790 = vunpack.c.h.b16 %v4378
    %v6791 = vunpack.c.l.b16 %v4379
    %v6792 = vunpack.c.h.b16 %v4379
    %v6793 = vunpack.c.l.b16 %v4380
    %v6794 = vunpack.c.h.b16 %v4380
    %v6795 = vunpack.c.l.b16 %v4381
    %v6796 = vunpack.c.h.b16 %v4381
    %v6797 = vunpack.c.l.b16 %v4382
    %v6798 = vunpack.c.h.b16 %v4382
    %v6799 = vunpack.c.l.b16 %v4383
    %v6800 = vunpack.c.h.b16 %v4383
    %v6801 = vunpack.c.l.b16 %v4384
    %v6802 = vunpack.c.h.b16 %v4384
    %v6803 = vunpack.c.l.b16 %v4385
    %v6804 = vunpack.c.h.b16 %v4385
    %v6805 = vunpack.c.l.b16 %v4386
    %v6806 = vunpack.c.h.b16 %v4386
    %v6807 = vunpack.c.l.b16 %v4387
    %v6808 = vunpack.c.h.b16 %v4387
    %v6809 = vunpack.c.l.b16 %v4388
    %v6810 = vunpack.c.h.b16 %v4388
    %v6811 = vunpack.c.l.b16 %v4389
    %v6812 = vunpack.c.h.b16 %v4389
    %v6813 = vunpack.c.l.b16 %v4390
    %v6814 = vunpack.c.h.b16 %v4390
    %v6815 = vunpack.c.l.b16 %v4391
    %v6816 = vunpack.c.h.b16 %v4391
    %v6817 = vunpack.c.l.b16 %v4392
    %v6818 = vunpack.c.h.b16 %v4392
    %v6819 = vunpack.c.l.b16 %v4393
    %v6820 = vunpack.c.h.b16 %v4393
    %v6821 = vunpack.c.l.b16 %v4394
    %v6822 = vunpack.c.h.b16 %v4394
    %v6823 = vunpack.c.l.b16 %v4395
    %v6824 = vunpack.c.h.b16 %v4395
    %v6825 = vunpack.c.l.b16 %v4396
    %v6826 = vunpack.c.h.b16 %v4396
    %v6827 = vunpack.c.l.b16 %v4397
    %v6828 = vunpack.c.h.b16 %v4397
    %v6829 = vunpack.c.l.b16 %v4398
    %v6830 = vunpack.c.h.b16 %v4398
    %v6831 = vunpack.c.l.b16 %v4399
    %v6832 = vunpack.c.h.b16 %v4399
    %v6833 = vunpack.c.l.b16 %v4400
    %v6834 = vunpack.c.h.b16 %v4400
    %v6835 = vunpack.c.l.b16 %v4401
    %v6836 = vunpack.c.h.b16 %v4401
    %v6837 = vunpack.c.l.b16 %v4402
    %v6838 = vunpack.c.h.b16 %v4402
    %v6839 = vunpack.c.l.b16 %v4403
    %v6840 = vunpack.c.h.b16 %v4403
    %v6841 = vunpack.c.l.b16 %v4404
    %v6842 = vunpack.c.h.b16 %v4404
    %v6843 = vunpack.c.l.b16 %v4405
    %v6844 = vunpack.c.h.b16 %v4405
    %v6845 = vunpack.c.l.b16 %v4406
    %v6846 = vunpack.c.h.b16 %v4406
    %v6847 = vunpack.c.l.b16 %v4407
    %v6848 = vunpack.c.h.b16 %v4407
    %v6849 = vunpack.c.l.b16 %v4408
    %v6850 = vunpack.c.h.b16 %v4408
    %v6851 = vunpack.c.l.b16 %v4409
    %v6852 = vunpack.c.h.b16 %v4409
    %v6853 = vunpack.c.l.b16 %v4410
    %v6854 = vunpack.c.h.b16 %v4410
    %v6855 = vunpack.c.l.b16 %v4411
    %v6856 = vunpack.c.h.b16 %v4411
    %v6857 = vunpack.c.l.b16 %v4412
    %v6858 = vunpack.c.h.b16 %v4412
    %v6859 = vunpack.c.l.b16 %v4413
    %v6860 = vunpack.c.h.b16 %v4413
    %v6861 = vunpack.c.l.b16 %v4414
    %v6862 = vunpack.c.h.b16 %v4414
    %v6863 = vunpack.c.l.b16 %v4415
    %v6864 = vunpack.c.h.b16 %v4415
    %v6865 = vunpack.c.l.b16 %v4416
    %v6866 = vunpack.c.h.b16 %v4416
    %v6867 = vunpack.c.l.b16 %v4417
    %v6868 = vunpack.c.h.b16 %v4417
    %v6869 = vunpack.c.l.b16 %v4418
    %v6870 = vunpack.c.h.b16 %v4418
    %v6871 = vunpack.c.l.b16 %v4419
    %v6872 = vunpack.c.h.b16 %v4419
    %v6873 = vunpack.c.l.b16 %v4420
    %v6874 = vunpack.c.h.b16 %v4420
    %v6875 = vunpack.c.l.b16 %v4421
    %v6876 = vunpack.c.h.b16 %v4421
    %v6877 = vunpack.c.l.b16 %v4422
    %v6878 = vunpack.c.h.b16 %v4422
    %v6879 = vunpack.c.l.b16 %v4423
    %v6880 = vunpack.c.h.b16 %v4423
    %v6881 = vunpack.c.l.b16 %v4424
    %v6882 = vunpack.c.h.b16 %v4424
    %v6883 = vunpack.c.l.b16 %v4425
    %v6884 = vunpack.c.h.b16 %v4425
    %v6885 = vunpack.c.l.b16 %v4426
    %v6886 = vunpack.c.h.b16 %v4426
    %v6887 = vunpack.c.l.b16 %v4427
    %v6888 = vunpack.c.h.b16 %v4427
    %v6889 = vunpack.c.l.b16 %v4428
    %v6890 = vunpack.c.h.b16 %v4428
    %v6891 = vunpack.c.l.b16 %v4429
    %v6892 = vunpack.c.h.b16 %v4429
    %v6893 = vunpack.c.l.b16 %v4430
    %v6894 = vunpack.c.h.b16 %v4430
    %v6895 = vunpack.c.l.b16 %v4431
    %v6896 = vunpack.c.h.b16 %v4431
    %v6897 = vunpack.c.l.b16 %v4432
    %v6898 = vunpack.c.h.b16 %v4432
    %v6899 = vunpack.c.l.b16 %v4433
    %v6900 = vunpack.c.h.b16 %v4433
    %v6901 = vunpack.c.l.b16 %v4434
    %v6902 = vunpack.c.h.b16 %v4434
    %v6903 = vunpack.c.l.b16 %v4435
    %v6904 = vunpack.c.h.b16 %v4435
    %v6905 = vunpack.c.l.b16 %v4436
    %v6906 = vunpack.c.h.b16 %v4436
    %v6907 = vunpack.c.l.b16 %v4437
    %v6908 = vunpack.c.h.b16 %v4437
    %v6909 = vunpack.c.l.b16 %v4438
    %v6910 = vunpack.c.h.b16 %v4438
    %v6911 = vunpack.c.l.b16 %v4439
    %v6912 = vunpack.c.h.b16 %v4439
    %v6913 = vunpack.c.l.b16 %v4440
    %v6914 = vunpack.c.h.b16 %v4440
    %v6915 = vunpack.c.l.b16 %v4441
    %v6916 = vunpack.c.h.b16 %v4441
    %v6917 = vunpack.c.l.b16 %v4442
    %v6918 = vunpack.c.h.b16 %v4442
    %v6919 = vunpack.c.l.b16 %v4443
    %v6920 = vunpack.c.h.b16 %v4443
    %v6921 = vunpack.c.l.b16 %v4444
    %v6922 = vunpack.c.h.b16 %v4444
    %v6923 = vunpack.c.l.b16 %v4445
    %v6924 = vunpack.c.h.b16 %v4445
    %v6925 = vunpack.c.l.b16 %v4446
    %v6926 = vunpack.c.h.b16 %v4446
    %v6927 = vunpack.c.l.b16 %v4447
    %v6928 = vunpack.c.h.b16 %v4447
    %v6929 = vunpack.c.l.b16 %v4448
    %v6930 = vunpack.c.h.b16 %v4448
    %v6931 = vunpack.c.l.b16 %v4449
    %v6932 = vunpack.c.h.b16 %v4449
    %v6933 = vunpack.c.l.b16 %v4450
    %v6934 = vunpack.c.h.b16 %v4450
    %v6935 = vunpack.c.l.b16 %v4451
    %v6936 = vunpack.c.h.b16 %v4451
    %v6937 = vunpack.c.l.b16 %v4452
    %v6938 = vunpack.c.h.b16 %v4452
    %v6939 = vunpack.c.l.b16 %v4453
    %v6940 = vunpack.c.h.b16 %v4453
    %v6941 = vunpack.c.l.b16 %v4454
    %v6942 = vunpack.c.h.b16 %v4454
    %v6943 = vunpack.c.l.b16 %v4455
    %v6944 = vunpack.c.h.b16 %v4455
    %v6945 = vunpack.c.l.b16 %v4456
    %v6946 = vunpack.c.h.b16 %v4456
    %v6947 = vunpack.c.l.b16 %v4457
    %v6948 = vunpack.c.h.b16 %v4457
    %v6949 = vunpack.c.l.b16 %v4458
    %v6950 = vunpack.c.h.b16 %v4458
    %v6951 = vunpack.c.l.b16 %v4459
    %v6952 = vunpack.c.h.b16 %v4459
    %v6953 = vunpack.c.l.b16 %v4460
    %v6954 = vunpack.c.h.b16 %v4460
    %v6955 = vunpack.c.l.b16 %v4461
    %v6956 = vunpack.c.h.b16 %v4461
    %v6957 = vunpack.c.l.b16 %v4462
    %v6958 = vunpack.c.h.b16 %v4462
    %v6959 = vunpack.c.l.b16 %v4463
    %v6960 = vunpack.c.h.b16 %v4463
    %v6961 = vunpack.c.l.b16 %v4464
    %v6962 = vunpack.c.h.b16 %v4464
    %v6963 = vunpack.c.l.b16 %v4465
    %v6964 = vunpack.c.h.b16 %v4465
    %v6965 = vunpack.c.l.b16 %v4466
    %v6966 = vunpack.c.h.b16 %v4466
    %v6967 = vunpack.c.l.b16 %v4467
    %v6968 = vunpack.c.h.b16 %v4467
    %v6969 = vunpack.c.l.b16 %v4468
    %v6970 = vunpack.c.h.b16 %v4468
    %v6971 = vunpack.c.l.b16 %v4469
    %v6972 = vunpack.c.h.b16 %v4469
    %v6973 = vunpack.c.l.b16 %v4470
    %v6974 = vunpack.c.h.b16 %v4470
    %v6975 = vunpack.c.l.b16 %v4471
    %v6976 = vunpack.c.h.b16 %v4471
    %v6977 = vunpack.c.l.b16 %v4472
    %v6978 = vunpack.c.h.b16 %v4472
    %v6979 = vunpack.c.l.b16 %v4473
    %v6980 = vunpack.c.h.b16 %v4473
    %v6981 = vunpack.c.l.b16 %v4474
    %v6982 = vunpack.c.h.b16 %v4474
    %v6983 = vunpack.c.l.b16 %v4475
    %v6984 = vunpack.c.h.b16 %v4475
    %v6985 = vunpack.c.l.b16 %v4476
    %v6986 = vunpack.c.h.b16 %v4476
    %v6987 = vunpack.c.l.b16 %v4477
    %v6988 = vunpack.c.h.b16 %v4477
    %v6989 = vunpack.c.l.b16 %v4478
    %v6990 = vunpack.c.h.b16 %v4478
    %v6991 = vunpack.c.l.b16 %v4479
    %v6992 = vunpack.c.h.b16 %v4479
    %v6993 = vunpack.c.l.b16 %v4480
    %v6994 = vunpack.c.h.b16 %v4480
    %v6995 = vunpack.c.l.b16 %v4481
    %v6996 = vunpack.c.h.b16 %v4481
    %v6997 = vunpack.c.l.b16 %v4482
    %v6998 = vunpack.c.h.b16 %v4482
    %v6999 = vunpack.c.l.b16 %v4483
    %v7000 = vunpack.c.h.b16 %v4483
    %v7001 = vunpack.c.l.b16 %v4484
    %v7002 = vunpack.c.h.b16 %v4484
    %v7003 = vunpack.c.l.b16 %v4485
    %v7004 = vunpack.c.h.b16 %v4485
    %v7005 = vunpack.c.l.b16 %v4486
    %v7006 = vunpack.c.h.b16 %v4486
    %v7007 = vunpack.c.l.b16 %v4487
    %v7008 = vunpack.c.h.b16 %v4487
    %v7009 = vunpack.c.l.b16 %v4488
    %v7010 = vunpack.c.h.b16 %v4488
    %v7011 = vunpack.c.l.b16 %v4489
    %v7012 = vunpack.c.h.b16 %v4489
    %v7013 = vunpack.c.l.b16 %v4490
    %v7014 = vunpack.c.h.b16 %v4490
    %v7015 = vunpack.c.l.b16 %v4491
    %v7016 = vunpack.c.h.b16 %v4491
    %v7017 = vunpack.c.l.b16 %v4492
    %v7018 = vunpack.c.h.b16 %v4492
    %v7019 = vunpack.c.l.b16 %v4493
    %v7020 = vunpack.c.h.b16 %v4493
    %v7021 = vunpack.c.l.b16 %v4494
    %v7022 = vunpack.c.h.b16 %v4494
    %v7023 = vunpack.c.l.b16 %v4495
    %v7024 = vunpack.c.h.b16 %v4495
    %v7025 = vunpack.c.l.b16 %v4496
    %v7026 = vunpack.c.h.b16 %v4496
    %v7027 = vunpack.c.l.b16 %v4497
    %v7028 = vunpack.c.h.b16 %v4497
    %v7029 = vunpack.c.l.b16 %v4498
    %v7030 = vunpack.c.h.b16 %v4498
    %v7031 = vunpack.c.l.b16 %v4499
    %v7032 = vunpack.c.h.b16 %v4499
    %v7033 = vunpack.c.l.b16 %v4500
    %v7034 = vunpack.c.h.b16 %v4500
    %v7035 = vunpack.c.l.b16 %v4501
    %v7036 = vunpack.c.h.b16 %v4501
    %v7037 = vunpack.c.l.b16 %v4502
    %v7038 = vunpack.c.h.b16 %v4502
    %v7039 = vunpack.c.l.b16 %v4503
    %v7040 = vunpack.c.h.b16 %v4503
    %v7041 = vunpack.c.l.b16 %v4504
    %v7042 = vunpack.c.h.b16 %v4504
    %v7043 = vunpack.c.l.b16 %v4505
    %v7044 = vunpack.c.h.b16 %v4505
    %v7045 = vunpack.c.l.b16 %v4506
    %v7046 = vunpack.c.h.b16 %v4506
    %v7047 = vunpack.c.l.b16 %v4507
    %v7048 = vunpack.c.h.b16 %v4507
    %v7049 = vunpack.c.l.b16 %v4508
    %v7050 = vunpack.c.h.b16 %v4508
    %v7051 = vunpack.c.l.b16 %v4509
    %v7052 = vunpack.c.h.b16 %v4509
    %v7053 = vunpack.c.l.b16 %v4510
    %v7054 = vunpack.c.h.b16 %v4510
    %v7055 = vunpack.c.l.b16 %v4511
    %v7056 = vunpack.c.h.b16 %v4511
    %v7057 = vunpack.c.l.b16 %v4512
    %v7058 = vunpack.c.h.b16 %v4512
    %v7059 = vunpack.c.l.b16 %v4513
    %v7060 = vunpack.c.h.b16 %v4513
    %v7061 = vunpack.c.l.b16 %v4514
    %v7062 = vunpack.c.h.b16 %v4514
    %v7063 = vunpack.c.l.b16 %v4515
    %v7064 = vunpack.c.h.b16 %v4515
    %v7065 = vunpack.c.l.b16 %v4516
    %v7066 = vunpack.c.h.b16 %v4516
    %v7067 = vunpack.c.l.b16 %v4517
    %v7068 = vunpack.c.h.b16 %v4517
    %v7069 = vunpack.c.l.b16 %v4518
    %v7070 = vunpack.c.h.b16 %v4518
    %v7071 = vunpack.c.l.b16 %v4519
    %v7072 = vunpack.c.h.b16 %v4519
    %v7073 = vunpack.c.l.b16 %v4520
    %v7074 = vunpack.c.h.b16 %v4520
    %v7075 = vunpack.c.l.b16 %v4521
    %v7076 = vunpack.c.h.b16 %v4521
    %v7077 = vunpack.c.l.b16 %v4522
    %v7078 = vunpack.c.h.b16 %v4522
    %v7079 = vunpack.c.l.b16 %v4523
    %v7080 = vunpack.c.h.b16 %v4523
    %v7081 = vunpack.c.l.b16 %v4524
    %v7082 = vunpack.c.h.b16 %v4524
    %v7083 = vunpack.c.l.b16 %v4525
    %v7084 = vunpack.c.h.b16 %v4525
    %v7085 = vunpack.c.l.b16 %v4526
    %v7086 = vunpack.c.h.b16 %v4526
    %v7087 = vunpack.c.l.b16 %v4527
    %v7088 = vunpack.c.h.b16 %v4527
    %v7089 = vunpack.c.l.b16 %v4528
    %v7090 = vunpack.c.h.b16 %v4528
    %v7091 = vunpack.c.l.b16 %v4529
    %v7092 = vunpack.c.h.b16 %v4529
    %v7093 = vunpack.c.l.b16 %v4530
    %v7094 = vunpack.c.h.b16 %v4530
    %v7095 = vunpack.c.l.b16 %v4531
    %v7096 = vunpack.c.h.b16 %v4531
    %v7097 = vunpack.c.l.b16 %v4532
    %v7098 = vunpack.c.h.b16 %v4532
    %v7099 = vunpack.c.l.b16 %v4533
    %v7100 = vunpack.c.h.b16 %v4533
    %v7101 = vunpack.c.l.b16 %v4534
    %v7102 = vunpack.c.h.b16 %v4534
    %v7103 = vunpack.c.l.b16 %v4535
    %v7104 = vunpack.c.h.b16 %v4535
    %v7105 = vunpack.c.l.b16 %v4536
    %v7106 = vunpack.c.h.b16 %v4536
    %v7107 = vunpack.c.l.b16 %v4537
    %v7108 = vunpack.c.h.b16 %v4537
    %v7109 = vunpack.c.l.b16 %v4538
    %v7110 = vunpack.c.h.b16 %v4538
    %v7111 = vunpack.c.l.b16 %v4539
    %v7112 = vunpack.c.h.b16 %v4539
    %v7113 = vunpack.c.l.b16 %v4540
    %v7114 = vunpack.c.h.b16 %v4540
    %v7115 = vunpack.c.l.b16 %v4541
    %v7116 = vunpack.c.h.b16 %v4541
    %v7117 = vunpack.c.l.b16 %v4542
    %v7118 = vunpack.c.h.b16 %v4542
    %v7119 = vunpack.c.l.b16 %v4543
    %v7120 = vunpack.c.h.b16 %v4543
    %v7121 = vunpack.c.l.b16 %v4544
    %v7122 = vunpack.c.h.b16 %v4544
    %v7123 = vunpack.c.l.b16 %v4545
    %v7124 = vunpack.c.h.b16 %v4545
    %v7125 = vunpack.c.l.b16 %v4546
    %v7126 = vunpack.c.h.b16 %v4546
    %v7127 = vunpack.c.l.b16 %v4547
    %v7128 = vunpack.c.h.b16 %v4547
    %v7129 = vunpack.c.l.b16 %v4548
    %v7130 = vunpack.c.h.b16 %v4548
    %v7131 = vunpack.c.l.b16 %v4549
    %v7132 = vunpack.c.h.b16 %v4549
    %v7133 = vunpack.c.l.b16 %v4550
    %v7134 = vunpack.c.h.b16 %v4550
    %v7135 = vunpack.c.l.b16 %v4551
    %v7136 = vunpack.c.h.b16 %v4551
    %v7137 = vunpack.c.l.b16 %v4552
    %v7138 = vunpack.c.h.b16 %v4552
    %v7139 = vunpack.c.l.b16 %v4553
    %v7140 = vunpack.c.h.b16 %v4553
    %v7141 = vunpack.c.l.b16 %v4554
    %v7142 = vunpack.c.h.b16 %v4554
    %v7143 = vunpack.c.l.b16 %v4555
    %v7144 = vunpack.c.h.b16 %v4555
    %v7145 = vunpack.c.l.b16 %v4556
    %v7146 = vunpack.c.h.b16 %v4556
    %v7147 = vunpack.c.l.b16 %v4557
    %v7148 = vunpack.c.h.b16 %v4557
    %v7149 = vunpack.c.l.b16 %v4558
    %v7150 = vunpack.c.h.b16 %v4558
    %v7151 = vunpack.c.l.b16 %v4559
    %v7152 = vunpack.c.h.b16 %v4559
    %v7153 = vunpack.c.l.b16 %v4560
    %v7154 = vunpack.c.h.b16 %v4560
    %v7155 = vunpack.c.l.b16 %v4561
    %v7156 = vunpack.c.h.b16 %v4561
    %v7157 = vunpack.c.l.b16 %v4562
    %v7158 = vunpack.c.h.b16 %v4562
    %v7159 = vunpack.c.l.b16 %v4563
    %v7160 = vunpack.c.h.b16 %v4563
    %v7161 = vunpack.c.l.b16 %v4564
    %v7162 = vunpack.c.h.b16 %v4564
    %v7163 = vunpack.c.l.b16 %v4565
    %v7164 = vunpack.c.h.b16 %v4565
    %v7165 = vunpack.c.l.b16 %v4566
    %v7166 = vunpack.c.h.b16 %v4566
    %v7167 = vunpack.c.l.b16 %v4567
    %v7168 = vunpack.c.h.b16 %v4567
    %v7169 = vunpack.c.l.b16 %v4568
    %v7170 = vunpack.c.h.b16 %v4568
    %v7171 = vunpack.c.l.b16 %v4569
    %v7172 = vunpack.c.h.b16 %v4569
    %v7173 = vunpack.c.l.b16 %v4570
    %v7174 = vunpack.c.h.b16 %v4570
    %v7175 = vunpack.c.l.b16 %v4571
    %v7176 = vunpack.c.h.b16 %v4571
    %v7177 = vunpack.c.l.b16 %v4572
    %v7178 = vunpack.c.h.b16 %v4572
    %v7179 = vunpack.c.l.b16 %v4573
    %v7180 = vunpack.c.h.b16 %v4573
    %v7181 = vunpack.c.l.b16 %v4574
    %v7182 = vunpack.c.h.b16 %v4574
    %v7183 = vunpack.c.l.b16 %v4575
    %v7184 = vunpack.c.h.b16 %v4575
    %v7185 = vunpack.c.l.b16 %v4576
    %v7186 = vunpack.c.h.b16 %v4576
    %v7187 = vunpack.c.l.b16 %v4577
    %v7188 = vunpack.c.h.b16 %v4577
    %v7189 = vunpack.c.l.b16 %v4578
    %v7190 = vunpack.c.h.b16 %v4578
    %v7191 = vunpack.c.l.b16 %v4579
    %v7192 = vunpack.c.h.b16 %v4579
    %v7193 = vunpack.c.l.b16 %v4580
    %v7194 = vunpack.c.h.b16 %v4580
    %v7195 = vunpack.c.l.b16 %v4581
    %v7196 = vunpack.c.h.b16 %v4581
    %v7197 = vunpack.c.l.b16 %v4582
    %v7198 = vunpack.c.h.b16 %v4582
    %v7199 = vunpack.c.l.b16 %v4583
    %v7200 = vunpack.c.h.b16 %v4583
    %v7201 = vunpack.c.l.b16 %v4584
    %v7202 = vunpack.c.h.b16 %v4584
    %v7203 = vunpack.c.l.b16 %v4585
    %v7204 = vunpack.c.h.b16 %v4585
    %v7205 = vunpack.c.l.b16 %v4586
    %v7206 = vunpack.c.h.b16 %v4586
    %v7207 = vunpack.c.l.b16 %v4587
    %v7208 = vunpack.c.h.b16 %v4587
    %v7209 = vunpack.c.l.b16 %v4588
    %v7210 = vunpack.c.h.b16 %v4588
    %v7211 = vunpack.c.l.b16 %v4589
    %v7212 = vunpack.c.h.b16 %v4589
    %v7213 = vunpack.c.l.b16 %v4590
    %v7214 = vunpack.c.h.b16 %v4590
    %v7215 = vunpack.c.l.b16 %v4591
    %v7216 = vunpack.c.h.b16 %v4591
    %v7217 = vunpack.c.l.b16 %v4592
    %v7218 = vunpack.c.h.b16 %v4592
    %v7219 = vunpack.c.l.b16 %v4593
    %v7220 = vunpack.c.h.b16 %v4593
    %v7221 = vunpack.c.l.b16 %v4594
    %v7222 = vunpack.c.h.b16 %v4594
    %v7223 = vunpack.c.l.b16 %v4595
    %v7224 = vunpack.c.h.b16 %v4595
    %v7225 = vunpack.c.l.b16 %v4596
    %v7226 = vunpack.c.h.b16 %v4596
    %v7227 = vunpack.c.l.b16 %v4597
    %v7228 = vunpack.c.h.b16 %v4597
    %v7229 = vunpack.c.l.b16 %v4598
    %v7230 = vunpack.c.h.b16 %v4598
    %v7231 = vunpack.c.l.b16 %v4599
    %v7232 = vunpack.c.h.b16 %v4599
    %v7233 = vunpack.c.l.b16 %v4600
    %v7234 = vunpack.c.h.b16 %v4600
    %v7235 = vunpack.c.l.b16 %v4601
    %v7236 = vunpack.c.h.b16 %v4601
    %v7237 = vunpack.c.l.b16 %v4602
    %v7238 = vunpack.c.h.b16 %v4602
    %v7239 = vunpack.c.l.b16 %v4603
    %v7240 = vunpack.c.h.b16 %v4603
    %v7241 = vunpack.c.l.b16 %v4604
    %v7242 = vunpack.c.h.b16 %v4604
    %v7243 = vunpack.c.l.b16 %v4605
    %v7244 = vunpack.c.h.b16 %v4605
    %v7245 = vunpack.c.l.b16 %v4606
    %v7246 = vunpack.c.h.b16 %v4606
    %v7247 = vunpack.c.l.b16 %v4607
    %v7248 = vunpack.c.h.b16 %v4607
    %v7249 = vunpack.c.l.b16 %v4608
    %v7250 = vunpack.c.h.b16 %v4608
    %v7251 = vunpack.c.l.b16 %v4609
    %v7252 = vunpack.c.h.b16 %v4609
    %v7253 = vunpack.c.l.b16 %v4610
    %v7254 = vunpack.c.h.b16 %v4610
    %v7255 = vunpack.c.l.b16 %v4611
    %v7256 = vunpack.c.h.b16 %v4611
    %v7257 = vunpack.c.l.b16 %v4612
    %v7258 = vunpack.c.h.b16 %v4612
    %v7259 = vunpack.c.l.b16 %v4613
    %v7260 = vunpack.c.h.b16 %v4613
    %v7261 = vunpack.c.l.b16 %v4614
    %v7262 = vunpack.c.h.b16 %v4614
    %v7263 = vunpack.c.l.b16 %v4615
    %v7264 = vunpack.c.h.b16 %v4615
    %v7265 = vunpack.c.l.b16 %v4616
    %v7266 = vunpack.c.h.b16 %v4616
    %v7267 = vunpack.c.l.b16 %v4617
    %v7268 = vunpack.c.h.b16 %v4617
    %v7269 = vunpack.c.l.b16 %v4618
    %v7270 = vunpack.c.h.b16 %v4618
    %v7271 = vunpack.c.l.b16 %v4619
    %v7272 = vunpack.c.h.b16 %v4619
    %v7273 = vunpack.c.l.b16 %v4620
    %v7274 = vunpack.c.h.b16 %v4620
    %v7275 = vunpack.c.l.b16 %v4621
    %v7276 = vunpack.c.h.b16 %v4621
    %v7277 = vunpack.c.l.b16 %v4622
    %v7278 = vunpack.c.h.b16 %v4622
    %v7279 = vunpack.c.l.b16 %v4623
    %v7280 = vunpack.c.h.b16 %v4623
    %v7281 = vunpack.c.l.b16 %v4624
    %v7282 = vunpack.c.h.b16 %v4624
    %v7283 = vunpack.c.l.b16 %v4625
    %v7284 = vunpack.c.h.b16 %v4625
    %v7285 = vunpack.c.l.b16 %v4626
    %v7286 = vunpack.c.h.b16 %v4626
    %v7287 = vunpack.c.l.b16 %v4627
    %v7288 = vunpack.c.h.b16 %v4627
    %v7289 = vunpack.c.l.b16 %v4628
    %v7290 = vunpack.c.h.b16 %v4628
    %v7291 = vunpack.c.l.b16 %v4629
    %v7292 = vunpack.c.h.b16 %v4629
    %v7293 = vunpack.c.l.b16 %v4630
    %v7294 = vunpack.c.h.b16 %v4630
    %v7295 = vunpack.c.l.b16 %v4631
    %v7296 = vunpack.c.h.b16 %v4631
    %v7297 = vunpack.c.l.b16 %v4632
    %v7298 = vunpack.c.h.b16 %v4632
    %v7299 = vunpack.c.l.b16 %v4633
    %v7300 = vunpack.c.h.b16 %v4633
    %v7301 = vunpack.c.l.b16 %v4634
    %v7302 = vunpack.c.h.b16 %v4634
    %v7303 = vunpack.c.l.b16 %v4635
    %v7304 = vunpack.c.h.b16 %v4635
    %v7305 = vunpack.c.l.b16 %v4636
    %v7306 = vunpack.c.h.b16 %v4636
    %v7307 = vunpack.c.l.b16 %v4637
    %v7308 = vunpack.c.h.b16 %v4637
    %v7309 = vunpack.c.l.b16 %v4638
    %v7310 = vunpack.c.h.b16 %v4638
    %v7311 = vunpack.c.l.b16 %v4639
    %v7312 = vunpack.c.h.b16 %v4639
    %v7313 = vunpack.c.l.b16 %v4640
    %v7314 = vunpack.c.h.b16 %v4640
    %v7315 = vunpack.c.l.b16 %v4641
    %v7316 = vunpack.c.h.b16 %v4641
    %v7317 = vunpack.c.l.b16 %v4642
    %v7318 = vunpack.c.h.b16 %v4642
    %v7319 = vunpack.c.l.b16 %v4643
    %v7320 = vunpack.c.h.b16 %v4643
    %v7321 = vunpack.c.l.b16 %v4644
    %v7322 = vunpack.c.h.b16 %v4644
    %v7323 = vunpack.c.l.b16 %v4645
    %v7324 = vunpack.c.h.b16 %v4645
    %v7325 = vunpack.c.l.b16 %v4646
    %v7326 = vunpack.c.h.b16 %v4646
    %v7327 = vunpack.c.l.b16 %v4647
    %v7328 = vunpack.c.h.b16 %v4647
    %v7329 = vunpack.c.l.b16 %v4648
    %v7330 = vunpack.c.h.b16 %v4648
    %v7331 = vunpack.c.l.b16 %v4649
    %v7332 = vunpack.c.h.b16 %v4649
    %v7333 = vunpack.c.l.b16 %v4650
    %v7334 = vunpack.c.h.b16 %v4650
    %v7335 = vunpack.c.l.b16 %v4651
    %v7336 = vunpack.c.h.b16 %v4651
    %v7337 = vunpack.c.l.b16 %v4652
    %v7338 = vunpack.c.h.b16 %v4652
    %v7339 = vunpack.c.l.b16 %v4653
    %v7340 = vunpack.c.h.b16 %v4653
    %v7341 = vunpack.c.l.b16 %v4654
    %v7342 = vunpack.c.h.b16 %v4654
    %v7343 = vunpack.c.l.b16 %v4655
    %v7344 = vunpack.c.h.b16 %v4655
    %v7345 = vunpack.c.l.b16 %v4656
    %v7346 = vunpack.c.h.b16 %v4656
    %v7347 = vunpack.c.l.b16 %v4657
    %v7348 = vunpack.c.h.b16 %v4657
    %v7349 = vunpack.c.l.b16 %v4658
    %v7350 = vunpack.c.h.b16 %v4658
    %v7351 = vunpack.c.l.b16 %v4659
    %v7352 = vunpack.c.h.b16 %v4659
    %v7353 = vunpack.c.l.b16 %v4660
    %v7354 = vunpack.c.h.b16 %v4660
    %v7355 = vunpack.c.l.b16 %v4661
    %v7356 = vunpack.c.h.b16 %v4661
    %v7357 = vunpack.c.l.b16 %v4662
    %v7358 = vunpack.c.h.b16 %v4662
    %v7359 = vunpack.c.l.b16 %v4663
    %v7360 = vunpack.c.h.b16 %v4663
    %v7361 = vunpack.c.l.b16 %v4664
    %v7362 = vunpack.c.h.b16 %v4664
    %v7363 = vunpack.c.l.b16 %v4665
    %v7364 = vunpack.c.h.b16 %v4665
    %v7365 = vunpack.c.l.b16 %v4666
    %v7366 = vunpack.c.h.b16 %v4666
    %v7367 = vunpack.c.l.b16 %v4667
    %v7368 = vunpack.c.h.b16 %v4667
    %v7369 = vunpack.c.l.b16 %v4668
    %v7370 = vunpack.c.h.b16 %v4668
    %v7371 = vunpack.c.l.b16 %v4669
    %v7372 = vunpack.c.h.b16 %v4669
    %v7373 = vunpack.c.l.b16 %v4670
    %v7374 = vunpack.c.h.b16 %v4670
    %v7375 = vunpack.c.l.b16 %v4671
    %v7376 = vunpack.c.h.b16 %v4671
    %v7377 = vunpack.c.l.b16 %v4672
    %v7378 = vunpack.c.h.b16 %v4672
    %v7379 = vunpack.c.l.b16 %v4673
    %v7380 = vunpack.c.h.b16 %v4673
    %v7381 = vunpack.c.l.b16 %v4674
    %v7382 = vunpack.c.h.b16 %v4674
    %v7383 = vunpack.c.l.b16 %v4675
    %v7384 = vunpack.c.h.b16 %v4675
    %v7385 = vunpack.c.l.b16 %v4676
    %v7386 = vunpack.c.h.b16 %v4676
    %v7387 = vunpack.c.l.b16 %v4677
    %v7388 = vunpack.c.h.b16 %v4677
    %v7389 = vunpack.c.l.b16 %v4678
    %v7390 = vunpack.c.h.b16 %v4678
    %v7391 = vunpack.c.l.b16 %v4679
    %v7392 = vunpack.c.h.b16 %v4679
    %v7393 = vunpack.c.l.b16 %v4680
    %v7394 = vunpack.c.h.b16 %v4680
    %v7395 = vunpack.c.l.b16 %v4681
    %v7396 = vunpack.c.h.b16 %v4681
    %v7397 = vunpack.c.l.b16 %v4682
    %v7398 = vunpack.c.h.b16 %v4682
    %v7399 = vunpack.c.l.b16 %v4683
    %v7400 = vunpack.c.h.b16 %v4683
    %v7401 = vunpack.c.l.b16 %v4684
    %v7402 = vunpack.c.h.b16 %v4684
    %v7403 = vunpack.c.l.b16 %v4685
    %v7404 = vunpack.c.h.b16 %v4685
    %v7405 = vunpack.c.l.b16 %v4686
    %v7406 = vunpack.c.h.b16 %v4686
    %v7407 = vunpack.c.l.b16 %v4687
    %v7408 = vunpack.c.h.b16 %v4687
    %v7409 = vunpack.c.l.b16 %v4688
    %v7410 = vunpack.c.h.b16 %v4688
    %v7411 = vunpack.c.l.b16 %v4689
    %v7412 = vunpack.c.h.b16 %v4689
    %v7413 = vunpack.c.l.b16 %v4690
    %v7414 = vunpack.c.h.b16 %v4690
    %v7415 = vunpack.c.l.b16 %v4691
    %v7416 = vunpack.c.h.b16 %v4691
    %v7417 = vunpack.c.l.b16 %v4692
    %v7418 = vunpack.c.h.b16 %v4692
    %v7419 = vunpack.c.l.b16 %v4693
    %v7420 = vunpack.c.h.b16 %v4693
    %v7421 = vunpack.c.l.b16 %v4694
    %v7422 = vunpack.c.h.b16 %v4694
    %v7423 = vunpack.c.l.b16 %v4695
    %v7424 = vunpack.c.h.b16 %v4695
    %v7425 = vunpack.c.l.b16 %v4696
    %v7426 = vunpack.c.h.b16 %v4696
    %v7427 = vunpack.c.l.b16 %v4697
    %v7428 = vunpack.c.h.b16 %v4697
    %v7429 = vunpack.c.l.b16 %v4698
    %v7430 = vunpack.c.h.b16 %v4698
    %v7431 = vunpack.c.l.b16 %v4699
    %v7432 = vunpack.c.h.b16 %v4699
    %v7433 = vunpack.c.l.b16 %v4700
    %v7434 = vunpack.c.h.b16 %v4700
    %v7435 = vunpack.c.l.b16 %v4701
    %v7436 = vunpack.c.h.b16 %v4701
    %v7437 = vunpack.c.l.b16 %v4702
    %v7438 = vunpack.c.h.b16 %v4702
    %v7439 = vunpack.c.l.b16 %v4703
    %v7440 = vunpack.c.h.b16 %v4703
    %v7441 = vunpack.c.l.b16 %v4704
    %v7442 = vunpack.c.h.b16 %v4704
    %v7443 = vunpack.c.l.b16 %v4705
    %v7444 = vunpack.c.h.b16 %v4705
    %v7445 = vunpack.c.l.b16 %v4706
    %v7446 = vunpack.c.h.b16 %v4706
    %v7447 = vunpack.c.l.b16 %v4707
    %v7448 = vunpack.c.h.b16 %v4707
    %v7449 = vunpack.c.l.b16 %v4708
    %v7450 = vunpack.c.h.b16 %v4708
    %v7451 = vunpack.c.l.b16 %v4709
    %v7452 = vunpack.c.h.b16 %v4709
    %v7453 = vunpack.c.l.b16 %v4710
    %v7454 = vunpack.c.h.b16 %v4710
    %v7455 = vunpack.c.l.b16 %v4711
    %v7456 = vunpack.c.h.b16 %v4711
    %v7457 = vunpack.c.l.b16 %v4712
    %v7458 = vunpack.c.h.b16 %v4712
    %v7459 = vunpack.c.l.b16 %v4713
    %v7460 = vunpack.c.h.b16 %v4713
    %v7461 = vunpack.c.l.b16 %v4714
    %v7462 = vunpack.c.h.b16 %v4714
    %v7463 = vunpack.c.l.b16 %v4715
    %v7464 = vunpack.c.h.b16 %v4715
    %v7465 = vunpack.c.l.b16 %v4716
    %v7466 = vunpack.c.h.b16 %v4716
    %v7467 = vunpack.c.l.b16 %v4717
    %v7468 = vunpack.c.h.b16 %v4717
    %v7469 = vunpack.c.l.b16 %v4718
    %v7470 = vunpack.c.h.b16 %v4718
    %v7471 = vunpack.c.l.b16 %v4719
    %v7472 = vunpack.c.h.b16 %v4719
    %v7473 = vunpack.c.l.b16 %v4720
    %v7474 = vunpack.c.h.b16 %v4720
    %v7475 = vunpack.c.l.b16 %v4721
    %v7476 = vunpack.c.h.b16 %v4721
    %v7477 = vunpack.c.l.b16 %v4722
    %v7478 = vunpack.c.h.b16 %v4722
    %v7479 = vunpack.c.l.b16 %v4723
    %v7480 = vunpack.c.h.b16 %v4723
    %v7481 = vunpack.c.l.b16 %v4724
    %v7482 = vunpack.c.h.b16 %v4724
    %v7483 = vunpack.c.l.b16 %v4725
    %v7484 = vunpack.c.h.b16 %v4725
    %v7485 = vunpack.c.l.b16 %v4726
    %v7486 = vunpack.c.h.b16 %v4726
    %v7487 = vunpack.c.l.b16 %v4727
    %v7488 = vunpack.c.h.b16 %v4727
    %v7489 = vunpack.c.l.b16 %v4728
    %v7490 = vunpack.c.h.b16 %v4728
    %v7491 = vunpack.c.l.b16 %v4729
    %v7492 = vunpack.c.h.b16 %v4729
    %v7493 = vunpack.c.l.b16 %v4730
    %v7494 = vunpack.c.h.b16 %v4730
    %v7495 = vunpack.c.l.b16 %v4731
    %v7496 = vunpack.c.h.b16 %v4731
    %v7497 = vunpack.c.l.b16 %v4732
    %v7498 = vunpack.c.h.b16 %v4732
    %v7499 = vunpack.c.l.b16 %v4733
    %v7500 = vunpack.c.h.b16 %v4733
    %v7501 = vunpack.c.l.b16 %v4734
    %v7502 = vunpack.c.h.b16 %v4734
    %v7503 = vunpack.c.l.b16 %v4735
    %v7504 = vunpack.c.h.b16 %v4735
    %v7505 = vunpack.c.l.b16 %v4736
    %v7506 = vunpack.c.h.b16 %v4736
    %v7507 = vunpack.c.l.b16 %v4737
    %v7508 = vunpack.c.h.b16 %v4737
    %v7509 = vunpack.c.l.b16 %v4738
    %v7510 = vunpack.c.h.b16 %v4738
    %v7511 = vunpack.c.l.b16 %v4739
    %v7512 = vunpack.c.h.b16 %v4739
    %v7513 = vunpack.c.l.b16 %v4740
    %v7514 = vunpack.c.h.b16 %v4740
    %v7515 = vunpack.c.l.b16 %v4741
    %v7516 = vunpack.c.h.b16 %v4741
    %v7517 = vunpack.c.l.b16 %v4742
    %v7518 = vunpack.c.h.b16 %v4742
    %v7519 = vunpack.c.l.b16 %v4743
    %v7520 = vunpack.c.h.b16 %v4743
    %v7521 = vunpack.c.l.b16 %v4744
    %v7522 = vunpack.c.h.b16 %v4744
    %v7523 = vunpack.c.l.b16 %v4745
    %v7524 = vunpack.c.h.b16 %v4745
    %v7525 = vunpack.c.l.b16 %v4746
    %v7526 = vunpack.c.h.b16 %v4746
    %v7527 = vunpack.c.l.b16 %v4747
    %v7528 = vunpack.c.h.b16 %v4747
    %v7529 = vunpack.c.l.b16 %v4748
    %v7530 = vunpack.c.h.b16 %v4748
    %v7531 = vunpack.c.l.b16 %v4749
    %v7532 = vunpack.c.h.b16 %v4749
    %v7533 = vunpack.c.l.b16 %v4750
    %v7534 = vunpack.c.h.b16 %v4750
    %v7535 = vunpack.c.l.b16 %v4751
    %v7536 = vunpack.c.h.b16 %v4751
    %v7537 = vunpack.c.l.b16 %v4752
    %v7538 = vunpack.c.h.b16 %v4752
    %v7539 = vunpack.c.l.b16 %v4753
    %v7540 = vunpack.c.h.b16 %v4753
    %v7541 = vunpack.c.l.b16 %v4754
    %v7542 = vunpack.c.h.b16 %v4754
    %v7543 = vunpack.c.l.b16 %v4755
    %v7544 = vunpack.c.h.b16 %v4755
    %v7545 = vunpack.c.l.b16 %v4756
    %v7546 = vunpack.c.h.b16 %v4756
    %v7547 = vunpack.c.l.b16 %v4757
    %v7548 = vunpack.c.h.b16 %v4757
    %v7549 = vunpack.c.l.b16 %v4758
    %v7550 = vunpack.c.h.b16 %v4758
    %v7551 = vunpack.c.l.b16 %v4759
    %v7552 = vunpack.c.h.b16 %v4759
    %v7553 = vunpack.c.l.b16 %v4760
    %v7554 = vunpack.c.h.b16 %v4760
    %v7555 = vunpack.c.l.b16 %v4761
    %v7556 = vunpack.c.h.b16 %v4761
    %v7557 = vunpack.c.l.b16 %v4762
    %v7558 = vunpack.c.h.b16 %v4762
    %v7559 = vunpack.c.l.b16 %v4763
    %v7560 = vunpack.c.h.b16 %v4763
    %v7561 = vunpack.c.l.b16 %v4764
    %v7562 = vunpack.c.h.b16 %v4764
    %v7563 = vunpack.c.l.b16 %v4765
    %v7564 = vunpack.c.h.b16 %v4765
    %v7565 = vunpack.c.l.b16 %v4766
    %v7566 = vunpack.c.h.b16 %v4766
    %v7567 = vunpack.c.l.b16 %v4767
    %v7568 = vunpack.c.h.b16 %v4767
    %v7569 = vunpack.c.l.b16 %v4768
    %v7570 = vunpack.c.h.b16 %v4768
    %v7571 = vunpack.c.l.b16 %v4769
    %v7572 = vunpack.c.h.b16 %v4769
    %v7573 = vunpack.c.l.b16 %v4770
    %v7574 = vunpack.c.h.b16 %v4770
    %v7575 = vunpack.c.l.b16 %v4771
    %v7576 = vunpack.c.h.b16 %v4771
    %v7577 = vunpack.c.l.b16 %v4772
    %v7578 = vunpack.c.h.b16 %v4772
    %v7579 = vunpack.c.l.b16 %v4773
    %v7580 = vunpack.c.h.b16 %v4773
    %v7581 = vunpack.c.l.b16 %v4774
    %v7582 = vunpack.c.h.b16 %v4774
    %v7583 = vunpack.c.l.b16 %v4775
    %v7584 = vunpack.c.h.b16 %v4775
    %v7585 = vunpack.c.l.b16 %v4776
    %v7586 = vunpack.c.h.b16 %v4776
    %v7587 = vunpack.c.l.b16 %v4777
    %v7588 = vunpack.c.h.b16 %v4777
    %v7589 = vunpack.c.l.b16 %v4778
    %v7590 = vunpack.c.h.b16 %v4778
    %v7591 = vunpack.c.l.b16 %v4779
    %v7592 = vunpack.c.h.b16 %v4779
    %v7593 = vunpack.c.l.b16 %v4780
    %v7594 = vunpack.c.h.b16 %v4780
    %v7595 = vunpack.c.l.b16 %v4781
    %v7596 = vunpack.c.h.b16 %v4781
    %v7597 = vunpack.c.l.b16 %v4782
    %v7598 = vunpack.c.h.b16 %v4782
    %v7599 = vunpack.c.l.b16 %v4783
    %v7600 = vunpack.c.h.b16 %v4783
    %v7601 = vunpack.c.l.b16 %v4784
    %v7602 = vunpack.c.h.b16 %v4784
    %v7603 = vunpack.c.l.b16 %v4785
    %v7604 = vunpack.c.h.b16 %v4785
    %v7605 = vunpack.c.l.b16 %v4786
    %v7606 = vunpack.c.h.b16 %v4786
    %v7607 = vunpack.c.l.b16 %v4787
    %v7608 = vunpack.c.h.b16 %v4787
    %v7609 = vunpack.c.l.b16 %v4788
    %v7610 = vunpack.c.h.b16 %v4788
    %v7611 = vunpack.c.l.b16 %v4789
    %v7612 = vunpack.c.h.b16 %v4789
    %v7613 = vunpack.c.l.b16 %v4790
    %v7614 = vunpack.c.h.b16 %v4790
    %v7615 = vunpack.c.l.b16 %v4791
    %v7616 = vunpack.c.h.b16 %v4791
    %v7617 = vunpack.c.l.b16 %v4792
    %v7618 = vunpack.c.h.b16 %v4792
    %v7619 = vunpack.c.l.b16 %v4793
    %v7620 = vunpack.c.h.b16 %v4793
    %v7621 = vunpack.c.l.b16 %v4794
    %v7622 = vunpack.c.h.b16 %v4794
    %v7623 = vunpack.c.l.b16 %v4795
    %v7624 = vunpack.c.h.b16 %v4795
    %v7625 = vunpack.c.l.b16 %v4796
    %v7626 = vunpack.c.h.b16 %v4796
    %v7627 = vunpack.c.l.b16 %v4797
    %v7628 = vunpack.c.h.b16 %v4797
    %v7629 = vunpack.c.l.b16 %v4798
    %v7630 = vunpack.c.h.b16 %v4798
    %v7631 = vunpack.c.l.b16 %v4799
    %v7632 = vunpack.c.h.b16 %v4799
    %v7633 = vunpack.c.l.b16 %v4800
    %v7634 = vunpack.c.h.b16 %v4800
    %v7635 = vunpack.c.l.b16 %v4801
    %v7636 = vunpack.c.h.b16 %v4801
    %v7637 = vunpack.c.l.b16 %v4802
    %v7638 = vunpack.c.h.b16 %v4802
    %v7639 = vunpack.c.l.b16 %v4803
    %v7640 = vunpack.c.h.b16 %v4803
    %v7641 = vunpack.c.l.b16 %v4804
    %v7642 = vunpack.c.h.b16 %v4804
    %v7643 = vunpack.c.l.b16 %v4805
    %v7644 = vunpack.c.h.b16 %v4805
    %v7645 = vunpack.c.l.b16 %v4806
    %v7646 = vunpack.c.h.b16 %v4806
    %v7647 = vunpack.c.l.b16 %v4807
    %v7648 = vunpack.c.h.b16 %v4807
    %v7649 = vunpack.c.l.b16 %v4808
    %v7650 = vunpack.c.h.b16 %v4808
    %v7651 = vunpack.c.l.b16 %v4809
    %v7652 = vunpack.c.h.b16 %v4809
    %v7653 = vunpack.c.l.b16 %v4810
    %v7654 = vunpack.c.h.b16 %v4810
    %v7655 = vunpack.c.l.b16 %v4811
    %v7656 = vunpack.c.h.b16 %v4811
    %v7657 = vunpack.c.l.b16 %v4812
    %v7658 = vunpack.c.h.b16 %v4812
    %v7659 = vunpack.c.l.b16 %v4813
    %v7660 = vunpack.c.h.b16 %v4813
    %v7661 = vunpack.c.l.b16 %v4814
    %v7662 = vunpack.c.h.b16 %v4814
    %v7663 = vunpack.c.l.b16 %v4815
    %v7664 = vunpack.c.h.b16 %v4815
    %v7665 = vunpack.c.l.b16 %v4816
    %v7666 = vunpack.c.h.b16 %v4816
    %v7667 = vunpack.c.l.b16 %v4817
    %v7668 = vunpack.c.h.b16 %v4817
    %v7669 = vunpack.c.l.b16 %v4818
    %v7670 = vunpack.c.h.b16 %v4818
    %v7671 = vunpack.c.l.b16 %v4819
    %v7672 = vunpack.c.h.b16 %v4819
    %v7673 = vunpack.c.l.b16 %v4820
    %v7674 = vunpack.c.h.b16 %v4820
    %v7675 = vunpack.c.l.b16 %v4821
    %v7676 = vunpack.c.h.b16 %v4821
    %v7677 = vunpack.c.l.b16 %v4822
    %v7678 = vunpack.c.h.b16 %v4822
    %v7679 = vunpack.c.l.b16 %v4823
    %v7680 = vunpack.c.h.b16 %v4823
    %v7681 = vunpack.c.l.b16 %v4824
    %v7682 = vunpack.c.h.b16 %v4824
    %v7683 = vunpack.c.l.b16 %v4825
    %v7684 = vunpack.c.h.b16 %v4825
    %v7685 = vunpack.c.l.b16 %v4826
    %v7686 = vunpack.c.h.b16 %v4826
    %v7687 = vunpack.c.l.b16 %v4827
    %v7688 = vunpack.c.h.b16 %v4827
    %v7689 = vunpack.c.l.b16 %v4828
    %v7690 = vunpack.c.h.b16 %v4828
    %v7691 = vunpack.c.l.b16 %v4829
    %v7692 = vunpack.c.h.b16 %v4829
    %v7693 = vunpack.c.l.b16 %v4830
    %v7694 = vunpack.c.h.b16 %v4830
    %v7695 = vunpack.c.l.b16 %v4831
    %v7696 = vunpack.c.h.b16 %v4831
    %v7697 = vunpack.c.l.b16 %v4832
    %v7698 = vunpack.c.h.b16 %v4832
    %v7699 = vunpack.c.l.b16 %v4833
    %v7700 = vunpack.c.h.b16 %v4833
    %v7701 = vunpack.c.l.b16 %v4834
    %v7702 = vunpack.c.h.b16 %v4834
    %v7703 = vunpack.c.l.b16 %v4835
    %v7704 = vunpack.c.h.b16 %v4835
    %v7705 = vunpack.c.l.b16 %v4836
    %v7706 = vunpack.c.h.b16 %v4836
    %v7707 = vunpack.c.l.b16 %v4837
    %v7708 = vunpack.c.h.b16 %v4837
    %v7709 = vunpack.c.l.b16 %v4838
    %v7710 = vunpack.c.h.b16 %v4838
    %v7711 = vunpack.c.l.b16 %v4839
    %v7712 = vunpack.c.h.b16 %v4839
    %v7713 = vunpack.c.l.b16 %v4840
    %v7714 = vunpack.c.h.b16 %v4840
    %v7715 = vunpack.c.l.b16 %v4841
    %v7716 = vunpack.c.h.b16 %v4841
    %v7717 = vunpack.c.l.b16 %v4842
    %v7718 = vunpack.c.h.b16 %v4842
    %v7719 = vunpack.c.l.b16 %v4843
    %v7720 = vunpack.c.h.b16 %v4843
    %v7721 = vunpack.c.l.b16 %v4844
    %v7722 = vunpack.c.h.b16 %v4844
    %v7723 = vunpack.c.l.b16 %v4845
    %v7724 = vunpack.c.h.b16 %v4845
    %v7725 = vunpack.c.l.b16 %v4846
    %v7726 = vunpack.c.h.b16 %v4846
    %v7727 = vunpack.c.l.b16 %v4847
    %v7728 = vunpack.c.h.b16 %v4847
    %v7729 = vunpack.c.l.b16 %v4848
    %v7730 = vunpack.c.h.b16 %v4848
    %v7731 = vunpack.c.l.b16 %v4849
    %v7732 = vunpack.c.h.b16 %v4849
    %v7733 = vunpack.c.l.b16 %v4850
    %v7734 = vunpack.c.h.b16 %v4850
    %v7735 = vunpack.c.l.b16 %v4851
    %v7736 = vunpack.c.h.b16 %v4851
    %v7737 = vunpack.c.l.b16 %v4852
    %v7738 = vunpack.c.h.b16 %v4852
    %v7739 = vunpack.c.l.b16 %v4853
    %v7740 = vunpack.c.h.b16 %v4853
    %v7741 = vunpack.c.l.b16 %v4854
    %v7742 = vunpack.c.h.b16 %v4854
    %v7743 = vunpack.c.l.b16 %v4855
    %v7744 = vunpack.c.h.b16 %v4855
    %v7745 = vunpack.c.l.b16 %v4856
    %v7746 = vunpack.c.h.b16 %v4856
    %v7747 = vunpack.c.l.b16 %v4857
    %v7748 = vunpack.c.h.b16 %v4857
    %v7749 = vunpack.c.l.b16 %v4858
    %v7750 = vunpack.c.h.b16 %v4858
    %v7751 = vunpack.c.l.b16 %v4859
    %v7752 = vunpack.c.h.b16 %v4859
    %v7753 = vunpack.c.l.b16 %v4860
    %v7754 = vunpack.c.h.b16 %v4860
    %v7755 = vunpack.c.l.b16 %v4861
    %v7756 = vunpack.c.h.b16 %v4861
    %v7757 = vunpack.c.l.b16 %v4862
    %v7758 = vunpack.c.h.b16 %v4862
    %v7759 = vunpack.c.l.b16 %v4863
    %v7760 = vunpack.c.h.b16 %v4863
    %v7761 = vunpack.c.l.b16 %v4864
    %v7762 = vunpack.c.h.b16 %v4864
    %v7763 = vunpack.c.l.b16 %v4865
    %v7764 = vunpack.c.h.b16 %v4865
    %v7765 = vunpack.c.l.b16 %v4866
    %v7766 = vunpack.c.h.b16 %v4866
    %v7767 = vunpack.c.l.b16 %v4867
    %v7768 = vunpack.c.h.b16 %v4867
    %v7769 = vunpack.c.l.b16 %v4868
    %v7770 = vunpack.c.h.b16 %v4868
    %v7771 = vunpack.c.l.b16 %v4869
    %v7772 = vunpack.c.h.b16 %v4869
    %v7773 = vunpack.c.l.b16 %v4870
    %v7774 = vunpack.c.h.b16 %v4870
    %v7775 = vunpack.c.l.b16 %v4871
    %v7776 = vunpack.c.h.b16 %v4871
    %v7777 = vunpack.c.l.b16 %v4872
    %v7778 = vunpack.c.h.b16 %v4872
    %v7779 = vunpack.c.l.b16 %v4873
    %v7780 = vunpack.c.h.b16 %v4873
    %v7781 = vunpack.c.l.b16 %v4874
    %v7782 = vunpack.c.h.b16 %v4874
    %v7783 = vunpack.c.l.b16 %v4875
    %v7784 = vunpack.c.h.b16 %v4875
    %v7785 = vunpack.c.l.b16 %v4876
    %v7786 = vunpack.c.h.b16 %v4876
    %v7787 = vunpack.c.l.b16 %v4877
    %v7788 = vunpack.c.h.b16 %v4877
    %v7789 = vunpack.c.l.b16 %v4878
    %v7790 = vunpack.c.h.b16 %v4878
    %v7791 = vunpack.c.l.b16 %v4879
    %v7792 = vunpack.c.h.b16 %v4879
    %v7793 = vunpack.c.l.b16 %v4880
    %v7794 = vunpack.c.h.b16 %v4880
    %v7795 = vunpack.c.l.b16 %v4881
    %v7796 = vunpack.c.h.b16 %v4881
    %v7797 = vunpack.c.l.b16 %v4882
    %v7798 = vunpack.c.h.b16 %v4882
    %v7799 = vunpack.c.l.b16 %v4883
    %v7800 = vunpack.c.h.b16 %v4883
    %v7801 = vunpack.c.l.b16 %v4884
    %v7802 = vunpack.c.h.b16 %v4884
    %v7803 = vunpack.c.l.b16 %v4885
    %v7804 = vunpack.c.h.b16 %v4885
    %v7805 = vunpack.c.l.b16 %v4886
    %v7806 = vunpack.c.h.b16 %v4886
    %v7807 = vunpack.c.l.b16 %v4887
    %v7808 = vunpack.c.h.b16 %v4887
    %v7809 = vunpack.c.l.b16 %v4888
    %v7810 = vunpack.c.h.b16 %v4888
    %v7811 = vunpack.c.l.b16 %v4889
    %v7812 = vunpack.c.h.b16 %v4889
    %v7813 = vunpack.c.l.b16 %v4890
    %v7814 = vunpack.c.h.b16 %v4890
    %v7815 = vunpack.c.l.b16 %v4891
    %v7816 = vunpack.c.h.b16 %v4891
    %v7817 = vunpack.c.l.b16 %v4892
    %v7818 = vunpack.c.h.b16 %v4892
    %v7819 = vunpack.c.l.b16 %v4893
    %v7820 = vunpack.c.h.b16 %v4893
    %v7821 = vunpack.c.l.b16 %v4894
    %v7822 = vunpack.c.h.b16 %v4894
    %v7823 = vunpack.c.l.b16 %v4895
    %v7824 = vunpack.c.h.b16 %v4895
    %v7825 = vunpack.c.l.b16 %v4896
    %v7826 = vunpack.c.h.b16 %v4896
    %v7827 = vunpack.c.l.b16 %v4897
    %v7828 = vunpack.c.h.b16 %v4897
    %v7829 = vunpack.c.l.b16 %v4898
    %v7830 = vunpack.c.h.b16 %v4898
    %v7831 = vunpack.c.l.b16 %v4899
    %v7832 = vunpack.c.h.b16 %v4899
    %v7833 = vunpack.c.l.b16 %v4900
    %v7834 = vunpack.c.h.b16 %v4900
    %v7835 = vunpack.c.l.b16 %v4901
    %v7836 = vunpack.c.h.b16 %v4901
    %v7837 = vunpack.c.l.b16 %v4902
    %v7838 = vunpack.c.h.b16 %v4902
    %v7839 = vunpack.c.l.b16 %v4903
    %v7840 = vunpack.c.h.b16 %v4903
    %v7841 = vunpack.c.l.b16 %v4904
    %v7842 = vunpack.c.h.b16 %v4904
    %v7843 = vunpack.c.l.b16 %v4905
    %v7844 = vunpack.c.h.b16 %v4905
    %v7845 = vunpack.c.l.b16 %v4906
    %v7846 = vunpack.c.h.b16 %v4906
    %v7847 = vunpack.c.l.b16 %v4907
    %v7848 = vunpack.c.h.b16 %v4907
    %v7849 = vunpack.c.l.b16 %v4908
    %v7850 = vunpack.c.h.b16 %v4908
    %v7851 = vunpack.c.l.b16 %v4909
    %v7852 = vunpack.c.h.b16 %v4909
    %v7853 = vunpack.c.l.b16 %v4910
    %v7854 = vunpack.c.h.b16 %v4910
    %v7855 = vunpack.c.l.b16 %v4911
    %v7856 = vunpack.c.h.b16 %v4911
    %v7857 = vunpack.c.l.b16 %v4912
    %v7858 = vunpack.c.h.b16 %v4912
    %v7859 = vunpack.c.l.b16 %v4913
    %v7860 = vunpack.c.h.b16 %v4913
    %v7861 = vunpack.c.l.b16 %v4914
    %v7862 = vunpack.c.h.b16 %v4914
    %v7863 = vunpack.c.l.b16 %v4915
    %v7864 = vunpack.c.h.b16 %v4915
    %v7865 = vunpack.c.l.b16 %v4916
    %v7866 = vunpack.c.h.b16 %v4916
    %v7867 = vunpack.c.l.b16 %v4917
    %v7868 = vunpack.c.h.b16 %v4917
    %v7869 = vunpack.c.l.b16 %v4918
    %v7870 = vunpack.c.h.b16 %v4918
    %v7871 = vunpack.c.l.b16 %v4919
    %v7872 = vunpack.c.h.b16 %v4919
    %v7873 = vunpack.c.l.b16 %v4920
    %v7874 = vunpack.c.h.b16 %v4920
    %v7875 = vunpack.c.l.b16 %v4921
    %v7876 = vunpack.c.h.b16 %v4921
    %v7877 = vunpack.c.l.b16 %v4922
    %v7878 = vunpack.c.h.b16 %v4922
    %v7879 = vunpack.c.l.b16 %v4923
    %v7880 = vunpack.c.h.b16 %v4923
    %v7881 = vunpack.c.l.b16 %v4924
    %v7882 = vunpack.c.h.b16 %v4924
    %v7883 = vunpack.c.l.b16 %v4925
    %v7884 = vunpack.c.h.b16 %v4925
    %v7885 = vunpack.c.l.b16 %v4926
    %v7886 = vunpack.c.h.b16 %v4926
    %v7887 = vunpack.c.l.b16 %v4927
    %v7888 = vunpack.c.h.b16 %v4927
    %v7889 = vunpack.c.l.b16 %v4928
    %v7890 = vunpack.c.h.b16 %v4928
    %v7891 = vunpack.c.l.b16 %v4929
    %v7892 = vunpack.c.h.b16 %v4929
    %v7893 = vunpack.c.l.b16 %v4930
    %v7894 = vunpack.c.h.b16 %v4930
    %v7895 = vunpack.c.l.b16 %v4931
    %v7896 = vunpack.c.h.b16 %v4931
    %v7897 = vunpack.c.l.b16 %v4932
    %v7898 = vunpack.c.h.b16 %v4932
    %v7899 = vunpack.c.l.b16 %v4933
    %v7900 = vunpack.c.h.b16 %v4933
    %v7901 = vunpack.c.l.b16 %v4934
    %v7902 = vunpack.c.h.b16 %v4934
    %v7903 = vunpack.c.l.b16 %v4935
    %v7904 = vunpack.c.h.b16 %v4935
    %v7905 = vunpack.c.l.b16 %v4936
    %v7906 = vunpack.c.h.b16 %v4936
    %v7907 = vunpack.c.l.b16 %v4937
    %v7908 = vunpack.c.h.b16 %v4937
    %v7909 = vunpack.c.l.b16 %v4938
    %v7910 = vunpack.c.h.b16 %v4938
    %v7911 = vunpack.c.l.b16 %v4939
    %v7912 = vunpack.c.h.b16 %v4939
    %v7913 = vunpack.c.l.b16 %v4940
    %v7914 = vunpack.c.h.b16 %v4940
    %v7915 = vunpack.c.l.b16 %v4941
    %v7916 = vunpack.c.h.b16 %v4941
    %v7917 = vunpack.c.l.b16 %v4942
    %v7918 = vunpack.c.h.b16 %v4942
    %v7919 = vunpack.c.l.b16 %v4943
    %v7920 = vunpack.c.h.b16 %v4943
    %v7921 = vunpack.c.l.b16 %v4944
    %v7922 = vunpack.c.h.b16 %v4944
    %v7923 = vunpack.c.l.b16 %v4945
    %v7924 = vunpack.c.h.b16 %v4945
    %v7925 = vunpack.c.l.b16 %v4946
    %v7926 = vunpack.c.h.b16 %v4946
    %v7927 = vunpack.c.l.b16 %v4947
    %v7928 = vunpack.c.h.b16 %v4947
    %v7929 = vunpack.c.l.b16 %v4948
    %v7930 = vunpack.c.h.b16 %v4948
    %v7931 = vunpack.c.l.b16 %v4949
    %v7932 = vunpack.c.h.b16 %v4949
    %v7933 = vunpack.c.l.b16 %v4950
    %v7934 = vunpack.c.h.b16 %v4950
    %v7935 = vunpack.c.l.b16 %v4951
    %v7936 = vunpack.c.h.b16 %v4951
    %v7937 = vunpack.c.l.b16 %v4952
    %v7938 = vunpack.c.h.b16 %v4952
    %v7939 = vunpack.c.l.b16 %v4953
    %v7940 = vunpack.c.h.b16 %v4953
    %v7941 = vunpack.c.l.b16 %v4954
    %v7942 = vunpack.c.h.b16 %v4954
    %v7943 = vunpack.c.l.b16 %v4955
    %v7944 = vunpack.c.h.b16 %v4955
    %v7945 = vunpack.c.l.b16 %v4956
    %v7946 = vunpack.c.h.b16 %v4956
    %v7947 = vunpack.c.l.b16 %v4957
    %v7948 = vunpack.c.h.b16 %v4957
    %v7949 = vunpack.c.l.b16 %v4958
    %v7950 = vunpack.c.h.b16 %v4958
    %v7951 = vunpack.c.l.b16 %v4959
    %v7952 = vunpack.c.h.b16 %v4959
    %v7953 = vunpack.c.l.b16 %v4960
    %v7954 = vunpack.c.h.b16 %v4960
    %v7955 = vunpack.c.l.b16 %v4961
    %v7956 = vunpack.c.h.b16 %v4961
    %v7957 = vunpack.c.l.b16 %v4962
    %v7958 = vunpack.c.h.b16 %v4962
    %v7959 = vunpack.c.l.b16 %v4963
    %v7960 = vunpack.c.h.b16 %v4963
    %v7961 = vunpack.c.l.b16 %v4964
    %v7962 = vunpack.c.h.b16 %v4964
    %v7963 = vunpack.c.l.b16 %v4965
    %v7964 = vunpack.c.h.b16 %v4965
    %v7965 = vunpack.c.l.b16 %v4966
    %v7966 = vunpack.c.h.b16 %v4966
    %v7967 = vunpack.c.l.b16 %v4967
    %v7968 = vunpack.c.h.b16 %v4967
    %v7969 = vunpack.c.l.b16 %v4968
    %v7970 = vunpack.c.h.b16 %v4968
    %v7971 = vunpack.c.l.b16 %v4969
    %v7972 = vunpack.c.h.b16 %v4969
    %v7973 = vunpack.c.l.b16 %v4970
    %v7974 = vunpack.c.h.b16 %v4970
    %v7975 = vunpack.c.l.b16 %v4971
    %v7976 = vunpack.c.h.b16 %v4971
    %v7977 = vunpack.c.l.b16 %v4972
    %v7978 = vunpack.c.h.b16 %v4972
    %v7979 = vunpack.c.l.b16 %v4973
    %v7980 = vunpack.c.h.b16 %v4973
    %v7981 = vunpack.c.l.b16 %v4974
    %v7982 = vunpack.c.h.b16 %v4974
    %v7983 = vunpack.c.l.b16 %v4975
    %v7984 = vunpack.c.h.b16 %v4975
    %v7985 = vunpack.c.l.b16 %v4976
    %v7986 = vunpack.c.h.b16 %v4976
    %v7987 = vunpack.c.l.b16 %v4977
    %v7988 = vunpack.c.h.b16 %v4977
    %v7989 = vunpack.c.l.b16 %v4978
    %v7990 = vunpack.c.h.b16 %v4978
    %v7991 = vunpack.c.l.b16 %v4979
    %v7992 = vunpack.c.h.b16 %v4979
    %v7993 = vunpack.c.l.b16 %v4980
    %v7994 = vunpack.c.h.b16 %v4980
    %v7995 = vunpack.c.l.b16 %v4981
    %v7996 = vunpack.c.h.b16 %v4981
    %v7997 = vunpack.c.l.b16 %v4982
    %v7998 = vunpack.c.h.b16 %v4982
    %v7999 = vunpack.c.l.b16 %v4983
    %v8000 = vunpack.c.h.b16 %v4983
    %v8001 = vunpack.c.l.b16 %v4984
    %v8002 = vunpack.c.h.b16 %v4984
    %v8003 = vunpack.c.l.b16 %v4985
    %v8004 = vunpack.c.h.b16 %v4985
    %v8005 = vunpack.c.l.b16 %v4986
    %v8006 = vunpack.c.h.b16 %v4986
    %v8007 = vunpack.c.l.b16 %v4987
    %v8008 = vunpack.c.h.b16 %v4987
    %v8009 = vunpack.c.l.b16 %v4988
    %v8010 = vunpack.c.h.b16 %v4988
    %v8011 = vunpack.c.l.b16 %v4989
    %v8012 = vunpack.c.h.b16 %v4989
    %v8013 = vunpack.c.l.b16 %v4990
    %v8014 = vunpack.c.h.b16 %v4990
    %v8015 = vunpack.c.l.b16 %v4991
    %v8016 = vunpack.c.h.b16 %v4991
    %v8017 = vunpack.c.l.b16 %v4992
    %v8018 = vunpack.c.h.b16 %v4992
    %v8019 = vunpack.c.l.b16 %v4993
    %v8020 = vunpack.c.h.b16 %v4993
    %v8021 = vunpack.c.l.b16 %v4994
    %v8022 = vunpack.c.h.b16 %v4994
    %v8023 = vunpack.c.l.b16 %v4995
    %v8024 = vunpack.c.h.b16 %v4995
    %v8025 = vunpack.c.l.b16 %v4996
    %v8026 = vunpack.c.h.b16 %v4996
    %v8027 = vunpack.c.l.b16 %v4997
    %v8028 = vunpack.c.h.b16 %v4997
    %v8029 = vunpack.c.l.b16 %v4998
    %v8030 = vunpack.c.h.b16 %v4998
    %v8031 = vunpack.c.l.b16 %v4999
    %v8032 = vunpack.c.h.b16 %v4999
    %v8033 = vunpack.c.l.b16 %v5000
    %v8034 = vunpack.c.h.b16 %v5000
    %v8035 = vunpack.c.l.b16 %v5001
    %v8036 = vunpack.c.h.b16 %v5001
    %v8037 = vunpack.c.l.b16 %v5002
    %v8038 = vunpack.c.h.b16 %v5002
    %v8039 = vunpack.c.l.b16 %v5003
    %v8040 = vunpack.c.h.b16 %v5003
    %v8041 = vunpack.c.l.b16 %v5004
    %v8042 = vunpack.c.h.b16 %v5004
    %v8043 = vunpack.c.l.b16 %v5005
    %v8044 = vunpack.c.h.b16 %v5005
    %v8045 = vunpack.c.l.b16 %v5006
    %v8046 = vunpack.c.h.b16 %v5006
    %v8047 = vunpack.c.l.b16 %v5007
    %v8048 = vunpack.c.h.b16 %v5007
    %v8049 = vunpack.c.l.b16 %v5008
    %v8050 = vunpack.c.h.b16 %v5008
    %v8051 = vunpack.c.l.b16 %v5009
    %v8052 = vunpack.c.h.b16 %v5009
    %v8053 = vunpack.c.l.b16 %v5010
    %v8054 = vunpack.c.h.b16 %v5010
    %v8055 = vunpack.c.l.b16 %v5011
    %v8056 = vunpack.c.h.b16 %v5011
    %v8057 = vunpack.c.l.b16 %v5012
    %v8058 = vunpack.c.h.b16 %v5012
    %v8059 = vunpack.c.l.b16 %v5013
    %v8060 = vunpack.c.h.b16 %v5013
    %v8061 = vunpack.c.l.b16 %v5014
    %v8062 = vunpack.c.h.b16 %v5014
    %v8063 = vunpack.c.l.b16 %v5015
    %v8064 = vunpack.c.h.b16 %v5015
    %v8065 = vunpack.c.l.b16 %v5016
    %v8066 = vunpack.c.h.b16 %v5016
    %v8067 = vunpack.c.l.b16 %v5017
    %v8068 = vunpack.c.h.b16 %v5017
    %v8069 = vunpack.c.l.b16 %v5018
    %v8070 = vunpack.c.h.b16 %v5018
    %v8071 = vunpack.c.l.b16 %v5019
    %v8072 = vunpack.c.h.b16 %v5019
    %v8073 = vunpack.c.l.b16 %v5020
    %v8074 = vunpack.c.h.b16 %v5020
    %v8075 = vunpack.c.l.b16 %v5021
    %v8076 = vunpack.c.h.b16 %v5021
    %v8077 = vunpack.c.l.b16 %v5022
    %v8078 = vunpack.c.h.b16 %v5022
    %v8079 = vunpack.c.l.b16 %v5023
    %v8080 = vunpack.c.h.b16 %v5023
    %v8081 = vunpack.c.l.b16 %v5024
    %v8082 = vunpack.c.h.b16 %v5024
    %v8083 = vunpack.c.l.b16 %v5025
    %v8084 = vunpack.c.h.b16 %v5025
    %v8085 = vunpack.c.l.b16 %v5026
    %v8086 = vunpack.c.h.b16 %v5026
    %v8087 = vunpack.c.l.b16 %v5027
    %v8088 = vunpack.c.h.b16 %v5027
    %v8089 = vunpack.c.l.b16 %v5028
    %v8090 = vunpack.c.h.b16 %v5028
    %v8091 = vunpack.c.l.b16 %v5029
    %v8092 = vunpack.c.h.b16 %v5029
    %v8093 = vunpack.c.l.b16 %v5030
    %v8094 = vunpack.c.h.b16 %v5030
    %v8095 = vunpack.c.l.b16 %v5031
    %v8096 = vunpack.c.h.b16 %v5031
    %v8097 = vunpack.c.l.b16 %v5032
    %v8098 = vunpack.c.h.b16 %v5032
    %v8099 = vunpack.c.l.b16 %v5033
    %v8100 = vunpack.c.h.b16 %v5033
    %v8101 = vunpack.c.l.b16 %v5034
    %v8102 = vunpack.c.h.b16 %v5034
    %v8103 = vunpack.c.l.b16 %v5035
    %v8104 = vunpack.c.h.b16 %v5035
    %v8105 = vunpack.c.l.b16 %v5036
    %v8106 = vunpack.c.h.b16 %v5036
    %v8107 = vunpack.c.l.b16 %v5037
    %v8108 = vunpack.c.h.b16 %v5037
    %v8109 = vunpack.c.l.b16 %v5038
    %v8110 = vunpack.c.h.b16 %v5038
    %v8111 = vunpack.c.l.b16 %v5039
    %v8112 = vunpack.c.h.b16 %v5039
    %v8113 = vunpack.c.l.b16 %v5040
    %v8114 = vunpack.c.h.b16 %v5040
    %v8115 = vunpack.c.l.b16 %v5041
    %v8116 = vunpack.c.h.b16 %v5041
    %v8117 = vunpack.c.l.b16 %v5042
    %v8118 = vunpack.c.h.b16 %v5042
    %v8119 = vunpack.c.l.b16 %v5043
    %v8120 = vunpack.c.h.b16 %v5043
    %v8121 = vunpack.c.l.b16 %v5044
    %v8122 = vunpack.c.h.b16 %v5044
    %v8123 = vunpack.c.l.b16 %v5045
    %v8124 = vunpack.c.h.b16 %v5045
    %v8125 = vunpack.c.l.b16 %v5046
    %v8126 = vunpack.c.h.b16 %v5046
    %v8127 = vunpack.c.l.b16 %v5047
    %v8128 = vunpack.c.h.b16 %v5047
    %v8129 = vunpack.c.l.b16 %v5048
    %v8130 = vunpack.c.h.b16 %v5048
    %v8131 = vunpack.c.l.b16 %v5049
    %v8132 = vunpack.c.h.b16 %v5049
    %v8133 = vunpack.c.l.b16 %v5050
    %v8134 = vunpack.c.h.b16 %v5050
    %v8135 = vunpack.c.l.b16 %v5051
    %v8136 = vunpack.c.h.b16 %v5051
    %v8137 = vunpack.c.l.b16 %v5052
    %v8138 = vunpack.c.h.b16 %v5052
    %v8139 = vunpack.c.l.b16 %v5053
    %v8140 = vunpack.c.h.b16 %v5053
    %v8141 = vunpack.c.l.b16 %v5054
    %v8142 = vunpack.c.h.b16 %v5054
    %v8143 = vunpack.c.l.b16 %v5055
    %v8144 = vunpack.c.h.b16 %v5055
    %v8145 = vunpack.c.l.b16 %v5056
    %v8146 = vunpack.c.h.b16 %v5056
    %v8147 = vunpack.c.l.b16 %v5057
    %v8148 = vunpack.c.h.b16 %v5057
    %v8149 = vunpack.c.l.b16 %v5058
    %v8150 = vunpack.c.h.b16 %v5058
    %v8151 = vunpack.c.l.b16 %v5059
    %v8152 = vunpack.c.h.b16 %v5059
    %v8153 = vunpack.c.l.b16 %v5060
    %v8154 = vunpack.c.h.b16 %v5060
    %v8155 = vunpack.c.l.b16 %v5061
    %v8156 = vunpack.c.h.b16 %v5061
    %v8157 = vunpack.c.l.b16 %v5062
    %v8158 = vunpack.c.h.b16 %v5062
    %v8159 = vunpack.c.l.b16 %v5063
    %v8160 = vunpack.c.h.b16 %v5063
    %v8161 = vunpack.c.l.b16 %v5064
    %v8162 = vunpack.c.h.b16 %v5064
    %v8163 = vunpack.c.l.b16 %v5065
    %v8164 = vunpack.c.h.b16 %v5065
    %v8165 = vunpack.c.l.b16 %v5066
    %v8166 = vunpack.c.h.b16 %v5066
    %v8167 = vunpack.c.l.b16 %v5067
    %v8168 = vunpack.c.h.b16 %v5067
    %v8169 = vunpack.c.l.b16 %v5068
    %v8170 = vunpack.c.h.b16 %v5068
    %v8171 = vunpack.c.l.b16 %v5069
    %v8172 = vunpack.c.h.b16 %v5069
    %v8173 = vunpack.c.l.b16 %v5070
    %v8174 = vunpack.c.h.b16 %v5070
    %v8175 = vunpack.c.l.b16 %v5071
    %v8176 = vunpack.c.h.b16 %v5071
    %v8177 = vunpack.c.l.b16 %v5072
    %v8178 = vunpack.c.h.b16 %v5072
    %v8179 = vunpack.c.l.b16 %v5073
    %v8180 = vunpack.c.h.b16 %v5073
    %v8181 = vunpack.c.l.b16 %v5074
    %v8182 = vunpack.c.h.b16 %v5074
    %v8183 = vunpack.c.l.b16 %v5075
    %v8184 = vunpack.c.h.b16 %v5075
    %v8185 = vunpack.c.l.b16 %v5076
    %v8186 = vunpack.c.h.b16 %v5076
    %v8187 = vunpack.c.l.b16 %v5077
    %v8188 = vunpack.c.h.b16 %v5077
    %v8189 = vunpack.c.l.b16 %v5078
    %v8190 = vunpack.c.h.b16 %v5078
    %v8191 = vunpack.c.l.b16 %v5079
    %v8192 = vunpack.c.h.b16 %v5079
    %v8193 = vunpack.c.l.b16 %v5080
    %v8194 = vunpack.c.h.b16 %v5080
    %v8195 = vpack.c.b16 %v6155, %v6147
    %v8196 = vpack.c.b16 %v6156, %v6148
    %v8197 = vpack.c.b16 %v6157, %v6149
    %v8198 = vpack.c.b16 %v6158, %v6150
    %v8199 = vpack.c.b16 %v6159, %v6151
    %v8200 = vpack.c.b16 %v6160, %v6152
    %v8201 = vpack.c.b16 %v6161, %v6153
    %v8202 = vpack.c.b16 %v6162, %v6154
    %v8203 = vpack.c.b16 %v6171, %v6163
    %v8204 = vpack.c.b16 %v6172, %v6164
    %v8205 = vpack.c.b16 %v6173, %v6165
    %v8206 = vpack.c.b16 %v6174, %v6166
    %v8207 = vpack.c.b16 %v6175, %v6167
    %v8208 = vpack.c.b16 %v6176, %v6168
    %v8209 = vpack.c.b16 %v6177, %v6169
    %v8210 = vpack.c.b16 %v6178, %v6170
    %v8211 = vpack.c.b16 %v6187, %v6179
    %v8212 = vpack.c.b16 %v6188, %v6180
    %v8213 = vpack.c.b16 %v6189, %v6181
    %v8214 = vpack.c.b16 %v6190, %v6182
    %v8215 = vpack.c.b16 %v6191, %v6183
    %v8216 = vpack.c.b16 %v6192, %v6184
    %v8217 = vpack.c.b16 %v6193, %v6185
    %v8218 = vpack.c.b16 %v6194, %v6186
    %v8219 = vpack.c.b16 %v6203, %v6195
    %v8220 = vpack.c.b16 %v6204, %v6196
    %v8221 = vpack.c.b16 %v6205, %v6197
    %v8222 = vpack.c.b16 %v6206, %v6198
    %v8223 = vpack.c.b16 %v6207, %v6199
    %v8224 = vpack.c.b16 %v6208, %v6200
    %v8225 = vpack.c.b16 %v6209, %v6201
    %v8226 = vpack.c.b16 %v6210, %v6202
    %v8227 = vpack.c.b16 %v6219, %v6211
    %v8228 = vpack.c.b16 %v6220, %v6212
    %v8229 = vpack.c.b16 %v6221, %v6213
    %v8230 = vpack.c.b16 %v6222, %v6214
    %v8231 = vpack.c.b16 %v6223, %v6215
    %v8232 = vpack.c.b16 %v6224, %v6216
    %v8233 = vpack.c.b16 %v6225, %v6217
    %v8234 = vpack.c.b16 %v6226, %v6218
    %v8235 = vpack.c.b16 %v6235, %v6227
    %v8236 = vpack.c.b16 %v6236, %v6228
    %v8237 = vpack.c.b16 %v6237, %v6229
    %v8238 = vpack.c.b16 %v6238, %v6230
    %v8239 = vpack.c.b16 %v6239, %v6231
    %v8240 = vpack.c.b16 %v6240, %v6232
    %v8241 = vpack.c.b16 %v6241, %v6233
    %v8242 = vpack.c.b16 %v6242, %v6234
    %v8243 = vpack.c.b16 %v6251, %v6243
    %v8244 = vpack.c.b16 %v6252, %v6244
    %v8245 = vpack.c.b16 %v6253, %v6245
    %v8246 = vpack.c.b16 %v6254, %v6246
    %v8247 = vpack.c.b16 %v6255, %v6247
    %v8248 = vpack.c.b16 %v6256, %v6248
    %v8249 = vpack.c.b16 %v6257, %v6249
    %v8250 = vpack.c.b16 %v6258, %v6250
    %v8251 = vpack.c.b16 %v6267, %v6259
    %v8252 = vpack.c.b16 %v6268, %v6260
    %v8253 = vpack.c.b16 %v6269, %v6261
    %v8254 = vpack.c.b16 %v6270, %v6262
    %v8255 = vpack.c.b16 %v6271, %v6263
    %v8256 = vpack.c.b16 %v6272, %v6264
    %v8257 = vpack.c.b16 %v6273, %v6265
    %v8258 = vpack.c.b16 %v6274, %v6266
    %v8259 = vpack.c.b16 %v6283, %v6275
    %v8260 = vpack.c.b16 %v6284, %v6276
    %v8261 = vpack.c.b16 %v6285, %v6277
    %v8262 = vpack.c.b16 %v6286, %v6278
    %v8263 = vpack.c.b16 %v6287, %v6279
    %v8264 = vpack.c.b16 %v6288, %v6280
    %v8265 = vpack.c.b16 %v6289, %v6281
    %v8266 = vpack.c.b16 %v6290, %v6282
    %v8267 = vpack.c.b16 %v6299, %v6291
    %v8268 = vpack.c.b16 %v6300, %v6292
    %v8269 = vpack.c.b16 %v6301, %v6293
    %v8270 = vpack.c.b16 %v6302, %v6294
    %v8271 = vpack.c.b16 %v6303, %v6295
    %v8272 = vpack.c.b16 %v6304, %v6296
    %v8273 = vpack.c.b16 %v6305, %v6297
    %v8274 = vpack.c.b16 %v6306, %v6298
    %v8275 = vpack.c.b16 %v6315, %v6307
    %v8276 = vpack.c.b16 %v6316, %v6308
    %v8277 = vpack.c.b16 %v6317, %v6309
    %v8278 = vpack.c.b16 %v6318, %v6310
    %v8279 = vpack.c.b16 %v6319, %v6311
    %v8280 = vpack.c.b16 %v6320, %v6312
    %v8281 = vpack.c.b16 %v6321, %v6313
    %v8282 = vpack.c.b16 %v6322, %v6314
    %v8283 = vpack.c.b16 %v6331, %v6323
    %v8284 = vpack.c.b16 %v6332, %v6324
    %v8285 = vpack.c.b16 %v6333, %v6325
    %v8286 = vpack.c.b16 %v6334, %v6326
    %v8287 = vpack.c.b16 %v6335, %v6327
    %v8288 = vpack.c.b16 %v6336, %v6328
    %v8289 = vpack.c.b16 %v6337, %v6329
    %v8290 = vpack.c.b16 %v6338, %v6330
    %v8291 = vpack.c.b16 %v6347, %v6339
    %v8292 = vpack.c.b16 %v6348, %v6340
    %v8293 = vpack.c.b16 %v6349, %v6341
    %v8294 = vpack.c.b16 %v6350, %v6342
    %v8295 = vpack.c.b16 %v6351, %v6343
    %v8296 = vpack.c.b16 %v6352, %v6344
    %v8297 = vpack.c.b16 %v6353, %v6345
    %v8298 = vpack.c.b16 %v6354, %v6346
    %v8299 = vpack.c.b16 %v6363, %v6355
    %v8300 = vpack.c.b16 %v6364, %v6356
    %v8301 = vpack.c.b16 %v6365, %v6357
    %v8302 = vpack.c.b16 %v6366, %v6358
    %v8303 = vpack.c.b16 %v6367, %v6359
    %v8304 = vpack.c.b16 %v6368, %v6360
    %v8305 = vpack.c.b16 %v6369, %v6361
    %v8306 = vpack.c.b16 %v6370, %v6362
    %v8307 = vpack.c.b16 %v6379, %v6371
    %v8308 = vpack.c.b16 %v6380, %v6372
    %v8309 = vpack.c.b16 %v6381, %v6373
    %v8310 = vpack.c.b16 %v6382, %v6374
    %v8311 = vpack.c.b16 %v6383, %v6375
    %v8312 = vpack.c.b16 %v6384, %v6376
    %v8313 = vpack.c.b16 %v6385, %v6377
    %v8314 = vpack.c.b16 %v6386, %v6378
    %v8315 = vpack.c.b16 %v6395, %v6387
    %v8316 = vpack.c.b16 %v6396, %v6388
    %v8317 = vpack.c.b16 %v6397, %v6389
    %v8318 = vpack.c.b16 %v6398, %v6390
    %v8319 = vpack.c.b16 %v6399, %v6391
    %v8320 = vpack.c.b16 %v6400, %v6392
    %v8321 = vpack.c.b16 %v6401, %v6393
    %v8322 = vpack.c.b16 %v6402, %v6394
    %v8323 = vpack.c.b16 %v6411, %v6403
    %v8324 = vpack.c.b16 %v6412, %v6404
    %v8325 = vpack.c.b16 %v6413, %v6405
    %v8326 = vpack.c.b16 %v6414, %v6406
    %v8327 = vpack.c.b16 %v6415, %v6407
    %v8328 = vpack.c.b16 %v6416, %v6408
    %v8329 = vpack.c.b16 %v6417, %v6409
    %v8330 = vpack.c.b16 %v6418, %v6410
    %v8331 = vpack.c.b16 %v6427, %v6419
    %v8332 = vpack.c.b16 %v6428, %v6420
    %v8333 = vpack.c.b16 %v6429, %v6421
    %v8334 = vpack.c.b16 %v6430, %v6422
    %v8335 = vpack.c.b16 %v6431, %v6423
    %v8336 = vpack.c.b16 %v6432, %v6424
    %v8337 = vpack.c.b16 %v6433, %v6425
    %v8338 = vpack.c.b16 %v6434, %v6426
    %v8339 = vpack.c.b16 %v6443, %v6435
    %v8340 = vpack.c.b16 %v6444, %v6436
    %v8341 = vpack.c.b16 %v6445, %v6437
    %v8342 = vpack.c.b16 %v6446, %v6438
    %v8343 = vpack.c.b16 %v6447, %v6439
    %v8344 = vpack.c.b16 %v6448, %v6440
    %v8345 = vpack.c.b16 %v6449, %v6441
    %v8346 = vpack.c.b16 %v6450, %v6442
    %v8347 = vpack.c.b16 %v6459, %v6451
    %v8348 = vpack.c.b16 %v6460, %v6452
    %v8349 = vpack.c.b16 %v6461, %v6453
    %v8350 = vpack.c.b16 %v6462, %v6454
    %v8351 = vpack.c.b16 %v6463, %v6455
    %v8352 = vpack.c.b16 %v6464, %v6456
    %v8353 = vpack.c.b16 %v6465, %v6457
    %v8354 = vpack.c.b16 %v6466, %v6458
    %v8355 = vpack.c.b16 %v6475, %v6467
    %v8356 = vpack.c.b16 %v6476, %v6468
    %v8357 = vpack.c.b16 %v6477, %v6469
    %v8358 = vpack.c.b16 %v6478, %v6470
    %v8359 = vpack.c.b16 %v6479, %v6471
    %v8360 = vpack.c.b16 %v6480, %v6472
    %v8361 = vpack.c.b16 %v6481, %v6473
    %v8362 = vpack.c.b16 %v6482, %v6474
    %v8363 = vpack.c.b16 %v6491, %v6483
    %v8364 = vpack.c.b16 %v6492, %v6484
    %v8365 = vpack.c.b16 %v6493, %v6485
    %v8366 = vpack.c.b16 %v6494, %v6486
    %v8367 = vpack.c.b16 %v6495, %v6487
    %v8368 = vpack.c.b16 %v6496, %v6488
    %v8369 = vpack.c.b16 %v6497, %v6489
    %v8370 = vpack.c.b16 %v6498, %v6490
    %v8371 = vpack.c.b16 %v6507, %v6499
    %v8372 = vpack.c.b16 %v6508, %v6500
    %v8373 = vpack.c.b16 %v6509, %v6501
    %v8374 = vpack.c.b16 %v6510, %v6502
    %v8375 = vpack.c.b16 %v6511, %v6503
    %v8376 = vpack.c.b16 %v6512, %v6504
    %v8377 = vpack.c.b16 %v6513, %v6505
    %v8378 = vpack.c.b16 %v6514, %v6506
    %v8379 = vpack.c.b16 %v6523, %v6515
    %v8380 = vpack.c.b16 %v6524, %v6516
    %v8381 = vpack.c.b16 %v6525, %v6517
    %v8382 = vpack.c.b16 %v6526, %v6518
    %v8383 = vpack.c.b16 %v6527, %v6519
    %v8384 = vpack.c.b16 %v6528, %v6520
    %v8385 = vpack.c.b16 %v6529, %v6521
    %v8386 = vpack.c.b16 %v6530, %v6522
    %v8387 = vpack.c.b16 %v6539, %v6531
    %v8388 = vpack.c.b16 %v6540, %v6532
    %v8389 = vpack.c.b16 %v6541, %v6533
    %v8390 = vpack.c.b16 %v6542, %v6534
    %v8391 = vpack.c.b16 %v6543, %v6535
    %v8392 = vpack.c.b16 %v6544, %v6536
    %v8393 = vpack.c.b16 %v6545, %v6537
    %v8394 = vpack.c.b16 %v6546, %v6538
    %v8395 = vpack.c.b16 %v6555, %v6547
    %v8396 = vpack.c.b16 %v6556, %v6548
    %v8397 = vpack.c.b16 %v6557, %v6549
    %v8398 = vpack.c.b16 %v6558, %v6550
    %v8399 = vpack.c.b16 %v6559, %v6551
    %v8400 = vpack.c.b16 %v6560, %v6552
    %v8401 = vpack.c.b16 %v6561, %v6553
    %v8402 = vpack.c.b16 %v6562, %v6554
    %v8403 = vpack.c.b16 %v6571, %v6563
    %v8404 = vpack.c.b16 %v6572, %v6564
    %v8405 = vpack.c.b16 %v6573, %v6565
    %v8406 = vpack.c.b16 %v6574, %v6566
    %v8407 = vpack.c.b16 %v6575, %v6567
    %v8408 = vpack.c.b16 %v6576, %v6568
    %v8409 = vpack.c.b16 %v6577, %v6569
    %v8410 = vpack.c.b16 %v6578, %v6570
    %v8411 = vpack.c.b16 %v6587, %v6579
    %v8412 = vpack.c.b16 %v6588, %v6580
    %v8413 = vpack.c.b16 %v6589, %v6581
    %v8414 = vpack.c.b16 %v6590, %v6582
    %v8415 = vpack.c.b16 %v6591, %v6583
    %v8416 = vpack.c.b16 %v6592, %v6584
    %v8417 = vpack.c.b16 %v6593, %v6585
    %v8418 = vpack.c.b16 %v6594, %v6586
    %v8419 = vpack.c.b16 %v6603, %v6595
    %v8420 = vpack.c.b16 %v6604, %v6596
    %v8421 = vpack.c.b16 %v6605, %v6597
    %v8422 = vpack.c.b16 %v6606, %v6598
    %v8423 = vpack.c.b16 %v6607, %v6599
    %v8424 = vpack.c.b16 %v6608, %v6600
    %v8425 = vpack.c.b16 %v6609, %v6601
    %v8426 = vpack.c.b16 %v6610, %v6602
    %v8427 = vpack.c.b16 %v6619, %v6611
    %v8428 = vpack.c.b16 %v6620, %v6612
    %v8429 = vpack.c.b16 %v6621, %v6613
    %v8430 = vpack.c.b16 %v6622, %v6614
    %v8431 = vpack.c.b16 %v6623, %v6615
    %v8432 = vpack.c.b16 %v6624, %v6616
    %v8433 = vpack.c.b16 %v6625, %v6617
    %v8434 = vpack.c.b16 %v6626, %v6618
    %v8435 = vpack.c.b16 %v6635, %v6627
    %v8436 = vpack.c.b16 %v6636, %v6628
    %v8437 = vpack.c.b16 %v6637, %v6629
    %v8438 = vpack.c.b16 %v6638, %v6630
    %v8439 = vpack.c.b16 %v6639, %v6631
    %v8440 = vpack.c.b16 %v6640, %v6632
    %v8441 = vpack.c.b16 %v6641, %v6633
    %v8442 = vpack.c.b16 %v6642, %v6634
    %v8443 = vpack.c.b16 %v6651, %v6643
    %v8444 = vpack.c.b16 %v6652, %v6644
    %v8445 = vpack.c.b16 %v6653, %v6645
    %v8446 = vpack.c.b16 %v6654, %v6646
    %v8447 = vpack.c.b16 %v6655, %v6647
    %v8448 = vpack.c.b16 %v6656, %v6648
    %v8449 = vpack.c.b16 %v6657, %v6649
    %v8450 = vpack.c.b16 %v6658, %v6650
    %v8451 = vpack.c.b16 %v6667, %v6659
    %v8452 = vpack.c.b16 %v6668, %v6660
    %v8453 = vpack.c.b16 %v6669, %v6661
    %v8454 = vpack.c.b16 %v6670, %v6662
    %v8455 = vpack.c.b16 %v6671, %v6663
    %v8456 = vpack.c.b16 %v6672, %v6664
    %v8457 = vpack.c.b16 %v6673, %v6665
    %v8458 = vpack.c.b16 %v6674, %v6666
    %v8459 = vpack.c.b16 %v6683, %v6675
    %v8460 = vpack.c.b16 %v6684, %v6676
    %v8461 = vpack.c.b16 %v6685, %v6677
    %v8462 = vpack.c.b16 %v6686, %v6678
    %v8463 = vpack.c.b16 %v6687, %v6679
    %v8464 = vpack.c.b16 %v6688, %v6680
    %v8465 = vpack.c.b16 %v6689, %v6681
    %v8466 = vpack.c.b16 %v6690, %v6682
    %v8467 = vpack.c.b16 %v6699, %v6691
    %v8468 = vpack.c.b16 %v6700, %v6692
    %v8469 = vpack.c.b16 %v6701, %v6693
    %v8470 = vpack.c.b16 %v6702, %v6694
    %v8471 = vpack.c.b16 %v6703, %v6695
    %v8472 = vpack.c.b16 %v6704, %v6696
    %v8473 = vpack.c.b16 %v6705, %v6697
    %v8474 = vpack.c.b16 %v6706, %v6698
    %v8475 = vpack.c.b16 %v6715, %v6707
    %v8476 = vpack.c.b16 %v6716, %v6708
    %v8477 = vpack.c.b16 %v6717, %v6709
    %v8478 = vpack.c.b16 %v6718, %v6710
    %v8479 = vpack.c.b16 %v6719, %v6711
    %v8480 = vpack.c.b16 %v6720, %v6712
    %v8481 = vpack.c.b16 %v6721, %v6713
    %v8482 = vpack.c.b16 %v6722, %v6714
    %v8483 = vpack.c.b16 %v6731, %v6723
    %v8484 = vpack.c.b16 %v6732, %v6724
    %v8485 = vpack.c.b16 %v6733, %v6725
    %v8486 = vpack.c.b16 %v6734, %v6726
    %v8487 = vpack.c.b16 %v6735, %v6727
    %v8488 = vpack.c.b16 %v6736, %v6728
    %v8489 = vpack.c.b16 %v6737, %v6729
    %v8490 = vpack.c.b16 %v6738, %v6730
    %v8491 = vpack.c.b16 %v6747, %v6739
    %v8492 = vpack.c.b16 %v6748, %v6740
    %v8493 = vpack.c.b16 %v6749, %v6741
    %v8494 = vpack.c.b16 %v6750, %v6742
    %v8495 = vpack.c.b16 %v6751, %v6743
    %v8496 = vpack.c.b16 %v6752, %v6744
    %v8497 = vpack.c.b16 %v6753, %v6745
    %v8498 = vpack.c.b16 %v6754, %v6746
    %v8499 = vpack.c.b16 %v6763, %v6755
    %v8500 = vpack.c.b16 %v6764, %v6756
    %v8501 = vpack.c.b16 %v6765, %v6757
    %v8502 = vpack.c.b16 %v6766, %v6758
    %v8503 = vpack.c.b16 %v6767, %v6759
    %v8504 = vpack.c.b16 %v6768, %v6760
    %v8505 = vpack.c.b16 %v6769, %v6761
    %v8506 = vpack.c.b16 %v6770, %v6762
    %v8507 = vpack.c.b16 %v6779, %v6771
    %v8508 = vpack.c.b16 %v6780, %v6772
    %v8509 = vpack.c.b16 %v6781, %v6773
    %v8510 = vpack.c.b16 %v6782, %v6774
    %v8511 = vpack.c.b16 %v6783, %v6775
    %v8512 = vpack.c.b16 %v6784, %v6776
    %v8513 = vpack.c.b16 %v6785, %v6777
    %v8514 = vpack.c.b16 %v6786, %v6778
    %v8515 = vpack.c.b16 %v6795, %v6787
    %v8516 = vpack.c.b16 %v6796, %v6788
    %v8517 = vpack.c.b16 %v6797, %v6789
    %v8518 = vpack.c.b16 %v6798, %v6790
    %v8519 = vpack.c.b16 %v6799, %v6791
    %v8520 = vpack.c.b16 %v6800, %v6792
    %v8521 = vpack.c.b16 %v6801, %v6793
    %v8522 = vpack.c.b16 %v6802, %v6794
    %v8523 = vpack.c.b16 %v6811, %v6803
    %v8524 = vpack.c.b16 %v6812, %v6804
    %v8525 = vpack.c.b16 %v6813, %v6805
    %v8526 = vpack.c.b16 %v6814, %v6806
    %v8527 = vpack.c.b16 %v6815, %v6807
    %v8528 = vpack.c.b16 %v6816, %v6808
    %v8529 = vpack.c.b16 %v6817, %v6809
    %v8530 = vpack.c.b16 %v6818, %v6810
    %v8531 = vpack.c.b16 %v6827, %v6819
    %v8532 = vpack.c.b16 %v6828, %v6820
    %v8533 = vpack.c.b16 %v6829, %v6821
    %v8534 = vpack.c.b16 %v6830, %v6822
    %v8535 = vpack.c.b16 %v6831, %v6823
    %v8536 = vpack.c.b16 %v6832, %v6824
    %v8537 = vpack.c.b16 %v6833, %v6825
    %v8538 = vpack.c.b16 %v6834, %v6826
    %v8539 = vpack.c.b16 %v6843, %v6835
    %v8540 = vpack.c.b16 %v6844, %v6836
    %v8541 = vpack.c.b16 %v6845, %v6837
    %v8542 = vpack.c.b16 %v6846, %v6838
    %v8543 = vpack.c.b16 %v6847, %v6839
    %v8544 = vpack.c.b16 %v6848, %v6840
    %v8545 = vpack.c.b16 %v6849, %v6841
    %v8546 = vpack.c.b16 %v6850, %v6842
    %v8547 = vpack.c.b16 %v6859, %v6851
    %v8548 = vpack.c.b16 %v6860, %v6852
    %v8549 = vpack.c.b16 %v6861, %v6853
    %v8550 = vpack.c.b16 %v6862, %v6854
    %v8551 = vpack.c.b16 %v6863, %v6855
    %v8552 = vpack.c.b16 %v6864, %v6856
    %v8553 = vpack.c.b16 %v6865, %v6857
    %v8554 = vpack.c.b16 %v6866, %v6858
    %v8555 = vpack.c.b16 %v6875, %v6867
    %v8556 = vpack.c.b16 %v6876, %v6868
    %v8557 = vpack.c.b16 %v6877, %v6869
    %v8558 = vpack.c.b16 %v6878, %v6870
    %v8559 = vpack.c.b16 %v6879, %v6871
    %v8560 = vpack.c.b16 %v6880, %v6872
    %v8561 = vpack.c.b16 %v6881, %v6873
    %v8562 = vpack.c.b16 %v6882, %v6874
    %v8563 = vpack.c.b16 %v6891, %v6883
    %v8564 = vpack.c.b16 %v6892, %v6884
    %v8565 = vpack.c.b16 %v6893, %v6885
    %v8566 = vpack.c.b16 %v6894, %v6886
    %v8567 = vpack.c.b16 %v6895, %v6887
    %v8568 = vpack.c.b16 %v6896, %v6888
    %v8569 = vpack.c.b16 %v6897, %v6889
    %v8570 = vpack.c.b16 %v6898, %v6890
    %v8571 = vpack.c.b16 %v6907, %v6899
    %v8572 = vpack.c.b16 %v6908, %v6900
    %v8573 = vpack.c.b16 %v6909, %v6901
    %v8574 = vpack.c.b16 %v6910, %v6902
    %v8575 = vpack.c.b16 %v6911, %v6903
    %v8576 = vpack.c.b16 %v6912, %v6904
    %v8577 = vpack.c.b16 %v6913, %v6905
    %v8578 = vpack.c.b16 %v6914, %v6906
    %v8579 = vpack.c.b16 %v6923, %v6915
    %v8580 = vpack.c.b16 %v6924, %v6916
    %v8581 = vpack.c.b16 %v6925, %v6917
    %v8582 = vpack.c.b16 %v6926, %v6918
    %v8583 = vpack.c.b16 %v6927, %v6919
    %v8584 = vpack.c.b16 %v6928, %v6920
    %v8585 = vpack.c.b16 %v6929, %v6921
    %v8586 = vpack.c.b16 %v6930, %v6922
    %v8587 = vpack.c.b16 %v6939, %v6931
    %v8588 = vpack.c.b16 %v6940, %v6932
    %v8589 = vpack.c.b16 %v6941, %v6933
    %v8590 = vpack.c.b16 %v6942, %v6934
    %v8591 = vpack.c.b16 %v6943, %v6935
    %v8592 = vpack.c.b16 %v6944, %v6936
    %v8593 = vpack.c.b16 %v6945, %v6937
    %v8594 = vpack.c.b16 %v6946, %v6938
    %v8595 = vpack.c.b16 %v6955, %v6947
    %v8596 = vpack.c.b16 %v6956, %v6948
    %v8597 = vpack.c.b16 %v6957, %v6949
    %v8598 = vpack.c.b16 %v6958, %v6950
    %v8599 = vpack.c.b16 %v6959, %v6951
    %v8600 = vpack.c.b16 %v6960, %v6952
    %v8601 = vpack.c.b16 %v6961, %v6953
    %v8602 = vpack.c.b16 %v6962, %v6954
    %v8603 = vpack.c.b16 %v6971, %v6963
    %v8604 = vpack.c.b16 %v6972, %v6964
    %v8605 = vpack.c.b16 %v6973, %v6965
    %v8606 = vpack.c.b16 %v6974, %v6966
    %v8607 = vpack.c.b16 %v6975, %v6967
    %v8608 = vpack.c.b16 %v6976, %v6968
    %v8609 = vpack.c.b16 %v6977, %v6969
    %v8610 = vpack.c.b16 %v6978, %v6970
    %v8611 = vpack.c.b16 %v6987, %v6979
    %v8612 = vpack.c.b16 %v6988, %v6980
    %v8613 = vpack.c.b16 %v6989, %v6981
    %v8614 = vpack.c.b16 %v6990, %v6982
    %v8615 = vpack.c.b16 %v6991, %v6983
    %v8616 = vpack.c.b16 %v6992, %v6984
    %v8617 = vpack.c.b16 %v6993, %v6985
    %v8618 = vpack.c.b16 %v6994, %v6986
    %v8619 = vpack.c.b16 %v7003, %v6995
    %v8620 = vpack.c.b16 %v7004, %v6996
    %v8621 = vpack.c.b16 %v7005, %v6997
    %v8622 = vpack.c.b16 %v7006, %v6998
    %v8623 = vpack.c.b16 %v7007, %v6999
    %v8624 = vpack.c.b16 %v7008, %v7000
    %v8625 = vpack.c.b16 %v7009, %v7001
    %v8626 = vpack.c.b16 %v7010, %v7002
    %v8627 = vpack.c.b16 %v7019, %v7011
    %v8628 = vpack.c.b16 %v7020, %v7012
    %v8629 = vpack.c.b16 %v7021, %v7013
    %v8630 = vpack.c.b16 %v7022, %v7014
    %v8631 = vpack.c.b16 %v7023, %v7015
    %v8632 = vpack.c.b16 %v7024, %v7016
    %v8633 = vpack.c.b16 %v7025, %v7017
    %v8634 = vpack.c.b16 %v7026, %v7018
    %v8635 = vpack.c.b16 %v7035, %v7027
    %v8636 = vpack.c.b16 %v7036, %v7028
    %v8637 = vpack.c.b16 %v7037, %v7029
    %v8638 = vpack.c.b16 %v7038, %v7030
    %v8639 = vpack.c.b16 %v7039, %v7031
    %v8640 = vpack.c.b16 %v7040, %v7032
    %v8641 = vpack.c.b16 %v7041, %v7033
    %v8642 = vpack.c.b16 %v7042, %v7034
    %v8643 = vpack.c.b16 %v7051, %v7043
    %v8644 = vpack.c.b16 %v7052, %v7044
    %v8645 = vpack.c.b16 %v7053, %v7045
    %v8646 = vpack.c.b16 %v7054, %v7046
    %v8647 = vpack.c.b16 %v7055, %v7047
    %v8648 = vpack.c.b16 %v7056, %v7048
    %v8649 = vpack.c.b16 %v7057, %v7049
    %v8650 = vpack.c.b16 %v7058, %v7050
    %v8651 = vpack.c.b16 %v7067, %v7059
    %v8652 = vpack.c.b16 %v7068, %v7060
    %v8653 = vpack.c.b16 %v7069, %v7061
    %v8654 = vpack.c.b16 %v7070, %v7062
    %v8655 = vpack.c.b16 %v7071, %v7063
    %v8656 = vpack.c.b16 %v7072, %v7064
    %v8657 = vpack.c.b16 %v7073, %v7065
    %v8658 = vpack.c.b16 %v7074, %v7066
    %v8659 = vpack.c.b16 %v7083, %v7075
    %v8660 = vpack.c.b16 %v7084, %v7076
    %v8661 = vpack.c.b16 %v7085, %v7077
    %v8662 = vpack.c.b16 %v7086, %v7078
    %v8663 = vpack.c.b16 %v7087, %v7079
    %v8664 = vpack.c.b16 %v7088, %v7080
    %v8665 = vpack.c.b16 %v7089, %v7081
    %v8666 = vpack.c.b16 %v7090, %v7082
    %v8667 = vpack.c.b16 %v7099, %v7091
    %v8668 = vpack.c.b16 %v7100, %v7092
    %v8669 = vpack.c.b16 %v7101, %v7093
    %v8670 = vpack.c.b16 %v7102, %v7094
    %v8671 = vpack.c.b16 %v7103, %v7095
    %v8672 = vpack.c.b16 %v7104, %v7096
    %v8673 = vpack.c.b16 %v7105, %v7097
    %v8674 = vpack.c.b16 %v7106, %v7098
    %v8675 = vpack.c.b16 %v7115, %v7107
    %v8676 = vpack.c.b16 %v7116, %v7108
    %v8677 = vpack.c.b16 %v7117, %v7109
    %v8678 = vpack.c.b16 %v7118, %v7110
    %v8679 = vpack.c.b16 %v7119, %v7111
    %v8680 = vpack.c.b16 %v7120, %v7112
    %v8681 = vpack.c.b16 %v7121, %v7113
    %v8682 = vpack.c.b16 %v7122, %v7114
    %v8683 = vpack.c.b16 %v7131, %v7123
    %v8684 = vpack.c.b16 %v7132, %v7124
    %v8685 = vpack.c.b16 %v7133, %v7125
    %v8686 = vpack.c.b16 %v7134, %v7126
    %v8687 = vpack.c.b16 %v7135, %v7127
    %v8688 = vpack.c.b16 %v7136, %v7128
    %v8689 = vpack.c.b16 %v7137, %v7129
    %v8690 = vpack.c.b16 %v7138, %v7130
    %v8691 = vpack.c.b16 %v7147, %v7139
    %v8692 = vpack.c.b16 %v7148, %v7140
    %v8693 = vpack.c.b16 %v7149, %v7141
    %v8694 = vpack.c.b16 %v7150, %v7142
    %v8695 = vpack.c.b16 %v7151, %v7143
    %v8696 = vpack.c.b16 %v7152, %v7144
    %v8697 = vpack.c.b16 %v7153, %v7145
    %v8698 = vpack.c.b16 %v7154, %v7146
    %v8699 = vpack.c.b16 %v7163, %v7155
    %v8700 = vpack.c.b16 %v7164, %v7156
    %v8701 = vpack.c.b16 %v7165, %v7157
    %v8702 = vpack.c.b16 %v7166, %v7158
    %v8703 = vpack.c.b16 %v7167, %v7159
    %v8704 = vpack.c.b16 %v7168, %v7160
    %v8705 = vpack.c.b16 %v7169, %v7161
    %v8706 = vpack.c.b16 %v7170, %v7162
    %v8707 = vpack.c.b16 %v7179, %v7171
    %v8708 = vpack.c.b16 %v7180, %v7172
    %v8709 = vpack.c.b16 %v7181, %v7173
    %v8710 = vpack.c.b16 %v7182, %v7174
    %v8711 = vpack.c.b16 %v7183, %v7175
    %v8712 = vpack.c.b16 %v7184, %v7176
    %v8713 = vpack.c.b16 %v7185, %v7177
    %v8714 = vpack.c.b16 %v7186, %v7178
    %v8715 = vpack.c.b16 %v7195, %v7187
    %v8716 = vpack.c.b16 %v7196, %v7188
    %v8717 = vpack.c.b16 %v7197, %v7189
    %v8718 = vpack.c.b16 %v7198, %v7190
    %v8719 = vpack.c.b16 %v7199, %v7191
    %v8720 = vpack.c.b16 %v7200, %v7192
    %v8721 = vpack.c.b16 %v7201, %v7193
    %v8722 = vpack.c.b16 %v7202, %v7194
    %v8723 = vpack.c.b16 %v7211, %v7203
    %v8724 = vpack.c.b16 %v7212, %v7204
    %v8725 = vpack.c.b16 %v7213, %v7205
    %v8726 = vpack.c.b16 %v7214, %v7206
    %v8727 = vpack.c.b16 %v7215, %v7207
    %v8728 = vpack.c.b16 %v7216, %v7208
    %v8729 = vpack.c.b16 %v7217, %v7209
    %v8730 = vpack.c.b16 %v7218, %v7210
    %v8731 = vpack.c.b16 %v7227, %v7219
    %v8732 = vpack.c.b16 %v7228, %v7220
    %v8733 = vpack.c.b16 %v7229, %v7221
    %v8734 = vpack.c.b16 %v7230, %v7222
    %v8735 = vpack.c.b16 %v7231, %v7223
    %v8736 = vpack.c.b16 %v7232, %v7224
    %v8737 = vpack.c.b16 %v7233, %v7225
    %v8738 = vpack.c.b16 %v7234, %v7226
    %v8739 = vpack.c.b16 %v7243, %v7235
    %v8740 = vpack.c.b16 %v7244, %v7236
    %v8741 = vpack.c.b16 %v7245, %v7237
    %v8742 = vpack.c.b16 %v7246, %v7238
    %v8743 = vpack.c.b16 %v7247, %v7239
    %v8744 = vpack.c.b16 %v7248, %v7240
    %v8745 = vpack.c.b16 %v7249, %v7241
    %v8746 = vpack.c.b16 %v7250, %v7242
    %v8747 = vpack.c.b16 %v7259, %v7251
    %v8748 = vpack.c.b16 %v7260, %v7252
    %v8749 = vpack.c.b16 %v7261, %v7253
    %v8750 = vpack.c.b16 %v7262, %v7254
    %v8751 = vpack.c.b16 %v7263, %v7255
    %v8752 = vpack.c.b16 %v7264, %v7256
    %v8753 = vpack.c.b16 %v7265, %v7257
    %v8754 = vpack.c.b16 %v7266, %v7258
    %v8755 = vpack.c.b16 %v7275, %v7267
    %v8756 = vpack.c.b16 %v7276, %v7268
    %v8757 = vpack.c.b16 %v7277, %v7269
    %v8758 = vpack.c.b16 %v7278, %v7270
    %v8759 = vpack.c.b16 %v7279, %v7271
    %v8760 = vpack.c.b16 %v7280, %v7272
    %v8761 = vpack.c.b16 %v7281, %v7273
    %v8762 = vpack.c.b16 %v7282, %v7274
    %v8763 = vpack.c.b16 %v7291, %v7283
    %v8764 = vpack.c.b16 %v7292, %v7284
    %v8765 = vpack.c.b16 %v7293, %v7285
    %v8766 = vpack.c.b16 %v7294, %v7286
    %v8767 = vpack.c.b16 %v7295, %v7287
    %v8768 = vpack.c.b16 %v7296, %v7288
    %v8769 = vpack.c.b16 %v7297, %v7289
    %v8770 = vpack.c.b16 %v7298, %v7290
    %v8771 = vpack.c.b16 %v7307, %v7299
    %v8772 = vpack.c.b16 %v7308, %v7300
    %v8773 = vpack.c.b16 %v7309, %v7301
    %v8774 = vpack.c.b16 %v7310, %v7302
    %v8775 = vpack.c.b16 %v7311, %v7303
    %v8776 = vpack.c.b16 %v7312, %v7304
    %v8777 = vpack.c.b16 %v7313, %v7305
    %v8778 = vpack.c.b16 %v7314, %v7306
    %v8779 = vpack.c.b16 %v7323, %v7315
    %v8780 = vpack.c.b16 %v7324, %v7316
    %v8781 = vpack.c.b16 %v7325, %v7317
    %v8782 = vpack.c.b16 %v7326, %v7318
    %v8783 = vpack.c.b16 %v7327, %v7319
    %v8784 = vpack.c.b16 %v7328, %v7320
    %v8785 = vpack.c.b16 %v7329, %v7321
    %v8786 = vpack.c.b16 %v7330, %v7322
    %v8787 = vpack.c.b16 %v7339, %v7331
    %v8788 = vpack.c.b16 %v7340, %v7332
    %v8789 = vpack.c.b16 %v7341, %v7333
    %v8790 = vpack.c.b16 %v7342, %v7334
    %v8791 = vpack.c.b16 %v7343, %v7335
    %v8792 = vpack.c.b16 %v7344, %v7336
    %v8793 = vpack.c.b16 %v7345, %v7337
    %v8794 = vpack.c.b16 %v7346, %v7338
    %v8795 = vpack.c.b16 %v7355, %v7347
    %v8796 = vpack.c.b16 %v7356, %v7348
    %v8797 = vpack.c.b16 %v7357, %v7349
    %v8798 = vpack.c.b16 %v7358, %v7350
    %v8799 = vpack.c.b16 %v7359, %v7351
    %v8800 = vpack.c.b16 %v7360, %v7352
    %v8801 = vpack.c.b16 %v7361, %v7353
    %v8802 = vpack.c.b16 %v7362, %v7354
    %v8803 = vpack.c.b16 %v7371, %v7363
    %v8804 = vpack.c.b16 %v7372, %v7364
    %v8805 = vpack.c.b16 %v7373, %v7365
    %v8806 = vpack.c.b16 %v7374, %v7366
    %v8807 = vpack.c.b16 %v7375, %v7367
    %v8808 = vpack.c.b16 %v7376, %v7368
    %v8809 = vpack.c.b16 %v7377, %v7369
    %v8810 = vpack.c.b16 %v7378, %v7370
    %v8811 = vpack.c.b16 %v7387, %v7379
    %v8812 = vpack.c.b16 %v7388, %v7380
    %v8813 = vpack.c.b16 %v7389, %v7381
    %v8814 = vpack.c.b16 %v7390, %v7382
    %v8815 = vpack.c.b16 %v7391, %v7383
    %v8816 = vpack.c.b16 %v7392, %v7384
    %v8817 = vpack.c.b16 %v7393, %v7385
    %v8818 = vpack.c.b16 %v7394, %v7386
    %v8819 = vpack.c.b16 %v7403, %v7395
    %v8820 = vpack.c.b16 %v7404, %v7396
    %v8821 = vpack.c.b16 %v7405, %v7397
    %v8822 = vpack.c.b16 %v7406, %v7398
    %v8823 = vpack.c.b16 %v7407, %v7399
    %v8824 = vpack.c.b16 %v7408, %v7400
    %v8825 = vpack.c.b16 %v7409, %v7401
    %v8826 = vpack.c.b16 %v7410, %v7402
    %v8827 = vpack.c.b16 %v7419, %v7411
    %v8828 = vpack.c.b16 %v7420, %v7412
    %v8829 = vpack.c.b16 %v7421, %v7413
    %v8830 = vpack.c.b16 %v7422, %v7414
    %v8831 = vpack.c.b16 %v7423, %v7415
    %v8832 = vpack.c.b16 %v7424, %v7416
    %v8833 = vpack.c.b16 %v7425, %v7417
    %v8834 = vpack.c.b16 %v7426, %v7418
    %v8835 = vpack.c.b16 %v7435, %v7427
    %v8836 = vpack.c.b16 %v7436, %v7428
    %v8837 = vpack.c.b16 %v7437, %v7429
    %v8838 = vpack.c.b16 %v7438, %v7430
    %v8839 = vpack.c.b16 %v7439, %v7431
    %v8840 = vpack.c.b16 %v7440, %v7432
    %v8841 = vpack.c.b16 %v7441, %v7433
    %v8842 = vpack.c.b16 %v7442, %v7434
    %v8843 = vpack.c.b16 %v7451, %v7443
    %v8844 = vpack.c.b16 %v7452, %v7444
    %v8845 = vpack.c.b16 %v7453, %v7445
    %v8846 = vpack.c.b16 %v7454, %v7446
    %v8847 = vpack.c.b16 %v7455, %v7447
    %v8848 = vpack.c.b16 %v7456, %v7448
    %v8849 = vpack.c.b16 %v7457, %v7449
    %v8850 = vpack.c.b16 %v7458, %v7450
    %v8851 = vpack.c.b16 %v7467, %v7459
    %v8852 = vpack.c.b16 %v7468, %v7460
    %v8853 = vpack.c.b16 %v7469, %v7461
    %v8854 = vpack.c.b16 %v7470, %v7462
    %v8855 = vpack.c.b16 %v7471, %v7463
    %v8856 = vpack.c.b16 %v7472, %v7464
    %v8857 = vpack.c.b16 %v7473, %v7465
    %v8858 = vpack.c.b16 %v7474, %v7466
    %v8859 = vpack.c.b16 %v7483, %v7475
    %v8860 = vpack.c.b16 %v7484, %v7476
    %v8861 = vpack.c.b16 %v7485, %v7477
    %v8862 = vpack.c.b16 %v7486, %v7478
    %v8863 = vpack.c.b16 %v7487, %v7479
    %v8864 = vpack.c.b16 %v7488, %v7480
    %v8865 = vpack.c.b16 %v7489, %v7481
    %v8866 = vpack.c.b16 %v7490, %v7482
    %v8867 = vpack.c.b16 %v7499, %v7491
    %v8868 = vpack.c.b16 %v7500, %v7492
    %v8869 = vpack.c.b16 %v7501, %v7493
    %v8870 = vpack.c.b16 %v7502, %v7494
    %v8871 = vpack.c.b16 %v7503, %v7495
    %v8872 = vpack.c.b16 %v7504, %v7496
    %v8873 = vpack.c.b16 %v7505, %v7497
    %v8874 = vpack.c.b16 %v7506, %v7498
    %v8875 = vpack.c.b16 %v7515, %v7507
    %v8876 = vpack.c.b16 %v7516, %v7508
    %v8877 = vpack.c.b16 %v7517, %v7509
    %v8878 = vpack.c.b16 %v7518, %v7510
    %v8879 = vpack.c.b16 %v7519, %v7511
    %v8880 = vpack.c.b16 %v7520, %v7512
    %v8881 = vpack.c.b16 %v7521, %v7513
    %v8882 = vpack.c.b16 %v7522, %v7514
    %v8883 = vpack.c.b16 %v7531, %v7523
    %v8884 = vpack.c.b16 %v7532, %v7524
    %v8885 = vpack.c.b16 %v7533, %v7525
    %v8886 = vpack.c.b16 %v7534, %v7526
    %v8887 = vpack.c.b16 %v7535, %v7527
    %v8888 = vpack.c.b16 %v7536, %v7528
    %v8889 = vpack.c.b16 %v7537, %v7529
    %v8890 = vpack.c.b16 %v7538, %v7530
    %v8891 = vpack.c.b16 %v7547, %v7539
    %v8892 = vpack.c.b16 %v7548, %v7540
    %v8893 = vpack.c.b16 %v7549, %v7541
    %v8894 = vpack.c.b16 %v7550, %v7542
    %v8895 = vpack.c.b16 %v7551, %v7543
    %v8896 = vpack.c.b16 %v7552, %v7544
    %v8897 = vpack.c.b16 %v7553, %v7545
    %v8898 = vpack.c.b16 %v7554, %v7546
    %v8899 = vpack.c.b16 %v7563, %v7555
    %v8900 = vpack.c.b16 %v7564, %v7556
    %v8901 = vpack.c.b16 %v7565, %v7557
    %v8902 = vpack.c.b16 %v7566, %v7558
    %v8903 = vpack.c.b16 %v7567, %v7559
    %v8904 = vpack.c.b16 %v7568, %v7560
    %v8905 = vpack.c.b16 %v7569, %v7561
    %v8906 = vpack.c.b16 %v7570, %v7562
    %v8907 = vpack.c.b16 %v7579, %v7571
    %v8908 = vpack.c.b16 %v7580, %v7572
    %v8909 = vpack.c.b16 %v7581, %v7573
    %v8910 = vpack.c.b16 %v7582, %v7574
    %v8911 = vpack.c.b16 %v7583, %v7575
    %v8912 = vpack.c.b16 %v7584, %v7576
    %v8913 = vpack.c.b16 %v7585, %v7577
    %v8914 = vpack.c.b16 %v7586, %v7578
    %v8915 = vpack.c.b16 %v7595, %v7587
    %v8916 = vpack.c.b16 %v7596, %v7588
    %v8917 = vpack.c.b16 %v7597, %v7589
    %v8918 = vpack.c.b16 %v7598, %v7590
    %v8919 = vpack.c.b16 %v7599, %v7591
    %v8920 = vpack.c.b16 %v7600, %v7592
    %v8921 = vpack.c.b16 %v7601, %v7593
    %v8922 = vpack.c.b16 %v7602, %v7594
    %v8923 = vpack.c.b16 %v7611, %v7603
    %v8924 = vpack.c.b16 %v7612, %v7604
    %v8925 = vpack.c.b16 %v7613, %v7605
    %v8926 = vpack.c.b16 %v7614, %v7606
    %v8927 = vpack.c.b16 %v7615, %v7607
    %v8928 = vpack.c.b16 %v7616, %v7608
    %v8929 = vpack.c.b16 %v7617, %v7609
    %v8930 = vpack.c.b16 %v7618, %v7610
    %v8931 = vpack.c.b16 %v7627, %v7619
    %v8932 = vpack.c.b16 %v7628, %v7620
    %v8933 = vpack.c.b16 %v7629, %v7621
    %v8934 = vpack.c.b16 %v7630, %v7622
    %v8935 = vpack.c.b16 %v7631, %v7623
    %v8936 = vpack.c.b16 %v7632, %v7624
    %v8937 = vpack.c.b16 %v7633, %v7625
    %v8938 = vpack.c.b16 %v7634, %v7626
    %v8939 = vpack.c.b16 %v7643, %v7635
    %v8940 = vpack.c.b16 %v7644, %v7636
    %v8941 = vpack.c.b16 %v7645, %v7637
    %v8942 = vpack.c.b16 %v7646, %v7638
    %v8943 = vpack.c.b16 %v7647, %v7639
    %v8944 = vpack.c.b16 %v7648, %v7640
    %v8945 = vpack.c.b16 %v7649, %v7641
    %v8946 = vpack.c.b16 %v7650, %v7642
    %v8947 = vpack.c.b16 %v7659, %v7651
    %v8948 = vpack.c.b16 %v7660, %v7652
    %v8949 = vpack.c.b16 %v7661, %v7653
    %v8950 = vpack.c.b16 %v7662, %v7654
    %v8951 = vpack.c.b16 %v7663, %v7655
    %v8952 = vpack.c.b16 %v7664, %v7656
    %v8953 = vpack.c.b16 %v7665, %v7657
    %v8954 = vpack.c.b16 %v7666, %v7658
    %v8955 = vpack.c.b16 %v7675, %v7667
    %v8956 = vpack.c.b16 %v7676, %v7668
    %v8957 = vpack.c.b16 %v7677, %v7669
    %v8958 = vpack.c.b16 %v7678, %v7670
    %v8959 = vpack.c.b16 %v7679, %v7671
    %v8960 = vpack.c.b16 %v7680, %v7672
    %v8961 = vpack.c.b16 %v7681, %v7673
    %v8962 = vpack.c.b16 %v7682, %v7674
    %v8963 = vpack.c.b16 %v7691, %v7683
    %v8964 = vpack.c.b16 %v7692, %v7684
    %v8965 = vpack.c.b16 %v7693, %v7685
    %v8966 = vpack.c.b16 %v7694, %v7686
    %v8967 = vpack.c.b16 %v7695, %v7687
    %v8968 = vpack.c.b16 %v7696, %v7688
    %v8969 = vpack.c.b16 %v7697, %v7689
    %v8970 = vpack.c.b16 %v7698, %v7690
    %v8971 = vpack.c.b16 %v7707, %v7699
    %v8972 = vpack.c.b16 %v7708, %v7700
    %v8973 = vpack.c.b16 %v7709, %v7701
    %v8974 = vpack.c.b16 %v7710, %v7702
    %v8975 = vpack.c.b16 %v7711, %v7703
    %v8976 = vpack.c.b16 %v7712, %v7704
    %v8977 = vpack.c.b16 %v7713, %v7705
    %v8978 = vpack.c.b16 %v7714, %v7706
    %v8979 = vpack.c.b16 %v7723, %v7715
    %v8980 = vpack.c.b16 %v7724, %v7716
    %v8981 = vpack.c.b16 %v7725, %v7717
    %v8982 = vpack.c.b16 %v7726, %v7718
    %v8983 = vpack.c.b16 %v7727, %v7719
    %v8984 = vpack.c.b16 %v7728, %v7720
    %v8985 = vpack.c.b16 %v7729, %v7721
    %v8986 = vpack.c.b16 %v7730, %v7722
    %v8987 = vpack.c.b16 %v7739, %v7731
    %v8988 = vpack.c.b16 %v7740, %v7732
    %v8989 = vpack.c.b16 %v7741, %v7733
    %v8990 = vpack.c.b16 %v7742, %v7734
    %v8991 = vpack.c.b16 %v7743, %v7735
    %v8992 = vpack.c.b16 %v7744, %v7736
    %v8993 = vpack.c.b16 %v7745, %v7737
    %v8994 = vpack.c.b16 %v7746, %v7738
    %v8995 = vpack.c.b16 %v7755, %v7747
    %v8996 = vpack.c.b16 %v7756, %v7748
    %v8997 = vpack.c.b16 %v7757, %v7749
    %v8998 = vpack.c.b16 %v7758, %v7750
    %v8999 = vpack.c.b16 %v7759, %v7751
    %v9000 = vpack.c.b16 %v7760, %v7752
    %v9001 = vpack.c.b16 %v7761, %v7753
    %v9002 = vpack.c.b16 %v7762, %v7754
    %v9003 = vpack.c.b16 %v7771, %v7763
    %v9004 = vpack.c.b16 %v7772, %v7764
    %v9005 = vpack.c.b16 %v7773, %v7765
    %v9006 = vpack.c.b16 %v7774, %v7766
    %v9007 = vpack.c.b16 %v7775, %v7767
    %v9008 = vpack.c.b16 %v7776, %v7768
    %v9009 = vpack.c.b16 %v7777, %v7769
    %v9010 = vpack.c.b16 %v7778, %v7770
    %v9011 = vpack.c.b16 %v7787, %v7779
    %v9012 = vpack.c.b16 %v7788, %v7780
    %v9013 = vpack.c.b16 %v7789, %v7781
    %v9014 = vpack.c.b16 %v7790, %v7782
    %v9015 = vpack.c.b16 %v7791, %v7783
    %v9016 = vpack.c.b16 %v7792, %v7784
    %v9017 = vpack.c.b16 %v7793, %v7785
    %v9018 = vpack.c.b16 %v7794, %v7786
    %v9019 = vpack.c.b16 %v7803, %v7795
    %v9020 = vpack.c.b16 %v7804, %v7796
    %v9021 = vpack.c.b16 %v7805, %v7797
    %v9022 = vpack.c.b16 %v7806, %v7798
    %v9023 = vpack.c.b16 %v7807, %v7799
    %v9024 = vpack.c.b16 %v7808, %v7800
    %v9025 = vpack.c.b16 %v7809, %v7801
    %v9026 = vpack.c.b16 %v7810, %v7802
    %v9027 = vpack.c.b16 %v7819, %v7811
    %v9028 = vpack.c.b16 %v7820, %v7812
    %v9029 = vpack.c.b16 %v7821, %v7813
    %v9030 = vpack.c.b16 %v7822, %v7814
    %v9031 = vpack.c.b16 %v7823, %v7815
    %v9032 = vpack.c.b16 %v7824, %v7816
    %v9033 = vpack.c.b16 %v7825, %v7817
    %v9034 = vpack.c.b16 %v7826, %v7818
    %v9035 = vpack.c.b16 %v7835, %v7827
    %v9036 = vpack.c.b16 %v7836, %v7828
    %v9037 = vpack.c.b16 %v7837, %v7829
    %v9038 = vpack.c.b16 %v7838, %v7830
    %v9039 = vpack.c.b16 %v7839, %v7831
    %v9040 = vpack.c.b16 %v7840, %v7832
    %v9041 = vpack.c.b16 %v7841, %v7833
    %v9042 = vpack.c.b16 %v7842, %v7834
    %v9043 = vpack.c.b16 %v7851, %v7843
    %v9044 = vpack.c.b16 %v7852, %v7844
    %v9045 = vpack.c.b16 %v7853, %v7845
    %v9046 = vpack.c.b16 %v7854, %v7846
    %v9047 = vpack.c.b16 %v7855, %v7847
    %v9048 = vpack.c.b16 %v7856, %v7848
    %v9049 = vpack.c.b16 %v7857, %v7849
    %v9050 = vpack.c.b16 %v7858, %v7850
    %v9051 = vpack.c.b16 %v7867, %v7859
    %v9052 = vpack.c.b16 %v7868, %v7860
    %v9053 = vpack.c.b16 %v7869, %v7861
    %v9054 = vpack.c.b16 %v7870, %v7862
    %v9055 = vpack.c.b16 %v7871, %v7863
    %v9056 = vpack.c.b16 %v7872, %v7864
    %v9057 = vpack.c.b16 %v7873, %v7865
    %v9058 = vpack.c.b16 %v7874, %v7866
    %v9059 = vpack.c.b16 %v7883, %v7875
    %v9060 = vpack.c.b16 %v7884, %v7876
    %v9061 = vpack.c.b16 %v7885, %v7877
    %v9062 = vpack.c.b16 %v7886, %v7878
    %v9063 = vpack.c.b16 %v7887, %v7879
    %v9064 = vpack.c.b16 %v7888, %v7880
    %v9065 = vpack.c.b16 %v7889, %v7881
    %v9066 = vpack.c.b16 %v7890, %v7882
    %v9067 = vpack.c.b16 %v7899, %v7891
    %v9068 = vpack.c.b16 %v7900, %v7892
    %v9069 = vpack.c.b16 %v7901, %v7893
    %v9070 = vpack.c.b16 %v7902, %v7894
    %v9071 = vpack.c.b16 %v7903, %v7895
    %v9072 = vpack.c.b16 %v7904, %v7896
    %v9073 = vpack.c.b16 %v7905, %v7897
    %v9074 = vpack.c.b16 %v7906, %v7898
    %v9075 = vpack.c.b16 %v7915, %v7907
    %v9076 = vpack.c.b16 %v7916, %v7908
    %v9077 = vpack.c.b16 %v7917, %v7909
    %v9078 = vpack.c.b16 %v7918, %v7910
    %v9079 = vpack.c.b16 %v7919, %v7911
    %v9080 = vpack.c.b16 %v7920, %v7912
    %v9081 = vpack.c.b16 %v7921, %v7913
    %v9082 = vpack.c.b16 %v7922, %v7914
    %v9083 = vpack.c.b16 %v7931, %v7923
    %v9084 = vpack.c.b16 %v7932, %v7924
    %v9085 = vpack.c.b16 %v7933, %v7925
    %v9086 = vpack.c.b16 %v7934, %v7926
    %v9087 = vpack.c.b16 %v7935, %v7927
    %v9088 = vpack.c.b16 %v7936, %v7928
    %v9089 = vpack.c.b16 %v7937, %v7929
    %v9090 = vpack.c.b16 %v7938, %v7930
    %v9091 = vpack.c.b16 %v7947, %v7939
    %v9092 = vpack.c.b16 %v7948, %v7940
    %v9093 = vpack.c.b16 %v7949, %v7941
    %v9094 = vpack.c.b16 %v7950, %v7942
    %v9095 = vpack.c.b16 %v7951, %v7943
    %v9096 = vpack.c.b16 %v7952, %v7944
    %v9097 = vpack.c.b16 %v7953, %v7945
    %v9098 = vpack.c.b16 %v7954, %v7946
    %v9099 = vpack.c.b16 %v7963, %v7955
    %v9100 = vpack.c.b16 %v7964, %v7956
    %v9101 = vpack.c.b16 %v7965, %v7957
    %v9102 = vpack.c.b16 %v7966, %v7958
    %v9103 = vpack.c.b16 %v7967, %v7959
    %v9104 = vpack.c.b16 %v7968, %v7960
    %v9105 = vpack.c.b16 %v7969, %v7961
    %v9106 = vpack.c.b16 %v7970, %v7962
    %v9107 = vpack.c.b16 %v7979, %v7971
    %v9108 = vpack.c.b16 %v7980, %v7972
    %v9109 = vpack.c.b16 %v7981, %v7973
    %v9110 = vpack.c.b16 %v7982, %v7974
    %v9111 = vpack.c.b16 %v7983, %v7975
    %v9112 = vpack.c.b16 %v7984, %v7976
    %v9113 = vpack.c.b16 %v7985, %v7977
    %v9114 = vpack.c.b16 %v7986, %v7978
    %v9115 = vpack.c.b16 %v7995, %v7987
    %v9116 = vpack.c.b16 %v7996, %v7988
    %v9117 = vpack.c.b16 %v7997, %v7989
    %v9118 = vpack.c.b16 %v7998, %v7990
    %v9119 = vpack.c.b16 %v7999, %v7991
    %v9120 = vpack.c.b16 %v8000, %v7992
    %v9121 = vpack.c.b16 %v8001, %v7993
    %v9122 = vpack.c.b16 %v8002, %v7994
    %v9123 = vpack.c.b16 %v8011, %v8003
    %v9124 = vpack.c.b16 %v8012, %v8004
    %v9125 = vpack.c.b16 %v8013, %v8005
    %v9126 = vpack.c.b16 %v8014, %v8006
    %v9127 = vpack.c.b16 %v8015, %v8007
    %v9128 = vpack.c.b16 %v8016, %v8008
    %v9129 = vpack.c.b16 %v8017, %v8009
    %v9130 = vpack.c.b16 %v8018, %v8010
    %v9131 = vpack.c.b16 %v8027, %v8019
    %v9132 = vpack.c.b16 %v8028, %v8020
    %v9133 = vpack.c.b16 %v8029, %v8021
    %v9134 = vpack.c.b16 %v8030, %v8022
    %v9135 = vpack.c.b16 %v8031, %v8023
    %v9136 = vpack.c.b16 %v8032, %v8024
    %v9137 = vpack.c.b16 %v8033, %v8025
    %v9138 = vpack.c.b16 %v8034, %v8026
    %v9139 = vpack.c.b16 %v8043, %v8035
    %v9140 = vpack.c.b16 %v8044, %v8036
    %v9141 = vpack.c.b16 %v8045, %v8037
    %v9142 = vpack.c.b16 %v8046, %v8038
    %v9143 = vpack.c.b16 %v8047, %v8039
    %v9144 = vpack.c.b16 %v8048, %v8040
    %v9145 = vpack.c.b16 %v8049, %v8041
    %v9146 = vpack.c.b16 %v8050, %v8042
    %v9147 = vpack.c.b16 %v8059, %v8051
    %v9148 = vpack.c.b16 %v8060, %v8052
    %v9149 = vpack.c.b16 %v8061, %v8053
    %v9150 = vpack.c.b16 %v8062, %v8054
    %v9151 = vpack.c.b16 %v8063, %v8055
    %v9152 = vpack.c.b16 %v8064, %v8056
    %v9153 = vpack.c.b16 %v8065, %v8057
    %v9154 = vpack.c.b16 %v8066, %v8058
    %v9155 = vpack.c.b16 %v8075, %v8067
    %v9156 = vpack.c.b16 %v8076, %v8068
    %v9157 = vpack.c.b16 %v8077, %v8069
    %v9158 = vpack.c.b16 %v8078, %v8070
    %v9159 = vpack.c.b16 %v8079, %v8071
    %v9160 = vpack.c.b16 %v8080, %v8072
    %v9161 = vpack.c.b16 %v8081, %v8073
    %v9162 = vpack.c.b16 %v8082, %v8074
    %v9163 = vpack.c.b16 %v8091, %v8083
    %v9164 = vpack.c.b16 %v8092, %v8084
    %v9165 = vpack.c.b16 %v8093, %v8085
    %v9166 = vpack.c.b16 %v8094, %v8086
    %v9167 = vpack.c.b16 %v8095, %v8087
    %v9168 = vpack.c.b16 %v8096, %v8088
    %v9169 = vpack.c.b16 %v8097, %v8089
    %v9170 = vpack.c.b16 %v8098, %v8090
    %v9171 = vpack.c.b16 %v8107, %v8099
    %v9172 = vpack.c.b16 %v8108, %v8100
    %v9173 = vpack.c.b16 %v8109, %v8101
    %v9174 = vpack.c.b16 %v8110, %v8102
    %v9175 = vpack.c.b16 %v8111, %v8103
    %v9176 = vpack.c.b16 %v8112, %v8104
    %v9177 = vpack.c.b16 %v8113, %v8105
    %v9178 = vpack.c.b16 %v8114, %v8106
    %v9179 = vpack.c.b16 %v8123, %v8115
    %v9180 = vpack.c.b16 %v8124, %v8116
    %v9181 = vpack.c.b16 %v8125, %v8117
    %v9182 = vpack.c.b16 %v8126, %v8118
    %v9183 = vpack.c.b16 %v8127, %v8119
    %v9184 = vpack.c.b16 %v8128, %v8120
    %v9185 = vpack.c.b16 %v8129, %v8121
    %v9186 = vpack.c.b16 %v8130, %v8122
    %v9187 = vpack.c.b16 %v8139, %v8131
    %v9188 = vpack.c.b16 %v8140, %v8132
    %v9189 = vpack.c.b16 %v8141, %v8133
    %v9190 = vpack.c.b16 %v8142, %v8134
    %v9191 = vpack.c.b16 %v8143, %v8135
    %v9192 = vpack.c.b16 %v8144, %v8136
    %v9193 = vpack.c.b16 %v8145, %v8137
    %v9194 = vpack.c.b16 %v8146, %v8138
    %v9195 = vpack.c.b16 %v8155, %v8147
    %v9196 = vpack.c.b16 %v8156, %v8148
    %v9197 = vpack.c.b16 %v8157, %v8149
    %v9198 = vpack.c.b16 %v8158, %v8150
    %v9199 = vpack.c.b16 %v8159, %v8151
    %v9200 = vpack.c.b16 %v8160, %v8152
    %v9201 = vpack.c.b16 %v8161, %v8153
    %v9202 = vpack.c.b16 %v8162, %v8154
    %v9203 = vpack.c.b16 %v8171, %v8163
    %v9204 = vpack.c.b16 %v8172, %v8164
    %v9205 = vpack.c.b16 %v8173, %v8165
    %v9206 = vpack.c.b16 %v8174, %v8166
    %v9207 = vpack.c.b16 %v8175, %v8167
    %v9208 = vpack.c.b16 %v8176, %v8168
    %v9209 = vpack.c.b16 %v8177, %v8169
    %v9210 = vpack.c.b16 %v8178, %v8170
    %v9211 = vpack.c.b16 %v8187, %v8179
    %v9212 = vpack.c.b16 %v8188, %v8180
    %v9213 = vpack.c.b16 %v8189, %v8181
    %v9214 = vpack.c.b16 %v8190, %v8182
    %v9215 = vpack.c.b16 %v8191, %v8183
    %v9216 = vpack.c.b16 %v8192, %v8184
    %v9217 = vpack.c.b16 %v8193, %v8185
    %v9218 = vpack.c.b16 %v8194, %v8186
    %10243 = vmatprep.subr.bf16.mxu0 %v8196
    %10244 = vmatpush1.bf16.msra.mxu0 %v8195
    %10245 = vmatprep.subr.bf16.mxu0 %v8204
    %10246 = vmatpush1.bf16.msra.mxu0 %v8203
    %10247 = vmatprep.subr.bf16.mxu0 %v8212
    %10248 = vmatpush1.bf16.msra.mxu0 %v8211
    %10249 = vmatprep.subr.bf16.mxu0 %v8220
    %10250 = vmatpush1.bf16.msra.mxu0 %v8219
    %10251 = vmatprep.subr.bf16.mxu0 %v8228
    %10252 = vmatpush1.bf16.msra.mxu0 %v8227
    %10253 = vmatprep.subr.bf16.mxu0 %v8236
    %10254 = vmatpush1.bf16.msra.mxu0 %v8235
    %10255 = vmatprep.subr.bf16.mxu0 %v8244
    %10256 = vmatpush1.bf16.msra.mxu0 %v8243
    %10257 = vmatprep.subr.bf16.mxu0 %v8252
    %10258 = vmatpush1.bf16.msra.mxu0 %v8251
    %10259 = vmatprep.subr.bf16.mxu0 %v8260
    %10260 = vmatpush1.bf16.msra.mxu0 %v8259
    %10261 = vmatprep.subr.bf16.mxu0 %v8268
    %10262 = vmatpush1.bf16.msra.mxu0 %v8267
    %10263 = vmatprep.subr.bf16.mxu0 %v8276
    %10264 = vmatpush1.bf16.msra.mxu0 %v8275
    %10265 = vmatprep.subr.bf16.mxu0 %v8284
    %10266 = vmatpush1.bf16.msra.mxu0 %v8283
    %10267 = vmatprep.subr.bf16.mxu0 %v8292
    %10268 = vmatpush1.bf16.msra.mxu0 %v8291
    %10269 = vmatprep.subr.bf16.mxu0 %v8300
    %10270 = vmatpush1.bf16.msra.mxu0 %v8299
    %10271 = vmatprep.subr.bf16.mxu0 %v8308
    %10272 = vmatpush1.bf16.msra.mxu0 %v8307
    %10273 = vmatprep.subr.bf16.mxu0 %v8316
    %10274 = vmatpush1.bf16.msra.mxu0 %v8315
    %10275 = vmatprep.mubr.bf16.mxu0 %v4042
    %10276 = vmatmul.mubr.bf16.gmra.mrb[0].mxu0 %v4041
    %v10277 = vpop.f32.mrb[0].mxu0
    %v10278 = vadd.f32 %v5086, %v10277
    %v10279 = vpop.f32.mrb[0].mxu0
    %v10280 = vadd.f32 %v5090, %v10279
    %v10281 = vpop.f32.mrb[0].mxu0
    %v10282 = vpop.f32.mrb[0].mxu0
    %10283 = vdwg.mxu0
    %10284 = vmatprep.subr.bf16.mxu0 %v8324
    %10285 = vmatpush1.bf16.msra.mxu0 %v8323
    %10286 = vmatprep.subr.bf16.mxu0 %v8332
    %10287 = vmatpush1.bf16.msra.mxu0 %v8331
    %10288 = vmatprep.subr.bf16.mxu0 %v8340
    %10289 = vmatpush1.bf16.msra.mxu0 %v8339
    %10290 = vmatprep.subr.bf16.mxu0 %v8348
    %10291 = vmatpush1.bf16.msra.mxu0 %v8347
    %10292 = vmatprep.subr.bf16.mxu0 %v8356
    %10293 = vmatpush1.bf16.msra.mxu0 %v8355
    %10294 = vmatprep.subr.bf16.mxu0 %v8364
    %10295 = vmatpush1.bf16.msra.mxu0 %v8363
    %10296 = vmatprep.subr.bf16.mxu0 %v8372
    %10297 = vmatpush1.bf16.msra.mxu0 %v8371
    %10298 = vmatprep.subr.bf16.mxu0 %v8380
    %10299 = vmatpush1.bf16.msra.mxu0 %v8379
    %10300 = vmatprep.subr.bf16.mxu0 %v8388
    %10301 = vmatpush1.bf16.msra.mxu0 %v8387
    %10302 = vmatprep.subr.bf16.mxu0 %v8396
    %10303 = vmatpush1.bf16.msra.mxu0 %v8395
    %10304 = vmatprep.subr.bf16.mxu0 %v8404
    %10305 = vmatpush1.bf16.msra.mxu0 %v8403
    %10306 = vmatprep.subr.bf16.mxu0 %v8412
    %10307 = vmatpush1.bf16.msra.mxu0 %v8411
    %10308 = vmatprep.subr.bf16.mxu0 %v8420
    %10309 = vmatpush1.bf16.msra.mxu0 %v8419
    %10310 = vmatprep.subr.bf16.mxu0 %v8428
    %10311 = vmatpush1.bf16.msra.mxu0 %v8427
    %10312 = vmatprep.subr.bf16.mxu0 %v8436
    %10313 = vmatpush1.bf16.msra.mxu0 %v8435
    %10314 = vmatprep.subr.bf16.mxu0 %v8444
    %10315 = vmatpush1.bf16.msra.mxu0 %v8443
    %10316 = vmatprep.mubr.bf16.mxu0 %v4044
    %10317 = vmatmul.mubr.bf16.gmra.mrb[0].mxu0 %v4043
    %v10318 = vpop.f32.mrb[0].mxu0
    %v10319 = vadd.f32 %v10278, %v10318
    %v10320 = vpop.f32.mrb[0].mxu0
    %v10321 = vadd.f32 %v10280, %v10320
    %v10322 = vpop.f32.mrb[0].mxu0
    %v10323 = vpop.f32.mrb[0].mxu0
    %10324 = vdwg.mxu0
    %10325 = vmatprep.subr.bf16.mxu0 %v8452
    %10326 = vmatpush1.bf16.msra.mxu0 %v8451
    %10327 = vmatprep.subr.bf16.mxu0 %v8460
    %10328 = vmatpush1.bf16.msra.mxu0 %v8459
    %10329 = vmatprep.subr.bf16.mxu0 %v8468
    %10330 = vmatpush1.bf16.msra.mxu0 %v8467
    %10331 = vmatprep.subr.bf16.mxu0 %v8476
    %10332 = vmatpush1.bf16.msra.mxu0 %v8475
    %10333 = vmatprep.subr.bf16.mxu0 %v8484
    %10334 = vmatpush1.bf16.msra.mxu0 %v8483
    %10335 = vmatprep.subr.bf16.mxu0 %v8492
    %10336 = vmatpush1.bf16.msra.mxu0 %v8491
    %10337 = vmatprep.subr.bf16.mxu0 %v8500
    %10338 = vmatpush1.bf16.msra.mxu0 %v8499
    %10339 = vmatprep.subr.bf16.mxu0 %v8508
    %10340 = vmatpush1.bf16.msra.mxu0 %v8507
    %10341 = vmatprep.subr.bf16.mxu0 %v8516
    %10342 = vmatpush1.bf16.msra.mxu0 %v8515
    %10343 = vmatprep.subr.bf16.mxu0 %v8524
    %10344 = vmatpush1.bf16.msra.mxu0 %v8523
    %10345 = vmatprep.subr.bf16.mxu0 %v8532
    %10346 = vmatpush1.bf16.msra.mxu0 %v8531
    %10347 = vmatprep.subr.bf16.mxu0 %v8540
    %10348 = vmatpush1.bf16.msra.mxu0 %v8539
    %10349 = vmatprep.subr.bf16.mxu0 %v8548
    %10350 = vmatpush1.bf16.msra.mxu0 %v8547
    %10351 = vmatprep.subr.bf16.mxu0 %v8556
    %10352 = vmatpush1.bf16.msra.mxu0 %v8555
    %10353 = vmatprep.subr.bf16.mxu0 %v8564
    %10354 = vmatpush1.bf16.msra.mxu0 %v8563
    %10355 = vmatprep.subr.bf16.mxu0 %v8572
    %10356 = vmatpush1.bf16.msra.mxu0 %v8571
    %10357 = vmatprep.mubr.bf16.mxu0 %v4046
    %10358 = vmatmul.mubr.bf16.gmra.mrb[0].mxu0 %v4045
    %v10359 = vpop.f32.mrb[0].mxu0
    %v10360 = vadd.f32 %v10319, %v10359
    %v10361 = vpop.f32.mrb[0].mxu0
    %v10362 = vadd.f32 %v10321, %v10361
    %v10363 = vpop.f32.mrb[0].mxu0
    %v10364 = vpop.f32.mrb[0].mxu0
    %10365 = vdwg.mxu0
    %10366 = vmatprep.subr.bf16.mxu0 %v8580
    %10367 = vmatpush1.bf16.msra.mxu0 %v8579
    %10368 = vmatprep.subr.bf16.mxu0 %v8588
    %10369 = vmatpush1.bf16.msra.mxu0 %v8587
    %10370 = vmatprep.subr.bf16.mxu0 %v8596
    %10371 = vmatpush1.bf16.msra.mxu0 %v8595
    %10372 = vmatprep.subr.bf16.mxu0 %v8604
    %10373 = vmatpush1.bf16.msra.mxu0 %v8603
    %10374 = vmatprep.subr.bf16.mxu0 %v8612
    %10375 = vmatpush1.bf16.msra.mxu0 %v8611
    %10376 = vmatprep.subr.bf16.mxu0 %v8620
    %10377 = vmatpush1.bf16.msra.mxu0 %v8619
    %10378 = vmatprep.subr.bf16.mxu0 %v8628
    %10379 = vmatpush1.bf16.msra.mxu0 %v8627
    %10380 = vmatprep.subr.bf16.mxu0 %v8636
    %10381 = vmatpush1.bf16.msra.mxu0 %v8635
    %10382 = vmatprep.subr.bf16.mxu0 %v8644
    %10383 = vmatpush1.bf16.msra.mxu0 %v8643
    %10384 = vmatprep.subr.bf16.mxu0 %v8652
    %10385 = vmatpush1.bf16.msra.mxu0 %v8651
    %10386 = vmatprep.subr.bf16.mxu0 %v8660
    %10387 = vmatpush1.bf16.msra.mxu0 %v8659
    %10388 = vmatprep.subr.bf16.mxu0 %v8668
    %10389 = vmatpush1.bf16.msra.mxu0 %v8667
    %10390 = vmatprep.subr.bf16.mxu0 %v8676
    %10391 = vmatpush1.bf16.msra.mxu0 %v8675
    %10392 = vmatprep.subr.bf16.mxu0 %v8684
    %10393 = vmatpush1.bf16.msra.mxu0 %v8683
    %10394 = vmatprep.subr.bf16.mxu0 %v8692
    %10395 = vmatpush1.bf16.msra.mxu0 %v8691
    %10396 = vmatprep.subr.bf16.mxu0 %v8700
    %10397 = vmatpush1.bf16.msra.mxu0 %v8699
    %10398 = vmatprep.mubr.bf16.mxu0 %v4048
    %10399 = vmatmul.mubr.bf16.gmra.mrb[0].mxu0 %v4047
    %v10400 = vpop.f32.mrb[0].mxu0
    %v10401 = vadd.f32 %v10360, %v10400
    %v10402 = vpop.f32.mrb[0].mxu0
    %v10403 = vadd.f32 %v10362, %v10402
    %v10404 = vpop.f32.mrb[0].mxu0
    %v10405 = vpop.f32.mrb[0].mxu0
    %10406 = vdwg.mxu0
    %10407 = vmatprep.subr.bf16.mxu0 %v8708
    %10408 = vmatpush1.bf16.msra.mxu0 %v8707
    %10409 = vmatprep.subr.bf16.mxu0 %v8716
    %10410 = vmatpush1.bf16.msra.mxu0 %v8715
    %10411 = vmatprep.subr.bf16.mxu0 %v8724
    %10412 = vmatpush1.bf16.msra.mxu0 %v8723
    %10413 = vmatprep.subr.bf16.mxu0 %v8732
    %10414 = vmatpush1.bf16.msra.mxu0 %v8731
    %10415 = vmatprep.subr.bf16.mxu0 %v8740
    %10416 = vmatpush1.bf16.msra.mxu0 %v8739
    %10417 = vmatprep.subr.bf16.mxu0 %v8748
    %10418 = vmatpush1.bf16.msra.mxu0 %v8747
    %10419 = vmatprep.subr.bf16.mxu0 %v8756
    %10420 = vmatpush1.bf16.msra.mxu0 %v8755
    %10421 = vmatprep.subr.bf16.mxu0 %v8764
    %10422 = vmatpush1.bf16.msra.mxu0 %v8763
    %10423 = vmatprep.subr.bf16.mxu0 %v8772
    %10424 = vmatpush1.bf16.msra.mxu0 %v8771
    %10425 = vmatprep.subr.bf16.mxu0 %v8780
    %10426 = vmatpush1.bf16.msra.mxu0 %v8779
    %10427 = vmatprep.subr.bf16.mxu0 %v8788
    %10428 = vmatpush1.bf16.msra.mxu0 %v8787
    %10429 = vmatprep.subr.bf16.mxu0 %v8796
    %10430 = vmatpush1.bf16.msra.mxu0 %v8795
    %10431 = vmatprep.subr.bf16.mxu0 %v8804
    %10432 = vmatpush1.bf16.msra.mxu0 %v8803
    %10433 = vmatprep.subr.bf16.mxu0 %v8812
    %10434 = vmatpush1.bf16.msra.mxu0 %v8811
    %10435 = vmatprep.subr.bf16.mxu0 %v8820
    %10436 = vmatpush1.bf16.msra.mxu0 %v8819
    %10437 = vmatprep.subr.bf16.mxu0 %v8828
    %10438 = vmatpush1.bf16.msra.mxu0 %v8827
    %10439 = vmatprep.mubr.bf16.mxu0 %v4050
    %10440 = vmatmul.mubr.bf16.gmra.mrb[0].mxu0 %v4049
    %v10441 = vpop.f32.mrb[0].mxu0
    %v10442 = vadd.f32 %v10401, %v10441
    %v10443 = vpop.f32.mrb[0].mxu0
    %v10444 = vadd.f32 %v10403, %v10443
    %v10445 = vpop.f32.mrb[0].mxu0
    %v10446 = vpop.f32.mrb[0].mxu0
    %10447 = vdwg.mxu0
    %10448 = vmatprep.subr.bf16.mxu0 %v8836
    %10449 = vmatpush1.bf16.msra.mxu0 %v8835
    %10450 = vmatprep.subr.bf16.mxu0 %v8844
    %10451 = vmatpush1.bf16.msra.mxu0 %v8843
    %10452 = vmatprep.subr.bf16.mxu0 %v8852
    %10453 = vmatpush1.bf16.msra.mxu0 %v8851
    %10454 = vmatprep.subr.bf16.mxu0 %v8860
    %10455 = vmatpush1.bf16.msra.mxu0 %v8859
    %10456 = vmatprep.subr.bf16.mxu0 %v8868
    %10457 = vmatpush1.bf16.msra.mxu0 %v8867
    %10458 = vmatprep.subr.bf16.mxu0 %v8876
    %10459 = vmatpush1.bf16.msra.mxu0 %v8875
    %10460 = vmatprep.subr.bf16.mxu0 %v8884
    %10461 = vmatpush1.bf16.msra.mxu0 %v8883
    %10462 = vmatprep.subr.bf16.mxu0 %v8892
    %10463 = vmatpush1.bf16.msra.mxu0 %v8891
    %10464 = vmatprep.subr.bf16.mxu0 %v8900
    %10465 = vmatpush1.bf16.msra.mxu0 %v8899
    %10466 = vmatprep.subr.bf16.mxu0 %v8908
    %10467 = vmatpush1.bf16.msra.mxu0 %v8907
    %10468 = vmatprep.subr.bf16.mxu0 %v8916
    %10469 = vmatpush1.bf16.msra.mxu0 %v8915
    %10470 = vmatprep.subr.bf16.mxu0 %v8924
    %10471 = vmatpush1.bf16.msra.mxu0 %v8923
    %10472 = vmatprep.subr.bf16.mxu0 %v8932
    %10473 = vmatpush1.bf16.msra.mxu0 %v8931
    %10474 = vmatprep.subr.bf16.mxu0 %v8940
    %10475 = vmatpush1.bf16.msra.mxu0 %v8939
    %10476 = vmatprep.subr.bf16.mxu0 %v8948
    %10477 = vmatpush1.bf16.msra.mxu0 %v8947
    %10478 = vmatprep.subr.bf16.mxu0 %v8956
    %10479 = vmatpush1.bf16.msra.mxu0 %v8955
    %10480 = vmatprep.mubr.bf16.mxu0 %v4052
    %10481 = vmatmul.mubr.bf16.gmra.mrb[0].mxu0 %v4051
    %v10482 = vpop.f32.mrb[0].mxu0
    %v10483 = vadd.f32 %v10442, %v10482
    %v10484 = vpop.f32.mrb[0].mxu0
    %v10485 = vadd.f32 %v10444, %v10484
    %v10486 = vpop.f32.mrb[0].mxu0
    %v10487 = vpop.f32.mrb[0].mxu0
    %10488 = vdwg.mxu0
    %10489 = vmatprep.subr.bf16.mxu0 %v8964
    %10490 = vmatpush1.bf16.msra.mxu0 %v8963
    %10491 = vmatprep.subr.bf16.mxu0 %v8972
    %10492 = vmatpush1.bf16.msra.mxu0 %v8971
    %10493 = vmatprep.subr.bf16.mxu0 %v8980
    %10494 = vmatpush1.bf16.msra.mxu0 %v8979
    %10495 = vmatprep.subr.bf16.mxu0 %v8988
    %10496 = vmatpush1.bf16.msra.mxu0 %v8987
    %10497 = vmatprep.subr.bf16.mxu0 %v8996
    %10498 = vmatpush1.bf16.msra.mxu0 %v8995
    %10499 = vmatprep.subr.bf16.mxu0 %v9004
    %10500 = vmatpush1.bf16.msra.mxu0 %v9003
    %10501 = vmatprep.subr.bf16.mxu0 %v9012
    %10502 = vmatpush1.bf16.msra.mxu0 %v9011
    %10503 = vmatprep.subr.bf16.mxu0 %v9020
    %10504 = vmatpush1.bf16.msra.mxu0 %v9019
    %10505 = vmatprep.subr.bf16.mxu0 %v9028
    %10506 = vmatpush1.bf16.msra.mxu0 %v9027
    %10507 = vmatprep.subr.bf16.mxu0 %v9036
    %10508 = vmatpush1.bf16.msra.mxu0 %v9035
    %10509 = vmatprep.subr.bf16.mxu0 %v9044
    %10510 = vmatpush1.bf16.msra.mxu0 %v9043
    %10511 = vmatprep.subr.bf16.mxu0 %v9052
    %10512 = vmatpush1.bf16.msra.mxu0 %v9051
    %10513 = vmatprep.subr.bf16.mxu0 %v9060
    %10514 = vmatpush1.bf16.msra.mxu0 %v9059
    %10515 = vmatprep.subr.bf16.mxu0 %v9068
    %10516 = vmatpush1.bf16.msra.mxu0 %v9067
    %10517 = vmatprep.subr.bf16.mxu0 %v9076
    %10518 = vmatpush1.bf16.msra.mxu0 %v9075
    %10519 = vmatprep.subr.bf16.mxu0 %v9084
    %10520 = vmatpush1.bf16.msra.mxu0 %v9083
    %10521 = vmatprep.mubr.bf16.mxu0 %v4054
    %10522 = vmatmul.mubr.bf16.gmra.mrb[0].mxu0 %v4053
    %v10523 = vpop.f32.mrb[0].mxu0
    %v10524 = vadd.f32 %v10483, %v10523
    %v10525 = vpop.f32.mrb[0].mxu0
    %v10526 = vadd.f32 %v10485, %v10525
    %v10527 = vpop.f32.mrb[0].mxu0
    %v10528 = vpop.f32.mrb[0].mxu0
    %10529 = vdwg.mxu0
    %10530 = vmatprep.subr.bf16.mxu0 %v9092
    %10531 = vmatpush1.bf16.msra.mxu0 %v9091
    %10532 = vmatprep.subr.bf16.mxu0 %v9100
    %10533 = vmatpush1.bf16.msra.mxu0 %v9099
    %10534 = vmatprep.subr.bf16.mxu0 %v9108
    %10535 = vmatpush1.bf16.msra.mxu0 %v9107
    %10536 = vmatprep.subr.bf16.mxu0 %v9116
    %10537 = vmatpush1.bf16.msra.mxu0 %v9115
    %10538 = vmatprep.subr.bf16.mxu0 %v9124
    %10539 = vmatpush1.bf16.msra.mxu0 %v9123
    %10540 = vmatprep.subr.bf16.mxu0 %v9132
    %10541 = vmatpush1.bf16.msra.mxu0 %v9131
    %10542 = vmatprep.subr.bf16.mxu0 %v9140
    %10543 = vmatpush1.bf16.msra.mxu0 %v9139
    %10544 = vmatprep.subr.bf16.mxu0 %v9148
    %10545 = vmatpush1.bf16.msra.mxu0 %v9147
    %10546 = vmatprep.subr.bf16.mxu0 %v9156
    %10547 = vmatpush1.bf16.msra.mxu0 %v9155
    %10548 = vmatprep.subr.bf16.mxu0 %v9164
    %10549 = vmatpush1.bf16.msra.mxu0 %v9163
    %10550 = vmatprep.subr.bf16.mxu0 %v9172
    %10551 = vmatpush1.bf16.msra.mxu0 %v9171
    %10552 = vmatprep.subr.bf16.mxu0 %v9180
    %10553 = vmatpush1.bf16.msra.mxu0 %v9179
    %10554 = vmatprep.subr.bf16.mxu0 %v9188
    %10555 = vmatpush1.bf16.msra.mxu0 %v9187
    %10556 = vmatprep.subr.bf16.mxu0 %v9196
    %10557 = vmatpush1.bf16.msra.mxu0 %v9195
    %10558 = vmatprep.subr.bf16.mxu0 %v9204
    %10559 = vmatpush1.bf16.msra.mxu0 %v9203
    %10560 = vmatprep.subr.bf16.mxu0 %v9212
    %10561 = vmatpush1.bf16.msra.mxu0 %v9211
    %10562 = vmatprep.mubr.bf16.mxu0 %v4056
    %10563 = vmatmul.mubr.bf16.gmra.mrb[0].mxu0 %v4055
    %v10564 = vpop.f32.mrb[0].mxu0
    %v10565 = vadd.f32 %v10524, %v10564
    %v10566 = vpop.f32.mrb[0].mxu0
    %v10567 = vadd.f32 %v10526, %v10566
    %v10568 = vpop.f32.mrb[0].mxu0
    %v10569 = vpop.f32.mrb[0].mxu0
    %10570 = vdwg.mxu0
    %10571 = vmatprep.subr.bf16.mxu0 %v8198
    %10572 = vmatpush1.bf16.msra.mxu0 %v8197
    %10573 = vmatprep.subr.bf16.mxu0 %v8206
    %10574 = vmatpush1.bf16.msra.mxu0 %v8205
    %10575 = vmatprep.subr.bf16.mxu0 %v8214
    %10576 = vmatpush1.bf16.msra.mxu0 %v8213
    %10577 = vmatprep.subr.bf16.mxu0 %v8222
    %10578 = vmatpush1.bf16.msra.mxu0 %v8221
    %10579 = vmatprep.subr.bf16.mxu0 %v8230
    %10580 = vmatpush1.bf16.msra.mxu0 %v8229
    %10581 = vmatprep.subr.bf16.mxu0 %v8238
    %10582 = vmatpush1.bf16.msra.mxu0 %v8237
    %10583 = vmatprep.subr.bf16.mxu0 %v8246
    %10584 = vmatpush1.bf16.msra.mxu0 %v8245
    %10585 = vmatprep.subr.bf16.mxu0 %v8254
    %10586 = vmatpush1.bf16.msra.mxu0 %v8253
    %10587 = vmatprep.subr.bf16.mxu0 %v8262
    %10588 = vmatpush1.bf16.msra.mxu0 %v8261
    %10589 = vmatprep.subr.bf16.mxu0 %v8270
    %10590 = vmatpush1.bf16.msra.mxu0 %v8269
    %10591 = vmatprep.subr.bf16.mxu0 %v8278
    %10592 = vmatpush1.bf16.msra.mxu0 %v8277
    %10593 = vmatprep.subr.bf16.mxu0 %v8286
    %10594 = vmatpush1.bf16.msra.mxu0 %v8285
    %10595 = vmatprep.subr.bf16.mxu0 %v8294
    %10596 = vmatpush1.bf16.msra.mxu0 %v8293
    %10597 = vmatprep.subr.bf16.mxu0 %v8302
    %10598 = vmatpush1.bf16.msra.mxu0 %v8301
    %10599 = vmatprep.subr.bf16.mxu0 %v8310
    %10600 = vmatpush1.bf16.msra.mxu0 %v8309
    %10601 = vmatprep.subr.bf16.mxu0 %v8318
    %10602 = vmatpush1.bf16.msra.mxu0 %v8317
    %10603 = vmatprep.mubr.bf16.mxu0 %v4042
    %10604 = vmatmul.mubr.bf16.gmra.mrb[0].mxu0 %v4041
    %v10605 = vpop.f32.mrb[0].mxu0
    %v10606 = vadd.f32 %v5094, %v10605
    %v10607 = vpop.f32.mrb[0].mxu0
    %v10608 = vadd.f32 %v5098, %v10607
    %v10609 = vpop.f32.mrb[0].mxu0
    %v10610 = vpop.f32.mrb[0].mxu0
    %10611 = vdwg.mxu0
    %10612 = vmatprep.subr.bf16.mxu0 %v8326
    %10613 = vmatpush1.bf16.msra.mxu0 %v8325
    %10614 = vmatprep.subr.bf16.mxu0 %v8334
    %10615 = vmatpush1.bf16.msra.mxu0 %v8333
    %10616 = vmatprep.subr.bf16.mxu0 %v8342
    %10617 = vmatpush1.bf16.msra.mxu0 %v8341
    %10618 = vmatprep.subr.bf16.mxu0 %v8350
    %10619 = vmatpush1.bf16.msra.mxu0 %v8349
    %10620 = vmatprep.subr.bf16.mxu0 %v8358
    %10621 = vmatpush1.bf16.msra.mxu0 %v8357
    %10622 = vmatprep.subr.bf16.mxu0 %v8366
    %10623 = vmatpush1.bf16.msra.mxu0 %v8365
    %10624 = vmatprep.subr.bf16.mxu0 %v8374
    %10625 = vmatpush1.bf16.msra.mxu0 %v8373
    %10626 = vmatprep.subr.bf16.mxu0 %v8382
    %10627 = vmatpush1.bf16.msra.mxu0 %v8381
    %10628 = vmatprep.subr.bf16.mxu0 %v8390
    %10629 = vmatpush1.bf16.msra.mxu0 %v8389
    %10630 = vmatprep.subr.bf16.mxu0 %v8398
    %10631 = vmatpush1.bf16.msra.mxu0 %v8397
    %10632 = vmatprep.subr.bf16.mxu0 %v8406
    %10633 = vmatpush1.bf16.msra.mxu0 %v8405
    %10634 = vmatprep.subr.bf16.mxu0 %v8414
    %10635 = vmatpush1.bf16.msra.mxu0 %v8413
    %10636 = vmatprep.subr.bf16.mxu0 %v8422
    %10637 = vmatpush1.bf16.msra.mxu0 %v8421
    %10638 = vmatprep.subr.bf16.mxu0 %v8430
    %10639 = vmatpush1.bf16.msra.mxu0 %v8429
    %10640 = vmatprep.subr.bf16.mxu0 %v8438
    %10641 = vmatpush1.bf16.msra.mxu0 %v8437
    %10642 = vmatprep.subr.bf16.mxu0 %v8446
    %10643 = vmatpush1.bf16.msra.mxu0 %v8445
    %10644 = vmatprep.mubr.bf16.mxu0 %v4044
    %10645 = vmatmul.mubr.bf16.gmra.mrb[0].mxu0 %v4043
    %v10646 = vpop.f32.mrb[0].mxu0
    %v10647 = vadd.f32 %v10606, %v10646
    %v10648 = vpop.f32.mrb[0].mxu0
    %v10649 = vadd.f32 %v10608, %v10648
    %v10650 = vpop.f32.mrb[0].mxu0
    %v10651 = vpop.f32.mrb[0].mxu0
    %10652 = vdwg.mxu0
    %10653 = vmatprep.subr.bf16.mxu0 %v8454
    %10654 = vmatpush1.bf16.msra.mxu0 %v8453
    %10655 = vmatprep.subr.bf16.mxu0 %v8462
    %10656 = vmatpush1.bf16.msra.mxu0 %v8461
    %10657 = vmatprep.subr.bf16.mxu0 %v8470
    %10658 = vmatpush1.bf16.msra.mxu0 %v8469
    %10659 = vmatprep.subr.bf16.mxu0 %v8478
    %10660 = vmatpush1.bf16.msra.mxu0 %v8477
    %10661 = vmatprep.subr.bf16.mxu0 %v8486
    %10662 = vmatpush1.bf16.msra.mxu0 %v8485
    %10663 = vmatprep.subr.bf16.mxu0 %v8494
    %10664 = vmatpush1.bf16.msra.mxu0 %v8493
    %10665 = vmatprep.subr.bf16.mxu0 %v8502
    %10666 = vmatpush1.bf16.msra.mxu0 %v8501
    %10667 = vmatprep.subr.bf16.mxu0 %v8510
    %10668 = vmatpush1.bf16.msra.mxu0 %v8509
    %10669 = vmatprep.subr.bf16.mxu0 %v8518
    %10670 = vmatpush1.bf16.msra.mxu0 %v8517
    %10671 = vmatprep.subr.bf16.mxu0 %v8526
    %10672 = vmatpush1.bf16.msra.mxu0 %v8525
    %10673 = vmatprep.subr.bf16.mxu0 %v8534
    %10674 = vmatpush1.bf16.msra.mxu0 %v8533
    %10675 = vmatprep.subr.bf16.mxu0 %v8542
    %10676 = vmatpush1.bf16.msra.mxu0 %v8541
    %10677 = vmatprep.subr.bf16.mxu0 %v8550
    %10678 = vmatpush1.bf16.msra.mxu0 %v8549
    %10679 = vmatprep.subr.bf16.mxu0 %v8558
    %10680 = vmatpush1.bf16.msra.mxu0 %v8557
    %10681 = vmatprep.subr.bf16.mxu0 %v8566
    %10682 = vmatpush1.bf16.msra.mxu0 %v8565
    %10683 = vmatprep.subr.bf16.mxu0 %v8574
    %10684 = vmatpush1.bf16.msra.mxu0 %v8573
    %10685 = vmatprep.mubr.bf16.mxu0 %v4046
    %10686 = vmatmul.mubr.bf16.gmra.mrb[0].mxu0 %v4045
    %v10687 = vpop.f32.mrb[0].mxu0
    %v10688 = vadd.f32 %v10647, %v10687
    %v10689 = vpop.f32.mrb[0].mxu0
    %v10690 = vadd.f32 %v10649, %v10689
    %v10691 = vpop.f32.mrb[0].mxu0
    %v10692 = vpop.f32.mrb[0].mxu0
    %10693 = vdwg.mxu0
    %10694 = vmatprep.subr.bf16.mxu0 %v8582
    %10695 = vmatpush1.bf16.msra.mxu0 %v8581
    %10696 = vmatprep.subr.bf16.mxu0 %v8590
    %10697 = vmatpush1.bf16.msra.mxu0 %v8589
    %10698 = vmatprep.subr.bf16.mxu0 %v8598
    %10699 = vmatpush1.bf16.msra.mxu0 %v8597
    %10700 = vmatprep.subr.bf16.mxu0 %v8606
    %10701 = vmatpush1.bf16.msra.mxu0 %v8605
    %10702 = vmatprep.subr.bf16.mxu0 %v8614
    %10703 = vmatpush1.bf16.msra.mxu0 %v8613
    %10704 = vmatprep.subr.bf16.mxu0 %v8622
    %10705 = vmatpush1.bf16.msra.mxu0 %v8621
    %10706 = vmatprep.subr.bf16.mxu0 %v8630
    %10707 = vmatpush1.bf16.msra.mxu0 %v8629
    %10708 = vmatprep.subr.bf16.mxu0 %v8638
    %10709 = vmatpush1.bf16.msra.mxu0 %v8637
    %10710 = vmatprep.subr.bf16.mxu0 %v8646
    %10711 = vmatpush1.bf16.msra.mxu0 %v8645
    %10712 = vmatprep.subr.bf16.mxu0 %v8654
    %10713 = vmatpush1.bf16.msra.mxu0 %v8653
    %10714 = vmatprep.subr.bf16.mxu0 %v8662
    %10715 = vmatpush1.bf16.msra.mxu0 %v8661
    %10716 = vmatprep.subr.bf16.mxu0 %v8670
    %10717 = vmatpush1.bf16.msra.mxu0 %v8669
    %10718 = vmatprep.subr.bf16.mxu0 %v8678
    %10719 = vmatpush1.bf16.msra.mxu0 %v8677
    %10720 = vmatprep.subr.bf16.mxu0 %v8686
    %10721 = vmatpush1.bf16.msra.mxu0 %v8685
    %10722 = vmatprep.subr.bf16.mxu0 %v8694
    %10723 = vmatpush1.bf16.msra.mxu0 %v8693
    %10724 = vmatprep.subr.bf16.mxu0 %v8702
    %10725 = vmatpush1.bf16.msra.mxu0 %v8701
    %10726 = vmatprep.mubr.bf16.mxu0 %v4048
    %10727 = vmatmul.mubr.bf16.gmra.mrb[0].mxu0 %v4047
    %v10728 = vpop.f32.mrb[0].mxu0
    %v10729 = vadd.f32 %v10688, %v10728
    %v10730 = vpop.f32.mrb[0].mxu0
    %v10731 = vadd.f32 %v10690, %v10730
    %v10732 = vpop.f32.mrb[0].mxu0
    %v10733 = vpop.f32.mrb[0].mxu0
    %10734 = vdwg.mxu0
    %10735 = vmatprep.subr.bf16.mxu0 %v8710
    %10736 = vmatpush1.bf16.msra.mxu0 %v8709
    %10737 = vmatprep.subr.bf16.mxu0 %v8718
    %10738 = vmatpush1.bf16.msra.mxu0 %v8717
    %10739 = vmatprep.subr.bf16.mxu0 %v8726
    %10740 = vmatpush1.bf16.msra.mxu0 %v8725
    %10741 = vmatprep.subr.bf16.mxu0 %v8734
    %10742 = vmatpush1.bf16.msra.mxu0 %v8733
    %10743 = vmatprep.subr.bf16.mxu0 %v8742
    %10744 = vmatpush1.bf16.msra.mxu0 %v8741
    %10745 = vmatprep.subr.bf16.mxu0 %v8750
    %10746 = vmatpush1.bf16.msra.mxu0 %v8749
    %10747 = vmatprep.subr.bf16.mxu0 %v8758
    %10748 = vmatpush1.bf16.msra.mxu0 %v8757
    %10749 = vmatprep.subr.bf16.mxu0 %v8766
    %10750 = vmatpush1.bf16.msra.mxu0 %v8765
    %10751 = vmatprep.subr.bf16.mxu0 %v8774
    %10752 = vmatpush1.bf16.msra.mxu0 %v8773
    %10753 = vmatprep.subr.bf16.mxu0 %v8782
    %10754 = vmatpush1.bf16.msra.mxu0 %v8781
    %10755 = vmatprep.subr.bf16.mxu0 %v8790
    %10756 = vmatpush1.bf16.msra.mxu0 %v8789
    %10757 = vmatprep.subr.bf16.mxu0 %v8798
    %10758 = vmatpush1.bf16.msra.mxu0 %v8797
    %10759 = vmatprep.subr.bf16.mxu0 %v8806
    %10760 = vmatpush1.bf16.msra.mxu0 %v8805
    %10761 = vmatprep.subr.bf16.mxu0 %v8814
    %10762 = vmatpush1.bf16.msra.mxu0 %v8813
    %10763 = vmatprep.subr.bf16.mxu0 %v8822
    %10764 = vmatpush1.bf16.msra.mxu0 %v8821
    %10765 = vmatprep.subr.bf16.mxu0 %v8830
    %10766 = vmatpush1.bf16.msra.mxu0 %v8829
    %10767 = vmatprep.mubr.bf16.mxu0 %v4050
    %10768 = vmatmul.mubr.bf16.gmra.mrb[0].mxu0 %v4049
    %v10769 = vpop.f32.mrb[0].mxu0
    %v10770 = vadd.f32 %v10729, %v10769
    %v10771 = vpop.f32.mrb[0].mxu0
    %v10772 = vadd.f32 %v10731, %v10771
    %v10773 = vpop.f32.mrb[0].mxu0
    %v10774 = vpop.f32.mrb[0].mxu0
    %10775 = vdwg.mxu0
    %10776 = vmatprep.subr.bf16.mxu0 %v8838
    %10777 = vmatpush1.bf16.msra.mxu0 %v8837
    %10778 = vmatprep.subr.bf16.mxu0 %v8846
    %10779 = vmatpush1.bf16.msra.mxu0 %v8845
    %10780 = vmatprep.subr.bf16.mxu0 %v8854
    %10781 = vmatpush1.bf16.msra.mxu0 %v8853
    %10782 = vmatprep.subr.bf16.mxu0 %v8862
    %10783 = vmatpush1.bf16.msra.mxu0 %v8861
    %10784 = vmatprep.subr.bf16.mxu0 %v8870
    %10785 = vmatpush1.bf16.msra.mxu0 %v8869
    %10786 = vmatprep.subr.bf16.mxu0 %v8878
    %10787 = vmatpush1.bf16.msra.mxu0 %v8877
    %10788 = vmatprep.subr.bf16.mxu0 %v8886
    %10789 = vmatpush1.bf16.msra.mxu0 %v8885
    %10790 = vmatprep.subr.bf16.mxu0 %v8894
    %10791 = vmatpush1.bf16.msra.mxu0 %v8893
    %10792 = vmatprep.subr.bf16.mxu0 %v8902
    %10793 = vmatpush1.bf16.msra.mxu0 %v8901
    %10794 = vmatprep.subr.bf16.mxu0 %v8910
    %10795 = vmatpush1.bf16.msra.mxu0 %v8909
    %10796 = vmatprep.subr.bf16.mxu0 %v8918
    %10797 = vmatpush1.bf16.msra.mxu0 %v8917
    %10798 = vmatprep.subr.bf16.mxu0 %v8926
    %10799 = vmatpush1.bf16.msra.mxu0 %v8925
    %10800 = vmatprep.subr.bf16.mxu0 %v8934
    %10801 = vmatpush1.bf16.msra.mxu0 %v8933
    %10802 = vmatprep.subr.bf16.mxu0 %v8942
    %10803 = vmatpush1.bf16.msra.mxu0 %v8941
    %10804 = vmatprep.subr.bf16.mxu0 %v8950
    %10805 = vmatpush1.bf16.msra.mxu0 %v8949
    %10806 = vmatprep.subr.bf16.mxu0 %v8958
    %10807 = vmatpush1.bf16.msra.mxu0 %v8957
    %10808 = vmatprep.mubr.bf16.mxu0 %v4052
    %10809 = vmatmul.mubr.bf16.gmra.mrb[0].mxu0 %v4051
    %v10810 = vpop.f32.mrb[0].mxu0
    %v10811 = vadd.f32 %v10770, %v10810
    %v10812 = vpop.f32.mrb[0].mxu0
    %v10813 = vadd.f32 %v10772, %v10812
    %v10814 = vpop.f32.mrb[0].mxu0
    %v10815 = vpop.f32.mrb[0].mxu0
    %10816 = vdwg.mxu0
    %10817 = vmatprep.subr.bf16.mxu0 %v8966
    %10818 = vmatpush1.bf16.msra.mxu0 %v8965
    %10819 = vmatprep.subr.bf16.mxu0 %v8974
    %10820 = vmatpush1.bf16.msra.mxu0 %v8973
    %10821 = vmatprep.subr.bf16.mxu0 %v8982
    %10822 = vmatpush1.bf16.msra.mxu0 %v8981
    %10823 = vmatprep.subr.bf16.mxu0 %v8990
    %10824 = vmatpush1.bf16.msra.mxu0 %v8989
    %10825 = vmatprep.subr.bf16.mxu0 %v8998
    %10826 = vmatpush1.bf16.msra.mxu0 %v8997
    %10827 = vmatprep.subr.bf16.mxu0 %v9006
    %10828 = vmatpush1.bf16.msra.mxu0 %v9005
    %10829 = vmatprep.subr.bf16.mxu0 %v9014
    %10830 = vmatpush1.bf16.msra.mxu0 %v9013
    %10831 = vmatprep.subr.bf16.mxu0 %v9022
    %10832 = vmatpush1.bf16.msra.mxu0 %v9021
    %10833 = vmatprep.subr.bf16.mxu0 %v9030
    %10834 = vmatpush1.bf16.msra.mxu0 %v9029
    %10835 = vmatprep.subr.bf16.mxu0 %v9038
    %10836 = vmatpush1.bf16.msra.mxu0 %v9037
    %10837 = vmatprep.subr.bf16.mxu0 %v9046
    %10838 = vmatpush1.bf16.msra.mxu0 %v9045
    %10839 = vmatprep.subr.bf16.mxu0 %v9054
    %10840 = vmatpush1.bf16.msra.mxu0 %v9053
    %10841 = vmatprep.subr.bf16.mxu0 %v9062
    %10842 = vmatpush1.bf16.msra.mxu0 %v9061
    %10843 = vmatprep.subr.bf16.mxu0 %v9070
    %10844 = vmatpush1.bf16.msra.mxu0 %v9069
    %10845 = vmatprep.subr.bf16.mxu0 %v9078
    %10846 = vmatpush1.bf16.msra.mxu0 %v9077
    %10847 = vmatprep.subr.bf16.mxu0 %v9086
    %10848 = vmatpush1.bf16.msra.mxu0 %v9085
    %10849 = vmatprep.mubr.bf16.mxu0 %v4054
    %10850 = vmatmul.mubr.bf16.gmra.mrb[0].mxu0 %v4053
    %v10851 = vpop.f32.mrb[0].mxu0
    %v10852 = vadd.f32 %v10811, %v10851
    %v10853 = vpop.f32.mrb[0].mxu0
    %v10854 = vadd.f32 %v10813, %v10853
    %v10855 = vpop.f32.mrb[0].mxu0
    %v10856 = vpop.f32.mrb[0].mxu0
    %10857 = vdwg.mxu0
    %10858 = vmatprep.subr.bf16.mxu0 %v9094
    %10859 = vmatpush1.bf16.msra.mxu0 %v9093
    %10860 = vmatprep.subr.bf16.mxu0 %v9102
    %10861 = vmatpush1.bf16.msra.mxu0 %v9101
    %10862 = vmatprep.subr.bf16.mxu0 %v9110
    %10863 = vmatpush1.bf16.msra.mxu0 %v9109
    %10864 = vmatprep.subr.bf16.mxu0 %v9118
    %10865 = vmatpush1.bf16.msra.mxu0 %v9117
    %10866 = vmatprep.subr.bf16.mxu0 %v9126
    %10867 = vmatpush1.bf16.msra.mxu0 %v9125
    %10868 = vmatprep.subr.bf16.mxu0 %v9134
    %10869 = vmatpush1.bf16.msra.mxu0 %v9133
    %10870 = vmatprep.subr.bf16.mxu0 %v9142
    %10871 = vmatpush1.bf16.msra.mxu0 %v9141
    %10872 = vmatprep.subr.bf16.mxu0 %v9150
    %10873 = vmatpush1.bf16.msra.mxu0 %v9149
    %10874 = vmatprep.subr.bf16.mxu0 %v9158
    %10875 = vmatpush1.bf16.msra.mxu0 %v9157
    %10876 = vmatprep.subr.bf16.mxu0 %v9166
    %10877 = vmatpush1.bf16.msra.mxu0 %v9165
    %10878 = vmatprep.subr.bf16.mxu0 %v9174
    %10879 = vmatpush1.bf16.msra.mxu0 %v9173
    %10880 = vmatprep.subr.bf16.mxu0 %v9182
    %10881 = vmatpush1.bf16.msra.mxu0 %v9181
    %10882 = vmatprep.subr.bf16.mxu0 %v9190
    %10883 = vmatpush1.bf16.msra.mxu0 %v9189
    %10884 = vmatprep.subr.bf16.mxu0 %v9198
    %10885 = vmatpush1.bf16.msra.mxu0 %v9197
    %10886 = vmatprep.subr.bf16.mxu0 %v9206
    %10887 = vmatpush1.bf16.msra.mxu0 %v9205
    %10888 = vmatprep.subr.bf16.mxu0 %v9214
    %10889 = vmatpush1.bf16.msra.mxu0 %v9213
    %10890 = vmatprep.mubr.bf16.mxu0 %v4056
    %10891 = vmatmul.mubr.bf16.gmra.mrb[0].mxu0 %v4055
    %v10892 = vpop.f32.mrb[0].mxu0
    %v10893 = vadd.f32 %v10852, %v10892
    %v10894 = vpop.f32.mrb[0].mxu0
    %v10895 = vadd.f32 %v10854, %v10894
    %v10896 = vpop.f32.mrb[0].mxu0
    %v10897 = vpop.f32.mrb[0].mxu0
    %10898 = vdwg.mxu0
    %10899 = vmatprep.subr.bf16.mxu0 %v8200
    %10900 = vmatpush1.bf16.msra.mxu0 %v8199
    %10901 = vmatprep.subr.bf16.mxu0 %v8208
    %10902 = vmatpush1.bf16.msra.mxu0 %v8207
    %10903 = vmatprep.subr.bf16.mxu0 %v8216
    %10904 = vmatpush1.bf16.msra.mxu0 %v8215
    %10905 = vmatprep.subr.bf16.mxu0 %v8224
    %10906 = vmatpush1.bf16.msra.mxu0 %v8223
    %10907 = vmatprep.subr.bf16.mxu0 %v8232
    %10908 = vmatpush1.bf16.msra.mxu0 %v8231
    %10909 = vmatprep.subr.bf16.mxu0 %v8240
    %10910 = vmatpush1.bf16.msra.mxu0 %v8239
    %10911 = vmatprep.subr.bf16.mxu0 %v8248
    %10912 = vmatpush1.bf16.msra.mxu0 %v8247
    %10913 = vmatprep.subr.bf16.mxu0 %v8256
    %10914 = vmatpush1.bf16.msra.mxu0 %v8255
    %10915 = vmatprep.subr.bf16.mxu0 %v8264
    %10916 = vmatpush1.bf16.msra.mxu0 %v8263
    %10917 = vmatprep.subr.bf16.mxu0 %v8272
    %10918 = vmatpush1.bf16.msra.mxu0 %v8271
    %10919 = vmatprep.subr.bf16.mxu0 %v8280
    %10920 = vmatpush1.bf16.msra.mxu0 %v8279
    %10921 = vmatprep.subr.bf16.mxu0 %v8288
    %10922 = vmatpush1.bf16.msra.mxu0 %v8287
    %10923 = vmatprep.subr.bf16.mxu0 %v8296
    %10924 = vmatpush1.bf16.msra.mxu0 %v8295
    %10925 = vmatprep.subr.bf16.mxu0 %v8304
    %10926 = vmatpush1.bf16.msra.mxu0 %v8303
    %10927 = vmatprep.subr.bf16.mxu0 %v8312
    %10928 = vmatpush1.bf16.msra.mxu0 %v8311
    %10929 = vmatprep.subr.bf16.mxu0 %v8320
    %10930 = vmatpush1.bf16.msra.mxu0 %v8319
    %10931 = vmatprep.mubr.bf16.mxu0 %v4042
    %10932 = vmatmul.mubr.bf16.gmra.mrb[0].mxu0 %v4041
    %v10933 = vpop.f32.mrb[0].mxu0
    %v10934 = vadd.f32 %v5102, %v10933
    %v10935 = vpop.f32.mrb[0].mxu0
    %v10936 = vadd.f32 %v5106, %v10935
    %v10937 = vpop.f32.mrb[0].mxu0
    %v10938 = vpop.f32.mrb[0].mxu0
    %10939 = vdwg.mxu0
    %10940 = vmatprep.subr.bf16.mxu0 %v8328
    %10941 = vmatpush1.bf16.msra.mxu0 %v8327
    %10942 = vmatprep.subr.bf16.mxu0 %v8336
    %10943 = vmatpush1.bf16.msra.mxu0 %v8335
    %10944 = vmatprep.subr.bf16.mxu0 %v8344
    %10945 = vmatpush1.bf16.msra.mxu0 %v8343
    %10946 = vmatprep.subr.bf16.mxu0 %v8352
    %10947 = vmatpush1.bf16.msra.mxu0 %v8351
    %10948 = vmatprep.subr.bf16.mxu0 %v8360
    %10949 = vmatpush1.bf16.msra.mxu0 %v8359
    %10950 = vmatprep.subr.bf16.mxu0 %v8368
    %10951 = vmatpush1.bf16.msra.mxu0 %v8367
    %10952 = vmatprep.subr.bf16.mxu0 %v8376
    %10953 = vmatpush1.bf16.msra.mxu0 %v8375
    %10954 = vmatprep.subr.bf16.mxu0 %v8384
    %10955 = vmatpush1.bf16.msra.mxu0 %v8383
    %10956 = vmatprep.subr.bf16.mxu0 %v8392
    %10957 = vmatpush1.bf16.msra.mxu0 %v8391
    %10958 = vmatprep.subr.bf16.mxu0 %v8400
    %10959 = vmatpush1.bf16.msra.mxu0 %v8399
    %10960 = vmatprep.subr.bf16.mxu0 %v8408
    %10961 = vmatpush1.bf16.msra.mxu0 %v8407
    %10962 = vmatprep.subr.bf16.mxu0 %v8416
    %10963 = vmatpush1.bf16.msra.mxu0 %v8415
    %10964 = vmatprep.subr.bf16.mxu0 %v8424
    %10965 = vmatpush1.bf16.msra.mxu0 %v8423
    %10966 = vmatprep.subr.bf16.mxu0 %v8432
    %10967 = vmatpush1.bf16.msra.mxu0 %v8431
    %10968 = vmatprep.subr.bf16.mxu0 %v8440
    %10969 = vmatpush1.bf16.msra.mxu0 %v8439
    %10970 = vmatprep.subr.bf16.mxu0 %v8448
    %10971 = vmatpush1.bf16.msra.mxu0 %v8447
    %10972 = vmatprep.mubr.bf16.mxu0 %v4044
    %10973 = vmatmul.mubr.bf16.gmra.mrb[0].mxu0 %v4043
    %v10974 = vpop.f32.mrb[0].mxu0
    %v10975 = vadd.f32 %v10934, %v10974
    %v10976 = vpop.f32.mrb[0].mxu0
    %v10977 = vadd.f32 %v10936, %v10976
    %v10978 = vpop.f32.mrb[0].mxu0
    %v10979 = vpop.f32.mrb[0].mxu0
    %10980 = vdwg.mxu0
    %10981 = vmatprep.subr.bf16.mxu0 %v8456
    %10982 = vmatpush1.bf16.msra.mxu0 %v8455
    %10983 = vmatprep.subr.bf16.mxu0 %v8464
    %10984 = vmatpush1.bf16.msra.mxu0 %v8463
    %10985 = vmatprep.subr.bf16.mxu0 %v8472
    %10986 = vmatpush1.bf16.msra.mxu0 %v8471
    %10987 = vmatprep.subr.bf16.mxu0 %v8480
    %10988 = vmatpush1.bf16.msra.mxu0 %v8479
    %10989 = vmatprep.subr.bf16.mxu0 %v8488
    %10990 = vmatpush1.bf16.msra.mxu0 %v8487
    %10991 = vmatprep.subr.bf16.mxu0 %v8496
    %10992 = vmatpush1.bf16.msra.mxu0 %v8495
    %10993 = vmatprep.subr.bf16.mxu0 %v8504
    %10994 = vmatpush1.bf16.msra.mxu0 %v8503
    %10995 = vmatprep.subr.bf16.mxu0 %v8512
    %10996 = vmatpush1.bf16.msra.mxu0 %v8511
    %10997 = vmatprep.subr.bf16.mxu0 %v8520
    %10998 = vmatpush1.bf16.msra.mxu0 %v8519
    %10999 = vmatprep.subr.bf16.mxu0 %v8528
    %11000 = vmatpush1.bf16.msra.mxu0 %v8527
    %11001 = vmatprep.subr.bf16.mxu0 %v8536
    %11002 = vmatpush1.bf16.msra.mxu0 %v8535
    %11003 = vmatprep.subr.bf16.mxu0 %v8544
    %11004 = vmatpush1.bf16.msra.mxu0 %v8543
    %11005 = vmatprep.subr.bf16.mxu0 %v8552
    %11006 = vmatpush1.bf16.msra.mxu0 %v8551
    %11007 = vmatprep.subr.bf16.mxu0 %v8560
    %11008 = vmatpush1.bf16.msra.mxu0 %v8559
    %11009 = vmatprep.subr.bf16.mxu0 %v8568
    %11010 = vmatpush1.bf16.msra.mxu0 %v8567
    %11011 = vmatprep.subr.bf16.mxu0 %v8576
    %11012 = vmatpush1.bf16.msra.mxu0 %v8575
    %11013 = vmatprep.mubr.bf16.mxu0 %v4046
    %11014 = vmatmul.mubr.bf16.gmra.mrb[0].mxu0 %v4045
    %v11015 = vpop.f32.mrb[0].mxu0
    %v11016 = vadd.f32 %v10975, %v11015
    %v11017 = vpop.f32.mrb[0].mxu0
    %v11018 = vadd.f32 %v10977, %v11017
    %v11019 = vpop.f32.mrb[0].mxu0
    %v11020 = vpop.f32.mrb[0].mxu0
    %11021 = vdwg.mxu0
    %11022 = vmatprep.subr.bf16.mxu0 %v8584
    %11023 = vmatpush1.bf16.msra.mxu0 %v8583
    %11024 = vmatprep.subr.bf16.mxu0 %v8592
    %11025 = vmatpush1.bf16.msra.mxu0 %v8591
    %11026 = vmatprep.subr.bf16.mxu0 %v8600
    %11027 = vmatpush1.bf16.msra.mxu0 %v8599
    %11028 = vmatprep.subr.bf16.mxu0 %v8608
    %11029 = vmatpush1.bf16.msra.mxu0 %v8607
    %11030 = vmatprep.subr.bf16.mxu0 %v8616
    %11031 = vmatpush1.bf16.msra.mxu0 %v8615
    %11032 = vmatprep.subr.bf16.mxu0 %v8624
    %11033 = vmatpush1.bf16.msra.mxu0 %v8623
    %11034 = vmatprep.subr.bf16.mxu0 %v8632
    %11035 = vmatpush1.bf16.msra.mxu0 %v8631
    %11036 = vmatprep.subr.bf16.mxu0 %v8640
    %11037 = vmatpush1.bf16.msra.mxu0 %v8639
    %11038 = vmatprep.subr.bf16.mxu0 %v8648
    %11039 = vmatpush1.bf16.msra.mxu0 %v8647
    %11040 = vmatprep.subr.bf16.mxu0 %v8656
    %11041 = vmatpush1.bf16.msra.mxu0 %v8655
    %11042 = vmatprep.subr.bf16.mxu0 %v8664
    %11043 = vmatpush1.bf16.msra.mxu0 %v8663
    %11044 = vmatprep.subr.bf16.mxu0 %v8672
    %11045 = vmatpush1.bf16.msra.mxu0 %v8671
    %11046 = vmatprep.subr.bf16.mxu0 %v8680
    %11047 = vmatpush1.bf16.msra.mxu0 %v8679
    %11048 = vmatprep.subr.bf16.mxu0 %v8688
    %11049 = vmatpush1.bf16.msra.mxu0 %v8687
    %11050 = vmatprep.subr.bf16.mxu0 %v8696
    %11051 = vmatpush1.bf16.msra.mxu0 %v8695
    %11052 = vmatprep.subr.bf16.mxu0 %v8704
    %11053 = vmatpush1.bf16.msra.mxu0 %v8703
    %11054 = vmatprep.mubr.bf16.mxu0 %v4048
    %11055 = vmatmul.mubr.bf16.gmra.mrb[0].mxu0 %v4047
    %v11056 = vpop.f32.mrb[0].mxu0
    %v11057 = vadd.f32 %v11016, %v11056
    %v11058 = vpop.f32.mrb[0].mxu0
    %v11059 = vadd.f32 %v11018, %v11058
    %v11060 = vpop.f32.mrb[0].mxu0
    %v11061 = vpop.f32.mrb[0].mxu0
    %11062 = vdwg.mxu0
    %11063 = vmatprep.subr.bf16.mxu0 %v8712
    %11064 = vmatpush1.bf16.msra.mxu0 %v8711
    %11065 = vmatprep.subr.bf16.mxu0 %v8720
    %11066 = vmatpush1.bf16.msra.mxu0 %v8719
    %11067 = vmatprep.subr.bf16.mxu0 %v8728
    %11068 = vmatpush1.bf16.msra.mxu0 %v8727
    %11069 = vmatprep.subr.bf16.mxu0 %v8736
    %11070 = vmatpush1.bf16.msra.mxu0 %v8735
    %11071 = vmatprep.subr.bf16.mxu0 %v8744
    %11072 = vmatpush1.bf16.msra.mxu0 %v8743
    %11073 = vmatprep.subr.bf16.mxu0 %v8752
    %11074 = vmatpush1.bf16.msra.mxu0 %v8751
    %11075 = vmatprep.subr.bf16.mxu0 %v8760
    %11076 = vmatpush1.bf16.msra.mxu0 %v8759
    %11077 = vmatprep.subr.bf16.mxu0 %v8768
    %11078 = vmatpush1.bf16.msra.mxu0 %v8767
    %11079 = vmatprep.subr.bf16.mxu0 %v8776
    %11080 = vmatpush1.bf16.msra.mxu0 %v8775
    %11081 = vmatprep.subr.bf16.mxu0 %v8784
    %11082 = vmatpush1.bf16.msra.mxu0 %v8783
    %11083 = vmatprep.subr.bf16.mxu0 %v8792
    %11084 = vmatpush1.bf16.msra.mxu0 %v8791
    %11085 = vmatprep.subr.bf16.mxu0 %v8800
    %11086 = vmatpush1.bf16.msra.mxu0 %v8799
    %11087 = vmatprep.subr.bf16.mxu0 %v8808
    %11088 = vmatpush1.bf16.msra.mxu0 %v8807
    %11089 = vmatprep.subr.bf16.mxu0 %v8816
    %11090 = vmatpush1.bf16.msra.mxu0 %v8815
    %11091 = vmatprep.subr.bf16.mxu0 %v8824
    %11092 = vmatpush1.bf16.msra.mxu0 %v8823
    %11093 = vmatprep.subr.bf16.mxu0 %v8832
    %11094 = vmatpush1.bf16.msra.mxu0 %v8831
    %11095 = vmatprep.mubr.bf16.mxu0 %v4050
    %11096 = vmatmul.mubr.bf16.gmra.mrb[0].mxu0 %v4049
    %v11097 = vpop.f32.mrb[0].mxu0
    %v11098 = vadd.f32 %v11057, %v11097
    %v11099 = vpop.f32.mrb[0].mxu0
    %v11100 = vadd.f32 %v11059, %v11099
    %v11101 = vpop.f32.mrb[0].mxu0
    %v11102 = vpop.f32.mrb[0].mxu0
    %11103 = vdwg.mxu0
    %11104 = vmatprep.subr.bf16.mxu0 %v8840
    %11105 = vmatpush1.bf16.msra.mxu0 %v8839
    %11106 = vmatprep.subr.bf16.mxu0 %v8848
    %11107 = vmatpush1.bf16.msra.mxu0 %v8847
    %11108 = vmatprep.subr.bf16.mxu0 %v8856
    %11109 = vmatpush1.bf16.msra.mxu0 %v8855
    %11110 = vmatprep.subr.bf16.mxu0 %v8864
    %11111 = vmatpush1.bf16.msra.mxu0 %v8863
    %11112 = vmatprep.subr.bf16.mxu0 %v8872
    %11113 = vmatpush1.bf16.msra.mxu0 %v8871
    %11114 = vmatprep.subr.bf16.mxu0 %v8880
    %11115 = vmatpush1.bf16.msra.mxu0 %v8879
    %11116 = vmatprep.subr.bf16.mxu0 %v8888
    %11117 = vmatpush1.bf16.msra.mxu0 %v8887
    %11118 = vmatprep.subr.bf16.mxu0 %v8896
    %11119 = vmatpush1.bf16.msra.mxu0 %v8895
    %11120 = vmatprep.subr.bf16.mxu0 %v8904
    %11121 = vmatpush1.bf16.msra.mxu0 %v8903
    %11122 = vmatprep.subr.bf16.mxu0 %v8912
    %11123 = vmatpush1.bf16.msra.mxu0 %v8911
    %11124 = vmatprep.subr.bf16.mxu0 %v8920
    %11125 = vmatpush1.bf16.msra.mxu0 %v8919
    %11126 = vmatprep.subr.bf16.mxu0 %v8928
    %11127 = vmatpush1.bf16.msra.mxu0 %v8927
    %11128 = vmatprep.subr.bf16.mxu0 %v8936
    %11129 = vmatpush1.bf16.msra.mxu0 %v8935
    %11130 = vmatprep.subr.bf16.mxu0 %v8944
    %11131 = vmatpush1.bf16.msra.mxu0 %v8943
    %11132 = vmatprep.subr.bf16.mxu0 %v8952
    %11133 = vmatpush1.bf16.msra.mxu0 %v8951
    %11134 = vmatprep.subr.bf16.mxu0 %v8960
    %11135 = vmatpush1.bf16.msra.mxu0 %v8959
    %11136 = vmatprep.mubr.bf16.mxu0 %v4052
    %11137 = vmatmul.mubr.bf16.gmra.mrb[0].mxu0 %v4051
    %v11138 = vpop.f32.mrb[0].mxu0
    %v11139 = vadd.f32 %v11098, %v11138
    %v11140 = vpop.f32.mrb[0].mxu0
    %v11141 = vadd.f32 %v11100, %v11140
    %v11142 = vpop.f32.mrb[0].mxu0
    %v11143 = vpop.f32.mrb[0].mxu0
    %11144 = vdwg.mxu0
    %11145 = vmatprep.subr.bf16.mxu0 %v8968
    %11146 = vmatpush1.bf16.msra.mxu0 %v8967
    %11147 = vmatprep.subr.bf16.mxu0 %v8976
    %11148 = vmatpush1.bf16.msra.mxu0 %v8975
    %11149 = vmatprep.subr.bf16.mxu0 %v8984
    %11150 = vmatpush1.bf16.msra.mxu0 %v8983
    %11151 = vmatprep.subr.bf16.mxu0 %v8992
    %11152 = vmatpush1.bf16.msra.mxu0 %v8991
    %11153 = vmatprep.subr.bf16.mxu0 %v9000
    %11154 = vmatpush1.bf16.msra.mxu0 %v8999
    %11155 = vmatprep.subr.bf16.mxu0 %v9008
    %11156 = vmatpush1.bf16.msra.mxu0 %v9007
    %11157 = vmatprep.subr.bf16.mxu0 %v9016
    %11158 = vmatpush1.bf16.msra.mxu0 %v9015
    %11159 = vmatprep.subr.bf16.mxu0 %v9024
    %11160 = vmatpush1.bf16.msra.mxu0 %v9023
    %11161 = vmatprep.subr.bf16.mxu0 %v9032
    %11162 = vmatpush1.bf16.msra.mxu0 %v9031
    %11163 = vmatprep.subr.bf16.mxu0 %v9040
    %11164 = vmatpush1.bf16.msra.mxu0 %v9039
    %11165 = vmatprep.subr.bf16.mxu0 %v9048
    %11166 = vmatpush1.bf16.msra.mxu0 %v9047
    %11167 = vmatprep.subr.bf16.mxu0 %v9056
    %11168 = vmatpush1.bf16.msra.mxu0 %v9055
    %11169 = vmatprep.subr.bf16.mxu0 %v9064
    %11170 = vmatpush1.bf16.msra.mxu0 %v9063
    %11171 = vmatprep.subr.bf16.mxu0 %v9072
    %11172 = vmatpush1.bf16.msra.mxu0 %v9071
    %11173 = vmatprep.subr.bf16.mxu0 %v9080
    %11174 = vmatpush1.bf16.msra.mxu0 %v9079
    %11175 = vmatprep.subr.bf16.mxu0 %v9088
    %11176 = vmatpush1.bf16.msra.mxu0 %v9087
    %11177 = vmatprep.mubr.bf16.mxu0 %v4054
    %11178 = vmatmul.mubr.bf16.gmra.mrb[0].mxu0 %v4053
    %v11179 = vpop.f32.mrb[0].mxu0
    %v11180 = vadd.f32 %v11139, %v11179
    %v11181 = vpop.f32.mrb[0].mxu0
    %v11182 = vadd.f32 %v11141, %v11181
    %v11183 = vpop.f32.mrb[0].mxu0
    %v11184 = vpop.f32.mrb[0].mxu0
    %11185 = vdwg.mxu0
    %11186 = vmatprep.subr.bf16.mxu0 %v9096
    %11187 = vmatpush1.bf16.msra.mxu0 %v9095
    %11188 = vmatprep.subr.bf16.mxu0 %v9104
    %11189 = vmatpush1.bf16.msra.mxu0 %v9103
    %11190 = vmatprep.subr.bf16.mxu0 %v9112
    %11191 = vmatpush1.bf16.msra.mxu0 %v9111
    %11192 = vmatprep.subr.bf16.mxu0 %v9120
    %11193 = vmatpush1.bf16.msra.mxu0 %v9119
    %11194 = vmatprep.subr.bf16.mxu0 %v9128
    %11195 = vmatpush1.bf16.msra.mxu0 %v9127
    %11196 = vmatprep.subr.bf16.mxu0 %v9136
    %11197 = vmatpush1.bf16.msra.mxu0 %v9135
    %11198 = vmatprep.subr.bf16.mxu0 %v9144
    %11199 = vmatpush1.bf16.msra.mxu0 %v9143
    %11200 = vmatprep.subr.bf16.mxu0 %v9152
    %11201 = vmatpush1.bf16.msra.mxu0 %v9151
    %11202 = vmatprep.subr.bf16.mxu0 %v9160
    %11203 = vmatpush1.bf16.msra.mxu0 %v9159
    %11204 = vmatprep.subr.bf16.mxu0 %v9168
    %11205 = vmatpush1.bf16.msra.mxu0 %v9167
    %11206 = vmatprep.subr.bf16.mxu0 %v9176
    %11207 = vmatpush1.bf16.msra.mxu0 %v9175
    %11208 = vmatprep.subr.bf16.mxu0 %v9184
    %11209 = vmatpush1.bf16.msra.mxu0 %v9183
    %11210 = vmatprep.subr.bf16.mxu0 %v9192
    %11211 = vmatpush1.bf16.msra.mxu0 %v9191
    %11212 = vmatprep.subr.bf16.mxu0 %v9200
    %11213 = vmatpush1.bf16.msra.mxu0 %v9199
    %11214 = vmatprep.subr.bf16.mxu0 %v9208
    %11215 = vmatpush1.bf16.msra.mxu0 %v9207
    %11216 = vmatprep.subr.bf16.mxu0 %v9216
    %11217 = vmatpush1.bf16.msra.mxu0 %v9215
    %11218 = vmatprep.mubr.bf16.mxu0 %v4056
    %11219 = vmatmul.mubr.bf16.gmra.mrb[0].mxu0 %v4055
    %v11220 = vpop.f32.mrb[0].mxu0
    %v11221 = vadd.f32 %v11180, %v11220
    %v11222 = vpop.f32.mrb[0].mxu0
    %v11223 = vadd.f32 %v11182, %v11222
    %v11224 = vpop.f32.mrb[0].mxu0
    %v11225 = vpop.f32.mrb[0].mxu0
    %11226 = vdwg.mxu0
    %11227 = vmatprep.subr.bf16.mxu0 %v8202
    %11228 = vmatpush1.bf16.msra.mxu0 %v8201
    %11229 = vmatprep.subr.bf16.mxu0 %v8210
    %11230 = vmatpush1.bf16.msra.mxu0 %v8209
    %11231 = vmatprep.subr.bf16.mxu0 %v8218
    %11232 = vmatpush1.bf16.msra.mxu0 %v8217
    %11233 = vmatprep.subr.bf16.mxu0 %v8226
    %11234 = vmatpush1.bf16.msra.mxu0 %v8225
    %11235 = vmatprep.subr.bf16.mxu0 %v8234
    %11236 = vmatpush1.bf16.msra.mxu0 %v8233
    %11237 = vmatprep.subr.bf16.mxu0 %v8242
    %11238 = vmatpush1.bf16.msra.mxu0 %v8241
    %11239 = vmatprep.subr.bf16.mxu0 %v8250
    %11240 = vmatpush1.bf16.msra.mxu0 %v8249
    %11241 = vmatprep.subr.bf16.mxu0 %v8258
    %11242 = vmatpush1.bf16.msra.mxu0 %v8257
    %11243 = vmatprep.subr.bf16.mxu0 %v8266
    %11244 = vmatpush1.bf16.msra.mxu0 %v8265
    %11245 = vmatprep.subr.bf16.mxu0 %v8274
    %11246 = vmatpush1.bf16.msra.mxu0 %v8273
    %11247 = vmatprep.subr.bf16.mxu0 %v8282
    %11248 = vmatpush1.bf16.msra.mxu0 %v8281
    %11249 = vmatprep.subr.bf16.mxu0 %v8290
    %11250 = vmatpush1.bf16.msra.mxu0 %v8289
    %11251 = vmatprep.subr.bf16.mxu0 %v8298
    %11252 = vmatpush1.bf16.msra.mxu0 %v8297
    %11253 = vmatprep.subr.bf16.mxu0 %v8306
    %11254 = vmatpush1.bf16.msra.mxu0 %v8305
    %11255 = vmatprep.subr.bf16.mxu0 %v8314
    %11256 = vmatpush1.bf16.msra.mxu0 %v8313
    %11257 = vmatprep.subr.bf16.mxu0 %v8322
    %11258 = vmatpush1.bf16.msra.mxu0 %v8321
    %11259 = vmatprep.mubr.bf16.mxu0 %v4042
    %11260 = vmatmul.mubr.bf16.gmra.mrb[0].mxu0 %v4041
    %v11261 = vpop.f32.mrb[0].mxu0
    %v11262 = vadd.f32 %v5110, %v11261
    %v11263 = vpop.f32.mrb[0].mxu0
    %v11264 = vadd.f32 %v5114, %v11263
    %v11265 = vpop.f32.mrb[0].mxu0
    %v11266 = vpop.f32.mrb[0].mxu0
    %11267 = vdwg.mxu0
    %11268 = vmatprep.subr.bf16.mxu0 %v8330
    %11269 = vmatpush1.bf16.msra.mxu0 %v8329
    %11270 = vmatprep.subr.bf16.mxu0 %v8338
    %11271 = vmatpush1.bf16.msra.mxu0 %v8337
    %11272 = vmatprep.subr.bf16.mxu0 %v8346
    %11273 = vmatpush1.bf16.msra.mxu0 %v8345
    %11274 = vmatprep.subr.bf16.mxu0 %v8354
    %11275 = vmatpush1.bf16.msra.mxu0 %v8353
    %11276 = vmatprep.subr.bf16.mxu0 %v8362
    %11277 = vmatpush1.bf16.msra.mxu0 %v8361
    %11278 = vmatprep.subr.bf16.mxu0 %v8370
    %11279 = vmatpush1.bf16.msra.mxu0 %v8369
    %11280 = vmatprep.subr.bf16.mxu0 %v8378
    %11281 = vmatpush1.bf16.msra.mxu0 %v8377
    %11282 = vmatprep.subr.bf16.mxu0 %v8386
    %11283 = vmatpush1.bf16.msra.mxu0 %v8385
    %11284 = vmatprep.subr.bf16.mxu0 %v8394
    %11285 = vmatpush1.bf16.msra.mxu0 %v8393
    %11286 = vmatprep.subr.bf16.mxu0 %v8402
    %11287 = vmatpush1.bf16.msra.mxu0 %v8401
    %11288 = vmatprep.subr.bf16.mxu0 %v8410
    %11289 = vmatpush1.bf16.msra.mxu0 %v8409
    %11290 = vmatprep.subr.bf16.mxu0 %v8418
    %11291 = vmatpush1.bf16.msra.mxu0 %v8417
    %11292 = vmatprep.subr.bf16.mxu0 %v8426
    %11293 = vmatpush1.bf16.msra.mxu0 %v8425
    %11294 = vmatprep.subr.bf16.mxu0 %v8434
    %11295 = vmatpush1.bf16.msra.mxu0 %v8433
    %11296 = vmatprep.subr.bf16.mxu0 %v8442
    %11297 = vmatpush1.bf16.msra.mxu0 %v8441
    %11298 = vmatprep.subr.bf16.mxu0 %v8450
    %11299 = vmatpush1.bf16.msra.mxu0 %v8449
    %11300 = vmatprep.mubr.bf16.mxu0 %v4044
    %11301 = vmatmul.mubr.bf16.gmra.mrb[0].mxu0 %v4043
    %v11302 = vpop.f32.mrb[0].mxu0
    %v11303 = vadd.f32 %v11262, %v11302
    %v11304 = vpop.f32.mrb[0].mxu0
    %v11305 = vadd.f32 %v11264, %v11304
    %v11306 = vpop.f32.mrb[0].mxu0
    %v11307 = vpop.f32.mrb[0].mxu0
    %11308 = vdwg.mxu0
    %11309 = vmatprep.subr.bf16.mxu0 %v8458
    %11310 = vmatpush1.bf16.msra.mxu0 %v8457
    %11311 = vmatprep.subr.bf16.mxu0 %v8466
    %11312 = vmatpush1.bf16.msra.mxu0 %v8465
    %11313 = vmatprep.subr.bf16.mxu0 %v8474
    %11314 = vmatpush1.bf16.msra.mxu0 %v8473
    %11315 = vmatprep.subr.bf16.mxu0 %v8482
    %11316 = vmatpush1.bf16.msra.mxu0 %v8481
    %11317 = vmatprep.subr.bf16.mxu0 %v8490
    %11318 = vmatpush1.bf16.msra.mxu0 %v8489
    %11319 = vmatprep.subr.bf16.mxu0 %v8498
    %11320 = vmatpush1.bf16.msra.mxu0 %v8497
    %11321 = vmatprep.subr.bf16.mxu0 %v8506
    %11322 = vmatpush1.bf16.msra.mxu0 %v8505
    %11323 = vmatprep.subr.bf16.mxu0 %v8514
    %11324 = vmatpush1.bf16.msra.mxu0 %v8513
    %11325 = vmatprep.subr.bf16.mxu0 %v8522
    %11326 = vmatpush1.bf16.msra.mxu0 %v8521
    %11327 = vmatprep.subr.bf16.mxu0 %v8530
    %11328 = vmatpush1.bf16.msra.mxu0 %v8529
    %11329 = vmatprep.subr.bf16.mxu0 %v8538
    %11330 = vmatpush1.bf16.msra.mxu0 %v8537
    %11331 = vmatprep.subr.bf16.mxu0 %v8546
    %11332 = vmatpush1.bf16.msra.mxu0 %v8545
    %11333 = vmatprep.subr.bf16.mxu0 %v8554
    %11334 = vmatpush1.bf16.msra.mxu0 %v8553
    %11335 = vmatprep.subr.bf16.mxu0 %v8562
    %11336 = vmatpush1.bf16.msra.mxu0 %v8561
    %11337 = vmatprep.subr.bf16.mxu0 %v8570
    %11338 = vmatpush1.bf16.msra.mxu0 %v8569
    %11339 = vmatprep.subr.bf16.mxu0 %v8578
    %11340 = vmatpush1.bf16.msra.mxu0 %v8577
    %11341 = vmatprep.mubr.bf16.mxu0 %v4046
    %11342 = vmatmul.mubr.bf16.gmra.mrb[0].mxu0 %v4045
    %v11343 = vpop.f32.mrb[0].mxu0
    %v11344 = vadd.f32 %v11303, %v11343
    %v11345 = vpop.f32.mrb[0].mxu0
    %v11346 = vadd.f32 %v11305, %v11345
    %v11347 = vpop.f32.mrb[0].mxu0
    %v11348 = vpop.f32.mrb[0].mxu0
    %11349 = vdwg.mxu0
    %11350 = vmatprep.subr.bf16.mxu0 %v8586
    %11351 = vmatpush1.bf16.msra.mxu0 %v8585
    %11352 = vmatprep.subr.bf16.mxu0 %v8594
    %11353 = vmatpush1.bf16.msra.mxu0 %v8593
    %11354 = vmatprep.subr.bf16.mxu0 %v8602
    %11355 = vmatpush1.bf16.msra.mxu0 %v8601
    %11356 = vmatprep.subr.bf16.mxu0 %v8610
    %11357 = vmatpush1.bf16.msra.mxu0 %v8609
    %11358 = vmatprep.subr.bf16.mxu0 %v8618
    %11359 = vmatpush1.bf16.msra.mxu0 %v8617
    %11360 = vmatprep.subr.bf16.mxu0 %v8626
    %11361 = vmatpush1.bf16.msra.mxu0 %v8625
    %11362 = vmatprep.subr.bf16.mxu0 %v8634
    %11363 = vmatpush1.bf16.msra.mxu0 %v8633
    %11364 = vmatprep.subr.bf16.mxu0 %v8642
    %11365 = vmatpush1.bf16.msra.mxu0 %v8641
    %11366 = vmatprep.subr.bf16.mxu0 %v8650
    %11367 = vmatpush1.bf16.msra.mxu0 %v8649
    %11368 = vmatprep.subr.bf16.mxu0 %v8658
    %11369 = vmatpush1.bf16.msra.mxu0 %v8657
    %11370 = vmatprep.subr.bf16.mxu0 %v8666
    %11371 = vmatpush1.bf16.msra.mxu0 %v8665
    %11372 = vmatprep.subr.bf16.mxu0 %v8674
    %11373 = vmatpush1.bf16.msra.mxu0 %v8673
    %11374 = vmatprep.subr.bf16.mxu0 %v8682
    %11375 = vmatpush1.bf16.msra.mxu0 %v8681
    %11376 = vmatprep.subr.bf16.mxu0 %v8690
    %11377 = vmatpush1.bf16.msra.mxu0 %v8689
    %11378 = vmatprep.subr.bf16.mxu0 %v8698
    %11379 = vmatpush1.bf16.msra.mxu0 %v8697
    %11380 = vmatprep.subr.bf16.mxu0 %v8706
    %11381 = vmatpush1.bf16.msra.mxu0 %v8705
    %11382 = vmatprep.mubr.bf16.mxu0 %v4048
    %11383 = vmatmul.mubr.bf16.gmra.mrb[0].mxu0 %v4047
    %v11384 = vpop.f32.mrb[0].mxu0
    %v11385 = vadd.f32 %v11344, %v11384
    %v11386 = vpop.f32.mrb[0].mxu0
    %v11387 = vadd.f32 %v11346, %v11386
    %v11388 = vpop.f32.mrb[0].mxu0
    %v11389 = vpop.f32.mrb[0].mxu0
    %11390 = vdwg.mxu0
    %11391 = vmatprep.subr.bf16.mxu0 %v8714
    %11392 = vmatpush1.bf16.msra.mxu0 %v8713
    %11393 = vmatprep.subr.bf16.mxu0 %v8722
    %11394 = vmatpush1.bf16.msra.mxu0 %v8721
    %11395 = vmatprep.subr.bf16.mxu0 %v8730
    %11396 = vmatpush1.bf16.msra.mxu0 %v8729
    %11397 = vmatprep.subr.bf16.mxu0 %v8738
    %11398 = vmatpush1.bf16.msra.mxu0 %v8737
    %11399 = vmatprep.subr.bf16.mxu0 %v8746
    %11400 = vmatpush1.bf16.msra.mxu0 %v8745
    %11401 = vmatprep.subr.bf16.mxu0 %v8754
    %11402 = vmatpush1.bf16.msra.mxu0 %v8753
    %11403 = vmatprep.subr.bf16.mxu0 %v8762
    %11404 = vmatpush1.bf16.msra.mxu0 %v8761
    %11405 = vmatprep.subr.bf16.mxu0 %v8770
    %11406 = vmatpush1.bf16.msra.mxu0 %v8769
    %11407 = vmatprep.subr.bf16.mxu0 %v8778
    %11408 = vmatpush1.bf16.msra.mxu0 %v8777
    %11409 = vmatprep.subr.bf16.mxu0 %v8786
    %11410 = vmatpush1.bf16.msra.mxu0 %v8785
    %11411 = vmatprep.subr.bf16.mxu0 %v8794
    %11412 = vmatpush1.bf16.msra.mxu0 %v8793
    %11413 = vmatprep.subr.bf16.mxu0 %v8802
    %11414 = vmatpush1.bf16.msra.mxu0 %v8801
    %11415 = vmatprep.subr.bf16.mxu0 %v8810
    %11416 = vmatpush1.bf16.msra.mxu0 %v8809
    %11417 = vmatprep.subr.bf16.mxu0 %v8818
    %11418 = vmatpush1.bf16.msra.mxu0 %v8817
    %11419 = vmatprep.subr.bf16.mxu0 %v8826
    %11420 = vmatpush1.bf16.msra.mxu0 %v8825
    %11421 = vmatprep.subr.bf16.mxu0 %v8834
    %11422 = vmatpush1.bf16.msra.mxu0 %v8833
    %11423 = vmatprep.mubr.bf16.mxu0 %v4050
    %11424 = vmatmul.mubr.bf16.gmra.mrb[0].mxu0 %v4049
    %v11425 = vpop.f32.mrb[0].mxu0
    %v11426 = vadd.f32 %v11385, %v11425
    %v11427 = vpop.f32.mrb[0].mxu0
    %v11428 = vadd.f32 %v11387, %v11427
    %v11429 = vpop.f32.mrb[0].mxu0
    %v11430 = vpop.f32.mrb[0].mxu0
    %11431 = vdwg.mxu0
    %11432 = vmatprep.subr.bf16.mxu0 %v8842
    %11433 = vmatpush1.bf16.msra.mxu0 %v8841
    %11434 = vmatprep.subr.bf16.mxu0 %v8850
    %11435 = vmatpush1.bf16.msra.mxu0 %v8849
    %11436 = vmatprep.subr.bf16.mxu0 %v8858
    %11437 = vmatpush1.bf16.msra.mxu0 %v8857
    %11438 = vmatprep.subr.bf16.mxu0 %v8866
    %11439 = vmatpush1.bf16.msra.mxu0 %v8865
    %11440 = vmatprep.subr.bf16.mxu0 %v8874
    %11441 = vmatpush1.bf16.msra.mxu0 %v8873
    %11442 = vmatprep.subr.bf16.mxu0 %v8882
    %11443 = vmatpush1.bf16.msra.mxu0 %v8881
    %11444 = vmatprep.subr.bf16.mxu0 %v8890
    %11445 = vmatpush1.bf16.msra.mxu0 %v8889
    %11446 = vmatprep.subr.bf16.mxu0 %v8898
    %11447 = vmatpush1.bf16.msra.mxu0 %v8897
    %11448 = vmatprep.subr.bf16.mxu0 %v8906
    %11449 = vmatpush1.bf16.msra.mxu0 %v8905
    %11450 = vmatprep.subr.bf16.mxu0 %v8914
    %11451 = vmatpush1.bf16.msra.mxu0 %v8913
    %11452 = vmatprep.subr.bf16.mxu0 %v8922
    %11453 = vmatpush1.bf16.msra.mxu0 %v8921
    %11454 = vmatprep.subr.bf16.mxu0 %v8930
    %11455 = vmatpush1.bf16.msra.mxu0 %v8929
    %11456 = vmatprep.subr.bf16.mxu0 %v8938
    %11457 = vmatpush1.bf16.msra.mxu0 %v8937
    %11458 = vmatprep.subr.bf16.mxu0 %v8946
    %11459 = vmatpush1.bf16.msra.mxu0 %v8945
    %11460 = vmatprep.subr.bf16.mxu0 %v8954
    %11461 = vmatpush1.bf16.msra.mxu0 %v8953
    %11462 = vmatprep.subr.bf16.mxu0 %v8962
    %11463 = vmatpush1.bf16.msra.mxu0 %v8961
    %11464 = vmatprep.mubr.bf16.mxu0 %v4052
    %11465 = vmatmul.mubr.bf16.gmra.mrb[0].mxu0 %v4051
    %v11466 = vpop.f32.mrb[0].mxu0
    %v11467 = vadd.f32 %v11426, %v11466
    %v11468 = vpop.f32.mrb[0].mxu0
    %v11469 = vadd.f32 %v11428, %v11468
    %v11470 = vpop.f32.mrb[0].mxu0
    %v11471 = vpop.f32.mrb[0].mxu0
    %11472 = vdwg.mxu0
    %11473 = vmatprep.subr.bf16.mxu0 %v8970
    %11474 = vmatpush1.bf16.msra.mxu0 %v8969
    %11475 = vmatprep.subr.bf16.mxu0 %v8978
    %11476 = vmatpush1.bf16.msra.mxu0 %v8977
    %11477 = vmatprep.subr.bf16.mxu0 %v8986
    %11478 = vmatpush1.bf16.msra.mxu0 %v8985
    %11479 = vmatprep.subr.bf16.mxu0 %v8994
    %11480 = vmatpush1.bf16.msra.mxu0 %v8993
    %11481 = vmatprep.subr.bf16.mxu0 %v9002
    %11482 = vmatpush1.bf16.msra.mxu0 %v9001
    %11483 = vmatprep.subr.bf16.mxu0 %v9010
    %11484 = vmatpush1.bf16.msra.mxu0 %v9009
    %11485 = vmatprep.subr.bf16.mxu0 %v9018
    %11486 = vmatpush1.bf16.msra.mxu0 %v9017
    %11487 = vmatprep.subr.bf16.mxu0 %v9026
    %11488 = vmatpush1.bf16.msra.mxu0 %v9025
    %11489 = vmatprep.subr.bf16.mxu0 %v9034
    %11490 = vmatpush1.bf16.msra.mxu0 %v9033
    %11491 = vmatprep.subr.bf16.mxu0 %v9042
    %11492 = vmatpush1.bf16.msra.mxu0 %v9041
    %11493 = vmatprep.subr.bf16.mxu0 %v9050
    %11494 = vmatpush1.bf16.msra.mxu0 %v9049
    %11495 = vmatprep.subr.bf16.mxu0 %v9058
    %11496 = vmatpush1.bf16.msra.mxu0 %v9057
    %11497 = vmatprep.subr.bf16.mxu0 %v9066
    %11498 = vmatpush1.bf16.msra.mxu0 %v9065
    %11499 = vmatprep.subr.bf16.mxu0 %v9074
    %11500 = vmatpush1.bf16.msra.mxu0 %v9073
    %11501 = vmatprep.subr.bf16.mxu0 %v9082
    %11502 = vmatpush1.bf16.msra.mxu0 %v9081
    %11503 = vmatprep.subr.bf16.mxu0 %v9090
    %11504 = vmatpush1.bf16.msra.mxu0 %v9089
    %11505 = vmatprep.mubr.bf16.mxu0 %v4054
    %11506 = vmatmul.mubr.bf16.gmra.mrb[0].mxu0 %v4053
    %v11507 = vpop.f32.mrb[0].mxu0
    %v11508 = vadd.f32 %v11467, %v11507
    %v11509 = vpop.f32.mrb[0].mxu0
    %v11510 = vadd.f32 %v11469, %v11509
    %v11511 = vpop.f32.mrb[0].mxu0
    %v11512 = vpop.f32.mrb[0].mxu0
    %11513 = vdwg.mxu0
    %11514 = vmatprep.subr.bf16.mxu0 %v9098
    %11515 = vmatpush1.bf16.msra.mxu0 %v9097
    %11516 = vmatprep.subr.bf16.mxu0 %v9106
    %11517 = vmatpush1.bf16.msra.mxu0 %v9105
    %11518 = vmatprep.subr.bf16.mxu0 %v9114
    %11519 = vmatpush1.bf16.msra.mxu0 %v9113
    %11520 = vmatprep.subr.bf16.mxu0 %v9122
    %11521 = vmatpush1.bf16.msra.mxu0 %v9121
    %11522 = vmatprep.subr.bf16.mxu0 %v9130
    %11523 = vmatpush1.bf16.msra.mxu0 %v9129
    %11524 = vmatprep.subr.bf16.mxu0 %v9138
    %11525 = vmatpush1.bf16.msra.mxu0 %v9137
    %11526 = vmatprep.subr.bf16.mxu0 %v9146
    %11527 = vmatpush1.bf16.msra.mxu0 %v9145
    %11528 = vmatprep.subr.bf16.mxu0 %v9154
    %11529 = vmatpush1.bf16.msra.mxu0 %v9153
    %11530 = vmatprep.subr.bf16.mxu0 %v9162
    %11531 = vmatpush1.bf16.msra.mxu0 %v9161
    %11532 = vmatprep.subr.bf16.mxu0 %v9170
    %11533 = vmatpush1.bf16.msra.mxu0 %v9169
    %11534 = vmatprep.subr.bf16.mxu0 %v9178
    %11535 = vmatpush1.bf16.msra.mxu0 %v9177
    %11536 = vmatprep.subr.bf16.mxu0 %v9186
    %11537 = vmatpush1.bf16.msra.mxu0 %v9185
    %11538 = vmatprep.subr.bf16.mxu0 %v9194
    %11539 = vmatpush1.bf16.msra.mxu0 %v9193
    %11540 = vmatprep.subr.bf16.mxu0 %v9202
    %11541 = vmatpush1.bf16.msra.mxu0 %v9201
    %11542 = vmatprep.subr.bf16.mxu0 %v9210
    %11543 = vmatpush1.bf16.msra.mxu0 %v9209
    %11544 = vmatprep.subr.bf16.mxu0 %v9218
    %11545 = vmatpush1.bf16.msra.mxu0 %v9217
    %11546 = vmatprep.mubr.bf16.mxu0 %v4056
    %11547 = vmatmul.mubr.bf16.gmra.mrb[0].mxu0 %v4055
    %v11548 = vpop.f32.mrb[0].mxu0
    %v11549 = vadd.f32 %v11508, %v11548
    %v11550 = vpop.f32.mrb[0].mxu0
    %v11551 = vadd.f32 %v11510, %v11550
    %v11552 = vpop.f32.mrb[0].mxu0
    %v11553 = vpop.f32.mrb[0].mxu0
    %11554 = vdwg.mxu0
    %vm11555 = vcmp.ge.f32.partialorder %v10565, 0.0
    %vm11556 = vcmp.ge.f32.partialorder %v10567, 0.0
    %vm11557 = vcmp.ge.f32.partialorder %v10893, 0.0
    %vm11558 = vcmp.ge.f32.partialorder %v10895, 0.0
    %vm11559 = vcmp.ge.f32.partialorder %v11221, 0.0
    %vm11560 = vcmp.ge.f32.partialorder %v11223, 0.0
    %vm11561 = vcmp.ge.f32.partialorder %v11549, 0.0
    %vm11562 = vcmp.ge.f32.partialorder %v11551, 0.0
    %v11563 = vmul.f32 %v10565, 0.01
    %v11564 = vmul.f32 %v10567, 0.01
    %v11565 = vmul.f32 %v10893, 0.01
    %v11566 = vmul.f32 %v10895, 0.01
    %v11567 = vmul.f32 %v11221, 0.01
    %v11568 = vmul.f32 %v11223, 0.01
    %v11569 = vmul.f32 %v11549, 0.01
    %v11570 = vmul.f32 %v11551, 0.01
    %v11571 = vsel %vm11555, %v10565, %v11563
    %v11572 = vsel %vm11556, %v10567, %v11564
    %v11573 = vsel %vm11557, %v10893, %v11565
    %v11574 = vsel %vm11558, %v10895, %v11566
    %v11575 = vsel %vm11559, %v11221, %v11567
    %v11576 = vsel %vm11560, %v11223, %v11568
    %v11577 = vsel %vm11561, %v11549, %v11569
    %v11578 = vsel %vm11562, %v11551, %v11570
    %v11579 = vpack.c.bf16 %v11571, %v11571
    %v11580 = vpack.c.bf16 %v11572, %v11572
    %v11581 = vpack.c.bf16 %v11573, %v11573
    %v11582 = vpack.c.bf16 %v11574, %v11574
    %v11583 = vpack.c.bf16 %v11575, %v11575
    %v11584 = vpack.c.bf16 %v11576, %v11576
    %v11585 = vpack.c.bf16 %v11577, %v11577
    %v11586 = vpack.c.bf16 %v11578, %v11578
    %v11587 = vld [vmem:[#allocation9] sm:$0xff]
    %v11588 = vld [vmem:[#allocation9 + $0x8] sm:$0xff]
    %v11589 = vld [vmem:[#allocation9 + $0x10] sm:$0xff]
    %v11590 = vld [vmem:[#allocation9 + $0x18] sm:$0xff]
    %v11591 = vld [vmem:[#allocation9 + $0x20] sm:$0xff]
    %v11592 = vld [vmem:[#allocation9 + $0x28] sm:$0xff]
    %v11593 = vld [vmem:[#allocation9 + $0x30] sm:$0xff]
    %v11594 = vld [vmem:[#allocation9 + $0x38] sm:$0xff]
    %v11595 = vld [vmem:[#allocation9 + $0x40] sm:$0xff]
    %v11596 = vld [vmem:[#allocation9 + $0x48] sm:$0xff]
    %v11597 = vld [vmem:[#allocation9 + $0x50] sm:$0xff]
    %v11598 = vld [vmem:[#allocation9 + $0x58] sm:$0xff]
    %v11599 = vld [vmem:[#allocation9 + $0x60] sm:$0xff]
    %v11600 = vld [vmem:[#allocation9 + $0x68] sm:$0xff]
    %v11601 = vld [vmem:[#allocation9 + $0x70] sm:$0xff]
    %v11602 = vld [vmem:[#allocation9 + $0x78] sm:$0xff]
    %v11603 = vld [vmem:[#allocation9 + $0x80] sm:$0xff]
    %v11604 = vld [vmem:[#allocation9 + $0x88] sm:$0xff]
    %v11605 = vld [vmem:[#allocation9 + $0x90] sm:$0xff]
    %v11606 = vld [vmem:[#allocation9 + $0x98] sm:$0xff]
    %v11607 = vld [vmem:[#allocation9 + $0xa0] sm:$0xff]
    %v11608 = vld [vmem:[#allocation9 + $0xa8] sm:$0xff]
    %v11609 = vld [vmem:[#allocation9 + $0xb0] sm:$0xff]
    %v11610 = vld [vmem:[#allocation9 + $0xb8] sm:$0xff]
    %v11611 = vld [vmem:[#allocation9 + $0xc0] sm:$0xff]
    %v11612 = vld [vmem:[#allocation9 + $0xc8] sm:$0xff]
    %v11613 = vld [vmem:[#allocation9 + $0xd0] sm:$0xff]
    %v11614 = vld [vmem:[#allocation9 + $0xd8] sm:$0xff]
    %v11615 = vld [vmem:[#allocation9 + $0xe0] sm:$0xff]
    %v11616 = vld [vmem:[#allocation9 + $0xe8] sm:$0xff]
    %v11617 = vld [vmem:[#allocation9 + $0xf0] sm:$0xff]
    %v11618 = vld [vmem:[#allocation9 + $0xf8] sm:$0xff]
    %v11619 = vld [vmem:[#allocation9 + $0x100] sm:$0xff]
    %v11620 = vld [vmem:[#allocation9 + $0x108] sm:$0xff]
    %v11621 = vld [vmem:[#allocation9 + $0x110] sm:$0xff]
    %v11622 = vld [vmem:[#allocation9 + $0x118] sm:$0xff]
    %v11623 = vld [vmem:[#allocation9 + $0x120] sm:$0xff]
    %v11624 = vld [vmem:[#allocation9 + $0x128] sm:$0xff]
    %v11625 = vld [vmem:[#allocation9 + $0x130] sm:$0xff]
    %v11626 = vld [vmem:[#allocation9 + $0x138] sm:$0xff]
    %v11627 = vld [vmem:[#allocation9 + $0x140] sm:$0xff]
    %v11628 = vld [vmem:[#allocation9 + $0x148] sm:$0xff]
    %v11629 = vld [vmem:[#allocation9 + $0x150] sm:$0xff]
    %v11630 = vld [vmem:[#allocation9 + $0x158] sm:$0xff]
    %v11631 = vld [vmem:[#allocation9 + $0x160] sm:$0xff]
    %v11632 = vld [vmem:[#allocation9 + $0x168] sm:$0xff]
    %v11633 = vld [vmem:[#allocation9 + $0x170] sm:$0xff]
    %v11634 = vld [vmem:[#allocation9 + $0x178] sm:$0xff]
    %v11635 = vld [vmem:[#allocation9 + $0x180] sm:$0xff]
    %v11636 = vld [vmem:[#allocation9 + $0x188] sm:$0xff]
    %v11637 = vld [vmem:[#allocation9 + $0x190] sm:$0xff]
    %v11638 = vld [vmem:[#allocation9 + $0x198] sm:$0xff]
    %v11639 = vld [vmem:[#allocation9 + $0x1a0] sm:$0xff]
    %v11640 = vld [vmem:[#allocation9 + $0x1a8] sm:$0xff]
    %v11641 = vld [vmem:[#allocation9 + $0x1b0] sm:$0xff]
    %v11642 = vld [vmem:[#allocation9 + $0x1b8] sm:$0xff]
    %v11643 = vld [vmem:[#allocation9 + $0x1c0] sm:$0xff]
    %v11644 = vld [vmem:[#allocation9 + $0x1c8] sm:$0xff]
    %v11645 = vld [vmem:[#allocation9 + $0x1d0] sm:$0xff]
    %v11646 = vld [vmem:[#allocation9 + $0x1d8] sm:$0xff]
    %v11647 = vld [vmem:[#allocation9 + $0x1e0] sm:$0xff]
    %v11648 = vld [vmem:[#allocation9 + $0x1e8] sm:$0xff]
    %v11649 = vld [vmem:[#allocation9 + $0x1f0] sm:$0xff]
    %v11650 = vld [vmem:[#allocation9 + $0x1f8] sm:$0xff]
    %v11651 = vld [vmem:[#allocation9 + $0x200] sm:$0xff]
    %v11652 = vld [vmem:[#allocation9 + $0x208] sm:$0xff]
    %v11653 = vld [vmem:[#allocation9 + $0x210] sm:$0xff]
    %v11654 = vld [vmem:[#allocation9 + $0x218] sm:$0xff]
    %v11655 = vld [vmem:[#allocation9 + $0x220] sm:$0xff]
    %v11656 = vld [vmem:[#allocation9 + $0x228] sm:$0xff]
    %v11657 = vld [vmem:[#allocation9 + $0x230] sm:$0xff]
    %v11658 = vld [vmem:[#allocation9 + $0x238] sm:$0xff]
    %v11659 = vld [vmem:[#allocation9 + $0x240] sm:$0xff]
    %v11660 = vld [vmem:[#allocation9 + $0x248] sm:$0xff]
    %v11661 = vld [vmem:[#allocation9 + $0x250] sm:$0xff]
    %v11662 = vld [vmem:[#allocation9 + $0x258] sm:$0xff]
    %v11663 = vld [vmem:[#allocation9 + $0x260] sm:$0xff]
    %v11664 = vld [vmem:[#allocation9 + $0x268] sm:$0xff]
    %v11665 = vld [vmem:[#allocation9 + $0x270] sm:$0xff]
    %v11666 = vld [vmem:[#allocation9 + $0x278] sm:$0xff]
    %v11667 = vld [vmem:[#allocation9 + $0x280] sm:$0xff]
    %v11668 = vld [vmem:[#allocation9 + $0x288] sm:$0xff]
    %v11669 = vld [vmem:[#allocation9 + $0x290] sm:$0xff]
    %v11670 = vld [vmem:[#allocation9 + $0x298] sm:$0xff]
    %v11671 = vld [vmem:[#allocation9 + $0x2a0] sm:$0xff]
    %v11672 = vld [vmem:[#allocation9 + $0x2a8] sm:$0xff]
    %v11673 = vld [vmem:[#allocation9 + $0x2b0] sm:$0xff]
    %v11674 = vld [vmem:[#allocation9 + $0x2b8] sm:$0xff]
    %v11675 = vld [vmem:[#allocation9 + $0x2c0] sm:$0xff]
    %v11676 = vld [vmem:[#allocation9 + $0x2c8] sm:$0xff]
    %v11677 = vld [vmem:[#allocation9 + $0x2d0] sm:$0xff]
    %v11678 = vld [vmem:[#allocation9 + $0x2d8] sm:$0xff]
    %v11679 = vld [vmem:[#allocation9 + $0x2e0] sm:$0xff]
    %v11680 = vld [vmem:[#allocation9 + $0x2e8] sm:$0xff]
    %v11681 = vld [vmem:[#allocation9 + $0x2f0] sm:$0xff]
    %v11682 = vld [vmem:[#allocation9 + $0x2f8] sm:$0xff]
    %v11683 = vld [vmem:[#allocation9 + $0x300] sm:$0xff]
    %v11684 = vld [vmem:[#allocation9 + $0x308] sm:$0xff]
    %v11685 = vld [vmem:[#allocation9 + $0x310] sm:$0xff]
    %v11686 = vld [vmem:[#allocation9 + $0x318] sm:$0xff]
    %v11687 = vld [vmem:[#allocation9 + $0x320] sm:$0xff]
    %v11688 = vld [vmem:[#allocation9 + $0x328] sm:$0xff]
    %v11689 = vld [vmem:[#allocation9 + $0x330] sm:$0xff]
    %v11690 = vld [vmem:[#allocation9 + $0x338] sm:$0xff]
    %v11691 = vld [vmem:[#allocation9 + $0x340] sm:$0xff]
    %v11692 = vld [vmem:[#allocation9 + $0x348] sm:$0xff]
    %v11693 = vld [vmem:[#allocation9 + $0x350] sm:$0xff]
    %v11694 = vld [vmem:[#allocation9 + $0x358] sm:$0xff]
    %v11695 = vld [vmem:[#allocation9 + $0x360] sm:$0xff]
    %v11696 = vld [vmem:[#allocation9 + $0x368] sm:$0xff]
    %v11697 = vld [vmem:[#allocation9 + $0x370] sm:$0xff]
    %v11698 = vld [vmem:[#allocation9 + $0x378] sm:$0xff]
    %v11699 = vld [vmem:[#allocation9 + $0x380] sm:$0xff]
    %v11700 = vld [vmem:[#allocation9 + $0x388] sm:$0xff]
    %v11701 = vld [vmem:[#allocation9 + $0x390] sm:$0xff]
    %v11702 = vld [vmem:[#allocation9 + $0x398] sm:$0xff]
    %v11703 = vld [vmem:[#allocation9 + $0x3a0] sm:$0xff]
    %v11704 = vld [vmem:[#allocation9 + $0x3a8] sm:$0xff]
    %v11705 = vld [vmem:[#allocation9 + $0x3b0] sm:$0xff]
    %v11706 = vld [vmem:[#allocation9 + $0x3b8] sm:$0xff]
    %v11707 = vld [vmem:[#allocation9 + $0x3c0] sm:$0xff]
    %v11708 = vld [vmem:[#allocation9 + $0x3c8] sm:$0xff]
    %v11709 = vld [vmem:[#allocation9 + $0x3d0] sm:$0xff]
    %v11710 = vld [vmem:[#allocation9 + $0x3d8] sm:$0xff]
    %v11711 = vld [vmem:[#allocation9 + $0x3e0] sm:$0xff]
    %v11712 = vld [vmem:[#allocation9 + $0x3e8] sm:$0xff]
    %v11713 = vld [vmem:[#allocation9 + $0x3f0] sm:$0xff]
    %v11714 = vld [vmem:[#allocation9 + $0x3f8] sm:$0xff]
    %v11715 = vld [vmem:[#allocation9 + $0x400] sm:$0xff]
    %v11716 = vld [vmem:[#allocation9 + $0x408] sm:$0xff]
    %v11717 = vld [vmem:[#allocation9 + $0x410] sm:$0xff]
    %v11718 = vld [vmem:[#allocation9 + $0x418] sm:$0xff]
    %v11719 = vld [vmem:[#allocation9 + $0x420] sm:$0xff]
    %v11720 = vld [vmem:[#allocation9 + $0x428] sm:$0xff]
    %v11721 = vld [vmem:[#allocation9 + $0x430] sm:$0xff]
    %v11722 = vld [vmem:[#allocation9 + $0x438] sm:$0xff]
    %v11723 = vld [vmem:[#allocation9 + $0x440] sm:$0xff]
    %v11724 = vld [vmem:[#allocation9 + $0x448] sm:$0xff]
    %v11725 = vld [vmem:[#allocation9 + $0x450] sm:$0xff]
    %v11726 = vld [vmem:[#allocation9 + $0x458] sm:$0xff]
    %v11727 = vld [vmem:[#allocation9 + $0x460] sm:$0xff]
    %v11728 = vld [vmem:[#allocation9 + $0x468] sm:$0xff]
    %v11729 = vld [vmem:[#allocation9 + $0x470] sm:$0xff]
    %v11730 = vld [vmem:[#allocation9 + $0x478] sm:$0xff]
    %v11731 = vld [vmem:[#allocation9 + $0x480] sm:$0xff]
    %v11732 = vld [vmem:[#allocation9 + $0x488] sm:$0xff]
    %v11733 = vld [vmem:[#allocation9 + $0x490] sm:$0xff]
    %v11734 = vld [vmem:[#allocation9 + $0x498] sm:$0xff]
    %v11735 = vld [vmem:[#allocation9 + $0x4a0] sm:$0xff]
    %v11736 = vld [vmem:[#allocation9 + $0x4a8] sm:$0xff]
    %v11737 = vld [vmem:[#allocation9 + $0x4b0] sm:$0xff]
    %v11738 = vld [vmem:[#allocation9 + $0x4b8] sm:$0xff]
    %v11739 = vld [vmem:[#allocation9 + $0x4c0] sm:$0xff]
    %v11740 = vld [vmem:[#allocation9 + $0x4c8] sm:$0xff]
    %v11741 = vld [vmem:[#allocation9 + $0x4d0] sm:$0xff]
    %v11742 = vld [vmem:[#allocation9 + $0x4d8] sm:$0xff]
    %v11743 = vld [vmem:[#allocation9 + $0x4e0] sm:$0xff]
    %v11744 = vld [vmem:[#allocation9 + $0x4e8] sm:$0xff]
    %v11745 = vld [vmem:[#allocation9 + $0x4f0] sm:$0xff]
    %v11746 = vld [vmem:[#allocation9 + $0x4f8] sm:$0xff]
    %v11747 = vld [vmem:[#allocation9 + $0x500] sm:$0xff]
    %v11748 = vld [vmem:[#allocation9 + $0x508] sm:$0xff]
    %v11749 = vld [vmem:[#allocation9 + $0x510] sm:$0xff]
    %v11750 = vld [vmem:[#allocation9 + $0x518] sm:$0xff]
    %v11751 = vld [vmem:[#allocation9 + $0x520] sm:$0xff]
    %v11752 = vld [vmem:[#allocation9 + $0x528] sm:$0xff]
    %v11753 = vld [vmem:[#allocation9 + $0x530] sm:$0xff]
    %v11754 = vld [vmem:[#allocation9 + $0x538] sm:$0xff]
    %v11755 = vld [vmem:[#allocation9 + $0x540] sm:$0xff]
    %v11756 = vld [vmem:[#allocation9 + $0x548] sm:$0xff]
    %v11757 = vld [vmem:[#allocation9 + $0x550] sm:$0xff]
    %v11758 = vld [vmem:[#allocation9 + $0x558] sm:$0xff]
    %v11759 = vld [vmem:[#allocation9 + $0x560] sm:$0xff]
    %v11760 = vld [vmem:[#allocation9 + $0x568] sm:$0xff]
    %v11761 = vld [vmem:[#allocation9 + $0x570] sm:$0xff]
    %v11762 = vld [vmem:[#allocation9 + $0x578] sm:$0xff]
    %v11763 = vld [vmem:[#allocation9 + $0x580] sm:$0xff]
    %v11764 = vld [vmem:[#allocation9 + $0x588] sm:$0xff]
    %v11765 = vld [vmem:[#allocation9 + $0x590] sm:$0xff]
    %v11766 = vld [vmem:[#allocation9 + $0x598] sm:$0xff]
    %v11767 = vld [vmem:[#allocation9 + $0x5a0] sm:$0xff]
    %v11768 = vld [vmem:[#allocation9 + $0x5a8] sm:$0xff]
    %v11769 = vld [vmem:[#allocation9 + $0x5b0] sm:$0xff]
    %v11770 = vld [vmem:[#allocation9 + $0x5b8] sm:$0xff]
    %v11771 = vld [vmem:[#allocation9 + $0x5c0] sm:$0xff]
    %v11772 = vld [vmem:[#allocation9 + $0x5c8] sm:$0xff]
    %v11773 = vld [vmem:[#allocation9 + $0x5d0] sm:$0xff]
    %v11774 = vld [vmem:[#allocation9 + $0x5d8] sm:$0xff]
    %v11775 = vld [vmem:[#allocation9 + $0x5e0] sm:$0xff]
    %v11776 = vld [vmem:[#allocation9 + $0x5e8] sm:$0xff]
    %v11777 = vld [vmem:[#allocation9 + $0x5f0] sm:$0xff]
    %v11778 = vld [vmem:[#allocation9 + $0x5f8] sm:$0xff]
    %v11779 = vld [vmem:[#allocation9 + $0x600] sm:$0xff]
    %v11780 = vld [vmem:[#allocation9 + $0x608] sm:$0xff]
    %v11781 = vld [vmem:[#allocation9 + $0x610] sm:$0xff]
    %v11782 = vld [vmem:[#allocation9 + $0x618] sm:$0xff]
    %v11783 = vld [vmem:[#allocation9 + $0x620] sm:$0xff]
    %v11784 = vld [vmem:[#allocation9 + $0x628] sm:$0xff]
    %v11785 = vld [vmem:[#allocation9 + $0x630] sm:$0xff]
    %v11786 = vld [vmem:[#allocation9 + $0x638] sm:$0xff]
    %v11787 = vld [vmem:[#allocation9 + $0x640] sm:$0xff]
    %v11788 = vld [vmem:[#allocation9 + $0x648] sm:$0xff]
    %v11789 = vld [vmem:[#allocation9 + $0x650] sm:$0xff]
    %v11790 = vld [vmem:[#allocation9 + $0x658] sm:$0xff]
    %v11791 = vld [vmem:[#allocation9 + $0x660] sm:$0xff]
    %v11792 = vld [vmem:[#allocation9 + $0x668] sm:$0xff]
    %v11793 = vld [vmem:[#allocation9 + $0x670] sm:$0xff]
    %v11794 = vld [vmem:[#allocation9 + $0x678] sm:$0xff]
    %v11795 = vld [vmem:[#allocation9 + $0x680] sm:$0xff]
    %v11796 = vld [vmem:[#allocation9 + $0x688] sm:$0xff]
    %v11797 = vld [vmem:[#allocation9 + $0x690] sm:$0xff]
    %v11798 = vld [vmem:[#allocation9 + $0x698] sm:$0xff]
    %v11799 = vld [vmem:[#allocation9 + $0x6a0] sm:$0xff]
    %v11800 = vld [vmem:[#allocation9 + $0x6a8] sm:$0xff]
    %v11801 = vld [vmem:[#allocation9 + $0x6b0] sm:$0xff]
    %v11802 = vld [vmem:[#allocation9 + $0x6b8] sm:$0xff]
    %v11803 = vld [vmem:[#allocation9 + $0x6c0] sm:$0xff]
    %v11804 = vld [vmem:[#allocation9 + $0x6c8] sm:$0xff]
    %v11805 = vld [vmem:[#allocation9 + $0x6d0] sm:$0xff]
    %v11806 = vld [vmem:[#allocation9 + $0x6d8] sm:$0xff]
    %v11807 = vld [vmem:[#allocation9 + $0x6e0] sm:$0xff]
    %v11808 = vld [vmem:[#allocation9 + $0x6e8] sm:$0xff]
    %v11809 = vld [vmem:[#allocation9 + $0x6f0] sm:$0xff]
    %v11810 = vld [vmem:[#allocation9 + $0x6f8] sm:$0xff]
    %v11811 = vld [vmem:[#allocation9 + $0x700] sm:$0xff]
    %v11812 = vld [vmem:[#allocation9 + $0x708] sm:$0xff]
    %v11813 = vld [vmem:[#allocation9 + $0x710] sm:$0xff]
    %v11814 = vld [vmem:[#allocation9 + $0x718] sm:$0xff]
    %v11815 = vld [vmem:[#allocation9 + $0x720] sm:$0xff]
    %v11816 = vld [vmem:[#allocation9 + $0x728] sm:$0xff]
    %v11817 = vld [vmem:[#allocation9 + $0x730] sm:$0xff]
    %v11818 = vld [vmem:[#allocation9 + $0x738] sm:$0xff]
    %v11819 = vld [vmem:[#allocation9 + $0x740] sm:$0xff]
    %v11820 = vld [vmem:[#allocation9 + $0x748] sm:$0xff]
    %v11821 = vld [vmem:[#allocation9 + $0x750] sm:$0xff]
    %v11822 = vld [vmem:[#allocation9 + $0x758] sm:$0xff]
    %v11823 = vld [vmem:[#allocation9 + $0x760] sm:$0xff]
    %v11824 = vld [vmem:[#allocation9 + $0x768] sm:$0xff]
    %v11825 = vld [vmem:[#allocation9 + $0x770] sm:$0xff]
    %v11826 = vld [vmem:[#allocation9 + $0x778] sm:$0xff]
    %v11827 = vld [vmem:[#allocation9 + $0x780] sm:$0xff]
    %v11828 = vld [vmem:[#allocation9 + $0x788] sm:$0xff]
    %v11829 = vld [vmem:[#allocation9 + $0x790] sm:$0xff]
    %v11830 = vld [vmem:[#allocation9 + $0x798] sm:$0xff]
    %v11831 = vld [vmem:[#allocation9 + $0x7a0] sm:$0xff]
    %v11832 = vld [vmem:[#allocation9 + $0x7a8] sm:$0xff]
    %v11833 = vld [vmem:[#allocation9 + $0x7b0] sm:$0xff]
    %v11834 = vld [vmem:[#allocation9 + $0x7b8] sm:$0xff]
    %v11835 = vld [vmem:[#allocation9 + $0x7c0] sm:$0xff]
    %v11836 = vld [vmem:[#allocation9 + $0x7c8] sm:$0xff]
    %v11837 = vld [vmem:[#allocation9 + $0x7d0] sm:$0xff]
    %v11838 = vld [vmem:[#allocation9 + $0x7d8] sm:$0xff]
    %v11839 = vld [vmem:[#allocation9 + $0x7e0] sm:$0xff]
    %v11840 = vld [vmem:[#allocation9 + $0x7e8] sm:$0xff]
    %v11841 = vld [vmem:[#allocation9 + $0x7f0] sm:$0xff]
    %v11842 = vld [vmem:[#allocation9 + $0x7f8] sm:$0xff]
    %v11843 = vld [vmem:[#allocation10] sm:$0xf]
    %v11845 = vlaneseq
    %v11846 = vshrl.u32 %v11845, 7
    %v11847 = vsub.s32 0, %v11846
    %v11848 = vrot.slane %v11843, %v11847
    %v11849 = vlaneseq
    %v11850 = vshrl.u32 %v11849, 7
    %v11851 = vsub.s32 1, %v11850
    %v11852 = vrot.slane %v11843, %v11851
    %v11853 = vlaneseq
    %v11854 = vshrl.u32 %v11853, 7
    %v11855 = vsub.s32 2, %v11854
    %v11856 = vrot.slane %v11843, %v11855
    %v11857 = vlaneseq
    %v11858 = vshrl.u32 %v11857, 7
    %v11859 = vsub.s32 3, %v11858
    %v11860 = vrot.slane %v11843, %v11859
    %v12121 = vunpack.c.l.b16 %v11587
    %v12122 = vunpack.c.h.b16 %v11587
    %v12123 = vunpack.c.l.b16 %v11588
    %v12124 = vunpack.c.h.b16 %v11588
    %v12125 = vunpack.c.l.b16 %v11589
    %v12126 = vunpack.c.h.b16 %v11589
    %v12127 = vunpack.c.l.b16 %v11590
    %v12128 = vunpack.c.h.b16 %v11590
    %v12129 = vunpack.c.l.b16 %v11591
    %v12130 = vunpack.c.h.b16 %v11591
    %v12131 = vunpack.c.l.b16 %v11592
    %v12132 = vunpack.c.h.b16 %v11592
    %v12133 = vunpack.c.l.b16 %v11593
    %v12134 = vunpack.c.h.b16 %v11593
    %v12135 = vunpack.c.l.b16 %v11594
    %v12136 = vunpack.c.h.b16 %v11594
    %v12137 = vunpack.c.l.b16 %v11595
    %v12138 = vunpack.c.h.b16 %v11595
    %v12139 = vunpack.c.l.b16 %v11596
    %v12140 = vunpack.c.h.b16 %v11596
    %v12141 = vunpack.c.l.b16 %v11597
    %v12142 = vunpack.c.h.b16 %v11597
    %v12143 = vunpack.c.l.b16 %v11598
    %v12144 = vunpack.c.h.b16 %v11598
    %v12145 = vunpack.c.l.b16 %v11599
    %v12146 = vunpack.c.h.b16 %v11599
    %v12147 = vunpack.c.l.b16 %v11600
    %v12148 = vunpack.c.h.b16 %v11600
    %v12149 = vunpack.c.l.b16 %v11601
    %v12150 = vunpack.c.h.b16 %v11601
    %v12151 = vunpack.c.l.b16 %v11602
    %v12152 = vunpack.c.h.b16 %v11602
    %v12153 = vunpack.c.l.b16 %v11603
    %v12154 = vunpack.c.h.b16 %v11603
    %v12155 = vunpack.c.l.b16 %v11604
    %v12156 = vunpack.c.h.b16 %v11604
    %v12157 = vunpack.c.l.b16 %v11605
    %v12158 = vunpack.c.h.b16 %v11605
    %v12159 = vunpack.c.l.b16 %v11606
    %v12160 = vunpack.c.h.b16 %v11606
    %v12161 = vunpack.c.l.b16 %v11607
    %v12162 = vunpack.c.h.b16 %v11607
    %v12163 = vunpack.c.l.b16 %v11608
    %v12164 = vunpack.c.h.b16 %v11608
    %v12165 = vunpack.c.l.b16 %v11609
    %v12166 = vunpack.c.h.b16 %v11609
    %v12167 = vunpack.c.l.b16 %v11610
    %v12168 = vunpack.c.h.b16 %v11610
    %v12169 = vunpack.c.l.b16 %v11611
    %v12170 = vunpack.c.h.b16 %v11611
    %v12171 = vunpack.c.l.b16 %v11612
    %v12172 = vunpack.c.h.b16 %v11612
    %v12173 = vunpack.c.l.b16 %v11613
    %v12174 = vunpack.c.h.b16 %v11613
    %v12175 = vunpack.c.l.b16 %v11614
    %v12176 = vunpack.c.h.b16 %v11614
    %v12177 = vunpack.c.l.b16 %v11615
    %v12178 = vunpack.c.h.b16 %v11615
    %v12179 = vunpack.c.l.b16 %v11616
    %v12180 = vunpack.c.h.b16 %v11616
    %v12181 = vunpack.c.l.b16 %v11617
    %v12182 = vunpack.c.h.b16 %v11617
    %v12183 = vunpack.c.l.b16 %v11618
    %v12184 = vunpack.c.h.b16 %v11618
    %v12185 = vunpack.c.l.b16 %v11619
    %v12186 = vunpack.c.h.b16 %v11619
    %v12187 = vunpack.c.l.b16 %v11620
    %v12188 = vunpack.c.h.b16 %v11620
    %v12189 = vunpack.c.l.b16 %v11621
    %v12190 = vunpack.c.h.b16 %v11621
    %v12191 = vunpack.c.l.b16 %v11622
    %v12192 = vunpack.c.h.b16 %v11622
    %v12193 = vunpack.c.l.b16 %v11623
    %v12194 = vunpack.c.h.b16 %v11623
    %v12195 = vunpack.c.l.b16 %v11624
    %v12196 = vunpack.c.h.b16 %v11624
    %v12197 = vunpack.c.l.b16 %v11625
    %v12198 = vunpack.c.h.b16 %v11625
    %v12199 = vunpack.c.l.b16 %v11626
    %v12200 = vunpack.c.h.b16 %v11626
    %v12201 = vunpack.c.l.b16 %v11627
    %v12202 = vunpack.c.h.b16 %v11627
    %v12203 = vunpack.c.l.b16 %v11628
    %v12204 = vunpack.c.h.b16 %v11628
    %v12205 = vunpack.c.l.b16 %v11629
    %v12206 = vunpack.c.h.b16 %v11629
    %v12207 = vunpack.c.l.b16 %v11630
    %v12208 = vunpack.c.h.b16 %v11630
    %v12209 = vunpack.c.l.b16 %v11631
    %v12210 = vunpack.c.h.b16 %v11631
    %v12211 = vunpack.c.l.b16 %v11632
    %v12212 = vunpack.c.h.b16 %v11632
    %v12213 = vunpack.c.l.b16 %v11633
    %v12214 = vunpack.c.h.b16 %v11633
    %v12215 = vunpack.c.l.b16 %v11634
    %v12216 = vunpack.c.h.b16 %v11634
    %v12217 = vunpack.c.l.b16 %v11635
    %v12218 = vunpack.c.h.b16 %v11635
    %v12219 = vunpack.c.l.b16 %v11636
    %v12220 = vunpack.c.h.b16 %v11636
    %v12221 = vunpack.c.l.b16 %v11637
    %v12222 = vunpack.c.h.b16 %v11637
    %v12223 = vunpack.c.l.b16 %v11638
    %v12224 = vunpack.c.h.b16 %v11638
    %v12225 = vunpack.c.l.b16 %v11639
    %v12226 = vunpack.c.h.b16 %v11639
    %v12227 = vunpack.c.l.b16 %v11640
    %v12228 = vunpack.c.h.b16 %v11640
    %v12229 = vunpack.c.l.b16 %v11641
    %v12230 = vunpack.c.h.b16 %v11641
    %v12231 = vunpack.c.l.b16 %v11642
    %v12232 = vunpack.c.h.b16 %v11642
    %v12233 = vunpack.c.l.b16 %v11643
    %v12234 = vunpack.c.h.b16 %v11643
    %v12235 = vunpack.c.l.b16 %v11644
    %v12236 = vunpack.c.h.b16 %v11644
    %v12237 = vunpack.c.l.b16 %v11645
    %v12238 = vunpack.c.h.b16 %v11645
    %v12239 = vunpack.c.l.b16 %v11646
    %v12240 = vunpack.c.h.b16 %v11646
    %v12241 = vunpack.c.l.b16 %v11647
    %v12242 = vunpack.c.h.b16 %v11647
    %v12243 = vunpack.c.l.b16 %v11648
    %v12244 = vunpack.c.h.b16 %v11648
    %v12245 = vunpack.c.l.b16 %v11649
    %v12246 = vunpack.c.h.b16 %v11649
    %v12247 = vunpack.c.l.b16 %v11650
    %v12248 = vunpack.c.h.b16 %v11650
    %v12249 = vunpack.c.l.b16 %v11651
    %v12250 = vunpack.c.h.b16 %v11651
    %v12251 = vunpack.c.l.b16 %v11652
    %v12252 = vunpack.c.h.b16 %v11652
    %v12253 = vunpack.c.l.b16 %v11653
    %v12254 = vunpack.c.h.b16 %v11653
    %v12255 = vunpack.c.l.b16 %v11654
    %v12256 = vunpack.c.h.b16 %v11654
    %v12257 = vunpack.c.l.b16 %v11655
    %v12258 = vunpack.c.h.b16 %v11655
    %v12259 = vunpack.c.l.b16 %v11656
    %v12260 = vunpack.c.h.b16 %v11656
    %v12261 = vunpack.c.l.b16 %v11657
    %v12262 = vunpack.c.h.b16 %v11657
    %v12263 = vunpack.c.l.b16 %v11658
    %v12264 = vunpack.c.h.b16 %v11658
    %v12265 = vunpack.c.l.b16 %v11659
    %v12266 = vunpack.c.h.b16 %v11659
    %v12267 = vunpack.c.l.b16 %v11660
    %v12268 = vunpack.c.h.b16 %v11660
    %v12269 = vunpack.c.l.b16 %v11661
    %v12270 = vunpack.c.h.b16 %v11661
    %v12271 = vunpack.c.l.b16 %v11662
    %v12272 = vunpack.c.h.b16 %v11662
    %v12273 = vunpack.c.l.b16 %v11663
    %v12274 = vunpack.c.h.b16 %v11663
    %v12275 = vunpack.c.l.b16 %v11664
    %v12276 = vunpack.c.h.b16 %v11664
    %v12277 = vunpack.c.l.b16 %v11665
    %v12278 = vunpack.c.h.b16 %v11665
    %v12279 = vunpack.c.l.b16 %v11666
    %v12280 = vunpack.c.h.b16 %v11666
    %v12281 = vunpack.c.l.b16 %v11667
    %v12282 = vunpack.c.h.b16 %v11667
    %v12283 = vunpack.c.l.b16 %v11668
    %v12284 = vunpack.c.h.b16 %v11668
    %v12285 = vunpack.c.l.b16 %v11669
    %v12286 = vunpack.c.h.b16 %v11669
    %v12287 = vunpack.c.l.b16 %v11670
    %v12288 = vunpack.c.h.b16 %v11670
    %v12289 = vunpack.c.l.b16 %v11671
    %v12290 = vunpack.c.h.b16 %v11671
    %v12291 = vunpack.c.l.b16 %v11672
    %v12292 = vunpack.c.h.b16 %v11672
    %v12293 = vunpack.c.l.b16 %v11673
    %v12294 = vunpack.c.h.b16 %v11673
    %v12295 = vunpack.c.l.b16 %v11674
    %v12296 = vunpack.c.h.b16 %v11674
    %v12297 = vunpack.c.l.b16 %v11675
    %v12298 = vunpack.c.h.b16 %v11675
    %v12299 = vunpack.c.l.b16 %v11676
    %v12300 = vunpack.c.h.b16 %v11676
    %v12301 = vunpack.c.l.b16 %v11677
    %v12302 = vunpack.c.h.b16 %v11677
    %v12303 = vunpack.c.l.b16 %v11678
    %v12304 = vunpack.c.h.b16 %v11678
    %v12305 = vunpack.c.l.b16 %v11679
    %v12306 = vunpack.c.h.b16 %v11679
    %v12307 = vunpack.c.l.b16 %v11680
    %v12308 = vunpack.c.h.b16 %v11680
    %v12309 = vunpack.c.l.b16 %v11681
    %v12310 = vunpack.c.h.b16 %v11681
    %v12311 = vunpack.c.l.b16 %v11682
    %v12312 = vunpack.c.h.b16 %v11682
    %v12313 = vunpack.c.l.b16 %v11683
    %v12314 = vunpack.c.h.b16 %v11683
    %v12315 = vunpack.c.l.b16 %v11684
    %v12316 = vunpack.c.h.b16 %v11684
    %v12317 = vunpack.c.l.b16 %v11685
    %v12318 = vunpack.c.h.b16 %v11685
    %v12319 = vunpack.c.l.b16 %v11686
    %v12320 = vunpack.c.h.b16 %v11686
    %v12321 = vunpack.c.l.b16 %v11687
    %v12322 = vunpack.c.h.b16 %v11687
    %v12323 = vunpack.c.l.b16 %v11688
    %v12324 = vunpack.c.h.b16 %v11688
    %v12325 = vunpack.c.l.b16 %v11689
    %v12326 = vunpack.c.h.b16 %v11689
    %v12327 = vunpack.c.l.b16 %v11690
    %v12328 = vunpack.c.h.b16 %v11690
    %v12329 = vunpack.c.l.b16 %v11691
    %v12330 = vunpack.c.h.b16 %v11691
    %v12331 = vunpack.c.l.b16 %v11692
    %v12332 = vunpack.c.h.b16 %v11692
    %v12333 = vunpack.c.l.b16 %v11693
    %v12334 = vunpack.c.h.b16 %v11693
    %v12335 = vunpack.c.l.b16 %v11694
    %v12336 = vunpack.c.h.b16 %v11694
    %v12337 = vunpack.c.l.b16 %v11695
    %v12338 = vunpack.c.h.b16 %v11695
    %v12339 = vunpack.c.l.b16 %v11696
    %v12340 = vunpack.c.h.b16 %v11696
    %v12341 = vunpack.c.l.b16 %v11697
    %v12342 = vunpack.c.h.b16 %v11697
    %v12343 = vunpack.c.l.b16 %v11698
    %v12344 = vunpack.c.h.b16 %v11698
    %v12345 = vunpack.c.l.b16 %v11699
    %v12346 = vunpack.c.h.b16 %v11699
    %v12347 = vunpack.c.l.b16 %v11700
    %v12348 = vunpack.c.h.b16 %v11700
    %v12349 = vunpack.c.l.b16 %v11701
    %v12350 = vunpack.c.h.b16 %v11701
    %v12351 = vunpack.c.l.b16 %v11702
    %v12352 = vunpack.c.h.b16 %v11702
    %v12353 = vunpack.c.l.b16 %v11703
    %v12354 = vunpack.c.h.b16 %v11703
    %v12355 = vunpack.c.l.b16 %v11704
    %v12356 = vunpack.c.h.b16 %v11704
    %v12357 = vunpack.c.l.b16 %v11705
    %v12358 = vunpack.c.h.b16 %v11705
    %v12359 = vunpack.c.l.b16 %v11706
    %v12360 = vunpack.c.h.b16 %v11706
    %v12361 = vunpack.c.l.b16 %v11707
    %v12362 = vunpack.c.h.b16 %v11707
    %v12363 = vunpack.c.l.b16 %v11708
    %v12364 = vunpack.c.h.b16 %v11708
    %v12365 = vunpack.c.l.b16 %v11709
    %v12366 = vunpack.c.h.b16 %v11709
    %v12367 = vunpack.c.l.b16 %v11710
    %v12368 = vunpack.c.h.b16 %v11710
    %v12369 = vunpack.c.l.b16 %v11711
    %v12370 = vunpack.c.h.b16 %v11711
    %v12371 = vunpack.c.l.b16 %v11712
    %v12372 = vunpack.c.h.b16 %v11712
    %v12373 = vunpack.c.l.b16 %v11713
    %v12374 = vunpack.c.h.b16 %v11713
    %v12375 = vunpack.c.l.b16 %v11714
    %v12376 = vunpack.c.h.b16 %v11714
    %v12377 = vunpack.c.l.b16 %v11715
    %v12378 = vunpack.c.h.b16 %v11715
    %v12379 = vunpack.c.l.b16 %v11716
    %v12380 = vunpack.c.h.b16 %v11716
    %v12381 = vunpack.c.l.b16 %v11717
    %v12382 = vunpack.c.h.b16 %v11717
    %v12383 = vunpack.c.l.b16 %v11718
    %v12384 = vunpack.c.h.b16 %v11718
    %v12385 = vunpack.c.l.b16 %v11719
    %v12386 = vunpack.c.h.b16 %v11719
    %v12387 = vunpack.c.l.b16 %v11720
    %v12388 = vunpack.c.h.b16 %v11720
    %v12389 = vunpack.c.l.b16 %v11721
    %v12390 = vunpack.c.h.b16 %v11721
    %v12391 = vunpack.c.l.b16 %v11722
    %v12392 = vunpack.c.h.b16 %v11722
    %v12393 = vunpack.c.l.b16 %v11723
    %v12394 = vunpack.c.h.b16 %v11723
    %v12395 = vunpack.c.l.b16 %v11724
    %v12396 = vunpack.c.h.b16 %v11724
    %v12397 = vunpack.c.l.b16 %v11725
    %v12398 = vunpack.c.h.b16 %v11725
    %v12399 = vunpack.c.l.b16 %v11726
    %v12400 = vunpack.c.h.b16 %v11726
    %v12401 = vunpack.c.l.b16 %v11727
    %v12402 = vunpack.c.h.b16 %v11727
    %v12403 = vunpack.c.l.b16 %v11728
    %v12404 = vunpack.c.h.b16 %v11728
    %v12405 = vunpack.c.l.b16 %v11729
    %v12406 = vunpack.c.h.b16 %v11729
    %v12407 = vunpack.c.l.b16 %v11730
    %v12408 = vunpack.c.h.b16 %v11730
    %v12409 = vunpack.c.l.b16 %v11731
    %v12410 = vunpack.c.h.b16 %v11731
    %v12411 = vunpack.c.l.b16 %v11732
    %v12412 = vunpack.c.h.b16 %v11732
    %v12413 = vunpack.c.l.b16 %v11733
    %v12414 = vunpack.c.h.b16 %v11733
    %v12415 = vunpack.c.l.b16 %v11734
    %v12416 = vunpack.c.h.b16 %v11734
    %v12417 = vunpack.c.l.b16 %v11735
    %v12418 = vunpack.c.h.b16 %v11735
    %v12419 = vunpack.c.l.b16 %v11736
    %v12420 = vunpack.c.h.b16 %v11736
    %v12421 = vunpack.c.l.b16 %v11737
    %v12422 = vunpack.c.h.b16 %v11737
    %v12423 = vunpack.c.l.b16 %v11738
    %v12424 = vunpack.c.h.b16 %v11738
    %v12425 = vunpack.c.l.b16 %v11739
    %v12426 = vunpack.c.h.b16 %v11739
    %v12427 = vunpack.c.l.b16 %v11740
    %v12428 = vunpack.c.h.b16 %v11740
    %v12429 = vunpack.c.l.b16 %v11741
    %v12430 = vunpack.c.h.b16 %v11741
    %v12431 = vunpack.c.l.b16 %v11742
    %v12432 = vunpack.c.h.b16 %v11742
    %v12433 = vunpack.c.l.b16 %v11743
    %v12434 = vunpack.c.h.b16 %v11743
    %v12435 = vunpack.c.l.b16 %v11744
    %v12436 = vunpack.c.h.b16 %v11744
    %v12437 = vunpack.c.l.b16 %v11745
    %v12438 = vunpack.c.h.b16 %v11745
    %v12439 = vunpack.c.l.b16 %v11746
    %v12440 = vunpack.c.h.b16 %v11746
    %v12441 = vunpack.c.l.b16 %v11747
    %v12442 = vunpack.c.h.b16 %v11747
    %v12443 = vunpack.c.l.b16 %v11748
    %v12444 = vunpack.c.h.b16 %v11748
    %v12445 = vunpack.c.l.b16 %v11749
    %v12446 = vunpack.c.h.b16 %v11749
    %v12447 = vunpack.c.l.b16 %v11750
    %v12448 = vunpack.c.h.b16 %v11750
    %v12449 = vunpack.c.l.b16 %v11751
    %v12450 = vunpack.c.h.b16 %v11751
    %v12451 = vunpack.c.l.b16 %v11752
    %v12452 = vunpack.c.h.b16 %v11752
    %v12453 = vunpack.c.l.b16 %v11753
    %v12454 = vunpack.c.h.b16 %v11753
    %v12455 = vunpack.c.l.b16 %v11754
    %v12456 = vunpack.c.h.b16 %v11754
    %v12457 = vunpack.c.l.b16 %v11755
    %v12458 = vunpack.c.h.b16 %v11755
    %v12459 = vunpack.c.l.b16 %v11756
    %v12460 = vunpack.c.h.b16 %v11756
    %v12461 = vunpack.c.l.b16 %v11757
    %v12462 = vunpack.c.h.b16 %v11757
    %v12463 = vunpack.c.l.b16 %v11758
    %v12464 = vunpack.c.h.b16 %v11758
    %v12465 = vunpack.c.l.b16 %v11759
    %v12466 = vunpack.c.h.b16 %v11759
    %v12467 = vunpack.c.l.b16 %v11760
    %v12468 = vunpack.c.h.b16 %v11760
    %v12469 = vunpack.c.l.b16 %v11761
    %v12470 = vunpack.c.h.b16 %v11761
    %v12471 = vunpack.c.l.b16 %v11762
    %v12472 = vunpack.c.h.b16 %v11762
    %v12473 = vunpack.c.l.b16 %v11763
    %v12474 = vunpack.c.h.b16 %v11763
    %v12475 = vunpack.c.l.b16 %v11764
    %v12476 = vunpack.c.h.b16 %v11764
    %v12477 = vunpack.c.l.b16 %v11765
    %v12478 = vunpack.c.h.b16 %v11765
    %v12479 = vunpack.c.l.b16 %v11766
    %v12480 = vunpack.c.h.b16 %v11766
    %v12481 = vunpack.c.l.b16 %v11767
    %v12482 = vunpack.c.h.b16 %v11767
    %v12483 = vunpack.c.l.b16 %v11768
    %v12484 = vunpack.c.h.b16 %v11768
    %v12485 = vunpack.c.l.b16 %v11769
    %v12486 = vunpack.c.h.b16 %v11769
    %v12487 = vunpack.c.l.b16 %v11770
    %v12488 = vunpack.c.h.b16 %v11770
    %v12489 = vunpack.c.l.b16 %v11771
    %v12490 = vunpack.c.h.b16 %v11771
    %v12491 = vunpack.c.l.b16 %v11772
    %v12492 = vunpack.c.h.b16 %v11772
    %v12493 = vunpack.c.l.b16 %v11773
    %v12494 = vunpack.c.h.b16 %v11773
    %v12495 = vunpack.c.l.b16 %v11774
    %v12496 = vunpack.c.h.b16 %v11774
    %v12497 = vunpack.c.l.b16 %v11775
    %v12498 = vunpack.c.h.b16 %v11775
    %v12499 = vunpack.c.l.b16 %v11776
    %v12500 = vunpack.c.h.b16 %v11776
    %v12501 = vunpack.c.l.b16 %v11777
    %v12502 = vunpack.c.h.b16 %v11777
    %v12503 = vunpack.c.l.b16 %v11778
    %v12504 = vunpack.c.h.b16 %v11778
    %v12505 = vunpack.c.l.b16 %v11779
    %v12506 = vunpack.c.h.b16 %v11779
    %v12507 = vunpack.c.l.b16 %v11780
    %v12508 = vunpack.c.h.b16 %v11780
    %v12509 = vunpack.c.l.b16 %v11781
    %v12510 = vunpack.c.h.b16 %v11781
    %v12511 = vunpack.c.l.b16 %v11782
    %v12512 = vunpack.c.h.b16 %v11782
    %v12513 = vunpack.c.l.b16 %v11783
    %v12514 = vunpack.c.h.b16 %v11783
    %v12515 = vunpack.c.l.b16 %v11784
    %v12516 = vunpack.c.h.b16 %v11784
    %v12517 = vunpack.c.l.b16 %v11785
    %v12518 = vunpack.c.h.b16 %v11785
    %v12519 = vunpack.c.l.b16 %v11786
    %v12520 = vunpack.c.h.b16 %v11786
    %v12521 = vunpack.c.l.b16 %v11787
    %v12522 = vunpack.c.h.b16 %v11787
    %v12523 = vunpack.c.l.b16 %v11788
    %v12524 = vunpack.c.h.b16 %v11788
    %v12525 = vunpack.c.l.b16 %v11789
    %v12526 = vunpack.c.h.b16 %v11789
    %v12527 = vunpack.c.l.b16 %v11790
    %v12528 = vunpack.c.h.b16 %v11790
    %v12529 = vunpack.c.l.b16 %v11791
    %v12530 = vunpack.c.h.b16 %v11791
    %v12531 = vunpack.c.l.b16 %v11792
    %v12532 = vunpack.c.h.b16 %v11792
    %v12533 = vunpack.c.l.b16 %v11793
    %v12534 = vunpack.c.h.b16 %v11793
    %v12535 = vunpack.c.l.b16 %v11794
    %v12536 = vunpack.c.h.b16 %v11794
    %v12537 = vunpack.c.l.b16 %v11795
    %v12538 = vunpack.c.h.b16 %v11795
    %v12539 = vunpack.c.l.b16 %v11796
    %v12540 = vunpack.c.h.b16 %v11796
    %v12541 = vunpack.c.l.b16 %v11797
    %v12542 = vunpack.c.h.b16 %v11797
    %v12543 = vunpack.c.l.b16 %v11798
    %v12544 = vunpack.c.h.b16 %v11798
    %v12545 = vunpack.c.l.b16 %v11799
    %v12546 = vunpack.c.h.b16 %v11799
    %v12547 = vunpack.c.l.b16 %v11800
    %v12548 = vunpack.c.h.b16 %v11800
    %v12549 = vunpack.c.l.b16 %v11801
    %v12550 = vunpack.c.h.b16 %v11801
    %v12551 = vunpack.c.l.b16 %v11802
    %v12552 = vunpack.c.h.b16 %v11802
    %v12553 = vunpack.c.l.b16 %v11803
    %v12554 = vunpack.c.h.b16 %v11803
    %v12555 = vunpack.c.l.b16 %v11804
    %v12556 = vunpack.c.h.b16 %v11804
    %v12557 = vunpack.c.l.b16 %v11805
    %v12558 = vunpack.c.h.b16 %v11805
    %v12559 = vunpack.c.l.b16 %v11806
    %v12560 = vunpack.c.h.b16 %v11806
    %v12561 = vunpack.c.l.b16 %v11807
    %v12562 = vunpack.c.h.b16 %v11807
    %v12563 = vunpack.c.l.b16 %v11808
    %v12564 = vunpack.c.h.b16 %v11808
    %v12565 = vunpack.c.l.b16 %v11809
    %v12566 = vunpack.c.h.b16 %v11809
    %v12567 = vunpack.c.l.b16 %v11810
    %v12568 = vunpack.c.h.b16 %v11810
    %v12569 = vunpack.c.l.b16 %v11811
    %v12570 = vunpack.c.h.b16 %v11811
    %v12571 = vunpack.c.l.b16 %v11812
    %v12572 = vunpack.c.h.b16 %v11812
    %v12573 = vunpack.c.l.b16 %v11813
    %v12574 = vunpack.c.h.b16 %v11813
    %v12575 = vunpack.c.l.b16 %v11814
    %v12576 = vunpack.c.h.b16 %v11814
    %v12577 = vunpack.c.l.b16 %v11815
    %v12578 = vunpack.c.h.b16 %v11815
    %v12579 = vunpack.c.l.b16 %v11816
    %v12580 = vunpack.c.h.b16 %v11816
    %v12581 = vunpack.c.l.b16 %v11817
    %v12582 = vunpack.c.h.b16 %v11817
    %v12583 = vunpack.c.l.b16 %v11818
    %v12584 = vunpack.c.h.b16 %v11818
    %v12585 = vunpack.c.l.b16 %v11819
    %v12586 = vunpack.c.h.b16 %v11819
    %v12587 = vunpack.c.l.b16 %v11820
    %v12588 = vunpack.c.h.b16 %v11820
    %v12589 = vunpack.c.l.b16 %v11821
    %v12590 = vunpack.c.h.b16 %v11821
    %v12591 = vunpack.c.l.b16 %v11822
    %v12592 = vunpack.c.h.b16 %v11822
    %v12593 = vunpack.c.l.b16 %v11823
    %v12594 = vunpack.c.h.b16 %v11823
    %v12595 = vunpack.c.l.b16 %v11824
    %v12596 = vunpack.c.h.b16 %v11824
    %v12597 = vunpack.c.l.b16 %v11825
    %v12598 = vunpack.c.h.b16 %v11825
    %v12599 = vunpack.c.l.b16 %v11826
    %v12600 = vunpack.c.h.b16 %v11826
    %v12601 = vunpack.c.l.b16 %v11827
    %v12602 = vunpack.c.h.b16 %v11827
    %v12603 = vunpack.c.l.b16 %v11828
    %v12604 = vunpack.c.h.b16 %v11828
    %v12605 = vunpack.c.l.b16 %v11829
    %v12606 = vunpack.c.h.b16 %v11829
    %v12607 = vunpack.c.l.b16 %v11830
    %v12608 = vunpack.c.h.b16 %v11830
    %v12609 = vunpack.c.l.b16 %v11831
    %v12610 = vunpack.c.h.b16 %v11831
    %v12611 = vunpack.c.l.b16 %v11832
    %v12612 = vunpack.c.h.b16 %v11832
    %v12613 = vunpack.c.l.b16 %v11833
    %v12614 = vunpack.c.h.b16 %v11833
    %v12615 = vunpack.c.l.b16 %v11834
    %v12616 = vunpack.c.h.b16 %v11834
    %v12617 = vunpack.c.l.b16 %v11835
    %v12618 = vunpack.c.h.b16 %v11835
    %v12619 = vunpack.c.l.b16 %v11836
    %v12620 = vunpack.c.h.b16 %v11836
    %v12621 = vunpack.c.l.b16 %v11837
    %v12622 = vunpack.c.h.b16 %v11837
    %v12623 = vunpack.c.l.b16 %v11838
    %v12624 = vunpack.c.h.b16 %v11838
    %v12625 = vunpack.c.l.b16 %v11839
    %v12626 = vunpack.c.h.b16 %v11839
    %v12627 = vunpack.c.l.b16 %v11840
    %v12628 = vunpack.c.h.b16 %v11840
    %v12629 = vunpack.c.l.b16 %v11841
    %v12630 = vunpack.c.h.b16 %v11841
    %v12631 = vunpack.c.l.b16 %v11842
    %v12632 = vunpack.c.h.b16 %v11842
    %v12633 = vpack.c.b16 %v12125, %v12121
    %v12634 = vpack.c.b16 %v12126, %v12122
    %v12635 = vpack.c.b16 %v12127, %v12123
    %v12636 = vpack.c.b16 %v12128, %v12124
    %v12637 = vpack.c.b16 %v12133, %v12129
    %v12638 = vpack.c.b16 %v12134, %v12130
    %v12639 = vpack.c.b16 %v12135, %v12131
    %v12640 = vpack.c.b16 %v12136, %v12132
    %v12641 = vpack.c.b16 %v12141, %v12137
    %v12642 = vpack.c.b16 %v12142, %v12138
    %v12643 = vpack.c.b16 %v12143, %v12139
    %v12644 = vpack.c.b16 %v12144, %v12140
    %v12645 = vpack.c.b16 %v12149, %v12145
    %v12646 = vpack.c.b16 %v12150, %v12146
    %v12647 = vpack.c.b16 %v12151, %v12147
    %v12648 = vpack.c.b16 %v12152, %v12148
    %v12649 = vpack.c.b16 %v12157, %v12153
    %v12650 = vpack.c.b16 %v12158, %v12154
    %v12651 = vpack.c.b16 %v12159, %v12155
    %v12652 = vpack.c.b16 %v12160, %v12156
    %v12653 = vpack.c.b16 %v12165, %v12161
    %v12654 = vpack.c.b16 %v12166, %v12162
    %v12655 = vpack.c.b16 %v12167, %v12163
    %v12656 = vpack.c.b16 %v12168, %v12164
    %v12657 = vpack.c.b16 %v12173, %v12169
    %v12658 = vpack.c.b16 %v12174, %v12170
    %v12659 = vpack.c.b16 %v12175, %v12171
    %v12660 = vpack.c.b16 %v12176, %v12172
    %v12661 = vpack.c.b16 %v12181, %v12177
    %v12662 = vpack.c.b16 %v12182, %v12178
    %v12663 = vpack.c.b16 %v12183, %v12179
    %v12664 = vpack.c.b16 %v12184, %v12180
    %v12665 = vpack.c.b16 %v12189, %v12185
    %v12666 = vpack.c.b16 %v12190, %v12186
    %v12667 = vpack.c.b16 %v12191, %v12187
    %v12668 = vpack.c.b16 %v12192, %v12188
    %v12669 = vpack.c.b16 %v12197, %v12193
    %v12670 = vpack.c.b16 %v12198, %v12194
    %v12671 = vpack.c.b16 %v12199, %v12195
    %v12672 = vpack.c.b16 %v12200, %v12196
    %v12673 = vpack.c.b16 %v12205, %v12201
    %v12674 = vpack.c.b16 %v12206, %v12202
    %v12675 = vpack.c.b16 %v12207, %v12203
    %v12676 = vpack.c.b16 %v12208, %v12204
    %v12677 = vpack.c.b16 %v12213, %v12209
    %v12678 = vpack.c.b16 %v12214, %v12210
    %v12679 = vpack.c.b16 %v12215, %v12211
    %v12680 = vpack.c.b16 %v12216, %v12212
    %v12681 = vpack.c.b16 %v12221, %v12217
    %v12682 = vpack.c.b16 %v12222, %v12218
    %v12683 = vpack.c.b16 %v12223, %v12219
    %v12684 = vpack.c.b16 %v12224, %v12220
    %v12685 = vpack.c.b16 %v12229, %v12225
    %v12686 = vpack.c.b16 %v12230, %v12226
    %v12687 = vpack.c.b16 %v12231, %v12227
    %v12688 = vpack.c.b16 %v12232, %v12228
    %v12689 = vpack.c.b16 %v12237, %v12233
    %v12690 = vpack.c.b16 %v12238, %v12234
    %v12691 = vpack.c.b16 %v12239, %v12235
    %v12692 = vpack.c.b16 %v12240, %v12236
    %v12693 = vpack.c.b16 %v12245, %v12241
    %v12694 = vpack.c.b16 %v12246, %v12242
    %v12695 = vpack.c.b16 %v12247, %v12243
    %v12696 = vpack.c.b16 %v12248, %v12244
    %v12697 = vpack.c.b16 %v12253, %v12249
    %v12698 = vpack.c.b16 %v12254, %v12250
    %v12699 = vpack.c.b16 %v12255, %v12251
    %v12700 = vpack.c.b16 %v12256, %v12252
    %v12701 = vpack.c.b16 %v12261, %v12257
    %v12702 = vpack.c.b16 %v12262, %v12258
    %v12703 = vpack.c.b16 %v12263, %v12259
    %v12704 = vpack.c.b16 %v12264, %v12260
    %v12705 = vpack.c.b16 %v12269, %v12265
    %v12706 = vpack.c.b16 %v12270, %v12266
    %v12707 = vpack.c.b16 %v12271, %v12267
    %v12708 = vpack.c.b16 %v12272, %v12268
    %v12709 = vpack.c.b16 %v12277, %v12273
    %v12710 = vpack.c.b16 %v12278, %v12274
    %v12711 = vpack.c.b16 %v12279, %v12275
    %v12712 = vpack.c.b16 %v12280, %v12276
    %v12713 = vpack.c.b16 %v12285, %v12281
    %v12714 = vpack.c.b16 %v12286, %v12282
    %v12715 = vpack.c.b16 %v12287, %v12283
    %v12716 = vpack.c.b16 %v12288, %v12284
    %v12717 = vpack.c.b16 %v12293, %v12289
    %v12718 = vpack.c.b16 %v12294, %v12290
    %v12719 = vpack.c.b16 %v12295, %v12291
    %v12720 = vpack.c.b16 %v12296, %v12292
    %v12721 = vpack.c.b16 %v12301, %v12297
    %v12722 = vpack.c.b16 %v12302, %v12298
    %v12723 = vpack.c.b16 %v12303, %v12299
    %v12724 = vpack.c.b16 %v12304, %v12300
    %v12725 = vpack.c.b16 %v12309, %v12305
    %v12726 = vpack.c.b16 %v12310, %v12306
    %v12727 = vpack.c.b16 %v12311, %v12307
    %v12728 = vpack.c.b16 %v12312, %v12308
    %v12729 = vpack.c.b16 %v12317, %v12313
    %v12730 = vpack.c.b16 %v12318, %v12314
    %v12731 = vpack.c.b16 %v12319, %v12315
    %v12732 = vpack.c.b16 %v12320, %v12316
    %v12733 = vpack.c.b16 %v12325, %v12321
    %v12734 = vpack.c.b16 %v12326, %v12322
    %v12735 = vpack.c.b16 %v12327, %v12323
    %v12736 = vpack.c.b16 %v12328, %v12324
    %v12737 = vpack.c.b16 %v12333, %v12329
    %v12738 = vpack.c.b16 %v12334, %v12330
    %v12739 = vpack.c.b16 %v12335, %v12331
    %v12740 = vpack.c.b16 %v12336, %v12332
    %v12741 = vpack.c.b16 %v12341, %v12337
    %v12742 = vpack.c.b16 %v12342, %v12338
    %v12743 = vpack.c.b16 %v12343, %v12339
    %v12744 = vpack.c.b16 %v12344, %v12340
    %v12745 = vpack.c.b16 %v12349, %v12345
    %v12746 = vpack.c.b16 %v12350, %v12346
    %v12747 = vpack.c.b16 %v12351, %v12347
    %v12748 = vpack.c.b16 %v12352, %v12348
    %v12749 = vpack.c.b16 %v12357, %v12353
    %v12750 = vpack.c.b16 %v12358, %v12354
    %v12751 = vpack.c.b16 %v12359, %v12355
    %v12752 = vpack.c.b16 %v12360, %v12356
    %v12753 = vpack.c.b16 %v12365, %v12361
    %v12754 = vpack.c.b16 %v12366, %v12362
    %v12755 = vpack.c.b16 %v12367, %v12363
    %v12756 = vpack.c.b16 %v12368, %v12364
    %v12757 = vpack.c.b16 %v12373, %v12369
    %v12758 = vpack.c.b16 %v12374, %v12370
    %v12759 = vpack.c.b16 %v12375, %v12371
    %v12760 = vpack.c.b16 %v12376, %v12372
    %v12761 = vpack.c.b16 %v12381, %v12377
    %v12762 = vpack.c.b16 %v12382, %v12378
    %v12763 = vpack.c.b16 %v12383, %v12379
    %v12764 = vpack.c.b16 %v12384, %v12380
    %v12765 = vpack.c.b16 %v12389, %v12385
    %v12766 = vpack.c.b16 %v12390, %v12386
    %v12767 = vpack.c.b16 %v12391, %v12387
    %v12768 = vpack.c.b16 %v12392, %v12388
    %v12769 = vpack.c.b16 %v12397, %v12393
    %v12770 = vpack.c.b16 %v12398, %v12394
    %v12771 = vpack.c.b16 %v12399, %v12395
    %v12772 = vpack.c.b16 %v12400, %v12396
    %v12773 = vpack.c.b16 %v12405, %v12401
    %v12774 = vpack.c.b16 %v12406, %v12402
    %v12775 = vpack.c.b16 %v12407, %v12403
    %v12776 = vpack.c.b16 %v12408, %v12404
    %v12777 = vpack.c.b16 %v12413, %v12409
    %v12778 = vpack.c.b16 %v12414, %v12410
    %v12779 = vpack.c.b16 %v12415, %v12411
    %v12780 = vpack.c.b16 %v12416, %v12412
    %v12781 = vpack.c.b16 %v12421, %v12417
    %v12782 = vpack.c.b16 %v12422, %v12418
    %v12783 = vpack.c.b16 %v12423, %v12419
    %v12784 = vpack.c.b16 %v12424, %v12420
    %v12785 = vpack.c.b16 %v12429, %v12425
    %v12786 = vpack.c.b16 %v12430, %v12426
    %v12787 = vpack.c.b16 %v12431, %v12427
    %v12788 = vpack.c.b16 %v12432, %v12428
    %v12789 = vpack.c.b16 %v12437, %v12433
    %v12790 = vpack.c.b16 %v12438, %v12434
    %v12791 = vpack.c.b16 %v12439, %v12435
    %v12792 = vpack.c.b16 %v12440, %v12436
    %v12793 = vpack.c.b16 %v12445, %v12441
    %v12794 = vpack.c.b16 %v12446, %v12442
    %v12795 = vpack.c.b16 %v12447, %v12443
    %v12796 = vpack.c.b16 %v12448, %v12444
    %v12797 = vpack.c.b16 %v12453, %v12449
    %v12798 = vpack.c.b16 %v12454, %v12450
    %v12799 = vpack.c.b16 %v12455, %v12451
    %v12800 = vpack.c.b16 %v12456, %v12452
    %v12801 = vpack.c.b16 %v12461, %v12457
    %v12802 = vpack.c.b16 %v12462, %v12458
    %v12803 = vpack.c.b16 %v12463, %v12459
    %v12804 = vpack.c.b16 %v12464, %v12460
    %v12805 = vpack.c.b16 %v12469, %v12465
    %v12806 = vpack.c.b16 %v12470, %v12466
    %v12807 = vpack.c.b16 %v12471, %v12467
    %v12808 = vpack.c.b16 %v12472, %v12468
    %v12809 = vpack.c.b16 %v12477, %v12473
    %v12810 = vpack.c.b16 %v12478, %v12474
    %v12811 = vpack.c.b16 %v12479, %v12475
    %v12812 = vpack.c.b16 %v12480, %v12476
    %v12813 = vpack.c.b16 %v12485, %v12481
    %v12814 = vpack.c.b16 %v12486, %v12482
    %v12815 = vpack.c.b16 %v12487, %v12483
    %v12816 = vpack.c.b16 %v12488, %v12484
    %v12817 = vpack.c.b16 %v12493, %v12489
    %v12818 = vpack.c.b16 %v12494, %v12490
    %v12819 = vpack.c.b16 %v12495, %v12491
    %v12820 = vpack.c.b16 %v12496, %v12492
    %v12821 = vpack.c.b16 %v12501, %v12497
    %v12822 = vpack.c.b16 %v12502, %v12498
    %v12823 = vpack.c.b16 %v12503, %v12499
    %v12824 = vpack.c.b16 %v12504, %v12500
    %v12825 = vpack.c.b16 %v12509, %v12505
    %v12826 = vpack.c.b16 %v12510, %v12506
    %v12827 = vpack.c.b16 %v12511, %v12507
    %v12828 = vpack.c.b16 %v12512, %v12508
    %v12829 = vpack.c.b16 %v12517, %v12513
    %v12830 = vpack.c.b16 %v12518, %v12514
    %v12831 = vpack.c.b16 %v12519, %v12515
    %v12832 = vpack.c.b16 %v12520, %v12516
    %v12833 = vpack.c.b16 %v12525, %v12521
    %v12834 = vpack.c.b16 %v12526, %v12522
    %v12835 = vpack.c.b16 %v12527, %v12523
    %v12836 = vpack.c.b16 %v12528, %v12524
    %v12837 = vpack.c.b16 %v12533, %v12529
    %v12838 = vpack.c.b16 %v12534, %v12530
    %v12839 = vpack.c.b16 %v12535, %v12531
    %v12840 = vpack.c.b16 %v12536, %v12532
    %v12841 = vpack.c.b16 %v12541, %v12537
    %v12842 = vpack.c.b16 %v12542, %v12538
    %v12843 = vpack.c.b16 %v12543, %v12539
    %v12844 = vpack.c.b16 %v12544, %v12540
    %v12845 = vpack.c.b16 %v12549, %v12545
    %v12846 = vpack.c.b16 %v12550, %v12546
    %v12847 = vpack.c.b16 %v12551, %v12547
    %v12848 = vpack.c.b16 %v12552, %v12548
    %v12849 = vpack.c.b16 %v12557, %v12553
    %v12850 = vpack.c.b16 %v12558, %v12554
    %v12851 = vpack.c.b16 %v12559, %v12555
    %v12852 = vpack.c.b16 %v12560, %v12556
    %v12853 = vpack.c.b16 %v12565, %v12561
    %v12854 = vpack.c.b16 %v12566, %v12562
    %v12855 = vpack.c.b16 %v12567, %v12563
    %v12856 = vpack.c.b16 %v12568, %v12564
    %v12857 = vpack.c.b16 %v12573, %v12569
    %v12858 = vpack.c.b16 %v12574, %v12570
    %v12859 = vpack.c.b16 %v12575, %v12571
    %v12860 = vpack.c.b16 %v12576, %v12572
    %v12861 = vpack.c.b16 %v12581, %v12577
    %v12862 = vpack.c.b16 %v12582, %v12578
    %v12863 = vpack.c.b16 %v12583, %v12579
    %v12864 = vpack.c.b16 %v12584, %v12580
    %v12865 = vpack.c.b16 %v12589, %v12585
    %v12866 = vpack.c.b16 %v12590, %v12586
    %v12867 = vpack.c.b16 %v12591, %v12587
    %v12868 = vpack.c.b16 %v12592, %v12588
    %v12869 = vpack.c.b16 %v12597, %v12593
    %v12870 = vpack.c.b16 %v12598, %v12594
    %v12871 = vpack.c.b16 %v12599, %v12595
    %v12872 = vpack.c.b16 %v12600, %v12596
    %v12873 = vpack.c.b16 %v12605, %v12601
    %v12874 = vpack.c.b16 %v12606, %v12602
    %v12875 = vpack.c.b16 %v12607, %v12603
    %v12876 = vpack.c.b16 %v12608, %v12604
    %v12877 = vpack.c.b16 %v12613, %v12609
    %v12878 = vpack.c.b16 %v12614, %v12610
    %v12879 = vpack.c.b16 %v12615, %v12611
    %v12880 = vpack.c.b16 %v12616, %v12612
    %v12881 = vpack.c.b16 %v12621, %v12617
    %v12882 = vpack.c.b16 %v12622, %v12618
    %v12883 = vpack.c.b16 %v12623, %v12619
    %v12884 = vpack.c.b16 %v12624, %v12620
    %v12885 = vpack.c.b16 %v12629, %v12625
    %v12886 = vpack.c.b16 %v12630, %v12626
    %v12887 = vpack.c.b16 %v12631, %v12627
    %v12888 = vpack.c.b16 %v12632, %v12628
    %13145 = vmatprep.subr.bf16.mxu0 %v12634
    %13146 = vmatpush1.bf16.msra.mxu0 %v12633
    %13147 = vmatprep.subr.bf16.mxu0 %v12638
    %13148 = vmatpush1.bf16.msra.mxu0 %v12637
    %13149 = vmatprep.subr.bf16.mxu0 %v12642
    %13150 = vmatpush1.bf16.msra.mxu0 %v12641
    %13151 = vmatprep.subr.bf16.mxu0 %v12646
    %13152 = vmatpush1.bf16.msra.mxu0 %v12645
    %13153 = vmatprep.subr.bf16.mxu0 %v12650
    %13154 = vmatpush1.bf16.msra.mxu0 %v12649
    %13155 = vmatprep.subr.bf16.mxu0 %v12654
    %13156 = vmatpush1.bf16.msra.mxu0 %v12653
    %13157 = vmatprep.subr.bf16.mxu0 %v12658
    %13158 = vmatpush1.bf16.msra.mxu0 %v12657
    %13159 = vmatprep.subr.bf16.mxu0 %v12662
    %13160 = vmatpush1.bf16.msra.mxu0 %v12661
    %13161 = vmatprep.subr.bf16.mxu0 %v12666
    %13162 = vmatpush1.bf16.msra.mxu0 %v12665
    %13163 = vmatprep.subr.bf16.mxu0 %v12670
    %13164 = vmatpush1.bf16.msra.mxu0 %v12669
    %13165 = vmatprep.subr.bf16.mxu0 %v12674
    %13166 = vmatpush1.bf16.msra.mxu0 %v12673
    %13167 = vmatprep.subr.bf16.mxu0 %v12678
    %13168 = vmatpush1.bf16.msra.mxu0 %v12677
    %13169 = vmatprep.subr.bf16.mxu0 %v12682
    %13170 = vmatpush1.bf16.msra.mxu0 %v12681
    %13171 = vmatprep.subr.bf16.mxu0 %v12686
    %13172 = vmatpush1.bf16.msra.mxu0 %v12685
    %13173 = vmatprep.subr.bf16.mxu0 %v12690
    %13174 = vmatpush1.bf16.msra.mxu0 %v12689
    %13175 = vmatprep.subr.bf16.mxu0 %v12694
    %13176 = vmatpush1.bf16.msra.mxu0 %v12693
    %13177 = vmatprep.mubr.bf16.mxu0 %v11580
    %13178 = vmatmul.mubr.bf16.gmra.mrb[0].mxu0 %v11579
    %v13179 = vpop.f32.mrb[0].mxu0
    %v13180 = vadd.f32 %v11848, %v13179
    %v13181 = vpop.f32.mrb[0].mxu0
    %v13182 = vadd.f32 %v11852, %v13181
    %v13183 = vpop.f32.mrb[0].mxu0
    %v13184 = vpop.f32.mrb[0].mxu0
    %13185 = vdwg.mxu0
    %13186 = vmatprep.subr.bf16.mxu0 %v12698
    %13187 = vmatpush1.bf16.msra.mxu0 %v12697
    %13188 = vmatprep.subr.bf16.mxu0 %v12702
    %13189 = vmatpush1.bf16.msra.mxu0 %v12701
    %13190 = vmatprep.subr.bf16.mxu0 %v12706
    %13191 = vmatpush1.bf16.msra.mxu0 %v12705
    %13192 = vmatprep.subr.bf16.mxu0 %v12710
    %13193 = vmatpush1.bf16.msra.mxu0 %v12709
    %13194 = vmatprep.subr.bf16.mxu0 %v12714
    %13195 = vmatpush1.bf16.msra.mxu0 %v12713
    %13196 = vmatprep.subr.bf16.mxu0 %v12718
    %13197 = vmatpush1.bf16.msra.mxu0 %v12717
    %13198 = vmatprep.subr.bf16.mxu0 %v12722
    %13199 = vmatpush1.bf16.msra.mxu0 %v12721
    %13200 = vmatprep.subr.bf16.mxu0 %v12726
    %13201 = vmatpush1.bf16.msra.mxu0 %v12725
    %13202 = vmatprep.subr.bf16.mxu0 %v12730
    %13203 = vmatpush1.bf16.msra.mxu0 %v12729
    %13204 = vmatprep.subr.bf16.mxu0 %v12734
    %13205 = vmatpush1.bf16.msra.mxu0 %v12733
    %13206 = vmatprep.subr.bf16.mxu0 %v12738
    %13207 = vmatpush1.bf16.msra.mxu0 %v12737
    %13208 = vmatprep.subr.bf16.mxu0 %v12742
    %13209 = vmatpush1.bf16.msra.mxu0 %v12741
    %13210 = vmatprep.subr.bf16.mxu0 %v12746
    %13211 = vmatpush1.bf16.msra.mxu0 %v12745
    %13212 = vmatprep.subr.bf16.mxu0 %v12750
    %13213 = vmatpush1.bf16.msra.mxu0 %v12749
    %13214 = vmatprep.subr.bf16.mxu0 %v12754
    %13215 = vmatpush1.bf16.msra.mxu0 %v12753
    %13216 = vmatprep.subr.bf16.mxu0 %v12758
    %13217 = vmatpush1.bf16.msra.mxu0 %v12757
    %13218 = vmatprep.mubr.bf16.mxu0 %v11582
    %13219 = vmatmul.mubr.bf16.gmra.mrb[0].mxu0 %v11581
    %v13220 = vpop.f32.mrb[0].mxu0
    %v13221 = vadd.f32 %v13180, %v13220
    %v13222 = vpop.f32.mrb[0].mxu0
    %v13223 = vadd.f32 %v13182, %v13222
    %v13224 = vpop.f32.mrb[0].mxu0
    %v13225 = vpop.f32.mrb[0].mxu0
    %13226 = vdwg.mxu0
    %13227 = vmatprep.subr.bf16.mxu0 %v12762
    %13228 = vmatpush1.bf16.msra.mxu0 %v12761
    %13229 = vmatprep.subr.bf16.mxu0 %v12766
    %13230 = vmatpush1.bf16.msra.mxu0 %v12765
    %13231 = vmatprep.subr.bf16.mxu0 %v12770
    %13232 = vmatpush1.bf16.msra.mxu0 %v12769
    %13233 = vmatprep.subr.bf16.mxu0 %v12774
    %13234 = vmatpush1.bf16.msra.mxu0 %v12773
    %13235 = vmatprep.subr.bf16.mxu0 %v12778
    %13236 = vmatpush1.bf16.msra.mxu0 %v12777
    %13237 = vmatprep.subr.bf16.mxu0 %v12782
    %13238 = vmatpush1.bf16.msra.mxu0 %v12781
    %13239 = vmatprep.subr.bf16.mxu0 %v12786
    %13240 = vmatpush1.bf16.msra.mxu0 %v12785
    %13241 = vmatprep.subr.bf16.mxu0 %v12790
    %13242 = vmatpush1.bf16.msra.mxu0 %v12789
    %13243 = vmatprep.subr.bf16.mxu0 %v12794
    %13244 = vmatpush1.bf16.msra.mxu0 %v12793
    %13245 = vmatprep.subr.bf16.mxu0 %v12798
    %13246 = vmatpush1.bf16.msra.mxu0 %v12797
    %13247 = vmatprep.subr.bf16.mxu0 %v12802
    %13248 = vmatpush1.bf16.msra.mxu0 %v12801
    %13249 = vmatprep.subr.bf16.mxu0 %v12806
    %13250 = vmatpush1.bf16.msra.mxu0 %v12805
    %13251 = vmatprep.subr.bf16.mxu0 %v12810
    %13252 = vmatpush1.bf16.msra.mxu0 %v12809
    %13253 = vmatprep.subr.bf16.mxu0 %v12814
    %13254 = vmatpush1.bf16.msra.mxu0 %v12813
    %13255 = vmatprep.subr.bf16.mxu0 %v12818
    %13256 = vmatpush1.bf16.msra.mxu0 %v12817
    %13257 = vmatprep.subr.bf16.mxu0 %v12822
    %13258 = vmatpush1.bf16.msra.mxu0 %v12821
    %13259 = vmatprep.mubr.bf16.mxu0 %v11584
    %13260 = vmatmul.mubr.bf16.gmra.mrb[0].mxu0 %v11583
    %v13261 = vpop.f32.mrb[0].mxu0
    %v13262 = vadd.f32 %v13221, %v13261
    %v13263 = vpop.f32.mrb[0].mxu0
    %v13264 = vadd.f32 %v13223, %v13263
    %v13265 = vpop.f32.mrb[0].mxu0
    %v13266 = vpop.f32.mrb[0].mxu0
    %13267 = vdwg.mxu0
    %13268 = vmatprep.subr.bf16.mxu0 %v12826
    %13269 = vmatpush1.bf16.msra.mxu0 %v12825
    %13270 = vmatprep.subr.bf16.mxu0 %v12830
    %13271 = vmatpush1.bf16.msra.mxu0 %v12829
    %13272 = vmatprep.subr.bf16.mxu0 %v12834
    %13273 = vmatpush1.bf16.msra.mxu0 %v12833
    %13274 = vmatprep.subr.bf16.mxu0 %v12838
    %13275 = vmatpush1.bf16.msra.mxu0 %v12837
    %13276 = vmatprep.subr.bf16.mxu0 %v12842
    %13277 = vmatpush1.bf16.msra.mxu0 %v12841
    %13278 = vmatprep.subr.bf16.mxu0 %v12846
    %13279 = vmatpush1.bf16.msra.mxu0 %v12845
    %13280 = vmatprep.subr.bf16.mxu0 %v12850
    %13281 = vmatpush1.bf16.msra.mxu0 %v12849
    %13282 = vmatprep.subr.bf16.mxu0 %v12854
    %13283 = vmatpush1.bf16.msra.mxu0 %v12853
    %13284 = vmatprep.subr.bf16.mxu0 %v12858
    %13285 = vmatpush1.bf16.msra.mxu0 %v12857
    %13286 = vmatprep.subr.bf16.mxu0 %v12862
    %13287 = vmatpush1.bf16.msra.mxu0 %v12861
    %13288 = vmatprep.subr.bf16.mxu0 %v12866
    %13289 = vmatpush1.bf16.msra.mxu0 %v12865
    %13290 = vmatprep.subr.bf16.mxu0 %v12870
    %13291 = vmatpush1.bf16.msra.mxu0 %v12869
    %13292 = vmatprep.subr.bf16.mxu0 %v12874
    %13293 = vmatpush1.bf16.msra.mxu0 %v12873
    %13294 = vmatprep.subr.bf16.mxu0 %v12878
    %13295 = vmatpush1.bf16.msra.mxu0 %v12877
    %13296 = vmatprep.subr.bf16.mxu0 %v12882
    %13297 = vmatpush1.bf16.msra.mxu0 %v12881
    %13298 = vmatprep.subr.bf16.mxu0 %v12886
    %13299 = vmatpush1.bf16.msra.mxu0 %v12885
    %13300 = vmatprep.mubr.bf16.mxu0 %v11586
    %13301 = vmatmul.mubr.bf16.gmra.mrb[0].mxu0 %v11585
    %v13302 = vpop.f32.mrb[0].mxu0
    %v13303 = vadd.f32 %v13262, %v13302
    %v13304 = vpop.f32.mrb[0].mxu0
    %v13305 = vadd.f32 %v13264, %v13304
    %v13306 = vpop.f32.mrb[0].mxu0
    %v13307 = vpop.f32.mrb[0].mxu0
    %13308 = vdwg.mxu0
    %13309 = vmatprep.subr.bf16.mxu0 %v12636
    %13310 = vmatpush1.bf16.msra.mxu0 %v12635
    %13311 = vmatprep.subr.bf16.mxu0 %v12640
    %13312 = vmatpush1.bf16.msra.mxu0 %v12639
    %13313 = vmatprep.subr.bf16.mxu0 %v12644
    %13314 = vmatpush1.bf16.msra.mxu0 %v12643
    %13315 = vmatprep.subr.bf16.mxu0 %v12648
    %13316 = vmatpush1.bf16.msra.mxu0 %v12647
    %13317 = vmatprep.subr.bf16.mxu0 %v12652
    %13318 = vmatpush1.bf16.msra.mxu0 %v12651
    %13319 = vmatprep.subr.bf16.mxu0 %v12656
    %13320 = vmatpush1.bf16.msra.mxu0 %v12655
    %13321 = vmatprep.subr.bf16.mxu0 %v12660
    %13322 = vmatpush1.bf16.msra.mxu0 %v12659
    %13323 = vmatprep.subr.bf16.mxu0 %v12664
    %13324 = vmatpush1.bf16.msra.mxu0 %v12663
    %13325 = vmatprep.subr.bf16.mxu0 %v12668
    %13326 = vmatpush1.bf16.msra.mxu0 %v12667
    %13327 = vmatprep.subr.bf16.mxu0 %v12672
    %13328 = vmatpush1.bf16.msra.mxu0 %v12671
    %13329 = vmatprep.subr.bf16.mxu0 %v12676
    %13330 = vmatpush1.bf16.msra.mxu0 %v12675
    %13331 = vmatprep.subr.bf16.mxu0 %v12680
    %13332 = vmatpush1.bf16.msra.mxu0 %v12679
    %13333 = vmatprep.subr.bf16.mxu0 %v12684
    %13334 = vmatpush1.bf16.msra.mxu0 %v12683
    %13335 = vmatprep.subr.bf16.mxu0 %v12688
    %13336 = vmatpush1.bf16.msra.mxu0 %v12687
    %13337 = vmatprep.subr.bf16.mxu0 %v12692
    %13338 = vmatpush1.bf16.msra.mxu0 %v12691
    %13339 = vmatprep.subr.bf16.mxu0 %v12696
    %13340 = vmatpush1.bf16.msra.mxu0 %v12695
    %13341 = vmatprep.mubr.bf16.mxu0 %v11580
    %13342 = vmatmul.mubr.bf16.gmra.mrb[0].mxu0 %v11579
    %v13343 = vpop.f32.mrb[0].mxu0
    %v13344 = vadd.f32 %v11856, %v13343
    %v13345 = vpop.f32.mrb[0].mxu0
    %v13346 = vadd.f32 %v11860, %v13345
    %v13347 = vpop.f32.mrb[0].mxu0
    %v13348 = vpop.f32.mrb[0].mxu0
    %13349 = vdwg.mxu0
    %13350 = vmatprep.subr.bf16.mxu0 %v12700
    %13351 = vmatpush1.bf16.msra.mxu0 %v12699
    %13352 = vmatprep.subr.bf16.mxu0 %v12704
    %13353 = vmatpush1.bf16.msra.mxu0 %v12703
    %13354 = vmatprep.subr.bf16.mxu0 %v12708
    %13355 = vmatpush1.bf16.msra.mxu0 %v12707
    %13356 = vmatprep.subr.bf16.mxu0 %v12712
    %13357 = vmatpush1.bf16.msra.mxu0 %v12711
    %13358 = vmatprep.subr.bf16.mxu0 %v12716
    %13359 = vmatpush1.bf16.msra.mxu0 %v12715
    %13360 = vmatprep.subr.bf16.mxu0 %v12720
    %13361 = vmatpush1.bf16.msra.mxu0 %v12719
    %13362 = vmatprep.subr.bf16.mxu0 %v12724
    %13363 = vmatpush1.bf16.msra.mxu0 %v12723
    %13364 = vmatprep.subr.bf16.mxu0 %v12728
    %13365 = vmatpush1.bf16.msra.mxu0 %v12727
    %13366 = vmatprep.subr.bf16.mxu0 %v12732
    %13367 = vmatpush1.bf16.msra.mxu0 %v12731
    %13368 = vmatprep.subr.bf16.mxu0 %v12736
    %13369 = vmatpush1.bf16.msra.mxu0 %v12735
    %13370 = vmatprep.subr.bf16.mxu0 %v12740
    %13371 = vmatpush1.bf16.msra.mxu0 %v12739
    %13372 = vmatprep.subr.bf16.mxu0 %v12744
    %13373 = vmatpush1.bf16.msra.mxu0 %v12743
    %13374 = vmatprep.subr.bf16.mxu0 %v12748
    %13375 = vmatpush1.bf16.msra.mxu0 %v12747
    %13376 = vmatprep.subr.bf16.mxu0 %v12752
    %13377 = vmatpush1.bf16.msra.mxu0 %v12751
    %13378 = vmatprep.subr.bf16.mxu0 %v12756
    %13379 = vmatpush1.bf16.msra.mxu0 %v12755
    %13380 = vmatprep.subr.bf16.mxu0 %v12760
    %13381 = vmatpush1.bf16.msra.mxu0 %v12759
    %13382 = vmatprep.mubr.bf16.mxu0 %v11582
    %13383 = vmatmul.mubr.bf16.gmra.mrb[0].mxu0 %v11581
    %v13384 = vpop.f32.mrb[0].mxu0
    %v13385 = vadd.f32 %v13344, %v13384
    %v13386 = vpop.f32.mrb[0].mxu0
    %v13387 = vadd.f32 %v13346, %v13386
    %v13388 = vpop.f32.mrb[0].mxu0
    %v13389 = vpop.f32.mrb[0].mxu0
    %13390 = vdwg.mxu0
    %13391 = vmatprep.subr.bf16.mxu0 %v12764
    %13392 = vmatpush1.bf16.msra.mxu0 %v12763
    %13393 = vmatprep.subr.bf16.mxu0 %v12768
    %13394 = vmatpush1.bf16.msra.mxu0 %v12767
    %13395 = vmatprep.subr.bf16.mxu0 %v12772
    %13396 = vmatpush1.bf16.msra.mxu0 %v12771
    %13397 = vmatprep.subr.bf16.mxu0 %v12776
    %13398 = vmatpush1.bf16.msra.mxu0 %v12775
    %13399 = vmatprep.subr.bf16.mxu0 %v12780
    %13400 = vmatpush1.bf16.msra.mxu0 %v12779
    %13401 = vmatprep.subr.bf16.mxu0 %v12784
    %13402 = vmatpush1.bf16.msra.mxu0 %v12783
    %13403 = vmatprep.subr.bf16.mxu0 %v12788
    %13404 = vmatpush1.bf16.msra.mxu0 %v12787
    %13405 = vmatprep.subr.bf16.mxu0 %v12792
    %13406 = vmatpush1.bf16.msra.mxu0 %v12791
    %13407 = vmatprep.subr.bf16.mxu0 %v12796
    %13408 = vmatpush1.bf16.msra.mxu0 %v12795
    %13409 = vmatprep.subr.bf16.mxu0 %v12800
    %13410 = vmatpush1.bf16.msra.mxu0 %v12799
    %13411 = vmatprep.subr.bf16.mxu0 %v12804
    %13412 = vmatpush1.bf16.msra.mxu0 %v12803
    %13413 = vmatprep.subr.bf16.mxu0 %v12808
    %13414 = vmatpush1.bf16.msra.mxu0 %v12807
    %13415 = vmatprep.subr.bf16.mxu0 %v12812
    %13416 = vmatpush1.bf16.msra.mxu0 %v12811
    %13417 = vmatprep.subr.bf16.mxu0 %v12816
    %13418 = vmatpush1.bf16.msra.mxu0 %v12815
    %13419 = vmatprep.subr.bf16.mxu0 %v12820
    %13420 = vmatpush1.bf16.msra.mxu0 %v12819
    %13421 = vmatprep.subr.bf16.mxu0 %v12824
    %13422 = vmatpush1.bf16.msra.mxu0 %v12823
    %13423 = vmatprep.mubr.bf16.mxu0 %v11584
    %13424 = vmatmul.mubr.bf16.gmra.mrb[0].mxu0 %v11583
    %v13425 = vpop.f32.mrb[0].mxu0
    %v13426 = vadd.f32 %v13385, %v13425
    %v13427 = vpop.f32.mrb[0].mxu0
    %v13428 = vadd.f32 %v13387, %v13427
    %v13429 = vpop.f32.mrb[0].mxu0
    %v13430 = vpop.f32.mrb[0].mxu0
    %13431 = vdwg.mxu0
    %13432 = vmatprep.subr.bf16.mxu0 %v12828
    %13433 = vmatpush1.bf16.msra.mxu0 %v12827
    %13434 = vmatprep.subr.bf16.mxu0 %v12832
    %13435 = vmatpush1.bf16.msra.mxu0 %v12831
    %13436 = vmatprep.subr.bf16.mxu0 %v12836
    %13437 = vmatpush1.bf16.msra.mxu0 %v12835
    %13438 = vmatprep.subr.bf16.mxu0 %v12840
    %13439 = vmatpush1.bf16.msra.mxu0 %v12839
    %13440 = vmatprep.subr.bf16.mxu0 %v12844
    %13441 = vmatpush1.bf16.msra.mxu0 %v12843
    %13442 = vmatprep.subr.bf16.mxu0 %v12848
    %13443 = vmatpush1.bf16.msra.mxu0 %v12847
    %13444 = vmatprep.subr.bf16.mxu0 %v12852
    %13445 = vmatpush1.bf16.msra.mxu0 %v12851
    %13446 = vmatprep.subr.bf16.mxu0 %v12856
    %13447 = vmatpush1.bf16.msra.mxu0 %v12855
    %13448 = vmatprep.subr.bf16.mxu0 %v12860
    %13449 = vmatpush1.bf16.msra.mxu0 %v12859
    %13450 = vmatprep.subr.bf16.mxu0 %v12864
    %13451 = vmatpush1.bf16.msra.mxu0 %v12863
    %13452 = vmatprep.subr.bf16.mxu0 %v12868
    %13453 = vmatpush1.bf16.msra.mxu0 %v12867
    %13454 = vmatprep.subr.bf16.mxu0 %v12872
    %13455 = vmatpush1.bf16.msra.mxu0 %v12871
    %13456 = vmatprep.subr.bf16.mxu0 %v12876
    %13457 = vmatpush1.bf16.msra.mxu0 %v12875
    %13458 = vmatprep.subr.bf16.mxu0 %v12880
    %13459 = vmatpush1.bf16.msra.mxu0 %v12879
    %13460 = vmatprep.subr.bf16.mxu0 %v12884
    %13461 = vmatpush1.bf16.msra.mxu0 %v12883
    %13462 = vmatprep.subr.bf16.mxu0 %v12888
    %13463 = vmatpush1.bf16.msra.mxu0 %v12887
    %13464 = vmatprep.mubr.bf16.mxu0 %v11586
    %13465 = vmatmul.mubr.bf16.gmra.mrb[0].mxu0 %v11585
    %v13466 = vpop.f32.mrb[0].mxu0
    %v13467 = vadd.f32 %v13426, %v13466
    %v13468 = vpop.f32.mrb[0].mxu0
    %v13469 = vadd.f32 %v13428, %v13468
    %v13470 = vpop.f32.mrb[0].mxu0
    %v13471 = vpop.f32.mrb[0].mxu0
    %13472 = vdwg.mxu0
    %vm13473 = vcmp.ge.f32.partialorder %v13303, 0.0
    %vm13474 = vcmp.ge.f32.partialorder %v13305, 0.0
    %vm13475 = vcmp.ge.f32.partialorder %v13467, 0.0
    %vm13476 = vcmp.ge.f32.partialorder %v13469, 0.0
    %v13477 = vmul.f32 %v13303, 0.01
    %v13478 = vmul.f32 %v13305, 0.01
    %v13479 = vmul.f32 %v13467, 0.01
    %v13480 = vmul.f32 %v13469, 0.01
    %v13481 = vsel %vm13473, %v13303, %v13477
    %v13482 = vsel %vm13474, %v13305, %v13478
    %v13483 = vsel %vm13475, %v13467, %v13479
    %v13484 = vsel %vm13476, %v13469, %v13480
    %v13485 = vpack.c.bf16 %v13481, %v13481
    %v13486 = vpack.c.bf16 %v13482, %v13482
    %v13487 = vpack.c.bf16 %v13483, %v13483
    %v13488 = vpack.c.bf16 %v13484, %v13484
    %v13489 = vld [vmem:[#allocation12] sm:$0xff]
    %v13490 = vld [vmem:[#allocation12 + $0x8] sm:$0xff]
    %v13491 = vld [vmem:[#allocation12 + $0x10] sm:$0xff]
    %v13492 = vld [vmem:[#allocation12 + $0x18] sm:$0xff]
    %v13493 = vld [vmem:[#allocation12 + $0x20] sm:$0xff]
    %v13494 = vld [vmem:[#allocation12 + $0x28] sm:$0xff]
    %v13495 = vld [vmem:[#allocation12 + $0x30] sm:$0xff]
    %v13496 = vld [vmem:[#allocation12 + $0x38] sm:$0xff]
    %v13497 = vld [vmem:[#allocation12 + $0x40] sm:$0xff]
    %v13498 = vld [vmem:[#allocation12 + $0x48] sm:$0xff]
    %v13499 = vld [vmem:[#allocation12 + $0x50] sm:$0xff]
    %v13500 = vld [vmem:[#allocation12 + $0x58] sm:$0xff]
    %v13501 = vld [vmem:[#allocation12 + $0x60] sm:$0xff]
    %v13502 = vld [vmem:[#allocation12 + $0x68] sm:$0xff]
    %v13503 = vld [vmem:[#allocation12 + $0x70] sm:$0xff]
    %v13504 = vld [vmem:[#allocation12 + $0x78] sm:$0xff]
    %v13505 = vld [vmem:[#allocation12 + $0x80] sm:$0xff]
    %v13506 = vld [vmem:[#allocation12 + $0x88] sm:$0xff]
    %v13507 = vld [vmem:[#allocation12 + $0x90] sm:$0xff]
    %v13508 = vld [vmem:[#allocation12 + $0x98] sm:$0xff]
    %v13509 = vld [vmem:[#allocation12 + $0xa0] sm:$0xff]
    %v13510 = vld [vmem:[#allocation12 + $0xa8] sm:$0xff]
    %v13511 = vld [vmem:[#allocation12 + $0xb0] sm:$0xff]
    %v13512 = vld [vmem:[#allocation12 + $0xb8] sm:$0xff]
    %v13513 = vld [vmem:[#allocation12 + $0xc0] sm:$0xff]
    %v13514 = vld [vmem:[#allocation12 + $0xc8] sm:$0xff]
    %v13515 = vld [vmem:[#allocation12 + $0xd0] sm:$0xff]
    %v13516 = vld [vmem:[#allocation12 + $0xd8] sm:$0xff]
    %v13517 = vld [vmem:[#allocation12 + $0xe0] sm:$0xff]
    %v13518 = vld [vmem:[#allocation12 + $0xe8] sm:$0xff]
    %v13519 = vld [vmem:[#allocation12 + $0xf0] sm:$0xff]
    %v13520 = vld [vmem:[#allocation12 + $0xf8] sm:$0xff]
    %v13521 = vld [vmem:[#allocation12 + $0x100] sm:$0xff]
    %v13522 = vld [vmem:[#allocation12 + $0x108] sm:$0xff]
    %v13523 = vld [vmem:[#allocation12 + $0x110] sm:$0xff]
    %v13524 = vld [vmem:[#allocation12 + $0x118] sm:$0xff]
    %v13525 = vld [vmem:[#allocation12 + $0x120] sm:$0xff]
    %v13526 = vld [vmem:[#allocation12 + $0x128] sm:$0xff]
    %v13527 = vld [vmem:[#allocation12 + $0x130] sm:$0xff]
    %v13528 = vld [vmem:[#allocation12 + $0x138] sm:$0xff]
    %v13529 = vld [vmem:[#allocation12 + $0x140] sm:$0xff]
    %v13530 = vld [vmem:[#allocation12 + $0x148] sm:$0xff]
    %v13531 = vld [vmem:[#allocation12 + $0x150] sm:$0xff]
    %v13532 = vld [vmem:[#allocation12 + $0x158] sm:$0xff]
    %v13533 = vld [vmem:[#allocation12 + $0x160] sm:$0xff]
    %v13534 = vld [vmem:[#allocation12 + $0x168] sm:$0xff]
    %v13535 = vld [vmem:[#allocation12 + $0x170] sm:$0xff]
    %v13536 = vld [vmem:[#allocation12 + $0x178] sm:$0xff]
    %v13537 = vld [vmem:[#allocation12 + $0x180] sm:$0xff]
    %v13538 = vld [vmem:[#allocation12 + $0x188] sm:$0xff]
    %v13539 = vld [vmem:[#allocation12 + $0x190] sm:$0xff]
    %v13540 = vld [vmem:[#allocation12 + $0x198] sm:$0xff]
    %v13541 = vld [vmem:[#allocation12 + $0x1a0] sm:$0xff]
    %v13542 = vld [vmem:[#allocation12 + $0x1a8] sm:$0xff]
    %v13543 = vld [vmem:[#allocation12 + $0x1b0] sm:$0xff]
    %v13544 = vld [vmem:[#allocation12 + $0x1b8] sm:$0xff]
    %v13545 = vld [vmem:[#allocation12 + $0x1c0] sm:$0xff]
    %v13546 = vld [vmem:[#allocation12 + $0x1c8] sm:$0xff]
    %v13547 = vld [vmem:[#allocation12 + $0x1d0] sm:$0xff]
    %v13548 = vld [vmem:[#allocation12 + $0x1d8] sm:$0xff]
    %v13549 = vld [vmem:[#allocation12 + $0x1e0] sm:$0xff]
    %v13550 = vld [vmem:[#allocation12 + $0x1e8] sm:$0xff]
    %v13551 = vld [vmem:[#allocation12 + $0x1f0] sm:$0xff]
    %v13552 = vld [vmem:[#allocation12 + $0x1f8] sm:$0xff]
    %v13553 = vld [vmem:[#allocation13] sm:$0x3]
    %v13555 = vlaneseq
    %v13556 = vshrl.u32 %v13555, 7
    %v13557 = vsub.s32 0, %v13556
    %v13558 = vrot.slane %v13553, %v13557
    %v13559 = vlaneseq
    %v13560 = vshrl.u32 %v13559, 7
    %v13561 = vsub.s32 1, %v13560
    %v13562 = vrot.slane %v13553, %v13561
    %v13629 = vunpack.c.l.b16 %v13489
    %v13630 = vunpack.c.h.b16 %v13489
    %v13631 = vunpack.c.l.b16 %v13490
    %v13632 = vunpack.c.h.b16 %v13490
    %v13633 = vunpack.c.l.b16 %v13491
    %v13634 = vunpack.c.h.b16 %v13491
    %v13635 = vunpack.c.l.b16 %v13492
    %v13636 = vunpack.c.h.b16 %v13492
    %v13637 = vunpack.c.l.b16 %v13493
    %v13638 = vunpack.c.h.b16 %v13493
    %v13639 = vunpack.c.l.b16 %v13494
    %v13640 = vunpack.c.h.b16 %v13494
    %v13641 = vunpack.c.l.b16 %v13495
    %v13642 = vunpack.c.h.b16 %v13495
    %v13643 = vunpack.c.l.b16 %v13496
    %v13644 = vunpack.c.h.b16 %v13496
    %v13645 = vunpack.c.l.b16 %v13497
    %v13646 = vunpack.c.h.b16 %v13497
    %v13647 = vunpack.c.l.b16 %v13498
    %v13648 = vunpack.c.h.b16 %v13498
    %v13649 = vunpack.c.l.b16 %v13499
    %v13650 = vunpack.c.h.b16 %v13499
    %v13651 = vunpack.c.l.b16 %v13500
    %v13652 = vunpack.c.h.b16 %v13500
    %v13653 = vunpack.c.l.b16 %v13501
    %v13654 = vunpack.c.h.b16 %v13501
    %v13655 = vunpack.c.l.b16 %v13502
    %v13656 = vunpack.c.h.b16 %v13502
    %v13657 = vunpack.c.l.b16 %v13503
    %v13658 = vunpack.c.h.b16 %v13503
    %v13659 = vunpack.c.l.b16 %v13504
    %v13660 = vunpack.c.h.b16 %v13504
    %v13661 = vunpack.c.l.b16 %v13505
    %v13662 = vunpack.c.h.b16 %v13505
    %v13663 = vunpack.c.l.b16 %v13506
    %v13664 = vunpack.c.h.b16 %v13506
    %v13665 = vunpack.c.l.b16 %v13507
    %v13666 = vunpack.c.h.b16 %v13507
    %v13667 = vunpack.c.l.b16 %v13508
    %v13668 = vunpack.c.h.b16 %v13508
    %v13669 = vunpack.c.l.b16 %v13509
    %v13670 = vunpack.c.h.b16 %v13509
    %v13671 = vunpack.c.l.b16 %v13510
    %v13672 = vunpack.c.h.b16 %v13510
    %v13673 = vunpack.c.l.b16 %v13511
    %v13674 = vunpack.c.h.b16 %v13511
    %v13675 = vunpack.c.l.b16 %v13512
    %v13676 = vunpack.c.h.b16 %v13512
    %v13677 = vunpack.c.l.b16 %v13513
    %v13678 = vunpack.c.h.b16 %v13513
    %v13679 = vunpack.c.l.b16 %v13514
    %v13680 = vunpack.c.h.b16 %v13514
    %v13681 = vunpack.c.l.b16 %v13515
    %v13682 = vunpack.c.h.b16 %v13515
    %v13683 = vunpack.c.l.b16 %v13516
    %v13684 = vunpack.c.h.b16 %v13516
    %v13685 = vunpack.c.l.b16 %v13517
    %v13686 = vunpack.c.h.b16 %v13517
    %v13687 = vunpack.c.l.b16 %v13518
    %v13688 = vunpack.c.h.b16 %v13518
    %v13689 = vunpack.c.l.b16 %v13519
    %v13690 = vunpack.c.h.b16 %v13519
    %v13691 = vunpack.c.l.b16 %v13520
    %v13692 = vunpack.c.h.b16 %v13520
    %v13693 = vunpack.c.l.b16 %v13521
    %v13694 = vunpack.c.h.b16 %v13521
    %v13695 = vunpack.c.l.b16 %v13522
    %v13696 = vunpack.c.h.b16 %v13522
    %v13697 = vunpack.c.l.b16 %v13523
    %v13698 = vunpack.c.h.b16 %v13523
    %v13699 = vunpack.c.l.b16 %v13524
    %v13700 = vunpack.c.h.b16 %v13524
    %v13701 = vunpack.c.l.b16 %v13525
    %v13702 = vunpack.c.h.b16 %v13525
    %v13703 = vunpack.c.l.b16 %v13526
    %v13704 = vunpack.c.h.b16 %v13526
    %v13705 = vunpack.c.l.b16 %v13527
    %v13706 = vunpack.c.h.b16 %v13527
    %v13707 = vunpack.c.l.b16 %v13528
    %v13708 = vunpack.c.h.b16 %v13528
    %v13709 = vunpack.c.l.b16 %v13529
    %v13710 = vunpack.c.h.b16 %v13529
    %v13711 = vunpack.c.l.b16 %v13530
    %v13712 = vunpack.c.h.b16 %v13530
    %v13713 = vunpack.c.l.b16 %v13531
    %v13714 = vunpack.c.h.b16 %v13531
    %v13715 = vunpack.c.l.b16 %v13532
    %v13716 = vunpack.c.h.b16 %v13532
    %v13717 = vunpack.c.l.b16 %v13533
    %v13718 = vunpack.c.h.b16 %v13533
    %v13719 = vunpack.c.l.b16 %v13534
    %v13720 = vunpack.c.h.b16 %v13534
    %v13721 = vunpack.c.l.b16 %v13535
    %v13722 = vunpack.c.h.b16 %v13535
    %v13723 = vunpack.c.l.b16 %v13536
    %v13724 = vunpack.c.h.b16 %v13536
    %v13725 = vunpack.c.l.b16 %v13537
    %v13726 = vunpack.c.h.b16 %v13537
    %v13727 = vunpack.c.l.b16 %v13538
    %v13728 = vunpack.c.h.b16 %v13538
    %v13729 = vunpack.c.l.b16 %v13539
    %v13730 = vunpack.c.h.b16 %v13539
    %v13731 = vunpack.c.l.b16 %v13540
    %v13732 = vunpack.c.h.b16 %v13540
    %v13733 = vunpack.c.l.b16 %v13541
    %v13734 = vunpack.c.h.b16 %v13541
    %v13735 = vunpack.c.l.b16 %v13542
    %v13736 = vunpack.c.h.b16 %v13542
    %v13737 = vunpack.c.l.b16 %v13543
    %v13738 = vunpack.c.h.b16 %v13543
    %v13739 = vunpack.c.l.b16 %v13544
    %v13740 = vunpack.c.h.b16 %v13544
    %v13741 = vunpack.c.l.b16 %v13545
    %v13742 = vunpack.c.h.b16 %v13545
    %v13743 = vunpack.c.l.b16 %v13546
    %v13744 = vunpack.c.h.b16 %v13546
    %v13745 = vunpack.c.l.b16 %v13547
    %v13746 = vunpack.c.h.b16 %v13547
    %v13747 = vunpack.c.l.b16 %v13548
    %v13748 = vunpack.c.h.b16 %v13548
    %v13749 = vunpack.c.l.b16 %v13549
    %v13750 = vunpack.c.h.b16 %v13549
    %v13751 = vunpack.c.l.b16 %v13550
    %v13752 = vunpack.c.h.b16 %v13550
    %v13753 = vunpack.c.l.b16 %v13551
    %v13754 = vunpack.c.h.b16 %v13551
    %v13755 = vunpack.c.l.b16 %v13552
    %v13756 = vunpack.c.h.b16 %v13552
    %v13757 = vpack.c.b16 %v13631, %v13629
    %v13758 = vpack.c.b16 %v13632, %v13630
    %v13759 = vpack.c.b16 %v13635, %v13633
    %v13760 = vpack.c.b16 %v13636, %v13634
    %v13761 = vpack.c.b16 %v13639, %v13637
    %v13762 = vpack.c.b16 %v13640, %v13638
    %v13763 = vpack.c.b16 %v13643, %v13641
    %v13764 = vpack.c.b16 %v13644, %v13642
    %v13765 = vpack.c.b16 %v13647, %v13645
    %v13766 = vpack.c.b16 %v13648, %v13646
    %v13767 = vpack.c.b16 %v13651, %v13649
    %v13768 = vpack.c.b16 %v13652, %v13650
    %v13769 = vpack.c.b16 %v13655, %v13653
    %v13770 = vpack.c.b16 %v13656, %v13654
    %v13771 = vpack.c.b16 %v13659, %v13657
    %v13772 = vpack.c.b16 %v13660, %v13658
    %v13773 = vpack.c.b16 %v13663, %v13661
    %v13774 = vpack.c.b16 %v13664, %v13662
    %v13775 = vpack.c.b16 %v13667, %v13665
    %v13776 = vpack.c.b16 %v13668, %v13666
    %v13777 = vpack.c.b16 %v13671, %v13669
    %v13778 = vpack.c.b16 %v13672, %v13670
    %v13779 = vpack.c.b16 %v13675, %v13673
    %v13780 = vpack.c.b16 %v13676, %v13674
    %v13781 = vpack.c.b16 %v13679, %v13677
    %v13782 = vpack.c.b16 %v13680, %v13678
    %v13783 = vpack.c.b16 %v13683, %v13681
    %v13784 = vpack.c.b16 %v13684, %v13682
    %v13785 = vpack.c.b16 %v13687, %v13685
    %v13786 = vpack.c.b16 %v13688, %v13686
    %v13787 = vpack.c.b16 %v13691, %v13689
    %v13788 = vpack.c.b16 %v13692, %v13690
    %v13789 = vpack.c.b16 %v13695, %v13693
    %v13790 = vpack.c.b16 %v13696, %v13694
    %v13791 = vpack.c.b16 %v13699, %v13697
    %v13792 = vpack.c.b16 %v13700, %v13698
    %v13793 = vpack.c.b16 %v13703, %v13701
    %v13794 = vpack.c.b16 %v13704, %v13702
    %v13795 = vpack.c.b16 %v13707, %v13705
    %v13796 = vpack.c.b16 %v13708, %v13706
    %v13797 = vpack.c.b16 %v13711, %v13709
    %v13798 = vpack.c.b16 %v13712, %v13710
    %v13799 = vpack.c.b16 %v13715, %v13713
    %v13800 = vpack.c.b16 %v13716, %v13714
    %v13801 = vpack.c.b16 %v13719, %v13717
    %v13802 = vpack.c.b16 %v13720, %v13718
    %v13803 = vpack.c.b16 %v13723, %v13721
    %v13804 = vpack.c.b16 %v13724, %v13722
    %v13805 = vpack.c.b16 %v13727, %v13725
    %v13806 = vpack.c.b16 %v13728, %v13726
    %v13807 = vpack.c.b16 %v13731, %v13729
    %v13808 = vpack.c.b16 %v13732, %v13730
    %v13809 = vpack.c.b16 %v13735, %v13733
    %v13810 = vpack.c.b16 %v13736, %v13734
    %v13811 = vpack.c.b16 %v13739, %v13737
    %v13812 = vpack.c.b16 %v13740, %v13738
    %v13813 = vpack.c.b16 %v13743, %v13741
    %v13814 = vpack.c.b16 %v13744, %v13742
    %v13815 = vpack.c.b16 %v13747, %v13745
    %v13816 = vpack.c.b16 %v13748, %v13746
    %v13817 = vpack.c.b16 %v13751, %v13749
    %v13818 = vpack.c.b16 %v13752, %v13750
    %v13819 = vpack.c.b16 %v13755, %v13753
    %v13820 = vpack.c.b16 %v13756, %v13754
    %13885 = vmatprep.subr.bf16.mxu0 %v13758
    %13886 = vmatpush1.bf16.msra.mxu0 %v13757
    %13887 = vmatprep.subr.bf16.mxu0 %v13760
    %13888 = vmatpush1.bf16.msra.mxu0 %v13759
    %13889 = vmatprep.subr.bf16.mxu0 %v13762
    %13890 = vmatpush1.bf16.msra.mxu0 %v13761
    %13891 = vmatprep.subr.bf16.mxu0 %v13764
    %13892 = vmatpush1.bf16.msra.mxu0 %v13763
    %13893 = vmatprep.subr.bf16.mxu0 %v13766
    %13894 = vmatpush1.bf16.msra.mxu0 %v13765
    %13895 = vmatprep.subr.bf16.mxu0 %v13768
    %13896 = vmatpush1.bf16.msra.mxu0 %v13767
    %13897 = vmatprep.subr.bf16.mxu0 %v13770
    %13898 = vmatpush1.bf16.msra.mxu0 %v13769
    %13899 = vmatprep.subr.bf16.mxu0 %v13772
    %13900 = vmatpush1.bf16.msra.mxu0 %v13771
    %13901 = vmatprep.subr.bf16.mxu0 %v13774
    %13902 = vmatpush1.bf16.msra.mxu0 %v13773
    %13903 = vmatprep.subr.bf16.mxu0 %v13776
    %13904 = vmatpush1.bf16.msra.mxu0 %v13775
    %13905 = vmatprep.subr.bf16.mxu0 %v13778
    %13906 = vmatpush1.bf16.msra.mxu0 %v13777
    %13907 = vmatprep.subr.bf16.mxu0 %v13780
    %13908 = vmatpush1.bf16.msra.mxu0 %v13779
    %13909 = vmatprep.subr.bf16.mxu0 %v13782
    %13910 = vmatpush1.bf16.msra.mxu0 %v13781
    %13911 = vmatprep.subr.bf16.mxu0 %v13784
    %13912 = vmatpush1.bf16.msra.mxu0 %v13783
    %13913 = vmatprep.subr.bf16.mxu0 %v13786
    %13914 = vmatpush1.bf16.msra.mxu0 %v13785
    %13915 = vmatprep.subr.bf16.mxu0 %v13788
    %13916 = vmatpush1.bf16.msra.mxu0 %v13787
    %13917 = vmatprep.mubr.bf16.mxu0 %v13486
    %13918 = vmatmul.mubr.bf16.gmra.mrb[0].mxu0 %v13485
    %v13919 = vpop.f32.mrb[0].mxu0
    %v13920 = vadd.f32 %v13558, %v13919
    %v13921 = vpop.f32.mrb[0].mxu0
    %v13922 = vadd.f32 %v13562, %v13921
    %v13923 = vpop.f32.mrb[0].mxu0
    %v13924 = vpop.f32.mrb[0].mxu0
    %13925 = vdwg.mxu0
    %13926 = vmatprep.subr.bf16.mxu0 %v13790
    %13927 = vmatpush1.bf16.msra.mxu0 %v13789
    %13928 = vmatprep.subr.bf16.mxu0 %v13792
    %13929 = vmatpush1.bf16.msra.mxu0 %v13791
    %13930 = vmatprep.subr.bf16.mxu0 %v13794
    %13931 = vmatpush1.bf16.msra.mxu0 %v13793
    %13932 = vmatprep.subr.bf16.mxu0 %v13796
    %13933 = vmatpush1.bf16.msra.mxu0 %v13795
    %13934 = vmatprep.subr.bf16.mxu0 %v13798
    %13935 = vmatpush1.bf16.msra.mxu0 %v13797
    %13936 = vmatprep.subr.bf16.mxu0 %v13800
    %13937 = vmatpush1.bf16.msra.mxu0 %v13799
    %13938 = vmatprep.subr.bf16.mxu0 %v13802
    %13939 = vmatpush1.bf16.msra.mxu0 %v13801
    %13940 = vmatprep.subr.bf16.mxu0 %v13804
    %13941 = vmatpush1.bf16.msra.mxu0 %v13803
    %13942 = vmatprep.subr.bf16.mxu0 %v13806
    %13943 = vmatpush1.bf16.msra.mxu0 %v13805
    %13944 = vmatprep.subr.bf16.mxu0 %v13808
    %13945 = vmatpush1.bf16.msra.mxu0 %v13807
    %13946 = vmatprep.subr.bf16.mxu0 %v13810
    %13947 = vmatpush1.bf16.msra.mxu0 %v13809
    %13948 = vmatprep.subr.bf16.mxu0 %v13812
    %13949 = vmatpush1.bf16.msra.mxu0 %v13811
    %13950 = vmatprep.subr.bf16.mxu0 %v13814
    %13951 = vmatpush1.bf16.msra.mxu0 %v13813
    %13952 = vmatprep.subr.bf16.mxu0 %v13816
    %13953 = vmatpush1.bf16.msra.mxu0 %v13815
    %13954 = vmatprep.subr.bf16.mxu0 %v13818
    %13955 = vmatpush1.bf16.msra.mxu0 %v13817
    %13956 = vmatprep.subr.bf16.mxu0 %v13820
    %13957 = vmatpush1.bf16.msra.mxu0 %v13819
    %13958 = vmatprep.mubr.bf16.mxu0 %v13488
    %13959 = vmatmul.mubr.bf16.gmra.mrb[0].mxu0 %v13487
    %v13960 = vpop.f32.mrb[0].mxu0
    %v13961 = vadd.f32 %v13920, %v13960
    %v13962 = vpop.f32.mrb[0].mxu0
    %v13963 = vadd.f32 %v13922, %v13962
    %v13964 = vpop.f32.mrb[0].mxu0
    %v13965 = vpop.f32.mrb[0].mxu0
    %13966 = vdwg.mxu0
    %vm13967 = vcmp.ge.f32.partialorder %v13961, 0.0
    %vm13968 = vcmp.ge.f32.partialorder %v13963, 0.0
    %v13969 = vmul.f32 %v13961, 0.01
    %v13970 = vmul.f32 %v13963, 0.01
    %v13971 = vsel %vm13967, %v13961, %v13969
    %v13972 = vsel %vm13968, %v13963, %v13970
    %v13973 = vpack.c.bf16 %v13971, %v13971
    %v13974 = vpack.c.bf16 %v13972, %v13972
    %v13975 = vld [vmem:[#allocation15] sm:$0xf]
    %v13976 = vld [vmem:[#allocation15 + $0x4] sm:$0xf]
    %v13977 = vld [vmem:[#allocation15 + $0x8] sm:$0xf]
    %v13978 = vld [vmem:[#allocation15 + $0xc] sm:$0xf]
    %v13979 = vld [vmem:[#allocation15 + $0x10] sm:$0xf]
    %v13980 = vld [vmem:[#allocation15 + $0x14] sm:$0xf]
    %v13981 = vld [vmem:[#allocation15 + $0x18] sm:$0xf]
    %v13982 = vld [vmem:[#allocation15 + $0x1c] sm:$0xf]
    %v13983 = vld [vmem:[#allocation15 + $0x20] sm:$0xf]
    %v13984 = vld [vmem:[#allocation15 + $0x24] sm:$0xf]
    %v13985 = vld [vmem:[#allocation15 + $0x28] sm:$0xf]
    %v13986 = vld [vmem:[#allocation15 + $0x2c] sm:$0xf]
    %v13987 = vld [vmem:[#allocation15 + $0x30] sm:$0xf]
    %v13988 = vld [vmem:[#allocation15 + $0x34] sm:$0xf]
    %v13989 = vld [vmem:[#allocation15 + $0x38] sm:$0xf]
    %v13990 = vld [vmem:[#allocation15 + $0x3c] sm:$0xf]
    %v13991 = vld [vmem:[#allocation15 + $0x40] sm:$0xf]
    %v13992 = vld [vmem:[#allocation15 + $0x44] sm:$0xf]
    %v13993 = vld [vmem:[#allocation15 + $0x48] sm:$0xf]
    %v13994 = vld [vmem:[#allocation15 + $0x4c] sm:$0xf]
    %v13995 = vld [vmem:[#allocation15 + $0x50] sm:$0xf]
    %v13996 = vld [vmem:[#allocation15 + $0x54] sm:$0xf]
    %v13997 = vld [vmem:[#allocation15 + $0x58] sm:$0xf]
    %v13998 = vld [vmem:[#allocation15 + $0x5c] sm:$0xf]
    %v13999 = vld [vmem:[#allocation15 + $0x60] sm:$0xf]
    %v14000 = vld [vmem:[#allocation15 + $0x64] sm:$0xf]
    %v14001 = vld [vmem:[#allocation15 + $0x68] sm:$0xf]
    %v14002 = vld [vmem:[#allocation15 + $0x6c] sm:$0xf]
    %v14003 = vld [vmem:[#allocation15 + $0x70] sm:$0xf]
    %v14004 = vld [vmem:[#allocation15 + $0x74] sm:$0xf]
    %v14005 = vld [vmem:[#allocation15 + $0x78] sm:$0xf]
    %v14006 = vld [vmem:[#allocation15 + $0x7c] sm:$0xf]
    %v14007 = vld [vmem:[#allocation16] sm:$0x1]
    %v14009 = vlaneseq
    %v14010 = vshrl.u32 %v14009, 7
    %v14011 = vsub.s32 0, %v14010
    %v14012 = vrot.slane %v14007, %v14011
    %v14046 = vunpack.c.l.b16 %v13975
    %v14047 = vunpack.c.l.b16 %v13976
    %v14048 = vunpack.c.l.b16 %v13977
    %v14049 = vunpack.c.l.b16 %v13978
    %v14050 = vunpack.c.l.b16 %v13979
    %v14051 = vunpack.c.l.b16 %v13980
    %v14052 = vunpack.c.l.b16 %v13981
    %v14053 = vunpack.c.l.b16 %v13982
    %v14054 = vunpack.c.l.b16 %v13983
    %v14055 = vunpack.c.l.b16 %v13984
    %v14056 = vunpack.c.l.b16 %v13985
    %v14057 = vunpack.c.l.b16 %v13986
    %v14058 = vunpack.c.l.b16 %v13987
    %v14059 = vunpack.c.l.b16 %v13988
    %v14060 = vunpack.c.l.b16 %v13989
    %v14061 = vunpack.c.l.b16 %v13990
    %v14062 = vunpack.c.l.b16 %v13991
    %v14063 = vunpack.c.l.b16 %v13992
    %v14064 = vunpack.c.l.b16 %v13993
    %v14065 = vunpack.c.l.b16 %v13994
    %v14066 = vunpack.c.l.b16 %v13995
    %v14067 = vunpack.c.l.b16 %v13996
    %v14068 = vunpack.c.l.b16 %v13997
    %v14069 = vunpack.c.l.b16 %v13998
    %v14070 = vunpack.c.l.b16 %v13999
    %v14071 = vunpack.c.l.b16 %v14000
    %v14072 = vunpack.c.l.b16 %v14001
    %v14073 = vunpack.c.l.b16 %v14002
    %v14074 = vunpack.c.l.b16 %v14003
    %v14075 = vunpack.c.l.b16 %v14004
    %v14076 = vunpack.c.l.b16 %v14005
    %v14077 = vunpack.c.l.b16 %v14006
    %v14078 = vpack.c.b16 %v14047, %v14046
    %v14079 = vpack.c.b16 %v14049, %v14048
    %v14080 = vpack.c.b16 %v14051, %v14050
    %v14081 = vpack.c.b16 %v14053, %v14052
    %v14082 = vpack.c.b16 %v14055, %v14054
    %v14083 = vpack.c.b16 %v14057, %v14056
    %v14084 = vpack.c.b16 %v14059, %v14058
    %v14085 = vpack.c.b16 %v14061, %v14060
    %v14086 = vpack.c.b16 %v14063, %v14062
    %v14087 = vpack.c.b16 %v14065, %v14064
    %v14088 = vpack.c.b16 %v14067, %v14066
    %v14089 = vpack.c.b16 %v14069, %v14068
    %v14090 = vpack.c.b16 %v14071, %v14070
    %v14091 = vpack.c.b16 %v14073, %v14072
    %v14092 = vpack.c.b16 %v14075, %v14074
    %v14093 = vpack.c.b16 %v14077, %v14076
    %14110 = vmatprep.subr.bf16.mxu0 0
    %14111 = vmatpush1.bf16.msra.mxu0 %v14078
    %14112 = vmatprep.subr.bf16.mxu0 0
    %14113 = vmatpush1.bf16.msra.mxu0 %v14079
    %14114 = vmatprep.subr.bf16.mxu0 0
    %14115 = vmatpush1.bf16.msra.mxu0 %v14080
    %14116 = vmatprep.subr.bf16.mxu0 0
    %14117 = vmatpush1.bf16.msra.mxu0 %v14081
    %14118 = vmatprep.subr.bf16.mxu0 0
    %14119 = vmatpush1.bf16.msra.mxu0 %v14082
    %14120 = vmatprep.subr.bf16.mxu0 0
    %14121 = vmatpush1.bf16.msra.mxu0 %v14083
    %14122 = vmatprep.subr.bf16.mxu0 0
    %14123 = vmatpush1.bf16.msra.mxu0 %v14084
    %14124 = vmatprep.subr.bf16.mxu0 0
    %14125 = vmatpush1.bf16.msra.mxu0 %v14085
    %14126 = vmatprep.subr.bf16.mxu0 0
    %14127 = vmatpush1.bf16.msra.mxu0 %v14086
    %14128 = vmatprep.subr.bf16.mxu0 0
    %14129 = vmatpush1.bf16.msra.mxu0 %v14087
    %14130 = vmatprep.subr.bf16.mxu0 0
    %14131 = vmatpush1.bf16.msra.mxu0 %v14088
    %14132 = vmatprep.subr.bf16.mxu0 0
    %14133 = vmatpush1.bf16.msra.mxu0 %v14089
    %14134 = vmatprep.subr.bf16.mxu0 0
    %14135 = vmatpush1.bf16.msra.mxu0 %v14090
    %14136 = vmatprep.subr.bf16.mxu0 0
    %14137 = vmatpush1.bf16.msra.mxu0 %v14091
    %14138 = vmatprep.subr.bf16.mxu0 0
    %14139 = vmatpush1.bf16.msra.mxu0 %v14092
    %14140 = vmatprep.subr.bf16.mxu0 0
    %14141 = vmatpush1.bf16.msra.mxu0 %v14093
    %14142 = vmatprep.mubr.bf16.mxu0 %v13974
    %14143 = vmatmul.mubr.bf16.gmra.mrb[0].mxu0 %v13973
    %v14144 = vpop.f32.mrb[0].mxu0
    %v14145 = vadd.f32 %v14012, %v14144
    %v14146 = vpop.f32.mrb[0].mxu0
    %v14147 = vpop.f32.mrb[0].mxu0
    %v14148 = vpop.f32.mrb[0].mxu0
    %14149 = vdwg.mxu0
    %14150 = vst [vmem:[%s11] sm:$0xff] %v14145
    // Predicated region
    $region86: #{cnn_model_forward.1} parent=1 // pred_check
      _
    $region87: #{cnn_model_forward.1} parent=1 // pred_check_branch
      %14152 = sbr.rel (0) target = $region89
    $region88: #{cnn_model_forward.1} parent=1 // pred_region
      _
    $region89: #{cnn_model_forward.1} parent=1 // pred_fallthru
      _
    // Predicated region
    $region90: #{cnn_model_forward.1} parent=1 // pred_check
      _
    $region91: #{cnn_model_forward.1} parent=1 // pred_check_branch
      %14154 = sbr.rel (0) target = $region93
    $region92: #{cnn_model_forward.1} parent=1 // pred_region
      _
    $region93: #{cnn_model_forward.1} parent=1 // pred_fallthru
      _
    %14155 = vsyncpa [#allocation3], 1
    %14156 = vsyncpa [#allocation5], 1
    %14157 = vsyncpa [#allocation8], 1
    %14158 = vsyncpa [#allocation11], 1
    %14159 = vsyncpa [#allocation14], 1
    %14160 = vsyncpa [#allocation17], 1

</llo_original>
